<compile_context>
chip_gen: v6e
topology: v6e:2x2x1
jax: 0.10.0
libtpu: 0.0.40
codegen_flags: <defaults>
</compile_context>

<pallas_src>
import jax
import jax.numpy as jnp
from jax import lax
from jax.experimental import pallas as pl
from jax.experimental.pallas import tpu as pltpu


def _round_up(a, b):
    return (a + b - 1) // b * b


def _conv3x3_accumulate(acc_ref, pad_ref, w_ref, H, W, Wpad, C):
    """Accumulate a 3x3 'same' conv into acc_ref (f32, (H, W, C)).

    pad_ref: (H+2, Wpad, C) f32 VMEM scratch; rows 0 / H+1, column 0 and all
             columns >= W+1 are zero; the conv input sits at rows 1..H,
             columns 1..W.
    w_ref:   (9, C, C) bf16 taps, tap kh*3+kw in (Cin, Cout) layout.

    For each kw, the three kh contributions are summed at identical (aligned)
    offsets first (9 MXU matmuls on contiguous slab views — no per-tap input
    copies); the column shift is then applied once per kw on the f32 result.
    """
    for kw in range(3):
        part = None
        for kh in range(3):
            slab = pad_ref[pl.ds(kh, H), :, :]           # aligned view (H, Wpad, C)
            lhs = slab.reshape(H * Wpad, C).astype(jnp.bfloat16)
            contrib = jnp.dot(lhs, w_ref[kh * 3 + kw],
                              preferred_element_type=jnp.float32)
            part = contrib if part is None else part + contrib
        part3 = part.reshape(H, Wpad, C)
        acc_ref[...] += part3[:, kw:kw + W, :]           # shift once per kw


def mid_kernel(x_ref, s1_ref, b1_ref, b2_ref, w1_ref, w2_ref, o_ref,
               pad_ref, acc_ref):
    _, H, W, C = x_ref.shape
    Wpad = pad_ref.shape[1]

    s1 = s1_ref[0]
    b1 = b1_ref[0]
    b2 = b2_ref[0]

    # Zero only the border strips (interior writes below never touch them).
    # Re-zeroed every grid step so correctness does not depend on grid
    # scheduling; this is a small fraction of the old full-buffer zero fill.
    pad_ref[pl.ds(0, 1), :, :] = jnp.zeros((1, Wpad, C), jnp.float32)
    pad_ref[pl.ds(H + 1, 1), :, :] = jnp.zeros((1, Wpad, C), jnp.float32)
    pad_ref[pl.ds(0, H + 2), pl.ds(0, 1), :] = jnp.zeros((H + 2, 1, C), jnp.float32)
    pad_ref[pl.ds(0, H + 2), pl.ds(W + 1, Wpad - W - 1), :] = jnp.zeros(
        (H + 2, Wpad - W - 1, C), jnp.float32)

    # BatchNorm2d #1 (folded scale/bias) + LeakyReLU(0.01).
    y = x_ref[0].astype(jnp.float32) * s1 + b1
    y = jnp.where(y > 0, y, 0.01 * y)
    pad_ref[pl.ds(1, H), pl.ds(1, W), :] = y

    # Conv2d #1 (3x3, padding=1, no bias).  BN2's scale is pre-folded into the
    # output channels of w1 and its bias is the accumulator init, so acc ends
    # up holding  z = BN2(conv1(y)).
    acc_ref[...] = jnp.broadcast_to(b2[None, None, :], (H, W, C))
    _conv3x3_accumulate(acc_ref, pad_ref, w1_ref, H, W, Wpad, C)
    # TODO(synk): Dropout2d(0.5) is identity in eval mode; training-mode
    #             stochastic channel dropout is not reproduced here.

    # Conv2d #2 input (borders of pad_ref are still zero).
    pad_ref[pl.ds(1, H), pl.ds(1, W), :] = acc_ref[...]

    # Conv2d #2 with the residual folded into the accumulator init.
    acc_ref[...] = x_ref[0].astype(jnp.float32)
    _conv3x3_accumulate(acc_ref, pad_ref, w2_ref, H, W, Wpad, C)

    o_ref[0] = acc_ref[...].astype(o_ref.dtype)


def mid_forward(x_nchw, params):
    (g1, be1, m1, v1, w1, g2, be2, m2, v2, w2) = params
    eps = 1e-5
    s1 = g1 / jnp.sqrt(v1 + eps)
    b1 = be1 - m1 * s1
    s2 = g2 / jnp.sqrt(v2 + eps)
    b2 = be2 - m2 * s2

    x = jnp.transpose(x_nchw, (0, 2, 3, 1))          # NCHW -> NHWC
    N, H, W, C = x.shape
    Cp = _round_up(C, 128)                           # lane-dense channels
    Wpad = _round_up(W + 2, 8)                       # sublane-aligned scratch W

    # OIHW -> HWIO.  Fold BN2's per-channel scale into conv1's OUTPUT channels
    # (exact: the scale is applied after conv1 and before conv2's padding).
    w1_hwio = jnp.transpose(w1, (2, 3, 1, 0)) * s2[None, None, None, :]
    w2_hwio = jnp.transpose(w2, (2, 3, 1, 0))

    def prep_w(w_hwio):
        if Cp != C:
            w_full = jnp.zeros((3, 3, Cp, Cp), jnp.float32)
            w_full = w_full.at[:, :, :C, :C].set(w_hwio)
        else:
            w_full = w_hwio
        # tap-major (kh*3+kw) stack of (Cin, Cout) matrices, bf16 for the MXU.
        return w_full.reshape(9, Cp, Cp).astype(jnp.bfloat16)

    w1_t = prep_w(w1_hwio)
    w2_t = prep_w(w2_hwio)

    def prep_vec(v):
        if Cp != C:
            return jnp.zeros((1, Cp), jnp.float32).at[0, :C].set(v)
        return v.reshape(1, Cp).astype(jnp.float32)

    s1p, b1p, b2p = prep_vec(s1), prep_vec(b1), prep_vec(b2)

    if Cp != C:
        x_p = jnp.zeros((N, H, W, Cp), x.dtype).at[..., :C].set(x)
    else:
        x_p = x

    # VMEM budget derived from the actual buffers (+ headroom for matmul
    # product temporaries).
    xb = jnp.dtype(x_p.dtype).itemsize
    vmem_bytes = (
        2 * H * W * Cp * xb            # input block   (double-buffered)
        + 2 * H * W * Cp * xb          # output block  (double-buffered)
        + 2 * 9 * Cp * Cp * 2          # bf16 weights  (single-buffered)
        + 3 * 2 * Cp * 4               # per-channel vectors
        + (H + 2) * Wpad * Cp * 4      # zero-bordered input scratch
        + H * W * Cp * 4               # f32 accumulator scratch
        + 2 * H * Wpad * Cp * 4        # matmul product temporaries (headroom)
    )
    vmem_limit = int(min(max(vmem_bytes + (8 << 20), 32 << 20), 100 << 20))

    # Weights are grid-invariant: single-buffer them (double-buffering only
    # wastes VMEM since the pipeline never re-fetches an unchanged block).
    w_spec = pl.BlockSpec((9, Cp, Cp), lambda n: (0, 0, 0),
                          pipeline_mode=pl.Buffered(1))
    vec_spec = pl.BlockSpec((1, Cp), lambda n: (0, 0))

    out = pl.pallas_call(
        mid_kernel,
        out_shape=jax.ShapeDtypeStruct((N, H, W, Cp), x.dtype),
        grid_spec=pltpu.PrefetchScalarGridSpec(
            num_scalar_prefetch=0,
            grid=(N,),
            in_specs=[
                pl.BlockSpec((1, H, W, Cp), lambda n: (n, 0, 0, 0)),
                vec_spec, vec_spec, vec_spec,
                w_spec, w_spec,
            ],
            out_specs=pl.BlockSpec((1, H, W, Cp), lambda n: (n, 0, 0, 0)),
            scratch_shapes=[
                pltpu.VMEM((H + 2, Wpad, Cp), jnp.float32),   # zero-bordered input
                pltpu.VMEM((H, W, Cp), jnp.float32),          # f32 accumulator
            ],
        ),
        compiler_params=pltpu.CompilerParams(
            dimension_semantics=("parallel",),
            vmem_limit_bytes=vmem_limit,
        ),
    )(x_p, s1p, b1p, b2p, w1_t, w2_t)

    if Cp != C:
        out = out[..., :C]
    return jnp.transpose(out, (0, 3, 1, 2))          # NHWC -> NCHW


def mid_reference(x_nchw, params):
    """Pure-JAX reference (lax.conv, f32 HIGHEST) for correctness checking."""
    (g1, be1, m1, v1, w1, g2, be2, m2, v2, w2) = params
    eps = 1e-5
    s1 = g1 / jnp.sqrt(v1 + eps)
    b1 = be1 - m1 * s1
    s2 = g2 / jnp.sqrt(v2 + eps)
    b2 = be2 - m2 * s2

    x = jnp.transpose(x_nchw, (0, 2, 3, 1))
    w1_hwio = jnp.transpose(w1, (2, 3, 1, 0))
    w2_hwio = jnp.transpose(w2, (2, 3, 1, 0))
    dn = ('NHWC', 'HWIO', 'NHWC')

    y = x * s1 + b1
    y = jnp.where(y > 0, y, 0.01 * y)
    h1 = lax.conv_general_dilated(y, w1_hwio, (1, 1), 'SAME', dimension_numbers=dn,
                                  precision=lax.Precision.HIGHEST)
    z = h1 * s2 + b2
    h2 = lax.conv_general_dilated(z, w2_hwio, (1, 1), 'SAME', dimension_numbers=dn,
                                  precision=lax.Precision.HIGHEST)
    return jnp.transpose(x + h2, (0, 3, 1, 2))


def init_params(key, filters):
    ks = jax.random.split(key, 8)
    g1 = jax.random.uniform(ks[0], (filters,), jnp.float32, 0.5, 1.5)
    be1 = 0.1 * jax.random.normal(ks[1], (filters,), jnp.float32)
    m1 = 0.1 * jax.random.normal(ks[2], (filters,), jnp.float32)
    v1 = jax.random.uniform(ks[3], (filters,), jnp.float32, 0.5, 1.5)
    w1 = 0.1 * jax.random.normal(ks[4], (filters, filters, 3, 3), jnp.float32)
    g2 = jax.random.uniform(ks[5], (filters,), jnp.float32, 0.5, 1.5)
    be2 = 0.1 * jax.random.normal(ks[6], (filters,), jnp.float32)
    m2 = 0.1 * jax.random.normal(ks[7], (filters,), jnp.float32)
    v2 = jax.random.uniform(jax.random.fold_in(key, 99), (filters,), jnp.float32, 0.5, 1.5)
    w2 = 0.1 * jax.random.normal(jax.random.fold_in(key, 100),
                                 (filters, filters, 3, 3), jnp.float32)
    return (g1, be1, m1, v1, w1, g2, be2, m2, v2, w2)


if __name__ == "__main__":
    key = jax.random.PRNGKey(0)
    k_x, k_p = jax.random.split(key)

    N, C, H, W = 2, 4, 16, 16                  # small NCHW input
    x = jax.random.normal(k_x, (N, C, H, W), jnp.float32)
    params = init_params(k_p, C)

    out = jax.block_until_ready(mid_forward(x, params))
    ref = jax.block_until_ready(mid_reference(x, params))

    assert out.shape == (N, C, H, W)
    # MXU inputs are bf16 (with f32 accumulation), so compare against the
    # pure-f32 reference with a correspondingly relaxed tolerance.
    assert jnp.allclose(out, ref, atol=5e-2, rtol=5e-2), "mismatch vs JAX reference"

    print("KERNEL_OK")
</pallas_src>

<mosaic_0001>
module attributes {stable_mosaic.version = 11 : i64} {
  func.func @mid_kernel(%arg0: i32, %arg1: memref<1x16x16x128xf32, #tpu.memory_space<vmem>>, %arg2: memref<1x128xf32, #tpu.memory_space<vmem>>, %arg3: memref<1x128xf32, #tpu.memory_space<vmem>>, %arg4: memref<1x128xf32, #tpu.memory_space<vmem>>, %arg5: memref<9x128x128xbf16, #tpu.memory_space<vmem>>, %arg6: memref<9x128x128xbf16, #tpu.memory_space<vmem>>, %arg7: memref<1x16x16x128xf32, #tpu.memory_space<vmem>>, %arg8: memref<18x24x128xf32, #tpu.memory_space<vmem>>, %arg9: memref<16x16x128xf32, #tpu.memory_space<vmem>>) attributes {dimension_semantics = [#tpu.dimension_semantics<parallel>], iteration_bounds = array<i64: 2>, scalar_prefetch = 0 : i64, scratch_operands = 2 : i64, tpu.core_type = #tpu.core_type<tc>, window_params = [{transform_indices = @transform_0, window_bounds = array<i64: 1, 16, 16, 128>}, {pipeline_mode = #tpu.pipeline_mode<synchronous>, transform_indices = @transform_1, window_bounds = array<i64: 1, 128>}, {pipeline_mode = #tpu.pipeline_mode<synchronous>, transform_indices = @transform_2, window_bounds = array<i64: 1, 128>}, {pipeline_mode = #tpu.pipeline_mode<synchronous>, transform_indices = @transform_3, window_bounds = array<i64: 1, 128>}, {pipeline_mode = #tpu.pipeline_mode<synchronous>, transform_indices = @transform_4, window_bounds = array<i64: 9, 128, 128>}, {pipeline_mode = #tpu.pipeline_mode<synchronous>, transform_indices = @transform_5, window_bounds = array<i64: 9, 128, 128>}, {transform_indices = @transform_6, window_bounds = array<i64: 1, 16, 16, 128>}]} {
    %c0 = arith.constant 0 : index
    %c0_0 = arith.constant 0 : index
    %0 = vector.load %arg2[%c0, %c0_0] : memref<1x128xf32, #tpu.memory_space<vmem>>, vector<1x128xf32>
    %1 = vector.shape_cast %0 : vector<1x128xf32> to vector<128xf32>
    %c0_1 = arith.constant 0 : index
    %c0_2 = arith.constant 0 : index
    %2 = vector.load %arg3[%c0_1, %c0_2] : memref<1x128xf32, #tpu.memory_space<vmem>>, vector<1x128xf32>
    %3 = vector.shape_cast %2 : vector<1x128xf32> to vector<128xf32>
    %c0_3 = arith.constant 0 : index
    %c0_4 = arith.constant 0 : index
    %4 = vector.load %arg4[%c0_3, %c0_4] : memref<1x128xf32, #tpu.memory_space<vmem>>, vector<1x128xf32>
    %5 = vector.shape_cast %4 : vector<1x128xf32> to vector<128xf32>
    %cst = arith.constant 0.000000e+00 : f32
    %6 = vector.broadcast %cst : f32 to vector<1x24x128xf32>
    %c0_5 = arith.constant 0 : index
    %c0_6 = arith.constant 0 : index
    %c0_7 = arith.constant 0 : index
    %7 = vector.load %arg8[%c0_5, %c0_6, %c0_7] : memref<18x24x128xf32, #tpu.memory_space<vmem>>, vector<1x24x128xf32>
    tpu.vector_store %arg8[%c0_5, %c0_6, %c0_7], %6 {strides = array<i32>} : memref<18x24x128xf32, #tpu.memory_space<vmem>>, vector<1x24x128xf32>,
    %cst_8 = arith.constant 0.000000e+00 : f32
    %8 = vector.broadcast %cst_8 : f32 to vector<1x24x128xf32>
    %c17 = arith.constant 17 : index
    %c0_9 = arith.constant 0 : index
    %c0_10 = arith.constant 0 : index
    %9 = vector.load %arg8[%c17, %c0_9, %c0_10] : memref<18x24x128xf32, #tpu.memory_space<vmem>>, vector<1x24x128xf32>
    tpu.vector_store %arg8[%c17, %c0_9, %c0_10], %8 {strides = array<i32>} : memref<18x24x128xf32, #tpu.memory_space<vmem>>, vector<1x24x128xf32>,
    %cst_11 = arith.constant 0.000000e+00 : f32
    %10 = vector.broadcast %cst_11 : f32 to vector<18x1x128xf32>
    %c0_12 = arith.constant 0 : index
    %c0_13 = arith.constant 0 : index
    %c0_14 = arith.constant 0 : index
    %11 = vector.load %arg8[%c0_12, %c0_13, %c0_14] : memref<18x24x128xf32, #tpu.memory_space<vmem>>, vector<18x1x128xf32>
    tpu.vector_store %arg8[%c0_12, %c0_13, %c0_14], %10 {strides = array<i32>} : memref<18x24x128xf32, #tpu.memory_space<vmem>>, vector<18x1x128xf32>,
    %cst_15 = arith.constant 0.000000e+00 : f32
    %12 = vector.broadcast %cst_15 : f32 to vector<18x7x128xf32>
    %c0_16 = arith.constant 0 : index
    %c17_17 = arith.constant 17 : index
    %c0_18 = arith.constant 0 : index
    %13 = vector.load %arg8[%c0_16, %c17_17, %c0_18] : memref<18x24x128xf32, #tpu.memory_space<vmem>>, vector<18x7x128xf32>
    tpu.vector_store %arg8[%c0_16, %c17_17, %c0_18], %12 {strides = array<i32>} : memref<18x24x128xf32, #tpu.memory_space<vmem>>, vector<18x7x128xf32>,
    %c0_19 = arith.constant 0 : index
    %c0_20 = arith.constant 0 : index
    %c0_21 = arith.constant 0 : index
    %c0_22 = arith.constant 0 : index
    %14 = vector.load %arg1[%c0_19, %c0_20, %c0_21, %c0_22] : memref<1x16x16x128xf32, #tpu.memory_space<vmem>>, vector<1x16x16x128xf32>
    %15 = vector.shape_cast %14 : vector<1x16x16x128xf32> to vector<16x16x128xf32>
    %16 = vector.shape_cast %1 : vector<128xf32> to vector<1x1x128xf32>
    %17 = vector.broadcast %16 : vector<1x1x128xf32> to vector<16x16x128xf32>
    %18 = arith.mulf %15, %17 : vector<16x16x128xf32>
    %19 = vector.shape_cast %3 : vector<128xf32> to vector<1x1x128xf32>
    %20 = vector.broadcast %19 : vector<1x1x128xf32> to vector<16x16x128xf32>
    %21 = arith.addf %18, %20 : vector<16x16x128xf32>
    %cst_23 = arith.constant 0.000000e+00 : f32
    %22 = vector.broadcast %cst_23 : f32 to vector<16x16x128xf32>
    %23 = arith.cmpf ogt, %21, %22 : vector<16x16x128xf32>
    %cst_24 = arith.constant 0.00999999977 : f32
    %24 = vector.broadcast %cst_24 : f32 to vector<16x16x128xf32>
    %25 = arith.mulf %24, %21 : vector<16x16x128xf32>
    %26 = arith.select %23, %21, %25 : vector<16x16x128xi1>, vector<16x16x128xf32>
    %c1 = arith.constant 1 : index
    %c1_25 = arith.constant 1 : index
    %c0_26 = arith.constant 0 : index
    %27 = vector.load %arg8[%c1, %c1_25, %c0_26] : memref<18x24x128xf32, #tpu.memory_space<vmem>>, vector<16x16x128xf32>
    tpu.vector_store %arg8[%c1, %c1_25, %c0_26], %26 {strides = array<i32>} : memref<18x24x128xf32, #tpu.memory_space<vmem>>, vector<16x16x128xf32>,
    %28 = vector.shape_cast %5 : vector<128xf32> to vector<1x1x128xf32>
    %29 = vector.shape_cast %28 : vector<1x1x128xf32> to vector<1x1x128xf32>
    %30 = vector.broadcast %29 : vector<1x1x128xf32> to vector<16x16x128xf32>
    %c0_27 = arith.constant 0 : index
    %c0_28 = arith.constant 0 : index
    %c0_29 = arith.constant 0 : index
    %31 = vector.load %arg9[%c0_27, %c0_28, %c0_29] : memref<16x16x128xf32, #tpu.memory_space<vmem>>, vector<16x16x128xf32>
    tpu.vector_store %arg9[%c0_27, %c0_28, %c0_29], %30 {strides = array<i32>} : memref<16x16x128xf32, #tpu.memory_space<vmem>>, vector<16x16x128xf32>,
    %c0_30 = arith.constant 0 : index
    %c0_31 = arith.constant 0 : index
    %c0_32 = arith.constant 0 : index
    %32 = vector.load %arg8[%c0_30, %c0_31, %c0_32] : memref<18x24x128xf32, #tpu.memory_space<vmem>>, vector<16x24x128xf32>
    %33 = vector.shape_cast %32 : vector<16x24x128xf32> to vector<384x128xf32>
    %34 = arith.truncf %33 : vector<384x128xf32> to vector<384x128xbf16>
    %c0_33 = arith.constant 0 : index
    %c0_34 = arith.constant 0 : index
    %c0_35 = arith.constant 0 : index
    %35 = vector.load %arg5[%c0_33, %c0_34, %c0_35] : memref<9x128x128xbf16, #tpu.memory_space<vmem>>, vector<1x128x128xbf16>
    %36 = vector.shape_cast %35 : vector<1x128x128xbf16> to vector<128x128xbf16>
    %cst_36 = arith.constant dense<0.000000e+00> : vector<384x128xf32>
    %37 = tpu.matmul %34, %36, %cst_36 {dimension_numbers = #tpu.dot_dimension_numbers<[1], [0], [0], [1], [0, 0, 1, 1], [], []>} : vector<384x128xbf16>, vector<128x128xbf16>, vector<384x128xf32> -> vector<384x128xf32>
    %c1_37 = arith.constant 1 : index
    %c0_38 = arith.constant 0 : index
    %c0_39 = arith.constant 0 : index
    %38 = vector.load %arg8[%c1_37, %c0_38, %c0_39] : memref<18x24x128xf32, #tpu.memory_space<vmem>>, vector<16x24x128xf32>
    %39 = vector.shape_cast %38 : vector<16x24x128xf32> to vector<384x128xf32>
    %40 = arith.truncf %39 : vector<384x128xf32> to vector<384x128xbf16>
    %c3 = arith.constant 3 : index
    %c0_40 = arith.constant 0 : index
    %c0_41 = arith.constant 0 : index
    %41 = vector.load %arg5[%c3, %c0_40, %c0_41] : memref<9x128x128xbf16, #tpu.memory_space<vmem>>, vector<1x128x128xbf16>
    %42 = vector.shape_cast %41 : vector<1x128x128xbf16> to vector<128x128xbf16>
    %cst_42 = arith.constant dense<0.000000e+00> : vector<384x128xf32>
    %43 = tpu.matmul %40, %42, %cst_42 {dimension_numbers = #tpu.dot_dimension_numbers<[1], [0], [0], [1], [0, 0, 1, 1], [], []>} : vector<384x128xbf16>, vector<128x128xbf16>, vector<384x128xf32> -> vector<384x128xf32>
    %44 = arith.addf %37, %43 : vector<384x128xf32>
    %c2 = arith.constant 2 : index
    %c0_43 = arith.constant 0 : index
    %c0_44 = arith.constant 0 : index
    %45 = vector.load %arg8[%c2, %c0_43, %c0_44] : memref<18x24x128xf32, #tpu.memory_space<vmem>>, vector<16x24x128xf32>
    %46 = vector.shape_cast %45 : vector<16x24x128xf32> to vector<384x128xf32>
    %47 = arith.truncf %46 : vector<384x128xf32> to vector<384x128xbf16>
    %c6 = arith.constant 6 : index
    %c0_45 = arith.constant 0 : index
    %c0_46 = arith.constant 0 : index
    %48 = vector.load %arg5[%c6, %c0_45, %c0_46] : memref<9x128x128xbf16, #tpu.memory_space<vmem>>, vector<1x128x128xbf16>
    %49 = vector.shape_cast %48 : vector<1x128x128xbf16> to vector<128x128xbf16>
    %cst_47 = arith.constant dense<0.000000e+00> : vector<384x128xf32>
    %50 = tpu.matmul %47, %49, %cst_47 {dimension_numbers = #tpu.dot_dimension_numbers<[1], [0], [0], [1], [0, 0, 1, 1], [], []>} : vector<384x128xbf16>, vector<128x128xbf16>, vector<384x128xf32> -> vector<384x128xf32>
    %51 = arith.addf %44, %50 : vector<384x128xf32>
    %52 = vector.shape_cast %51 : vector<384x128xf32> to vector<16x24x128xf32>
    %c0_48 = arith.constant 0 : index
    %c0_49 = arith.constant 0 : index
    %c0_50 = arith.constant 0 : index
    %53 = vector.load %arg9[%c0_48, %c0_49, %c0_50] : memref<16x16x128xf32, #tpu.memory_space<vmem>>, vector<16x16x128xf32>
    %54 = vector.extract_strided_slice %52 {offsets = [0, 0, 0], sizes = [16, 16, 128], strides = [1, 1, 1]} : vector<16x24x128xf32> to vector<16x16x128xf32>
    %55 = arith.addf %53, %54 : vector<16x16x128xf32>
    %c0_51 = arith.constant 0 : index
    %c0_52 = arith.constant 0 : index
    %c0_53 = arith.constant 0 : index
    %56 = vector.load %arg9[%c0_51, %c0_52, %c0_53] : memref<16x16x128xf32, #tpu.memory_space<vmem>>, vector<16x16x128xf32>
    tpu.vector_store %arg9[%c0_51, %c0_52, %c0_53], %55 {strides = array<i32>} : memref<16x16x128xf32, #tpu.memory_space<vmem>>, vector<16x16x128xf32>,
    %c0_54 = arith.constant 0 : index
    %c0_55 = arith.constant 0 : index
    %c0_56 = arith.constant 0 : index
    %57 = vector.load %arg8[%c0_54, %c0_55, %c0_56] : memref<18x24x128xf32, #tpu.memory_space<vmem>>, vector<16x24x128xf32>
    %58 = vector.shape_cast %57 : vector<16x24x128xf32> to vector<384x128xf32>
    %59 = arith.truncf %58 : vector<384x128xf32> to vector<384x128xbf16>
    %c1_57 = arith.constant 1 : index
    %c0_58 = arith.constant 0 : index
    %c0_59 = arith.constant 0 : index
    %60 = vector.load %arg5[%c1_57, %c0_58, %c0_59] : memref<9x128x128xbf16, #tpu.memory_space<vmem>>, vector<1x128x128xbf16>
    %61 = vector.shape_cast %60 : vector<1x128x128xbf16> to vector<128x128xbf16>
    %cst_60 = arith.constant dense<0.000000e+00> : vector<384x128xf32>
    %62 = tpu.matmul %59, %61, %cst_60 {dimension_numbers = #tpu.dot_dimension_numbers<[1], [0], [0], [1], [0, 0, 1, 1], [], []>} : vector<384x128xbf16>, vector<128x128xbf16>, vector<384x128xf32> -> vector<384x128xf32>
    %c1_61 = arith.constant 1 : index
    %c0_62 = arith.constant 0 : index
    %c0_63 = arith.constant 0 : index
    %63 = vector.load %arg8[%c1_61, %c0_62, %c0_63] : memref<18x24x128xf32, #tpu.memory_space<vmem>>, vector<16x24x128xf32>
    %64 = vector.shape_cast %63 : vector<16x24x128xf32> to vector<384x128xf32>
    %65 = arith.truncf %64 : vector<384x128xf32> to vector<384x128xbf16>
    %c4 = arith.constant 4 : index
    %c0_64 = arith.constant 0 : index
    %c0_65 = arith.constant 0 : index
    %66 = vector.load %arg5[%c4, %c0_64, %c0_65] : memref<9x128x128xbf16, #tpu.memory_space<vmem>>, vector<1x128x128xbf16>
    %67 = vector.shape_cast %66 : vector<1x128x128xbf16> to vector<128x128xbf16>
    %cst_66 = arith.constant dense<0.000000e+00> : vector<384x128xf32>
    %68 = tpu.matmul %65, %67, %cst_66 {dimension_numbers = #tpu.dot_dimension_numbers<[1], [0], [0], [1], [0, 0, 1, 1], [], []>} : vector<384x128xbf16>, vector<128x128xbf16>, vector<384x128xf32> -> vector<384x128xf32>
    %69 = arith.addf %62, %68 : vector<384x128xf32>
    %c2_67 = arith.constant 2 : index
    %c0_68 = arith.constant 0 : index
    %c0_69 = arith.constant 0 : index
    %70 = vector.load %arg8[%c2_67, %c0_68, %c0_69] : memref<18x24x128xf32, #tpu.memory_space<vmem>>, vector<16x24x128xf32>
    %71 = vector.shape_cast %70 : vector<16x24x128xf32> to vector<384x128xf32>
    %72 = arith.truncf %71 : vector<384x128xf32> to vector<384x128xbf16>
    %c7 = arith.constant 7 : index
    %c0_70 = arith.constant 0 : index
    %c0_71 = arith.constant 0 : index
    %73 = vector.load %arg5[%c7, %c0_70, %c0_71] : memref<9x128x128xbf16, #tpu.memory_space<vmem>>, vector<1x128x128xbf16>
    %74 = vector.shape_cast %73 : vector<1x128x128xbf16> to vector<128x128xbf16>
    %cst_72 = arith.constant dense<0.000000e+00> : vector<384x128xf32>
    %75 = tpu.matmul %72, %74, %cst_72 {dimension_numbers = #tpu.dot_dimension_numbers<[1], [0], [0], [1], [0, 0, 1, 1], [], []>} : vector<384x128xbf16>, vector<128x128xbf16>, vector<384x128xf32> -> vector<384x128xf32>
    %76 = arith.addf %69, %75 : vector<384x128xf32>
    %77 = vector.shape_cast %76 : vector<384x128xf32> to vector<16x24x128xf32>
    %c0_73 = arith.constant 0 : index
    %c0_74 = arith.constant 0 : index
    %c0_75 = arith.constant 0 : index
    %78 = vector.load %arg9[%c0_73, %c0_74, %c0_75] : memref<16x16x128xf32, #tpu.memory_space<vmem>>, vector<16x16x128xf32>
    %79 = vector.extract_strided_slice %77 {offsets = [0, 1, 0], sizes = [16, 16, 128], strides = [1, 1, 1]} : vector<16x24x128xf32> to vector<16x16x128xf32>
    %80 = arith.addf %78, %79 : vector<16x16x128xf32>
    %c0_76 = arith.constant 0 : index
    %c0_77 = arith.constant 0 : index
    %c0_78 = arith.constant 0 : index
    %81 = vector.load %arg9[%c0_76, %c0_77, %c0_78] : memref<16x16x128xf32, #tpu.memory_space<vmem>>, vector<16x16x128xf32>
    tpu.vector_store %arg9[%c0_76, %c0_77, %c0_78], %80 {strides = array<i32>} : memref<16x16x128xf32, #tpu.memory_space<vmem>>, vector<16x16x128xf32>,
    %c0_79 = arith.constant 0 : index
    %c0_80 = arith.constant 0 : index
    %c0_81 = arith.constant 0 : index
    %82 = vector.load %arg8[%c0_79, %c0_80, %c0_81] : memref<18x24x128xf32, #tpu.memory_space<vmem>>, vector<16x24x128xf32>
    %83 = vector.shape_cast %82 : vector<16x24x128xf32> to vector<384x128xf32>
    %84 = arith.truncf %83 : vector<384x128xf32> to vector<384x128xbf16>
    %c2_82 = arith.constant 2 : index
    %c0_83 = arith.constant 0 : index
    %c0_84 = arith.constant 0 : index
    %85 = vector.load %arg5[%c2_82, %c0_83, %c0_84] : memref<9x128x128xbf16, #tpu.memory_space<vmem>>, vector<1x128x128xbf16>
    %86 = vector.shape_cast %85 : vector<1x128x128xbf16> to vector<128x128xbf16>
    %cst_85 = arith.constant dense<0.000000e+00> : vector<384x128xf32>
    %87 = tpu.matmul %84, %86, %cst_85 {dimension_numbers = #tpu.dot_dimension_numbers<[1], [0], [0], [1], [0, 0, 1, 1], [], []>} : vector<384x128xbf16>, vector<128x128xbf16>, vector<384x128xf32> -> vector<384x128xf32>
    %c1_86 = arith.constant 1 : index
    %c0_87 = arith.constant 0 : index
    %c0_88 = arith.constant 0 : index
    %88 = vector.load %arg8[%c1_86, %c0_87, %c0_88] : memref<18x24x128xf32, #tpu.memory_space<vmem>>, vector<16x24x128xf32>
    %89 = vector.shape_cast %88 : vector<16x24x128xf32> to vector<384x128xf32>
    %90 = arith.truncf %89 : vector<384x128xf32> to vector<384x128xbf16>
    %c5 = arith.constant 5 : index
    %c0_89 = arith.constant 0 : index
    %c0_90 = arith.constant 0 : index
    %91 = vector.load %arg5[%c5, %c0_89, %c0_90] : memref<9x128x128xbf16, #tpu.memory_space<vmem>>, vector<1x128x128xbf16>
    %92 = vector.shape_cast %91 : vector<1x128x128xbf16> to vector<128x128xbf16>
    %cst_91 = arith.constant dense<0.000000e+00> : vector<384x128xf32>
    %93 = tpu.matmul %90, %92, %cst_91 {dimension_numbers = #tpu.dot_dimension_numbers<[1], [0], [0], [1], [0, 0, 1, 1], [], []>} : vector<384x128xbf16>, vector<128x128xbf16>, vector<384x128xf32> -> vector<384x128xf32>
    %94 = arith.addf %87, %93 : vector<384x128xf32>
    %c2_92 = arith.constant 2 : index
    %c0_93 = arith.constant 0 : index
    %c0_94 = arith.constant 0 : index
    %95 = vector.load %arg8[%c2_92, %c0_93, %c0_94] : memref<18x24x128xf32, #tpu.memory_space<vmem>>, vector<16x24x128xf32>
    %96 = vector.shape_cast %95 : vector<16x24x128xf32> to vector<384x128xf32>
    %97 = arith.truncf %96 : vector<384x128xf32> to vector<384x128xbf16>
    %c8 = arith.constant 8 : index
    %c0_95 = arith.constant 0 : index
    %c0_96 = arith.constant 0 : index
    %98 = vector.load %arg5[%c8, %c0_95, %c0_96] : memref<9x128x128xbf16, #tpu.memory_space<vmem>>, vector<1x128x128xbf16>
    %99 = vector.shape_cast %98 : vector<1x128x128xbf16> to vector<128x128xbf16>
    %cst_97 = arith.constant dense<0.000000e+00> : vector<384x128xf32>
    %100 = tpu.matmul %97, %99, %cst_97 {dimension_numbers = #tpu.dot_dimension_numbers<[1], [0], [0], [1], [0, 0, 1, 1], [], []>} : vector<384x128xbf16>, vector<128x128xbf16>, vector<384x128xf32> -> vector<384x128xf32>
    %101 = arith.addf %94, %100 : vector<384x128xf32>
    %102 = vector.shape_cast %101 : vector<384x128xf32> to vector<16x24x128xf32>
    %c0_98 = arith.constant 0 : index
    %c0_99 = arith.constant 0 : index
    %c0_100 = arith.constant 0 : index
    %103 = vector.load %arg9[%c0_98, %c0_99, %c0_100] : memref<16x16x128xf32, #tpu.memory_space<vmem>>, vector<16x16x128xf32>
    %104 = vector.extract_strided_slice %102 {offsets = [0, 2, 0], sizes = [16, 16, 128], strides = [1, 1, 1]} : vector<16x24x128xf32> to vector<16x16x128xf32>
    %105 = arith.addf %103, %104 : vector<16x16x128xf32>
    %c0_101 = arith.constant 0 : index
    %c0_102 = arith.constant 0 : index
    %c0_103 = arith.constant 0 : index
    %106 = vector.load %arg9[%c0_101, %c0_102, %c0_103] : memref<16x16x128xf32, #tpu.memory_space<vmem>>, vector<16x16x128xf32>
    tpu.vector_store %arg9[%c0_101, %c0_102, %c0_103], %105 {strides = array<i32>} : memref<16x16x128xf32, #tpu.memory_space<vmem>>, vector<16x16x128xf32>,
    %c0_104 = arith.constant 0 : index
    %c0_105 = arith.constant 0 : index
    %c0_106 = arith.constant 0 : index
    %107 = vector.load %arg9[%c0_104, %c0_105, %c0_106] : memref<16x16x128xf32, #tpu.memory_space<vmem>>, vector<16x16x128xf32>
    %c1_107 = arith.constant 1 : index
    %c1_108 = arith.constant 1 : index
    %c0_109 = arith.constant 0 : index
    %108 = vector.load %arg8[%c1_107, %c1_108, %c0_109] : memref<18x24x128xf32, #tpu.memory_space<vmem>>, vector<16x16x128xf32>
    tpu.vector_store %arg8[%c1_107, %c1_108, %c0_109], %107 {strides = array<i32>} : memref<18x24x128xf32, #tpu.memory_space<vmem>>, vector<16x16x128xf32>,
    %c0_110 = arith.constant 0 : index
    %c0_111 = arith.constant 0 : index
    %c0_112 = arith.constant 0 : index
    %c0_113 = arith.constant 0 : index
    %109 = vector.load %arg1[%c0_110, %c0_111, %c0_112, %c0_113] : memref<1x16x16x128xf32, #tpu.memory_space<vmem>>, vector<1x16x16x128xf32>
    %110 = vector.shape_cast %109 : vector<1x16x16x128xf32> to vector<16x16x128xf32>
    %c0_114 = arith.constant 0 : index
    %c0_115 = arith.constant 0 : index
    %c0_116 = arith.constant 0 : index
    %111 = vector.load %arg9[%c0_114, %c0_115, %c0_116] : memref<16x16x128xf32, #tpu.memory_space<vmem>>, vector<16x16x128xf32>
    tpu.vector_store %arg9[%c0_114, %c0_115, %c0_116], %110 {strides = array<i32>} : memref<16x16x128xf32, #tpu.memory_space<vmem>>, vector<16x16x128xf32>,
    %c0_117 = arith.constant 0 : index
    %c0_118 = arith.constant 0 : index
    %c0_119 = arith.constant 0 : index
    %112 = vector.load %arg8[%c0_117, %c0_118, %c0_119] : memref<18x24x128xf32, #tpu.memory_space<vmem>>, vector<16x24x128xf32>
    %113 = vector.shape_cast %112 : vector<16x24x128xf32> to vector<384x128xf32>
    %114 = arith.truncf %113 : vector<384x128xf32> to vector<384x128xbf16>
    %c0_120 = arith.constant 0 : index
    %c0_121 = arith.constant 0 : index
    %c0_122 = arith.constant 0 : index
    %115 = vector.load %arg6[%c0_120, %c0_121, %c0_122] : memref<9x128x128xbf16, #tpu.memory_space<vmem>>, vector<1x128x128xbf16>
    %116 = vector.shape_cast %115 : vector<1x128x128xbf16> to vector<128x128xbf16>
    %cst_123 = arith.constant dense<0.000000e+00> : vector<384x128xf32>
    %117 = tpu.matmul %114, %116, %cst_123 {dimension_numbers = #tpu.dot_dimension_numbers<[1], [0], [0], [1], [0, 0, 1, 1], [], []>} : vector<384x128xbf16>, vector<128x128xbf16>, vector<384x128xf32> -> vector<384x128xf32>
    %c1_124 = arith.constant 1 : index
    %c0_125 = arith.constant 0 : index
    %c0_126 = arith.constant 0 : index
    %118 = vector.load %arg8[%c1_124, %c0_125, %c0_126] : memref<18x24x128xf32, #tpu.memory_space<vmem>>, vector<16x24x128xf32>
    %119 = vector.shape_cast %118 : vector<16x24x128xf32> to vector<384x128xf32>
    %120 = arith.truncf %119 : vector<384x128xf32> to vector<384x128xbf16>
    %c3_127 = arith.constant 3 : index
    %c0_128 = arith.constant 0 : index
    %c0_129 = arith.constant 0 : index
    %121 = vector.load %arg6[%c3_127, %c0_128, %c0_129] : memref<9x128x128xbf16, #tpu.memory_space<vmem>>, vector<1x128x128xbf16>
    %122 = vector.shape_cast %121 : vector<1x128x128xbf16> to vector<128x128xbf16>
    %cst_130 = arith.constant dense<0.000000e+00> : vector<384x128xf32>
    %123 = tpu.matmul %120, %122, %cst_130 {dimension_numbers = #tpu.dot_dimension_numbers<[1], [0], [0], [1], [0, 0, 1, 1], [], []>} : vector<384x128xbf16>, vector<128x128xbf16>, vector<384x128xf32> -> vector<384x128xf32>
    %124 = arith.addf %117, %123 : vector<384x128xf32>
    %c2_131 = arith.constant 2 : index
    %c0_132 = arith.constant 0 : index
    %c0_133 = arith.constant 0 : index
    %125 = vector.load %arg8[%c2_131, %c0_132, %c0_133] : memref<18x24x128xf32, #tpu.memory_space<vmem>>, vector<16x24x128xf32>
    %126 = vector.shape_cast %125 : vector<16x24x128xf32> to vector<384x128xf32>
    %127 = arith.truncf %126 : vector<384x128xf32> to vector<384x128xbf16>
    %c6_134 = arith.constant 6 : index
    %c0_135 = arith.constant 0 : index
    %c0_136 = arith.constant 0 : index
    %128 = vector.load %arg6[%c6_134, %c0_135, %c0_136] : memref<9x128x128xbf16, #tpu.memory_space<vmem>>, vector<1x128x128xbf16>
    %129 = vector.shape_cast %128 : vector<1x128x128xbf16> to vector<128x128xbf16>
    %cst_137 = arith.constant dense<0.000000e+00> : vector<384x128xf32>
    %130 = tpu.matmul %127, %129, %cst_137 {dimension_numbers = #tpu.dot_dimension_numbers<[1], [0], [0], [1], [0, 0, 1, 1], [], []>} : vector<384x128xbf16>, vector<128x128xbf16>, vector<384x128xf32> -> vector<384x128xf32>
    %131 = arith.addf %124, %130 : vector<384x128xf32>
    %132 = vector.shape_cast %131 : vector<384x128xf32> to vector<16x24x128xf32>
    %c0_138 = arith.constant 0 : index
    %c0_139 = arith.constant 0 : index
    %c0_140 = arith.constant 0 : index
    %133 = vector.load %arg9[%c0_138, %c0_139, %c0_140] : memref<16x16x128xf32, #tpu.memory_space<vmem>>, vector<16x16x128xf32>
    %134 = vector.extract_strided_slice %132 {offsets = [0, 0, 0], sizes = [16, 16, 128], strides = [1, 1, 1]} : vector<16x24x128xf32> to vector<16x16x128xf32>
    %135 = arith.addf %133, %134 : vector<16x16x128xf32>
    %c0_141 = arith.constant 0 : index
    %c0_142 = arith.constant 0 : index
    %c0_143 = arith.constant 0 : index
    %136 = vector.load %arg9[%c0_141, %c0_142, %c0_143] : memref<16x16x128xf32, #tpu.memory_space<vmem>>, vector<16x16x128xf32>
    tpu.vector_store %arg9[%c0_141, %c0_142, %c0_143], %135 {strides = array<i32>} : memref<16x16x128xf32, #tpu.memory_space<vmem>>, vector<16x16x128xf32>,
    %c0_144 = arith.constant 0 : index
    %c0_145 = arith.constant 0 : index
    %c0_146 = arith.constant 0 : index
    %137 = vector.load %arg8[%c0_144, %c0_145, %c0_146] : memref<18x24x128xf32, #tpu.memory_space<vmem>>, vector<16x24x128xf32>
    %138 = vector.shape_cast %137 : vector<16x24x128xf32> to vector<384x128xf32>
    %139 = arith.truncf %138 : vector<384x128xf32> to vector<384x128xbf16>
    %c1_147 = arith.constant 1 : index
    %c0_148 = arith.constant 0 : index
    %c0_149 = arith.constant 0 : index
    %140 = vector.load %arg6[%c1_147, %c0_148, %c0_149] : memref<9x128x128xbf16, #tpu.memory_space<vmem>>, vector<1x128x128xbf16>
    %141 = vector.shape_cast %140 : vector<1x128x128xbf16> to vector<128x128xbf16>
    %cst_150 = arith.constant dense<0.000000e+00> : vector<384x128xf32>
    %142 = tpu.matmul %139, %141, %cst_150 {dimension_numbers = #tpu.dot_dimension_numbers<[1], [0], [0], [1], [0, 0, 1, 1], [], []>} : vector<384x128xbf16>, vector<128x128xbf16>, vector<384x128xf32> -> vector<384x128xf32>
    %c1_151 = arith.constant 1 : index
    %c0_152 = arith.constant 0 : index
    %c0_153 = arith.constant 0 : index
    %143 = vector.load %arg8[%c1_151, %c0_152, %c0_153] : memref<18x24x128xf32, #tpu.memory_space<vmem>>, vector<16x24x128xf32>
    %144 = vector.shape_cast %143 : vector<16x24x128xf32> to vector<384x128xf32>
    %145 = arith.truncf %144 : vector<384x128xf32> to vector<384x128xbf16>
    %c4_154 = arith.constant 4 : index
    %c0_155 = arith.constant 0 : index
    %c0_156 = arith.constant 0 : index
    %146 = vector.load %arg6[%c4_154, %c0_155, %c0_156] : memref<9x128x128xbf16, #tpu.memory_space<vmem>>, vector<1x128x128xbf16>
    %147 = vector.shape_cast %146 : vector<1x128x128xbf16> to vector<128x128xbf16>
    %cst_157 = arith.constant dense<0.000000e+00> : vector<384x128xf32>
    %148 = tpu.matmul %145, %147, %cst_157 {dimension_numbers = #tpu.dot_dimension_numbers<[1], [0], [0], [1], [0, 0, 1, 1], [], []>} : vector<384x128xbf16>, vector<128x128xbf16>, vector<384x128xf32> -> vector<384x128xf32>
    %149 = arith.addf %142, %148 : vector<384x128xf32>
    %c2_158 = arith.constant 2 : index
    %c0_159 = arith.constant 0 : index
    %c0_160 = arith.constant 0 : index
    %150 = vector.load %arg8[%c2_158, %c0_159, %c0_160] : memref<18x24x128xf32, #tpu.memory_space<vmem>>, vector<16x24x128xf32>
    %151 = vector.shape_cast %150 : vector<16x24x128xf32> to vector<384x128xf32>
    %152 = arith.truncf %151 : vector<384x128xf32> to vector<384x128xbf16>
    %c7_161 = arith.constant 7 : index
    %c0_162 = arith.constant 0 : index
    %c0_163 = arith.constant 0 : index
    %153 = vector.load %arg6[%c7_161, %c0_162, %c0_163] : memref<9x128x128xbf16, #tpu.memory_space<vmem>>, vector<1x128x128xbf16>
    %154 = vector.shape_cast %153 : vector<1x128x128xbf16> to vector<128x128xbf16>
    %cst_164 = arith.constant dense<0.000000e+00> : vector<384x128xf32>
    %155 = tpu.matmul %152, %154, %cst_164 {dimension_numbers = #tpu.dot_dimension_numbers<[1], [0], [0], [1], [0, 0, 1, 1], [], []>} : vector<384x128xbf16>, vector<128x128xbf16>, vector<384x128xf32> -> vector<384x128xf32>
    %156 = arith.addf %149, %155 : vector<384x128xf32>
    %157 = vector.shape_cast %156 : vector<384x128xf32> to vector<16x24x128xf32>
    %c0_165 = arith.constant 0 : index
    %c0_166 = arith.constant 0 : index
    %c0_167 = arith.constant 0 : index
    %158 = vector.load %arg9[%c0_165, %c0_166, %c0_167] : memref<16x16x128xf32, #tpu.memory_space<vmem>>, vector<16x16x128xf32>
    %159 = vector.extract_strided_slice %157 {offsets = [0, 1, 0], sizes = [16, 16, 128], strides = [1, 1, 1]} : vector<16x24x128xf32> to vector<16x16x128xf32>
    %160 = arith.addf %158, %159 : vector<16x16x128xf32>
    %c0_168 = arith.constant 0 : index
    %c0_169 = arith.constant 0 : index
    %c0_170 = arith.constant 0 : index
    %161 = vector.load %arg9[%c0_168, %c0_169, %c0_170] : memref<16x16x128xf32, #tpu.memory_space<vmem>>, vector<16x16x128xf32>
    tpu.vector_store %arg9[%c0_168, %c0_169, %c0_170], %160 {strides = array<i32>} : memref<16x16x128xf32, #tpu.memory_space<vmem>>, vector<16x16x128xf32>,
    %c0_171 = arith.constant 0 : index
    %c0_172 = arith.constant 0 : index
    %c0_173 = arith.constant 0 : index
    %162 = vector.load %arg8[%c0_171, %c0_172, %c0_173] : memref<18x24x128xf32, #tpu.memory_space<vmem>>, vector<16x24x128xf32>
    %163 = vector.shape_cast %162 : vector<16x24x128xf32> to vector<384x128xf32>
    %164 = arith.truncf %163 : vector<384x128xf32> to vector<384x128xbf16>
    %c2_174 = arith.constant 2 : index
    %c0_175 = arith.constant 0 : index
    %c0_176 = arith.constant 0 : index
    %165 = vector.load %arg6[%c2_174, %c0_175, %c0_176] : memref<9x128x128xbf16, #tpu.memory_space<vmem>>, vector<1x128x128xbf16>
    %166 = vector.shape_cast %165 : vector<1x128x128xbf16> to vector<128x128xbf16>
    %cst_177 = arith.constant dense<0.000000e+00> : vector<384x128xf32>
    %167 = tpu.matmul %164, %166, %cst_177 {dimension_numbers = #tpu.dot_dimension_numbers<[1], [0], [0], [1], [0, 0, 1, 1], [], []>} : vector<384x128xbf16>, vector<128x128xbf16>, vector<384x128xf32> -> vector<384x128xf32>
    %c1_178 = arith.constant 1 : index
    %c0_179 = arith.constant 0 : index
    %c0_180 = arith.constant 0 : index
    %168 = vector.load %arg8[%c1_178, %c0_179, %c0_180] : memref<18x24x128xf32, #tpu.memory_space<vmem>>, vector<16x24x128xf32>
    %169 = vector.shape_cast %168 : vector<16x24x128xf32> to vector<384x128xf32>
    %170 = arith.truncf %169 : vector<384x128xf32> to vector<384x128xbf16>
    %c5_181 = arith.constant 5 : index
    %c0_182 = arith.constant 0 : index
    %c0_183 = arith.constant 0 : index
    %171 = vector.load %arg6[%c5_181, %c0_182, %c0_183] : memref<9x128x128xbf16, #tpu.memory_space<vmem>>, vector<1x128x128xbf16>
    %172 = vector.shape_cast %171 : vector<1x128x128xbf16> to vector<128x128xbf16>
    %cst_184 = arith.constant dense<0.000000e+00> : vector<384x128xf32>
    %173 = tpu.matmul %170, %172, %cst_184 {dimension_numbers = #tpu.dot_dimension_numbers<[1], [0], [0], [1], [0, 0, 1, 1], [], []>} : vector<384x128xbf16>, vector<128x128xbf16>, vector<384x128xf32> -> vector<384x128xf32>
    %174 = arith.addf %167, %173 : vector<384x128xf32>
    %c2_185 = arith.constant 2 : index
    %c0_186 = arith.constant 0 : index
    %c0_187 = arith.constant 0 : index
    %175 = vector.load %arg8[%c2_185, %c0_186, %c0_187] : memref<18x24x128xf32, #tpu.memory_space<vmem>>, vector<16x24x128xf32>
    %176 = vector.shape_cast %175 : vector<16x24x128xf32> to vector<384x128xf32>
    %177 = arith.truncf %176 : vector<384x128xf32> to vector<384x128xbf16>
    %c8_188 = arith.constant 8 : index
    %c0_189 = arith.constant 0 : index
    %c0_190 = arith.constant 0 : index
    %178 = vector.load %arg6[%c8_188, %c0_189, %c0_190] : memref<9x128x128xbf16, #tpu.memory_space<vmem>>, vector<1x128x128xbf16>
    %179 = vector.shape_cast %178 : vector<1x128x128xbf16> to vector<128x128xbf16>
    %cst_191 = arith.constant dense<0.000000e+00> : vector<384x128xf32>
    %180 = tpu.matmul %177, %179, %cst_191 {dimension_numbers = #tpu.dot_dimension_numbers<[1], [0], [0], [1], [0, 0, 1, 1], [], []>} : vector<384x128xbf16>, vector<128x128xbf16>, vector<384x128xf32> -> vector<384x128xf32>
    %181 = arith.addf %174, %180 : vector<384x128xf32>
    %182 = vector.shape_cast %181 : vector<384x128xf32> to vector<16x24x128xf32>
    %c0_192 = arith.constant 0 : index
    %c0_193 = arith.constant 0 : index
    %c0_194 = arith.constant 0 : index
    %183 = vector.load %arg9[%c0_192, %c0_193, %c0_194] : memref<16x16x128xf32, #tpu.memory_space<vmem>>, vector<16x16x128xf32>
    %184 = vector.extract_strided_slice %182 {offsets = [0, 2, 0], sizes = [16, 16, 128], strides = [1, 1, 1]} : vector<16x24x128xf32> to vector<16x16x128xf32>
    %185 = arith.addf %183, %184 : vector<16x16x128xf32>
    %c0_195 = arith.constant 0 : index
    %c0_196 = arith.constant 0 : index
    %c0_197 = arith.constant 0 : index
    %186 = vector.load %arg9[%c0_195, %c0_196, %c0_197] : memref<16x16x128xf32, #tpu.memory_space<vmem>>, vector<16x16x128xf32>
    tpu.vector_store %arg9[%c0_195, %c0_196, %c0_197], %185 {strides = array<i32>} : memref<16x16x128xf32, #tpu.memory_space<vmem>>, vector<16x16x128xf32>,
    %c0_198 = arith.constant 0 : index
    %c0_199 = arith.constant 0 : index
    %c0_200 = arith.constant 0 : index
    %187 = vector.load %arg9[%c0_198, %c0_199, %c0_200] : memref<16x16x128xf32, #tpu.memory_space<vmem>>, vector<16x16x128xf32>
    %c0_201 = arith.constant 0 : index
    %c0_202 = arith.constant 0 : index
    %c0_203 = arith.constant 0 : index
    %c0_204 = arith.constant 0 : index
    %188 = vector.load %arg7[%c0_201, %c0_202, %c0_203, %c0_204] : memref<1x16x16x128xf32, #tpu.memory_space<vmem>>, vector<1x16x16x128xf32>
    %189 = vector.shape_cast %188 : vector<1x16x16x128xf32> to vector<16x16x128xf32>
    %190 = vector.shape_cast %187 : vector<16x16x128xf32> to vector<1x16x16x128xf32>
    tpu.vector_store %arg7[%c0_201, %c0_202, %c0_203, %c0_204], %190 {strides = array<i32>} : memref<1x16x16x128xf32, #tpu.memory_space<vmem>>, vector<1x16x16x128xf32>,
    return
  }
  func.func @transform_0(%arg0: i32) -> (i32, i32, i32, i32) {
    %c0_i32 = arith.constant 0 : i32
    %c0_i32_0 = arith.constant 0 : i32
    %c0_i32_1 = arith.constant 0 : i32
    %c0_i32_2 = arith.constant 0 : i32
    return %arg0, %c0_i32, %c0_i32_0, %c0_i32_1 : i32, i32, i32, i32
  }
  func.func @transform_1(%arg0: i32) -> (i32, i32) {
    %c0_i32 = arith.constant 0 : i32
    %c0_i32_0 = arith.constant 0 : i32
    %c0_i32_1 = arith.constant 0 : i32
    return %c0_i32, %c0_i32_0 : i32, i32
  }
  func.func @transform_2(%arg0: i32) -> (i32, i32) {
    %c0_i32 = arith.constant 0 : i32
    %c0_i32_0 = arith.constant 0 : i32
    %c0_i32_1 = arith.constant 0 : i32
    return %c0_i32, %c0_i32_0 : i32, i32
  }
  func.func @transform_3(%arg0: i32) -> (i32, i32) {
    %c0_i32 = arith.constant 0 : i32
    %c0_i32_0 = arith.constant 0 : i32
    %c0_i32_1 = arith.constant 0 : i32
    return %c0_i32, %c0_i32_0 : i32, i32
  }
  func.func @transform_4(%arg0: i32) -> (i32, i32, i32) {
    %c0_i32 = arith.constant 0 : i32
    %c0_i32_0 = arith.constant 0 : i32
    %c0_i32_1 = arith.constant 0 : i32
    %c0_i32_2 = arith.constant 0 : i32
    return %c0_i32, %c0_i32_0, %c0_i32_1 : i32, i32, i32
  }
  func.func @transform_5(%arg0: i32) -> (i32, i32, i32) {
    %c0_i32 = arith.constant 0 : i32
    %c0_i32_0 = arith.constant 0 : i32
    %c0_i32_1 = arith.constant 0 : i32
    %c0_i32_2 = arith.constant 0 : i32
    return %c0_i32, %c0_i32_0, %c0_i32_1 : i32, i32, i32
  }
  func.func @transform_6(%arg0: i32) -> (i32, i32, i32, i32) {
    %c0_i32 = arith.constant 0 : i32
    %c0_i32_0 = arith.constant 0 : i32
    %c0_i32_1 = arith.constant 0 : i32
    %c0_i32_2 = arith.constant 0 : i32
    return %arg0, %c0_i32, %c0_i32_0, %c0_i32_1 : i32, i32, i32, i32
  }
}

</mosaic_0001>

<llo_original>
// kernel: tpu_custom_call.1
$region0: #{tpu_custom_call.1}
  #allocation0 [shape = 'u32[]', space=smem, size = 0x4, offset = 0x4, fixed_abs, tag = 'smem constant byte address 0x4 - core index']
  #allocation1 [shape = 'u32[144,128]{1,0:T(1,128)}', space=vmem, size = 0x12000, scoped, tag = 'internal scratch']
  #allocation2 [shape = 'f32[18,24,128]{2,1,0:T(8,128)}', space=vmem, size = 0x36000, scoped, tag = 'scratch operand']
  #allocation3 [shape = 'f32[16,16,128]{2,1,0:T(8,128)}', space=vmem, size = 0x20000, scoped, tag = 'scratch operand']
  %s0 = inlined_call_operand.hbm [shape: f32[2,16,16,128], index: 0, kind: input, shape index: {}]
  %s1 = inlined_call_operand.vmem [shape: f32[1,128], index: 1, kind: input, shape index: {}]
  %s2 = inlined_call_operand.vmem [shape: f32[1,128], index: 2, kind: input, shape index: {}]
  %s3 = inlined_call_operand.vmem [shape: f32[1,128], index: 3, kind: input, shape index: {}]
  %s4 = inlined_call_operand.hbm [shape: bf16[9,128,128], index: 4, kind: input, shape index: {}]
  %s5 = inlined_call_operand.hbm [shape: bf16[9,128,128], index: 5, kind: input, shape index: {}]
  %s6 = inlined_call_operand.hbm [shape: f32[2,16,16,128], index: 6, kind: output, shape index: {}]
  %s7 = sld [smem:[#allocation0]]
  $region69: #{tpu_custom_call.1} parent=0
    _
  %s9 = ssub.s32 1, %s7
  %s10 = scalar_select 0, %s9, %s7
  $region1: #{tpu_custom_call.1} parent=0
    #allocation4 [shape = 'u8[262144]{0}', space=vmem, size = 0x40000, scoped, tag = 'input window, operand 0']
    #allocation5 [shape = 's32[2]{0}', space=sflag, size = 0x8, scoped, tag = 'scoped memory for tpu_custom_call.1']
    #allocation6 [shape = 's32[2]{0}', space=sflag, size = 0x8, scoped, tag = 'scoped memory for tpu_custom_call.1']
    #allocation7 [shape = 'u8[294912]{0}', space=vmem, size = 0x48000, scoped, tag = 'input window, operand 4, single buffered']
    #allocation8 [shape = 's32[1]{0}', space=sflag, size = 0x4, scoped, tag = 'scoped memory for tpu_custom_call.1']
    #allocation9 [shape = 'u8[294912]{0}', space=vmem, size = 0x48000, scoped, tag = 'input window, operand 5, single buffered']
    #allocation10 [shape = 'u8[262144]{0}', space=vmem, size = 0x40000, scoped, tag = 'output window, operand 0']
    %11 = vsyncpa [#allocation5], 0
    %s12 = scalar_lea.sflag [#allocation5], 1
    %13 = vsyncpa %s12, 0
    %14 = vsyncpa [#allocation8], 0
    %15 = vsyncpa [#allocation6], 0
    %s16 = scalar_lea.sflag [#allocation6], 1
    %17 = vsyncpa %s16, 0
    loop: start=0, step=1, limit=4
    $region2: #{tpu_custom_call.1} parent=1 // loop_pre_header
      _
    $region3: #{tpu_custom_call.1} parent=1 // loop_header
      %s19 = sphi 0, %s23
      %p20 = scmp.ge.s32.totalorder %s19, 4
      %s29 = sphi 0, %s31
      %s32 = sphi 0, %s29
      %s33 = sphi 0, %s32
      %s49 = sphi 0, %s33
      %s53 = sphi 0, %s53
      %s55 = sphi 0, %s53
      %s56 = sphi 0, %s55
      %s70 = sphi 0, %s56
      %s74 = sphi 0, %s74
      %s76 = sphi 0, %s74
      %s77 = sphi 0, %s76
      %s91 = sphi 0, %s77
      %s95 = sphi 0, %s95
      %s97 = sphi 0, %s95
      %s98 = sphi 0, %s97
      %s112 = sphi 0, %s98
      %s116 = sphi 0, %s116
      %s118 = sphi 0, %s116
      %s119 = sphi 0, %s118
      %s133 = sphi 0, %s119
      %s137 = sphi 0, %s137
      %s139 = sphi 0, %s137
      %s140 = sphi 0, %s139
      %s154 = sphi 0, %s140
      %s160 = sphi 0, %s162
      %s163 = sphi 0, %s160
      %s164 = sphi 0, %s163
      %s180 = sphi 0, %s164
    $region4: #{tpu_custom_call.1} parent=1 // loop_header_branch
      %22 = sbr.rel (%p20) target = $region8
    $region5: #{tpu_custom_call.1} parent=1 // loop_body
      %s24 = ssub.s32 %s19, 1
      %s25 = ssub.s32 %s19, 2
      %s26 = sadd.s32 %s19, 1
      %s27 = ssub.s32 %s19, %s26
      %p28 = scmp.eq.s32.totalorder %s27, 0
      %s30 = sadd.s32 %s29, 1
      %s31 = scalar_select %p28, %s29, %s30
      %p34 = pneg %p28
      %p35 = scmp.eq.s32.totalorder %s19, 1
      %p36 = por %p34, %p35
      %p37 = scmp.ne.s32.totalorder %s29, %s32
      %p38 = scmp.eq.s32.totalorder %s19, 0
      %p39 = por %p37, %p38
      %p40 = scmp.ne.s32.totalorder %s29, %s32
      %p41 = scmp.eq.s32.totalorder %s24, 1
      %p42 = por %p40, %p41
      %p43 = scmp.ne.s32.totalorder %s32, %s33
      %p44 = scmp.eq.s32.totalorder %s24, 0
      %p45 = por %p43, %p44
      %p46 = scmp.ne.s32.totalorder %s32, %s33
      %p47 = scmp.eq.s32.totalorder %s25, 1
      %p48 = por %p46, %p47
      %p50 = scmp.ne.s32.totalorder %s33, %s49
      %p51 = scmp.eq.s32.totalorder %s25, 0
      %p52 = por %p50, %p51
      %s54 = sadd.s32 %s53, 1
      %p57 = scmp.eq.s32.totalorder %s19, 1
      %p58 = scmp.ne.s32.totalorder %s53, %s55
      %p59 = scmp.eq.s32.totalorder %s19, 0
      %p60 = por %p58, %p59
      %p61 = scmp.ne.s32.totalorder %s53, %s55
      %p62 = scmp.eq.s32.totalorder %s24, 1
      %p63 = por %p61, %p62
      %p64 = scmp.ne.s32.totalorder %s55, %s56
      %p65 = scmp.eq.s32.totalorder %s24, 0
      %p66 = por %p64, %p65
      %p67 = scmp.ne.s32.totalorder %s55, %s56
      %p68 = scmp.eq.s32.totalorder %s25, 1
      %p69 = por %p67, %p68
      %p71 = scmp.ne.s32.totalorder %s56, %s70
      %p72 = scmp.eq.s32.totalorder %s25, 0
      %p73 = por %p71, %p72
      %s75 = sadd.s32 %s74, 1
      %p78 = scmp.eq.s32.totalorder %s19, 1
      %p79 = scmp.ne.s32.totalorder %s74, %s76
      %p80 = scmp.eq.s32.totalorder %s19, 0
      %p81 = por %p79, %p80
      %p82 = scmp.ne.s32.totalorder %s74, %s76
      %p83 = scmp.eq.s32.totalorder %s24, 1
      %p84 = por %p82, %p83
      %p85 = scmp.ne.s32.totalorder %s76, %s77
      %p86 = scmp.eq.s32.totalorder %s24, 0
      %p87 = por %p85, %p86
      %p88 = scmp.ne.s32.totalorder %s76, %s77
      %p89 = scmp.eq.s32.totalorder %s25, 1
      %p90 = por %p88, %p89
      %p92 = scmp.ne.s32.totalorder %s77, %s91
      %p93 = scmp.eq.s32.totalorder %s25, 0
      %p94 = por %p92, %p93
      %s96 = sadd.s32 %s95, 1
      %p99 = scmp.eq.s32.totalorder %s19, 1
      %p100 = scmp.ne.s32.totalorder %s95, %s97
      %p101 = scmp.eq.s32.totalorder %s19, 0
      %p102 = por %p100, %p101
      %p103 = scmp.ne.s32.totalorder %s95, %s97
      %p104 = scmp.eq.s32.totalorder %s24, 1
      %p105 = por %p103, %p104
      %p106 = scmp.ne.s32.totalorder %s97, %s98
      %p107 = scmp.eq.s32.totalorder %s24, 0
      %p108 = por %p106, %p107
      %p109 = scmp.ne.s32.totalorder %s97, %s98
      %p110 = scmp.eq.s32.totalorder %s25, 1
      %p111 = por %p109, %p110
      %p113 = scmp.ne.s32.totalorder %s98, %s112
      %p114 = scmp.eq.s32.totalorder %s25, 0
      %p115 = por %p113, %p114
      %s117 = sadd.s32 %s116, 1
      %p120 = scmp.eq.s32.totalorder %s19, 1
      %p121 = scmp.ne.s32.totalorder %s116, %s118
      %p122 = scmp.eq.s32.totalorder %s19, 0
      %p123 = por %p121, %p122
      %p124 = scmp.ne.s32.totalorder %s116, %s118
      %p125 = scmp.eq.s32.totalorder %s24, 1
      %p126 = por %p124, %p125
      %p127 = scmp.ne.s32.totalorder %s118, %s119
      %p128 = scmp.eq.s32.totalorder %s24, 0
      %p129 = por %p127, %p128
      %p130 = scmp.ne.s32.totalorder %s118, %s119
      %p131 = scmp.eq.s32.totalorder %s25, 1
      %p132 = por %p130, %p131
      %p134 = scmp.ne.s32.totalorder %s119, %s133
      %p135 = scmp.eq.s32.totalorder %s25, 0
      %p136 = por %p134, %p135
      %s138 = sadd.s32 %s137, 1
      %p141 = scmp.eq.s32.totalorder %s19, 1
      %p142 = scmp.ne.s32.totalorder %s137, %s139
      %p143 = scmp.eq.s32.totalorder %s19, 0
      %p144 = por %p142, %p143
      %p145 = scmp.ne.s32.totalorder %s137, %s139
      %p146 = scmp.eq.s32.totalorder %s24, 1
      %p147 = por %p145, %p146
      %p148 = scmp.ne.s32.totalorder %s139, %s140
      %p149 = scmp.eq.s32.totalorder %s24, 0
      %p150 = por %p148, %p149
      %p151 = scmp.ne.s32.totalorder %s139, %s140
      %p152 = scmp.eq.s32.totalorder %s25, 1
      %p153 = por %p151, %p152
      %p155 = scmp.ne.s32.totalorder %s140, %s154
      %p156 = scmp.eq.s32.totalorder %s25, 0
      %p157 = por %p155, %p156
      %s158 = ssub.s32 %s19, %s26
      %p159 = scmp.eq.s32.totalorder %s158, 0
      %s161 = sadd.s32 %s160, 1
      %s162 = scalar_select %p159, %s160, %s161
      %p165 = pneg %p159
      %p166 = scmp.eq.s32.totalorder %s19, 1
      %p167 = por %p165, %p166
      %p168 = scmp.ne.s32.totalorder %s160, %s163
      %p169 = scmp.eq.s32.totalorder %s19, 0
      %p170 = por %p168, %p169
      %p171 = scmp.ne.s32.totalorder %s160, %s163
      %p172 = scmp.eq.s32.totalorder %s24, 1
      %p173 = por %p171, %p172
      %p174 = scmp.ne.s32.totalorder %s163, %s164
      %p175 = scmp.eq.s32.totalorder %s24, 0
      %p176 = por %p174, %p175
      %p177 = scmp.ne.s32.totalorder %s163, %s164
      %p178 = scmp.eq.s32.totalorder %s25, 1
      %p179 = por %p177, %p178
      %p181 = scmp.ne.s32.totalorder %s164, %s180
      %p182 = scmp.eq.s32.totalorder %s25, 0
      %p183 = por %p181, %p182
      %p184 = scmp.le.s32.totalorder 1, %s19
      %p185 = scmp.lt.s32.totalorder %s19, 3
      %p186 = pnand %p184, %p185
      %p187 = pneg %p186
      // Predicated region
      $region9: #{tpu_custom_call.1} parent=5 // pred_check
        _
      $region10: #{tpu_custom_call.1} parent=5 // pred_check_branch
        %189 = sbr.rel (%p186) target = $region12
      $region11: #{tpu_custom_call.1} parent=5 // pred_region
        %s190 = ssub.s32 %s19, 1
        // Predicated region
        $region13: #{tpu_custom_call.1} parent=11 // pred_check
          %p191 = pneg %p66
        $region14: #{tpu_custom_call.1} parent=11 // pred_check_branch
          %193 = sbr.rel (%p191) target = $region16
        $region15: #{tpu_custom_call.1} parent=11 // pred_region
          _
        $region16: #{tpu_custom_call.1} parent=11 // pred_fallthru
          _
        // Predicated region
        $region17: #{tpu_custom_call.1} parent=11 // pred_check
          %p194 = pneg %p87
        $region18: #{tpu_custom_call.1} parent=11 // pred_check_branch
          %196 = sbr.rel (%p194) target = $region20
        $region19: #{tpu_custom_call.1} parent=11 // pred_region
          _
        $region20: #{tpu_custom_call.1} parent=11 // pred_fallthru
          _
        // Predicated region
        $region21: #{tpu_custom_call.1} parent=11 // pred_check
          %p197 = pneg %p108
        $region22: #{tpu_custom_call.1} parent=11 // pred_check_branch
          %199 = sbr.rel (%p197) target = $region24
        $region23: #{tpu_custom_call.1} parent=11 // pred_region
          _
        $region24: #{tpu_custom_call.1} parent=11 // pred_fallthru
          _
        // Predicated region
        $region25: #{tpu_custom_call.1} parent=11 // pred_check
          %p200 = pneg %p129
        $region26: #{tpu_custom_call.1} parent=11 // pred_check_branch
          %202 = sbr.rel (%p200) target = $region28
        $region27: #{tpu_custom_call.1} parent=11 // pred_region
          %s204 = ssub.s32 9216, 9216
          %205 = vsyncadd [#allocation8], %s204
          %s206 = sshll.u32 [#allocation7], 4
          %s207 = int_to_ptr.vmem [resolvable:$true] %s206
          %212 = dma.hbm_to_vmem [thread:$0]  %s4, 9216, %s207, [#allocation8], 64, 64, 4
        $region28: #{tpu_custom_call.1} parent=11 // pred_fallthru
          _
        // Predicated region
        $region29: #{tpu_custom_call.1} parent=11 // pred_check
          %p213 = pneg %p150
        $region30: #{tpu_custom_call.1} parent=11 // pred_check_branch
          %215 = sbr.rel (%p213) target = $region32
        $region31: #{tpu_custom_call.1} parent=11 // pred_region
          %s217 = ssub.s32 9216, 9216
          %218 = vsyncadd [#allocation8], %s217
          %s219 = sshll.u32 [#allocation9], 4
          %s220 = int_to_ptr.vmem [resolvable:$true] %s219
          %225 = dma.hbm_to_vmem [thread:$0]  %s5, 9216, %s220, [#allocation8], 64, 64, 4
        $region32: #{tpu_custom_call.1} parent=11 // pred_fallthru
          _
      $region12: #{tpu_custom_call.1} parent=5 // pred_fallthru
        _
      %p226 = scmp.lt.s32.totalorder %s19, 2
      // Predicated region
      $region33: #{tpu_custom_call.1} parent=5 // pred_check
        %p227 = pneg %p226
      $region34: #{tpu_custom_call.1} parent=5 // pred_check_branch
        %229 = sbr.rel (%p227) target = $region36
      $region35: #{tpu_custom_call.1} parent=5 // pred_region
        // Predicated region
        $region37: #{tpu_custom_call.1} parent=35 // pred_check
          %p230 = pneg %p39
        $region38: #{tpu_custom_call.1} parent=35 // pred_check_branch
          %232 = sbr.rel (%p230) target = $region40
        $region39: #{tpu_custom_call.1} parent=35 // pred_region
          %s233 = sand.u32 %s29, 1
          %s234 = scalar_lea.sflag [#allocation5], %s233
          %s235 = sand.u32 %s29, 1
          %s236 = smul.addr %s235, 256
          %s237 = scalar_lea.vmem [#allocation4], %s236
          %s239 = ssub.s32 4096, 4096
          %240 = vsyncadd %s234, %s239
          %s241 = smul.addr %s19, 32
          %s242 = smul.addr %s241, 128
          %s243 = scalar_lea.hbm %s0, %s242
          %s244 = sshll.u32 %s237, 4
          %s245 = int_to_ptr.vmem [resolvable:$true] %s244
          %250 = dma.hbm_to_vmem [thread:$0]  %s243, 4096, %s245, %s234, 128, 128, 8
        $region40: #{tpu_custom_call.1} parent=35 // pred_fallthru
          _
      $region36: #{tpu_custom_call.1} parent=5 // pred_fallthru
        _
      %p251 = scmp.le.s32.totalorder 1, %s19
      %p252 = scmp.lt.s32.totalorder %s19, 3
      %p253 = pnand %p251, %p252
      %p254 = pneg %p253
      // Predicated region
      $region41: #{tpu_custom_call.1} parent=5 // pred_check
        _
      $region42: #{tpu_custom_call.1} parent=5 // pred_check_branch
        %256 = sbr.rel (%p253) target = $region44
      $region43: #{tpu_custom_call.1} parent=5 // pred_region
        %s257 = ssub.s32 %s19, 1
        %s258 = sand.u32 %s32, 1
        %s259 = scalar_lea.sflag [#allocation5], %s258
        %s260 = sand.u32 %s32, 1
        %s261 = smul.addr %s260, 256
        %s262 = scalar_lea.vmem [#allocation4], %s261
        // Predicated region
        $region45: #{tpu_custom_call.1} parent=43 // pred_check
          %p263 = pneg %p45
        $region46: #{tpu_custom_call.1} parent=43 // pred_check_branch
          %265 = sbr.rel (%p263) target = $region48
        $region47: #{tpu_custom_call.1} parent=43 // pred_region
          %266 = dma.done %s259, 4096
        $region48: #{tpu_custom_call.1} parent=43 // pred_fallthru
          _
        // Predicated region
        $region49: #{tpu_custom_call.1} parent=43 // pred_check
          %p267 = pneg %p129
        $region50: #{tpu_custom_call.1} parent=43 // pred_check_branch
          %269 = sbr.rel (%p267) target = $region52
        $region51: #{tpu_custom_call.1} parent=43 // pred_region
          %270 = dma.done [#allocation8], 9216
        $region52: #{tpu_custom_call.1} parent=43 // pred_fallthru
          _
        // Predicated region
        $region53: #{tpu_custom_call.1} parent=43 // pred_check
          %p271 = pneg %p150
        $region54: #{tpu_custom_call.1} parent=43 // pred_check_branch
          %273 = sbr.rel (%p271) target = $region56
        $region55: #{tpu_custom_call.1} parent=43 // pred_region
          %274 = dma.done [#allocation8], 9216
        $region56: #{tpu_custom_call.1} parent=43 // pred_fallthru
          _
        %s275 = sand.u32 %s32, 1
        %s276 = scalar_lea.sflag [#allocation5], %s275
        %s277 = sand.u32 %s32, 1
        %s278 = smul.addr %s277, 256
        %s279 = scalar_lea.vmem [#allocation4], %s278
        %p280 = pneg %p45
        %p281 = pneg %p42
        %p282 = pneg %p66
        %p283 = pneg %p63
        %p284 = pneg %p87
        %p285 = pneg %p84
        %p286 = pneg %p108
        %p287 = pneg %p105
        %p288 = pneg %p129
        %p289 = pneg %p126
        %p290 = pneg %p150
        %p291 = pneg %p147
        %p292 = pneg %p176
        %p293 = pneg %p173
        %s294 = sand.u32 %s163, 1
        %s295 = scalar_lea.sflag [#allocation6], %s294
        %s296 = sand.u32 %s163, 1
        %s297 = smul.addr %s296, 256
        %s298 = scalar_lea.vmem [#allocation10], %s297
        %v300 = vld [vmem:[%s1] sm:$0x1]
        %v301 = vld [vmem:[%s2] sm:$0x1]
        %v302 = vld [vmem:[%s3] sm:$0x1]
        %303 = vst [vmem:[#allocation2] sm:$0xff] 0.0
        %304 = vst [vmem:[#allocation2 + $0x8] sm:$0xff] 0.0
        %305 = vst [vmem:[#allocation2 + $0x10] sm:$0xff] 0.0
        %s306 = scalar_lea.vmem [#allocation2], 408
        %307 = vst [vmem:[%s306] sm:$0xff] 0.0
        %308 = vst [vmem:[%s306 + $0x8] sm:$0xff] 0.0
        %309 = vst [vmem:[%s306 + $0x10] sm:$0xff] 0.0
        %310 = vst [vmem:[#allocation2] sm:$0x1] 0.0
        %311 = vst [vmem:[#allocation2 + $0x18] sm:$0x1] 0.0
        %312 = vst [vmem:[#allocation2 + $0x30] sm:$0x1] 0.0
        %313 = vst [vmem:[#allocation2 + $0x48] sm:$0x1] 0.0
        %314 = vst [vmem:[#allocation2 + $0x60] sm:$0x1] 0.0
        %315 = vst [vmem:[#allocation2 + $0x78] sm:$0x1] 0.0
        %316 = vst [vmem:[#allocation2 + $0x90] sm:$0x1] 0.0
        %317 = vst [vmem:[#allocation2 + $0xa8] sm:$0x1] 0.0
        %318 = vst [vmem:[#allocation2 + $0xc0] sm:$0x1] 0.0
        %319 = vst [vmem:[#allocation2 + $0xd8] sm:$0x1] 0.0
        %320 = vst [vmem:[#allocation2 + $0xf0] sm:$0x1] 0.0
        %321 = vst [vmem:[#allocation2 + $0x108] sm:$0x1] 0.0
        %322 = vst [vmem:[#allocation2 + $0x120] sm:$0x1] 0.0
        %323 = vst [vmem:[#allocation2 + $0x138] sm:$0x1] 0.0
        %324 = vst [vmem:[#allocation2 + $0x150] sm:$0x1] 0.0
        %325 = vst [vmem:[#allocation2 + $0x168] sm:$0x1] 0.0
        %326 = vst [vmem:[#allocation2 + $0x180] sm:$0x1] 0.0
        %327 = vst [vmem:[#allocation2 + $0x198] sm:$0x1] 0.0
        %328 = vst [vmem:[#allocation2 + $0x11] sm:$0x7f] 0.0
        %329 = vst [vmem:[#allocation2 + $0x29] sm:$0x7f] 0.0
        %330 = vst [vmem:[#allocation2 + $0x41] sm:$0x7f] 0.0
        %331 = vst [vmem:[#allocation2 + $0x59] sm:$0x7f] 0.0
        %332 = vst [vmem:[#allocation2 + $0x71] sm:$0x7f] 0.0
        %333 = vst [vmem:[#allocation2 + $0x89] sm:$0x7f] 0.0
        %334 = vst [vmem:[#allocation2 + $0xa1] sm:$0x7f] 0.0
        %335 = vst [vmem:[#allocation2 + $0xb9] sm:$0x7f] 0.0
        %336 = vst [vmem:[#allocation2 + $0xd1] sm:$0x7f] 0.0
        %337 = vst [vmem:[#allocation2 + $0xe9] sm:$0x7f] 0.0
        %338 = vst [vmem:[#allocation2 + $0x101] sm:$0x7f] 0.0
        %339 = vst [vmem:[#allocation2 + $0x119] sm:$0x7f] 0.0
        %340 = vst [vmem:[#allocation2 + $0x131] sm:$0x7f] 0.0
        %341 = vst [vmem:[#allocation2 + $0x149] sm:$0x7f] 0.0
        %342 = vst [vmem:[#allocation2 + $0x161] sm:$0x7f] 0.0
        %343 = vst [vmem:[#allocation2 + $0x179] sm:$0x7f] 0.0
        %344 = vst [vmem:[#allocation2 + $0x191] sm:$0x7f] 0.0
        %345 = vst [vmem:[#allocation2 + $0x1a9] sm:$0x7f] 0.0
        %v346 = vld [vmem:[%s262] sm:$0xff]
        %v347 = vld [vmem:[%s262 + $0x8] sm:$0xff]
        %v348 = vld [vmem:[%s262 + $0x10] sm:$0xff]
        %v349 = vld [vmem:[%s262 + $0x18] sm:$0xff]
        %v350 = vld [vmem:[%s262 + $0x20] sm:$0xff]
        %v351 = vld [vmem:[%s262 + $0x28] sm:$0xff]
        %v352 = vld [vmem:[%s262 + $0x30] sm:$0xff]
        %v353 = vld [vmem:[%s262 + $0x38] sm:$0xff]
        %v354 = vld [vmem:[%s262 + $0x40] sm:$0xff]
        %v355 = vld [vmem:[%s262 + $0x48] sm:$0xff]
        %v356 = vld [vmem:[%s262 + $0x50] sm:$0xff]
        %v357 = vld [vmem:[%s262 + $0x58] sm:$0xff]
        %v358 = vld [vmem:[%s262 + $0x60] sm:$0xff]
        %v359 = vld [vmem:[%s262 + $0x68] sm:$0xff]
        %v360 = vld [vmem:[%s262 + $0x70] sm:$0xff]
        %v361 = vld [vmem:[%s262 + $0x78] sm:$0xff]
        %v362 = vld [vmem:[%s262 + $0x80] sm:$0xff]
        %v363 = vld [vmem:[%s262 + $0x88] sm:$0xff]
        %v364 = vld [vmem:[%s262 + $0x90] sm:$0xff]
        %v365 = vld [vmem:[%s262 + $0x98] sm:$0xff]
        %v366 = vld [vmem:[%s262 + $0xa0] sm:$0xff]
        %v367 = vld [vmem:[%s262 + $0xa8] sm:$0xff]
        %v368 = vld [vmem:[%s262 + $0xb0] sm:$0xff]
        %v369 = vld [vmem:[%s262 + $0xb8] sm:$0xff]
        %v370 = vld [vmem:[%s262 + $0xc0] sm:$0xff]
        %v371 = vld [vmem:[%s262 + $0xc8] sm:$0xff]
        %v372 = vld [vmem:[%s262 + $0xd0] sm:$0xff]
        %v373 = vld [vmem:[%s262 + $0xd8] sm:$0xff]
        %v374 = vld [vmem:[%s262 + $0xe0] sm:$0xff]
        %v375 = vld [vmem:[%s262 + $0xe8] sm:$0xff]
        %v376 = vld [vmem:[%s262 + $0xf0] sm:$0xff]
        %v377 = vld [vmem:[%s262 + $0xf8] sm:$0xff]
        %v379 = vlaneseq
        %v380 = vshrl.u32 %v379, 7
        %v381 = vsub.s32 0, %v380
        %v382 = vrot.slane %v300, %v381
        %v384 = vmul.f32 %v346, %v382
        %v385 = vmul.f32 %v347, %v382
        %v386 = vmul.f32 %v348, %v382
        %v387 = vmul.f32 %v349, %v382
        %v388 = vmul.f32 %v350, %v382
        %v389 = vmul.f32 %v351, %v382
        %v390 = vmul.f32 %v352, %v382
        %v391 = vmul.f32 %v353, %v382
        %v392 = vmul.f32 %v354, %v382
        %v393 = vmul.f32 %v355, %v382
        %v394 = vmul.f32 %v356, %v382
        %v395 = vmul.f32 %v357, %v382
        %v396 = vmul.f32 %v358, %v382
        %v397 = vmul.f32 %v359, %v382
        %v398 = vmul.f32 %v360, %v382
        %v399 = vmul.f32 %v361, %v382
        %v400 = vmul.f32 %v362, %v382
        %v401 = vmul.f32 %v363, %v382
        %v402 = vmul.f32 %v364, %v382
        %v403 = vmul.f32 %v365, %v382
        %v404 = vmul.f32 %v366, %v382
        %v405 = vmul.f32 %v367, %v382
        %v406 = vmul.f32 %v368, %v382
        %v407 = vmul.f32 %v369, %v382
        %v408 = vmul.f32 %v370, %v382
        %v409 = vmul.f32 %v371, %v382
        %v410 = vmul.f32 %v372, %v382
        %v411 = vmul.f32 %v373, %v382
        %v412 = vmul.f32 %v374, %v382
        %v413 = vmul.f32 %v375, %v382
        %v414 = vmul.f32 %v376, %v382
        %v415 = vmul.f32 %v377, %v382
        %v417 = vlaneseq
        %v418 = vshrl.u32 %v417, 7
        %v419 = vsub.s32 0, %v418
        %v420 = vrot.slane %v301, %v419
        %v422 = vadd.f32 %v384, %v420
        %v423 = vadd.f32 %v385, %v420
        %v424 = vadd.f32 %v386, %v420
        %v425 = vadd.f32 %v387, %v420
        %v426 = vadd.f32 %v388, %v420
        %v427 = vadd.f32 %v389, %v420
        %v428 = vadd.f32 %v390, %v420
        %v429 = vadd.f32 %v391, %v420
        %v430 = vadd.f32 %v392, %v420
        %v431 = vadd.f32 %v393, %v420
        %v432 = vadd.f32 %v394, %v420
        %v433 = vadd.f32 %v395, %v420
        %v434 = vadd.f32 %v396, %v420
        %v435 = vadd.f32 %v397, %v420
        %v436 = vadd.f32 %v398, %v420
        %v437 = vadd.f32 %v399, %v420
        %v438 = vadd.f32 %v400, %v420
        %v439 = vadd.f32 %v401, %v420
        %v440 = vadd.f32 %v402, %v420
        %v441 = vadd.f32 %v403, %v420
        %v442 = vadd.f32 %v404, %v420
        %v443 = vadd.f32 %v405, %v420
        %v444 = vadd.f32 %v406, %v420
        %v445 = vadd.f32 %v407, %v420
        %v446 = vadd.f32 %v408, %v420
        %v447 = vadd.f32 %v409, %v420
        %v448 = vadd.f32 %v410, %v420
        %v449 = vadd.f32 %v411, %v420
        %v450 = vadd.f32 %v412, %v420
        %v451 = vadd.f32 %v413, %v420
        %v452 = vadd.f32 %v414, %v420
        %v453 = vadd.f32 %v415, %v420
        %vm454 = vcmp.gt.f32.partialorder %v422, 0.0
        %vm455 = vcmp.gt.f32.partialorder %v423, 0.0
        %vm456 = vcmp.gt.f32.partialorder %v424, 0.0
        %vm457 = vcmp.gt.f32.partialorder %v425, 0.0
        %vm458 = vcmp.gt.f32.partialorder %v426, 0.0
        %vm459 = vcmp.gt.f32.partialorder %v427, 0.0
        %vm460 = vcmp.gt.f32.partialorder %v428, 0.0
        %vm461 = vcmp.gt.f32.partialorder %v429, 0.0
        %vm462 = vcmp.gt.f32.partialorder %v430, 0.0
        %vm463 = vcmp.gt.f32.partialorder %v431, 0.0
        %vm464 = vcmp.gt.f32.partialorder %v432, 0.0
        %vm465 = vcmp.gt.f32.partialorder %v433, 0.0
        %vm466 = vcmp.gt.f32.partialorder %v434, 0.0
        %vm467 = vcmp.gt.f32.partialorder %v435, 0.0
        %vm468 = vcmp.gt.f32.partialorder %v436, 0.0
        %vm469 = vcmp.gt.f32.partialorder %v437, 0.0
        %vm470 = vcmp.gt.f32.partialorder %v438, 0.0
        %vm471 = vcmp.gt.f32.partialorder %v439, 0.0
        %vm472 = vcmp.gt.f32.partialorder %v440, 0.0
        %vm473 = vcmp.gt.f32.partialorder %v441, 0.0
        %vm474 = vcmp.gt.f32.partialorder %v442, 0.0
        %vm475 = vcmp.gt.f32.partialorder %v443, 0.0
        %vm476 = vcmp.gt.f32.partialorder %v444, 0.0
        %vm477 = vcmp.gt.f32.partialorder %v445, 0.0
        %vm478 = vcmp.gt.f32.partialorder %v446, 0.0
        %vm479 = vcmp.gt.f32.partialorder %v447, 0.0
        %vm480 = vcmp.gt.f32.partialorder %v448, 0.0
        %vm481 = vcmp.gt.f32.partialorder %v449, 0.0
        %vm482 = vcmp.gt.f32.partialorder %v450, 0.0
        %vm483 = vcmp.gt.f32.partialorder %v451, 0.0
        %vm484 = vcmp.gt.f32.partialorder %v452, 0.0
        %vm485 = vcmp.gt.f32.partialorder %v453, 0.0
        %v486 = vmul.f32 %v422, 0.01
        %v487 = vmul.f32 %v423, 0.01
        %v488 = vmul.f32 %v424, 0.01
        %v489 = vmul.f32 %v425, 0.01
        %v490 = vmul.f32 %v426, 0.01
        %v491 = vmul.f32 %v427, 0.01
        %v492 = vmul.f32 %v428, 0.01
        %v493 = vmul.f32 %v429, 0.01
        %v494 = vmul.f32 %v430, 0.01
        %v495 = vmul.f32 %v431, 0.01
        %v496 = vmul.f32 %v432, 0.01
        %v497 = vmul.f32 %v433, 0.01
        %v498 = vmul.f32 %v434, 0.01
        %v499 = vmul.f32 %v435, 0.01
        %v500 = vmul.f32 %v436, 0.01
        %v501 = vmul.f32 %v437, 0.01
        %v502 = vmul.f32 %v438, 0.01
        %v503 = vmul.f32 %v439, 0.01
        %v504 = vmul.f32 %v440, 0.01
        %v505 = vmul.f32 %v441, 0.01
        %v506 = vmul.f32 %v442, 0.01
        %v507 = vmul.f32 %v443, 0.01
        %v508 = vmul.f32 %v444, 0.01
        %v509 = vmul.f32 %v445, 0.01
        %v510 = vmul.f32 %v446, 0.01
        %v511 = vmul.f32 %v447, 0.01
        %v512 = vmul.f32 %v448, 0.01
        %v513 = vmul.f32 %v449, 0.01
        %v514 = vmul.f32 %v450, 0.01
        %v515 = vmul.f32 %v451, 0.01
        %v516 = vmul.f32 %v452, 0.01
        %v517 = vmul.f32 %v453, 0.01
        %v518 = vsel %vm454, %v422, %v486
        %v519 = vsel %vm455, %v423, %v487
        %v520 = vsel %vm456, %v424, %v488
        %v521 = vsel %vm457, %v425, %v489
        %v522 = vsel %vm458, %v426, %v490
        %v523 = vsel %vm459, %v427, %v491
        %v524 = vsel %vm460, %v428, %v492
        %v525 = vsel %vm461, %v429, %v493
        %v526 = vsel %vm462, %v430, %v494
        %v527 = vsel %vm463, %v431, %v495
        %v528 = vsel %vm464, %v432, %v496
        %v529 = vsel %vm465, %v433, %v497
        %v530 = vsel %vm466, %v434, %v498
        %v531 = vsel %vm467, %v435, %v499
        %v532 = vsel %vm468, %v436, %v500
        %v533 = vsel %vm469, %v437, %v501
        %v534 = vsel %vm470, %v438, %v502
        %v535 = vsel %vm471, %v439, %v503
        %v536 = vsel %vm472, %v440, %v504
        %v537 = vsel %vm473, %v441, %v505
        %v538 = vsel %vm474, %v442, %v506
        %v539 = vsel %vm475, %v443, %v507
        %v540 = vsel %vm476, %v444, %v508
        %v541 = vsel %vm477, %v445, %v509
        %v542 = vsel %vm478, %v446, %v510
        %v543 = vsel %vm479, %v447, %v511
        %v544 = vsel %vm480, %v448, %v512
        %v545 = vsel %vm481, %v449, %v513
        %v546 = vsel %vm482, %v450, %v514
        %v547 = vsel %vm483, %v451, %v515
        %v548 = vsel %vm484, %v452, %v516
        %v549 = vsel %vm485, %v453, %v517
        %s550 = scalar_lea.vmem [#allocation2], 24
        %551 = vst [vmem:[%s550 + $0x1] sm:$0xff] %v518
        %552 = vst [vmem:[%s550 + $0x9] sm:$0xff] %v519
        %553 = vst [vmem:[%s550 + $0x19] sm:$0xff] %v520
        %554 = vst [vmem:[%s550 + $0x21] sm:$0xff] %v521
        %555 = vst [vmem:[%s550 + $0x31] sm:$0xff] %v522
        %556 = vst [vmem:[%s550 + $0x39] sm:$0xff] %v523
        %557 = vst [vmem:[%s550 + $0x49] sm:$0xff] %v524
        %558 = vst [vmem:[%s550 + $0x51] sm:$0xff] %v525
        %559 = vst [vmem:[%s550 + $0x61] sm:$0xff] %v526
        %560 = vst [vmem:[%s550 + $0x69] sm:$0xff] %v527
        %561 = vst [vmem:[%s550 + $0x79] sm:$0xff] %v528
        %562 = vst [vmem:[%s550 + $0x81] sm:$0xff] %v529
        %563 = vst [vmem:[%s550 + $0x91] sm:$0xff] %v530
        %564 = vst [vmem:[%s550 + $0x99] sm:$0xff] %v531
        %565 = vst [vmem:[%s550 + $0xa9] sm:$0xff] %v532
        %566 = vst [vmem:[%s550 + $0xb1] sm:$0xff] %v533
        %567 = vst [vmem:[%s550 + $0xc1] sm:$0xff] %v534
        %568 = vst [vmem:[%s550 + $0xc9] sm:$0xff] %v535
        %569 = vst [vmem:[%s550 + $0xd9] sm:$0xff] %v536
        %570 = vst [vmem:[%s550 + $0xe1] sm:$0xff] %v537
        %571 = vst [vmem:[%s550 + $0xf1] sm:$0xff] %v538
        %572 = vst [vmem:[%s550 + $0xf9] sm:$0xff] %v539
        %573 = vst [vmem:[%s550 + $0x109] sm:$0xff] %v540
        %574 = vst [vmem:[%s550 + $0x111] sm:$0xff] %v541
        %575 = vst [vmem:[%s550 + $0x121] sm:$0xff] %v542
        %576 = vst [vmem:[%s550 + $0x129] sm:$0xff] %v543
        %577 = vst [vmem:[%s550 + $0x139] sm:$0xff] %v544
        %578 = vst [vmem:[%s550 + $0x141] sm:$0xff] %v545
        %579 = vst [vmem:[%s550 + $0x151] sm:$0xff] %v546
        %580 = vst [vmem:[%s550 + $0x159] sm:$0xff] %v547
        %581 = vst [vmem:[%s550 + $0x169] sm:$0xff] %v548
        %582 = vst [vmem:[%s550 + $0x171] sm:$0xff] %v549
        %v584 = vlaneseq
        %v585 = vshrl.u32 %v584, 7
        %v586 = vsub.s32 0, %v585
        %v587 = vrot.slane %v302, %v586
        %589 = vst [vmem:[#allocation3] sm:$0xff] %v587
        %590 = vst [vmem:[#allocation3 + $0x8] sm:$0xff] %v587
        %591 = vst [vmem:[#allocation3 + $0x10] sm:$0xff] %v587
        %592 = vst [vmem:[#allocation3 + $0x18] sm:$0xff] %v587
        %593 = vst [vmem:[#allocation3 + $0x20] sm:$0xff] %v587
        %594 = vst [vmem:[#allocation3 + $0x28] sm:$0xff] %v587
        %595 = vst [vmem:[#allocation3 + $0x30] sm:$0xff] %v587
        %596 = vst [vmem:[#allocation3 + $0x38] sm:$0xff] %v587
        %597 = vst [vmem:[#allocation3 + $0x40] sm:$0xff] %v587
        %598 = vst [vmem:[#allocation3 + $0x48] sm:$0xff] %v587
        %599 = vst [vmem:[#allocation3 + $0x50] sm:$0xff] %v587
        %600 = vst [vmem:[#allocation3 + $0x58] sm:$0xff] %v587
        %601 = vst [vmem:[#allocation3 + $0x60] sm:$0xff] %v587
        %602 = vst [vmem:[#allocation3 + $0x68] sm:$0xff] %v587
        %603 = vst [vmem:[#allocation3 + $0x70] sm:$0xff] %v587
        %604 = vst [vmem:[#allocation3 + $0x78] sm:$0xff] %v587
        %605 = vst [vmem:[#allocation3 + $0x80] sm:$0xff] %v587
        %606 = vst [vmem:[#allocation3 + $0x88] sm:$0xff] %v587
        %607 = vst [vmem:[#allocation3 + $0x90] sm:$0xff] %v587
        %608 = vst [vmem:[#allocation3 + $0x98] sm:$0xff] %v587
        %609 = vst [vmem:[#allocation3 + $0xa0] sm:$0xff] %v587
        %610 = vst [vmem:[#allocation3 + $0xa8] sm:$0xff] %v587
        %611 = vst [vmem:[#allocation3 + $0xb0] sm:$0xff] %v587
        %612 = vst [vmem:[#allocation3 + $0xb8] sm:$0xff] %v587
        %613 = vst [vmem:[#allocation3 + $0xc0] sm:$0xff] %v587
        %614 = vst [vmem:[#allocation3 + $0xc8] sm:$0xff] %v587
        %615 = vst [vmem:[#allocation3 + $0xd0] sm:$0xff] %v587
        %616 = vst [vmem:[#allocation3 + $0xd8] sm:$0xff] %v587
        %617 = vst [vmem:[#allocation3 + $0xe0] sm:$0xff] %v587
        %618 = vst [vmem:[#allocation3 + $0xe8] sm:$0xff] %v587
        %619 = vst [vmem:[#allocation3 + $0xf0] sm:$0xff] %v587
        %620 = vst [vmem:[#allocation3 + $0xf8] sm:$0xff] %v587
        %v621 = vld [vmem:[#allocation2] sm:$0xff]
        %v622 = vld [vmem:[#allocation2 + $0x8] sm:$0xff]
        %v623 = vld [vmem:[#allocation2 + $0x10] sm:$0xff]
        %v624 = vld [vmem:[#allocation2 + $0x18] sm:$0xff]
        %v625 = vld [vmem:[#allocation2 + $0x20] sm:$0xff]
        %v626 = vld [vmem:[#allocation2 + $0x28] sm:$0xff]
        %v627 = vld [vmem:[#allocation2 + $0x30] sm:$0xff]
        %v628 = vld [vmem:[#allocation2 + $0x38] sm:$0xff]
        %v629 = vld [vmem:[#allocation2 + $0x40] sm:$0xff]
        %v630 = vld [vmem:[#allocation2 + $0x48] sm:$0xff]
        %v631 = vld [vmem:[#allocation2 + $0x50] sm:$0xff]
        %v632 = vld [vmem:[#allocation2 + $0x58] sm:$0xff]
        %v633 = vld [vmem:[#allocation2 + $0x60] sm:$0xff]
        %v634 = vld [vmem:[#allocation2 + $0x68] sm:$0xff]
        %v635 = vld [vmem:[#allocation2 + $0x70] sm:$0xff]
        %v636 = vld [vmem:[#allocation2 + $0x78] sm:$0xff]
        %v637 = vld [vmem:[#allocation2 + $0x80] sm:$0xff]
        %v638 = vld [vmem:[#allocation2 + $0x88] sm:$0xff]
        %v639 = vld [vmem:[#allocation2 + $0x90] sm:$0xff]
        %v640 = vld [vmem:[#allocation2 + $0x98] sm:$0xff]
        %v641 = vld [vmem:[#allocation2 + $0xa0] sm:$0xff]
        %v642 = vld [vmem:[#allocation2 + $0xa8] sm:$0xff]
        %v643 = vld [vmem:[#allocation2 + $0xb0] sm:$0xff]
        %v644 = vld [vmem:[#allocation2 + $0xb8] sm:$0xff]
        %v645 = vld [vmem:[#allocation2 + $0xc0] sm:$0xff]
        %v646 = vld [vmem:[#allocation2 + $0xc8] sm:$0xff]
        %v647 = vld [vmem:[#allocation2 + $0xd0] sm:$0xff]
        %v648 = vld [vmem:[#allocation2 + $0xd8] sm:$0xff]
        %v649 = vld [vmem:[#allocation2 + $0xe0] sm:$0xff]
        %v650 = vld [vmem:[#allocation2 + $0xe8] sm:$0xff]
        %v651 = vld [vmem:[#allocation2 + $0xf0] sm:$0xff]
        %v652 = vld [vmem:[#allocation2 + $0xf8] sm:$0xff]
        %v653 = vld [vmem:[#allocation2 + $0x100] sm:$0xff]
        %v654 = vld [vmem:[#allocation2 + $0x108] sm:$0xff]
        %v655 = vld [vmem:[#allocation2 + $0x110] sm:$0xff]
        %v656 = vld [vmem:[#allocation2 + $0x118] sm:$0xff]
        %v657 = vld [vmem:[#allocation2 + $0x120] sm:$0xff]
        %v658 = vld [vmem:[#allocation2 + $0x128] sm:$0xff]
        %v659 = vld [vmem:[#allocation2 + $0x130] sm:$0xff]
        %v660 = vld [vmem:[#allocation2 + $0x138] sm:$0xff]
        %v661 = vld [vmem:[#allocation2 + $0x140] sm:$0xff]
        %v662 = vld [vmem:[#allocation2 + $0x148] sm:$0xff]
        %v663 = vld [vmem:[#allocation2 + $0x150] sm:$0xff]
        %v664 = vld [vmem:[#allocation2 + $0x158] sm:$0xff]
        %v665 = vld [vmem:[#allocation2 + $0x160] sm:$0xff]
        %v666 = vld [vmem:[#allocation2 + $0x168] sm:$0xff]
        %v667 = vld [vmem:[#allocation2 + $0x170] sm:$0xff]
        %v668 = vld [vmem:[#allocation2 + $0x178] sm:$0xff]
        %v669 = vpack.c.bf16 %v622, %v621
        %v670 = vpack.c.bf16 %v624, %v623
        %v671 = vpack.c.bf16 %v626, %v625
        %v672 = vpack.c.bf16 %v628, %v627
        %v673 = vpack.c.bf16 %v630, %v629
        %v674 = vpack.c.bf16 %v632, %v631
        %v675 = vpack.c.bf16 %v634, %v633
        %v676 = vpack.c.bf16 %v636, %v635
        %v677 = vpack.c.bf16 %v638, %v637
        %v678 = vpack.c.bf16 %v640, %v639
        %v679 = vpack.c.bf16 %v642, %v641
        %v680 = vpack.c.bf16 %v644, %v643
        %v681 = vpack.c.bf16 %v646, %v645
        %v682 = vpack.c.bf16 %v648, %v647
        %v683 = vpack.c.bf16 %v650, %v649
        %v684 = vpack.c.bf16 %v652, %v651
        %v685 = vpack.c.bf16 %v654, %v653
        %v686 = vpack.c.bf16 %v656, %v655
        %v687 = vpack.c.bf16 %v658, %v657
        %v688 = vpack.c.bf16 %v660, %v659
        %v689 = vpack.c.bf16 %v662, %v661
        %v690 = vpack.c.bf16 %v664, %v663
        %v691 = vpack.c.bf16 %v666, %v665
        %v692 = vpack.c.bf16 %v668, %v667
        %v693 = vld [vmem:[#allocation7] sm:$0xf]
        %v694 = vld [vmem:[#allocation7 + $0x4] sm:$0xf]
        %v695 = vld [vmem:[#allocation7 + $0x8] sm:$0xf]
        %v696 = vld [vmem:[#allocation7 + $0xc] sm:$0xf]
        %v697 = vld [vmem:[#allocation7 + $0x10] sm:$0xf]
        %v698 = vld [vmem:[#allocation7 + $0x14] sm:$0xf]
        %v699 = vld [vmem:[#allocation7 + $0x18] sm:$0xf]
        %v700 = vld [vmem:[#allocation7 + $0x1c] sm:$0xf]
        %v701 = vld [vmem:[#allocation7 + $0x20] sm:$0xf]
        %v702 = vld [vmem:[#allocation7 + $0x24] sm:$0xf]
        %v703 = vld [vmem:[#allocation7 + $0x28] sm:$0xf]
        %v704 = vld [vmem:[#allocation7 + $0x2c] sm:$0xf]
        %v705 = vld [vmem:[#allocation7 + $0x30] sm:$0xf]
        %v706 = vld [vmem:[#allocation7 + $0x34] sm:$0xf]
        %v707 = vld [vmem:[#allocation7 + $0x38] sm:$0xf]
        %v708 = vld [vmem:[#allocation7 + $0x3c] sm:$0xf]
        %v709 = vld [vmem:[%s550] sm:$0xff]
        %v710 = vld [vmem:[%s550 + $0x8] sm:$0xff]
        %v711 = vld [vmem:[%s550 + $0x10] sm:$0xff]
        %v712 = vld [vmem:[%s550 + $0x18] sm:$0xff]
        %v713 = vld [vmem:[%s550 + $0x20] sm:$0xff]
        %v714 = vld [vmem:[%s550 + $0x28] sm:$0xff]
        %v715 = vld [vmem:[%s550 + $0x30] sm:$0xff]
        %v716 = vld [vmem:[%s550 + $0x38] sm:$0xff]
        %v717 = vld [vmem:[%s550 + $0x40] sm:$0xff]
        %v718 = vld [vmem:[%s550 + $0x48] sm:$0xff]
        %v719 = vld [vmem:[%s550 + $0x50] sm:$0xff]
        %v720 = vld [vmem:[%s550 + $0x58] sm:$0xff]
        %v721 = vld [vmem:[%s550 + $0x60] sm:$0xff]
        %v722 = vld [vmem:[%s550 + $0x68] sm:$0xff]
        %v723 = vld [vmem:[%s550 + $0x70] sm:$0xff]
        %v724 = vld [vmem:[%s550 + $0x78] sm:$0xff]
        %v725 = vld [vmem:[%s550 + $0x80] sm:$0xff]
        %v726 = vld [vmem:[%s550 + $0x88] sm:$0xff]
        %v727 = vld [vmem:[%s550 + $0x90] sm:$0xff]
        %v728 = vld [vmem:[%s550 + $0x98] sm:$0xff]
        %v729 = vld [vmem:[%s550 + $0xa0] sm:$0xff]
        %v730 = vld [vmem:[%s550 + $0xa8] sm:$0xff]
        %v731 = vld [vmem:[%s550 + $0xb0] sm:$0xff]
        %v732 = vld [vmem:[%s550 + $0xb8] sm:$0xff]
        %v733 = vld [vmem:[%s550 + $0xc0] sm:$0xff]
        %v734 = vld [vmem:[%s550 + $0xc8] sm:$0xff]
        %v735 = vld [vmem:[%s550 + $0xd0] sm:$0xff]
        %v736 = vld [vmem:[%s550 + $0xd8] sm:$0xff]
        %v737 = vld [vmem:[%s550 + $0xe0] sm:$0xff]
        %v738 = vld [vmem:[%s550 + $0xe8] sm:$0xff]
        %v739 = vld [vmem:[%s550 + $0xf0] sm:$0xff]
        %v740 = vld [vmem:[%s550 + $0xf8] sm:$0xff]
        %v741 = vld [vmem:[%s550 + $0x100] sm:$0xff]
        %v742 = vld [vmem:[%s550 + $0x108] sm:$0xff]
        %v743 = vld [vmem:[%s550 + $0x110] sm:$0xff]
        %v744 = vld [vmem:[%s550 + $0x118] sm:$0xff]
        %v745 = vld [vmem:[%s550 + $0x120] sm:$0xff]
        %v746 = vld [vmem:[%s550 + $0x128] sm:$0xff]
        %v747 = vld [vmem:[%s550 + $0x130] sm:$0xff]
        %v748 = vld [vmem:[%s550 + $0x138] sm:$0xff]
        %v749 = vld [vmem:[%s550 + $0x140] sm:$0xff]
        %v750 = vld [vmem:[%s550 + $0x148] sm:$0xff]
        %v751 = vld [vmem:[%s550 + $0x150] sm:$0xff]
        %v752 = vld [vmem:[%s550 + $0x158] sm:$0xff]
        %v753 = vld [vmem:[%s550 + $0x160] sm:$0xff]
        %v754 = vld [vmem:[%s550 + $0x168] sm:$0xff]
        %v755 = vld [vmem:[%s550 + $0x170] sm:$0xff]
        %v756 = vld [vmem:[%s550 + $0x178] sm:$0xff]
        %v757 = vpack.c.bf16 %v710, %v709
        %v758 = vpack.c.bf16 %v712, %v711
        %v759 = vpack.c.bf16 %v714, %v713
        %v760 = vpack.c.bf16 %v716, %v715
        %v761 = vpack.c.bf16 %v718, %v717
        %v762 = vpack.c.bf16 %v720, %v719
        %v763 = vpack.c.bf16 %v722, %v721
        %v764 = vpack.c.bf16 %v724, %v723
        %v765 = vpack.c.bf16 %v726, %v725
        %v766 = vpack.c.bf16 %v728, %v727
        %v767 = vpack.c.bf16 %v730, %v729
        %v768 = vpack.c.bf16 %v732, %v731
        %v769 = vpack.c.bf16 %v734, %v733
        %v770 = vpack.c.bf16 %v736, %v735
        %v771 = vpack.c.bf16 %v738, %v737
        %v772 = vpack.c.bf16 %v740, %v739
        %v773 = vpack.c.bf16 %v742, %v741
        %v774 = vpack.c.bf16 %v744, %v743
        %v775 = vpack.c.bf16 %v746, %v745
        %v776 = vpack.c.bf16 %v748, %v747
        %v777 = vpack.c.bf16 %v750, %v749
        %v778 = vpack.c.bf16 %v752, %v751
        %v779 = vpack.c.bf16 %v754, %v753
        %v780 = vpack.c.bf16 %v756, %v755
        %s781 = scalar_lea.vmem [#allocation7], 192
        %v782 = vld [vmem:[%s781] sm:$0xf]
        %v783 = vld [vmem:[%s781 + $0x4] sm:$0xf]
        %v784 = vld [vmem:[%s781 + $0x8] sm:$0xf]
        %v785 = vld [vmem:[%s781 + $0xc] sm:$0xf]
        %v786 = vld [vmem:[%s781 + $0x10] sm:$0xf]
        %v787 = vld [vmem:[%s781 + $0x14] sm:$0xf]
        %v788 = vld [vmem:[%s781 + $0x18] sm:$0xf]
        %v789 = vld [vmem:[%s781 + $0x1c] sm:$0xf]
        %v790 = vld [vmem:[%s781 + $0x20] sm:$0xf]
        %v791 = vld [vmem:[%s781 + $0x24] sm:$0xf]
        %v792 = vld [vmem:[%s781 + $0x28] sm:$0xf]
        %v793 = vld [vmem:[%s781 + $0x2c] sm:$0xf]
        %v794 = vld [vmem:[%s781 + $0x30] sm:$0xf]
        %v795 = vld [vmem:[%s781 + $0x34] sm:$0xf]
        %v796 = vld [vmem:[%s781 + $0x38] sm:$0xf]
        %v797 = vld [vmem:[%s781 + $0x3c] sm:$0xf]
        %v814 = vunpack.c.l.b16 %v782
        %v815 = vunpack.c.l.b16 %v783
        %v816 = vunpack.c.l.b16 %v784
        %v817 = vunpack.c.l.b16 %v785
        %v818 = vunpack.c.l.b16 %v786
        %v819 = vunpack.c.l.b16 %v787
        %v820 = vunpack.c.l.b16 %v788
        %v821 = vunpack.c.l.b16 %v789
        %v822 = vunpack.c.l.b16 %v790
        %v823 = vunpack.c.l.b16 %v791
        %v824 = vunpack.c.l.b16 %v792
        %v825 = vunpack.c.l.b16 %v793
        %v826 = vunpack.c.l.b16 %v794
        %v827 = vunpack.c.l.b16 %v795
        %v828 = vunpack.c.l.b16 %v796
        %v829 = vunpack.c.l.b16 %v797
        %v830 = vpack.c.b16 %v815, %v814
        %v831 = vpack.c.b16 %v817, %v816
        %v832 = vpack.c.b16 %v819, %v818
        %v833 = vpack.c.b16 %v821, %v820
        %v834 = vpack.c.b16 %v823, %v822
        %v835 = vpack.c.b16 %v825, %v824
        %v836 = vpack.c.b16 %v827, %v826
        %v837 = vpack.c.b16 %v829, %v828
        %846 = vmatprep.subr.bf16.mxu0 0
        %847 = vmatpush1.bf16.msra.mxu0 %v837
        %848 = vmatprep.subr.bf16.mxu0 0
        %849 = vmatpush1.bf16.msra.mxu0 %v836
        %850 = vmatprep.subr.bf16.mxu0 0
        %851 = vmatpush1.bf16.msra.mxu0 %v835
        %852 = vmatprep.subr.bf16.mxu0 0
        %853 = vmatpush1.bf16.msra.mxu0 %v834
        %854 = vmatprep.subr.bf16.mxu0 0
        %855 = vmatpush1.bf16.msra.mxu0 %v833
        %856 = vmatprep.subr.bf16.mxu0 0
        %857 = vmatpush1.bf16.msra.mxu0 %v832
        %858 = vmatprep.subr.bf16.mxu0 0
        %859 = vmatpush1.bf16.msra.mxu0 %v831
        %860 = vmatprep.subr.bf16.mxu0 0
        %861 = vmatpush1.bf16.msra.mxu0 %v830
        %862 = vmatprep.subr.bf16.mxu0 0
        %863 = vmatpush2.bf16.msra.mxu0 0
        %864 = vmatprep.subr.bf16.mxu0 0
        %865 = vmatpush2.bf16.msra.mxu0 0
        %866 = vmatprep.subr.bf16.mxu0 0
        %867 = vmatpush2.bf16.msra.mxu0 0
        %868 = vmatprep.subr.bf16.mxu0 0
        %869 = vmatpush2.bf16.msra.mxu0 0
        %870 = vmatprep.subr.bf16.mxu0 0
        %871 = vmatpush2.bf16.msra.mxu0 0
        %872 = vmatprep.subr.bf16.mxu0 0
        %873 = vmatpush2.bf16.msra.mxu0 0
        %874 = vmatprep.subr.bf16.mxu0 0
        %875 = vmatpush2.bf16.msra.mxu0 0
        %876 = vmatprep.subr.bf16.mxu0 0
        %877 = vmatpush2.bf16.msra.mxu0 0
        %878 = vmatprep.mubr.bf16.mxu0 0
        %879 = vmatmul.mubr.bf16.gmra.mxu0 %v757
        %v880 = vpop.f32.mrf.mxu0
        %v881 = vadd.f32 0.0, %v880
        %v882 = vpop.f32.mrf.mxu0
        %v883 = vpop.f32.mrf.mxu0
        %v884 = vadd.f32 0.0, %v883
        %v885 = vpop.f32.mrf.mxu0
        %886 = vmatprep.mubr.bf16.mxu0 0
        %887 = vmatmul.mubr.bf16.gmra.mxu0 %v758
        %v888 = vpop.f32.mrf.mxu0
        %v889 = vpop.f32.mrf.mxu0
        %v890 = vpop.f32.mrf.mxu0
        %v891 = vadd.f32 0.0, %v890
        %v892 = vpop.f32.mrf.mxu0
        %893 = vmatprep.mubr.bf16.mxu0 0
        %894 = vmatmul.mubr.bf16.gmra.mxu0 %v759
        %v895 = vpop.f32.mrf.mxu0
        %v896 = vadd.f32 0.0, %v895
        %v897 = vpop.f32.mrf.mxu0
        %v898 = vpop.f32.mrf.mxu0
        %v899 = vpop.f32.mrf.mxu0
        %900 = vmatprep.mubr.bf16.mxu0 0
        %901 = vmatmul.mubr.bf16.gmra.mxu0 %v760
        %v902 = vpop.f32.mrf.mxu0
        %v903 = vadd.f32 0.0, %v902
        %v904 = vpop.f32.mrf.mxu0
        %v905 = vpop.f32.mrf.mxu0
        %v906 = vadd.f32 0.0, %v905
        %v907 = vpop.f32.mrf.mxu0
        %908 = vmatprep.mubr.bf16.mxu0 0
        %909 = vmatmul.mubr.bf16.gmra.mxu0 %v761
        %v910 = vpop.f32.mrf.mxu0
        %v911 = vpop.f32.mrf.mxu0
        %v912 = vpop.f32.mrf.mxu0
        %v913 = vadd.f32 0.0, %v912
        %v914 = vpop.f32.mrf.mxu0
        %915 = vmatprep.mubr.bf16.mxu0 0
        %916 = vmatmul.mubr.bf16.gmra.mxu0 %v762
        %v917 = vpop.f32.mrf.mxu0
        %v918 = vadd.f32 0.0, %v917
        %v919 = vpop.f32.mrf.mxu0
        %v920 = vpop.f32.mrf.mxu0
        %v921 = vpop.f32.mrf.mxu0
        %922 = vmatprep.mubr.bf16.mxu0 0
        %923 = vmatmul.mubr.bf16.gmra.mxu0 %v763
        %v924 = vpop.f32.mrf.mxu0
        %v925 = vadd.f32 0.0, %v924
        %v926 = vpop.f32.mrf.mxu0
        %v927 = vpop.f32.mrf.mxu0
        %v928 = vadd.f32 0.0, %v927
        %v929 = vpop.f32.mrf.mxu0
        %930 = vmatprep.mubr.bf16.mxu0 0
        %931 = vmatmul.mubr.bf16.gmra.mxu0 %v764
        %v932 = vpop.f32.mrf.mxu0
        %v933 = vpop.f32.mrf.mxu0
        %v934 = vpop.f32.mrf.mxu0
        %v935 = vadd.f32 0.0, %v934
        %v936 = vpop.f32.mrf.mxu0
        %937 = vmatprep.mubr.bf16.mxu0 0
        %938 = vmatmul.mubr.bf16.gmra.mxu0 %v765
        %v939 = vpop.f32.mrf.mxu0
        %v940 = vadd.f32 0.0, %v939
        %v941 = vpop.f32.mrf.mxu0
        %v942 = vpop.f32.mrf.mxu0
        %v943 = vpop.f32.mrf.mxu0
        %944 = vmatprep.mubr.bf16.mxu0 0
        %945 = vmatmul.mubr.bf16.gmra.mxu0 %v766
        %v946 = vpop.f32.mrf.mxu0
        %v947 = vadd.f32 0.0, %v946
        %v948 = vpop.f32.mrf.mxu0
        %v949 = vpop.f32.mrf.mxu0
        %v950 = vadd.f32 0.0, %v949
        %v951 = vpop.f32.mrf.mxu0
        %952 = vmatprep.mubr.bf16.mxu0 0
        %953 = vmatmul.mubr.bf16.gmra.mxu0 %v767
        %v954 = vpop.f32.mrf.mxu0
        %v955 = vpop.f32.mrf.mxu0
        %v956 = vpop.f32.mrf.mxu0
        %v957 = vadd.f32 0.0, %v956
        %v958 = vpop.f32.mrf.mxu0
        %959 = vmatprep.mubr.bf16.mxu0 0
        %960 = vmatmul.mubr.bf16.gmra.mxu0 %v768
        %v961 = vpop.f32.mrf.mxu0
        %v962 = vadd.f32 0.0, %v961
        %v963 = vpop.f32.mrf.mxu0
        %v964 = vpop.f32.mrf.mxu0
        %v965 = vpop.f32.mrf.mxu0
        %966 = vmatprep.mubr.bf16.mxu0 0
        %967 = vmatmul.mubr.bf16.gmra.mxu0 %v769
        %v968 = vpop.f32.mrf.mxu0
        %v969 = vadd.f32 0.0, %v968
        %v970 = vpop.f32.mrf.mxu0
        %v971 = vpop.f32.mrf.mxu0
        %v972 = vadd.f32 0.0, %v971
        %v973 = vpop.f32.mrf.mxu0
        %974 = vmatprep.mubr.bf16.mxu0 0
        %975 = vmatmul.mubr.bf16.gmra.mxu0 %v770
        %v976 = vpop.f32.mrf.mxu0
        %v977 = vpop.f32.mrf.mxu0
        %v978 = vpop.f32.mrf.mxu0
        %v979 = vadd.f32 0.0, %v978
        %v980 = vpop.f32.mrf.mxu0
        %981 = vmatprep.mubr.bf16.mxu0 0
        %982 = vmatmul.mubr.bf16.gmra.mxu0 %v771
        %v983 = vpop.f32.mrf.mxu0
        %v984 = vadd.f32 0.0, %v983
        %v985 = vpop.f32.mrf.mxu0
        %v986 = vpop.f32.mrf.mxu0
        %v987 = vpop.f32.mrf.mxu0
        %988 = vmatprep.mubr.bf16.mxu0 0
        %989 = vmatmul.mubr.bf16.gmra.mxu0 %v772
        %v990 = vpop.f32.mrf.mxu0
        %v991 = vadd.f32 0.0, %v990
        %v992 = vpop.f32.mrf.mxu0
        %v993 = vpop.f32.mrf.mxu0
        %v994 = vadd.f32 0.0, %v993
        %v995 = vpop.f32.mrf.mxu0
        %996 = vmatprep.mubr.bf16.mxu0 0
        %997 = vmatmul.mubr.bf16.gmra.mxu0 %v773
        %v998 = vpop.f32.mrf.mxu0
        %v999 = vpop.f32.mrf.mxu0
        %v1000 = vpop.f32.mrf.mxu0
        %v1001 = vadd.f32 0.0, %v1000
        %v1002 = vpop.f32.mrf.mxu0
        %1003 = vmatprep.mubr.bf16.mxu0 0
        %1004 = vmatmul.mubr.bf16.gmra.mxu0 %v774
        %v1005 = vpop.f32.mrf.mxu0
        %v1006 = vadd.f32 0.0, %v1005
        %v1007 = vpop.f32.mrf.mxu0
        %v1008 = vpop.f32.mrf.mxu0
        %v1009 = vpop.f32.mrf.mxu0
        %1010 = vmatprep.mubr.bf16.mxu0 0
        %1011 = vmatmul.mubr.bf16.gmra.mxu0 %v775
        %v1012 = vpop.f32.mrf.mxu0
        %v1013 = vadd.f32 0.0, %v1012
        %v1014 = vpop.f32.mrf.mxu0
        %v1015 = vpop.f32.mrf.mxu0
        %v1016 = vadd.f32 0.0, %v1015
        %v1017 = vpop.f32.mrf.mxu0
        %1018 = vmatprep.mubr.bf16.mxu0 0
        %1019 = vmatmul.mubr.bf16.gmra.mxu0 %v776
        %v1020 = vpop.f32.mrf.mxu0
        %v1021 = vpop.f32.mrf.mxu0
        %v1022 = vpop.f32.mrf.mxu0
        %v1023 = vadd.f32 0.0, %v1022
        %v1024 = vpop.f32.mrf.mxu0
        %1025 = vmatprep.mubr.bf16.mxu0 0
        %1026 = vmatmul.mubr.bf16.gmra.mxu0 %v777
        %v1027 = vpop.f32.mrf.mxu0
        %v1028 = vadd.f32 0.0, %v1027
        %v1029 = vpop.f32.mrf.mxu0
        %v1030 = vpop.f32.mrf.mxu0
        %v1031 = vpop.f32.mrf.mxu0
        %1032 = vmatprep.mubr.bf16.mxu0 0
        %1033 = vmatmul.mubr.bf16.gmra.mxu0 %v778
        %v1034 = vpop.f32.mrf.mxu0
        %v1035 = vadd.f32 0.0, %v1034
        %v1036 = vpop.f32.mrf.mxu0
        %v1037 = vpop.f32.mrf.mxu0
        %v1038 = vadd.f32 0.0, %v1037
        %v1039 = vpop.f32.mrf.mxu0
        %1040 = vmatprep.mubr.bf16.mxu0 0
        %1041 = vmatmul.mubr.bf16.gmra.mxu0 %v779
        %v1042 = vpop.f32.mrf.mxu0
        %v1043 = vpop.f32.mrf.mxu0
        %v1044 = vpop.f32.mrf.mxu0
        %v1045 = vadd.f32 0.0, %v1044
        %v1046 = vpop.f32.mrf.mxu0
        %1047 = vmatprep.mubr.bf16.mxu0 0
        %1048 = vmatmul.mubr.bf16.gmra.mxu0 %v780
        %v1049 = vpop.f32.mrf.mxu0
        %v1050 = vadd.f32 0.0, %v1049
        %v1051 = vpop.f32.mrf.mxu0
        %v1052 = vpop.f32.mrf.mxu0
        %v1053 = vpop.f32.mrf.mxu0
        %1054 = vdwg.mxu0
        %v1071 = vunpack.c.l.b16 %v693
        %v1072 = vunpack.c.l.b16 %v694
        %v1073 = vunpack.c.l.b16 %v695
        %v1074 = vunpack.c.l.b16 %v696
        %v1075 = vunpack.c.l.b16 %v697
        %v1076 = vunpack.c.l.b16 %v698
        %v1077 = vunpack.c.l.b16 %v699
        %v1078 = vunpack.c.l.b16 %v700
        %v1079 = vunpack.c.l.b16 %v701
        %v1080 = vunpack.c.l.b16 %v702
        %v1081 = vunpack.c.l.b16 %v703
        %v1082 = vunpack.c.l.b16 %v704
        %v1083 = vunpack.c.l.b16 %v705
        %v1084 = vunpack.c.l.b16 %v706
        %v1085 = vunpack.c.l.b16 %v707
        %v1086 = vunpack.c.l.b16 %v708
        %v1087 = vpack.c.b16 %v1072, %v1071
        %v1088 = vpack.c.b16 %v1074, %v1073
        %v1089 = vpack.c.b16 %v1076, %v1075
        %v1090 = vpack.c.b16 %v1078, %v1077
        %v1091 = vpack.c.b16 %v1080, %v1079
        %v1092 = vpack.c.b16 %v1082, %v1081
        %v1093 = vpack.c.b16 %v1084, %v1083
        %v1094 = vpack.c.b16 %v1086, %v1085
        %1103 = vmatprep.subr.bf16.mxu0 0
        %1104 = vmatpush1.bf16.msra.mxu0 %v1094
        %1105 = vmatprep.subr.bf16.mxu0 0
        %1106 = vmatpush1.bf16.msra.mxu0 %v1093
        %1107 = vmatprep.subr.bf16.mxu0 0
        %1108 = vmatpush1.bf16.msra.mxu0 %v1092
        %1109 = vmatprep.subr.bf16.mxu0 0
        %1110 = vmatpush1.bf16.msra.mxu0 %v1091
        %1111 = vmatprep.subr.bf16.mxu0 0
        %1112 = vmatpush1.bf16.msra.mxu0 %v1090
        %1113 = vmatprep.subr.bf16.mxu0 0
        %1114 = vmatpush1.bf16.msra.mxu0 %v1089
        %1115 = vmatprep.subr.bf16.mxu0 0
        %1116 = vmatpush1.bf16.msra.mxu0 %v1088
        %1117 = vmatprep.subr.bf16.mxu0 0
        %1118 = vmatpush1.bf16.msra.mxu0 %v1087
        %1119 = vmatprep.subr.bf16.mxu0 0
        %1120 = vmatpush2.bf16.msra.mxu0 0
        %1121 = vmatprep.subr.bf16.mxu0 0
        %1122 = vmatpush2.bf16.msra.mxu0 0
        %1123 = vmatprep.subr.bf16.mxu0 0
        %1124 = vmatpush2.bf16.msra.mxu0 0
        %1125 = vmatprep.subr.bf16.mxu0 0
        %1126 = vmatpush2.bf16.msra.mxu0 0
        %1127 = vmatprep.subr.bf16.mxu0 0
        %1128 = vmatpush2.bf16.msra.mxu0 0
        %1129 = vmatprep.subr.bf16.mxu0 0
        %1130 = vmatpush2.bf16.msra.mxu0 0
        %1131 = vmatprep.subr.bf16.mxu0 0
        %1132 = vmatpush2.bf16.msra.mxu0 0
        %1133 = vmatprep.subr.bf16.mxu0 0
        %1134 = vmatpush2.bf16.msra.mxu0 0
        %1135 = vmatprep.mubr.bf16.mxu0 0
        %1136 = vmatmul.mubr.bf16.gmra.mxu0 %v669
        %v1137 = vpop.f32.mrf.mxu0
        %v1138 = vadd.f32 %v881, %v1137
        %v1139 = vpop.f32.mrf.mxu0
        %v1140 = vpop.f32.mrf.mxu0
        %v1141 = vadd.f32 %v884, %v1140
        %v1142 = vpop.f32.mrf.mxu0
        %1143 = vmatprep.mubr.bf16.mxu0 0
        %1144 = vmatmul.mubr.bf16.gmra.mxu0 %v670
        %v1145 = vpop.f32.mrf.mxu0
        %v1146 = vpop.f32.mrf.mxu0
        %v1147 = vpop.f32.mrf.mxu0
        %v1148 = vadd.f32 %v891, %v1147
        %v1149 = vpop.f32.mrf.mxu0
        %1150 = vmatprep.mubr.bf16.mxu0 0
        %1151 = vmatmul.mubr.bf16.gmra.mxu0 %v671
        %v1152 = vpop.f32.mrf.mxu0
        %v1153 = vadd.f32 %v896, %v1152
        %v1154 = vpop.f32.mrf.mxu0
        %v1155 = vpop.f32.mrf.mxu0
        %v1156 = vpop.f32.mrf.mxu0
        %1157 = vmatprep.mubr.bf16.mxu0 0
        %1158 = vmatmul.mubr.bf16.gmra.mxu0 %v672
        %v1159 = vpop.f32.mrf.mxu0
        %v1160 = vadd.f32 %v903, %v1159
        %v1161 = vpop.f32.mrf.mxu0
        %v1162 = vpop.f32.mrf.mxu0
        %v1163 = vadd.f32 %v906, %v1162
        %v1164 = vpop.f32.mrf.mxu0
        %1165 = vmatprep.mubr.bf16.mxu0 0
        %1166 = vmatmul.mubr.bf16.gmra.mxu0 %v673
        %v1167 = vpop.f32.mrf.mxu0
        %v1168 = vpop.f32.mrf.mxu0
        %v1169 = vpop.f32.mrf.mxu0
        %v1170 = vadd.f32 %v913, %v1169
        %v1171 = vpop.f32.mrf.mxu0
        %1172 = vmatprep.mubr.bf16.mxu0 0
        %1173 = vmatmul.mubr.bf16.gmra.mxu0 %v674
        %v1174 = vpop.f32.mrf.mxu0
        %v1175 = vadd.f32 %v918, %v1174
        %v1176 = vpop.f32.mrf.mxu0
        %v1177 = vpop.f32.mrf.mxu0
        %v1178 = vpop.f32.mrf.mxu0
        %1179 = vmatprep.mubr.bf16.mxu0 0
        %1180 = vmatmul.mubr.bf16.gmra.mxu0 %v675
        %v1181 = vpop.f32.mrf.mxu0
        %v1182 = vadd.f32 %v925, %v1181
        %v1183 = vpop.f32.mrf.mxu0
        %v1184 = vpop.f32.mrf.mxu0
        %v1185 = vadd.f32 %v928, %v1184
        %v1186 = vpop.f32.mrf.mxu0
        %1187 = vmatprep.mubr.bf16.mxu0 0
        %1188 = vmatmul.mubr.bf16.gmra.mxu0 %v676
        %v1189 = vpop.f32.mrf.mxu0
        %v1190 = vpop.f32.mrf.mxu0
        %v1191 = vpop.f32.mrf.mxu0
        %v1192 = vadd.f32 %v935, %v1191
        %v1193 = vpop.f32.mrf.mxu0
        %1194 = vmatprep.mubr.bf16.mxu0 0
        %1195 = vmatmul.mubr.bf16.gmra.mxu0 %v677
        %v1196 = vpop.f32.mrf.mxu0
        %v1197 = vadd.f32 %v940, %v1196
        %v1198 = vpop.f32.mrf.mxu0
        %v1199 = vpop.f32.mrf.mxu0
        %v1200 = vpop.f32.mrf.mxu0
        %1201 = vmatprep.mubr.bf16.mxu0 0
        %1202 = vmatmul.mubr.bf16.gmra.mxu0 %v678
        %v1203 = vpop.f32.mrf.mxu0
        %v1204 = vadd.f32 %v947, %v1203
        %v1205 = vpop.f32.mrf.mxu0
        %v1206 = vpop.f32.mrf.mxu0
        %v1207 = vadd.f32 %v950, %v1206
        %v1208 = vpop.f32.mrf.mxu0
        %1209 = vmatprep.mubr.bf16.mxu0 0
        %1210 = vmatmul.mubr.bf16.gmra.mxu0 %v679
        %v1211 = vpop.f32.mrf.mxu0
        %v1212 = vpop.f32.mrf.mxu0
        %v1213 = vpop.f32.mrf.mxu0
        %v1214 = vadd.f32 %v957, %v1213
        %v1215 = vpop.f32.mrf.mxu0
        %1216 = vmatprep.mubr.bf16.mxu0 0
        %1217 = vmatmul.mubr.bf16.gmra.mxu0 %v680
        %v1218 = vpop.f32.mrf.mxu0
        %v1219 = vadd.f32 %v962, %v1218
        %v1220 = vpop.f32.mrf.mxu0
        %v1221 = vpop.f32.mrf.mxu0
        %v1222 = vpop.f32.mrf.mxu0
        %1223 = vmatprep.mubr.bf16.mxu0 0
        %1224 = vmatmul.mubr.bf16.gmra.mxu0 %v681
        %v1225 = vpop.f32.mrf.mxu0
        %v1226 = vadd.f32 %v969, %v1225
        %v1227 = vpop.f32.mrf.mxu0
        %v1228 = vpop.f32.mrf.mxu0
        %v1229 = vadd.f32 %v972, %v1228
        %v1230 = vpop.f32.mrf.mxu0
        %1231 = vmatprep.mubr.bf16.mxu0 0
        %1232 = vmatmul.mubr.bf16.gmra.mxu0 %v682
        %v1233 = vpop.f32.mrf.mxu0
        %v1234 = vpop.f32.mrf.mxu0
        %v1235 = vpop.f32.mrf.mxu0
        %v1236 = vadd.f32 %v979, %v1235
        %v1237 = vpop.f32.mrf.mxu0
        %1238 = vmatprep.mubr.bf16.mxu0 0
        %1239 = vmatmul.mubr.bf16.gmra.mxu0 %v683
        %v1240 = vpop.f32.mrf.mxu0
        %v1241 = vadd.f32 %v984, %v1240
        %v1242 = vpop.f32.mrf.mxu0
        %v1243 = vpop.f32.mrf.mxu0
        %v1244 = vpop.f32.mrf.mxu0
        %1245 = vmatprep.mubr.bf16.mxu0 0
        %1246 = vmatmul.mubr.bf16.gmra.mxu0 %v684
        %v1247 = vpop.f32.mrf.mxu0
        %v1248 = vadd.f32 %v991, %v1247
        %v1249 = vpop.f32.mrf.mxu0
        %v1250 = vpop.f32.mrf.mxu0
        %v1251 = vadd.f32 %v994, %v1250
        %v1252 = vpop.f32.mrf.mxu0
        %1253 = vmatprep.mubr.bf16.mxu0 0
        %1254 = vmatmul.mubr.bf16.gmra.mxu0 %v685
        %v1255 = vpop.f32.mrf.mxu0
        %v1256 = vpop.f32.mrf.mxu0
        %v1257 = vpop.f32.mrf.mxu0
        %v1258 = vadd.f32 %v1001, %v1257
        %v1259 = vpop.f32.mrf.mxu0
        %1260 = vmatprep.mubr.bf16.mxu0 0
        %1261 = vmatmul.mubr.bf16.gmra.mxu0 %v686
        %v1262 = vpop.f32.mrf.mxu0
        %v1263 = vadd.f32 %v1006, %v1262
        %v1264 = vpop.f32.mrf.mxu0
        %v1265 = vpop.f32.mrf.mxu0
        %v1266 = vpop.f32.mrf.mxu0
        %1267 = vmatprep.mubr.bf16.mxu0 0
        %1268 = vmatmul.mubr.bf16.gmra.mxu0 %v687
        %v1269 = vpop.f32.mrf.mxu0
        %v1270 = vadd.f32 %v1013, %v1269
        %v1271 = vpop.f32.mrf.mxu0
        %v1272 = vpop.f32.mrf.mxu0
        %v1273 = vadd.f32 %v1016, %v1272
        %v1274 = vpop.f32.mrf.mxu0
        %1275 = vmatprep.mubr.bf16.mxu0 0
        %1276 = vmatmul.mubr.bf16.gmra.mxu0 %v688
        %v1277 = vpop.f32.mrf.mxu0
        %v1278 = vpop.f32.mrf.mxu0
        %v1279 = vpop.f32.mrf.mxu0
        %v1280 = vadd.f32 %v1023, %v1279
        %v1281 = vpop.f32.mrf.mxu0
        %1282 = vmatprep.mubr.bf16.mxu0 0
        %1283 = vmatmul.mubr.bf16.gmra.mxu0 %v689
        %v1284 = vpop.f32.mrf.mxu0
        %v1285 = vadd.f32 %v1028, %v1284
        %v1286 = vpop.f32.mrf.mxu0
        %v1287 = vpop.f32.mrf.mxu0
        %v1288 = vpop.f32.mrf.mxu0
        %1289 = vmatprep.mubr.bf16.mxu0 0
        %1290 = vmatmul.mubr.bf16.gmra.mxu0 %v690
        %v1291 = vpop.f32.mrf.mxu0
        %v1292 = vadd.f32 %v1035, %v1291
        %v1293 = vpop.f32.mrf.mxu0
        %v1294 = vpop.f32.mrf.mxu0
        %v1295 = vadd.f32 %v1038, %v1294
        %v1296 = vpop.f32.mrf.mxu0
        %1297 = vmatprep.mubr.bf16.mxu0 0
        %1298 = vmatmul.mubr.bf16.gmra.mxu0 %v691
        %v1299 = vpop.f32.mrf.mxu0
        %v1300 = vpop.f32.mrf.mxu0
        %v1301 = vpop.f32.mrf.mxu0
        %v1302 = vadd.f32 %v1045, %v1301
        %v1303 = vpop.f32.mrf.mxu0
        %1304 = vmatprep.mubr.bf16.mxu0 0
        %1305 = vmatmul.mubr.bf16.gmra.mxu0 %v692
        %v1306 = vpop.f32.mrf.mxu0
        %v1307 = vadd.f32 %v1050, %v1306
        %v1308 = vpop.f32.mrf.mxu0
        %v1309 = vpop.f32.mrf.mxu0
        %v1310 = vpop.f32.mrf.mxu0
        %1311 = vdwg.mxu0
        %s1312 = scalar_lea.vmem [#allocation2], 48
        %v1313 = vld [vmem:[%s1312] sm:$0xff]
        %v1314 = vld [vmem:[%s1312 + $0x8] sm:$0xff]
        %v1315 = vld [vmem:[%s1312 + $0x10] sm:$0xff]
        %v1316 = vld [vmem:[%s1312 + $0x18] sm:$0xff]
        %v1317 = vld [vmem:[%s1312 + $0x20] sm:$0xff]
        %v1318 = vld [vmem:[%s1312 + $0x28] sm:$0xff]
        %v1319 = vld [vmem:[%s1312 + $0x30] sm:$0xff]
        %v1320 = vld [vmem:[%s1312 + $0x38] sm:$0xff]
        %v1321 = vld [vmem:[%s1312 + $0x40] sm:$0xff]
        %v1322 = vld [vmem:[%s1312 + $0x48] sm:$0xff]
        %v1323 = vld [vmem:[%s1312 + $0x50] sm:$0xff]
        %v1324 = vld [vmem:[%s1312 + $0x58] sm:$0xff]
        %v1325 = vld [vmem:[%s1312 + $0x60] sm:$0xff]
        %v1326 = vld [vmem:[%s1312 + $0x68] sm:$0xff]
        %v1327 = vld [vmem:[%s1312 + $0x70] sm:$0xff]
        %v1328 = vld [vmem:[%s1312 + $0x78] sm:$0xff]
        %v1329 = vld [vmem:[%s1312 + $0x80] sm:$0xff]
        %v1330 = vld [vmem:[%s1312 + $0x88] sm:$0xff]
        %v1331 = vld [vmem:[%s1312 + $0x90] sm:$0xff]
        %v1332 = vld [vmem:[%s1312 + $0x98] sm:$0xff]
        %v1333 = vld [vmem:[%s1312 + $0xa0] sm:$0xff]
        %v1334 = vld [vmem:[%s1312 + $0xa8] sm:$0xff]
        %v1335 = vld [vmem:[%s1312 + $0xb0] sm:$0xff]
        %v1336 = vld [vmem:[%s1312 + $0xb8] sm:$0xff]
        %v1337 = vld [vmem:[%s1312 + $0xc0] sm:$0xff]
        %v1338 = vld [vmem:[%s1312 + $0xc8] sm:$0xff]
        %v1339 = vld [vmem:[%s1312 + $0xd0] sm:$0xff]
        %v1340 = vld [vmem:[%s1312 + $0xd8] sm:$0xff]
        %v1341 = vld [vmem:[%s1312 + $0xe0] sm:$0xff]
        %v1342 = vld [vmem:[%s1312 + $0xe8] sm:$0xff]
        %v1343 = vld [vmem:[%s1312 + $0xf0] sm:$0xff]
        %v1344 = vld [vmem:[%s1312 + $0xf8] sm:$0xff]
        %v1345 = vld [vmem:[%s1312 + $0x100] sm:$0xff]
        %v1346 = vld [vmem:[%s1312 + $0x108] sm:$0xff]
        %v1347 = vld [vmem:[%s1312 + $0x110] sm:$0xff]
        %v1348 = vld [vmem:[%s1312 + $0x118] sm:$0xff]
        %v1349 = vld [vmem:[%s1312 + $0x120] sm:$0xff]
        %v1350 = vld [vmem:[%s1312 + $0x128] sm:$0xff]
        %v1351 = vld [vmem:[%s1312 + $0x130] sm:$0xff]
        %v1352 = vld [vmem:[%s1312 + $0x138] sm:$0xff]
        %v1353 = vld [vmem:[%s1312 + $0x140] sm:$0xff]
        %v1354 = vld [vmem:[%s1312 + $0x148] sm:$0xff]
        %v1355 = vld [vmem:[%s1312 + $0x150] sm:$0xff]
        %v1356 = vld [vmem:[%s1312 + $0x158] sm:$0xff]
        %v1357 = vld [vmem:[%s1312 + $0x160] sm:$0xff]
        %v1358 = vld [vmem:[%s1312 + $0x168] sm:$0xff]
        %v1359 = vld [vmem:[%s1312 + $0x170] sm:$0xff]
        %v1360 = vld [vmem:[%s1312 + $0x178] sm:$0xff]
        %v1361 = vpack.c.bf16 %v1314, %v1313
        %v1362 = vpack.c.bf16 %v1316, %v1315
        %v1363 = vpack.c.bf16 %v1318, %v1317
        %v1364 = vpack.c.bf16 %v1320, %v1319
        %v1365 = vpack.c.bf16 %v1322, %v1321
        %v1366 = vpack.c.bf16 %v1324, %v1323
        %v1367 = vpack.c.bf16 %v1326, %v1325
        %v1368 = vpack.c.bf16 %v1328, %v1327
        %v1369 = vpack.c.bf16 %v1330, %v1329
        %v1370 = vpack.c.bf16 %v1332, %v1331
        %v1371 = vpack.c.bf16 %v1334, %v1333
        %v1372 = vpack.c.bf16 %v1336, %v1335
        %v1373 = vpack.c.bf16 %v1338, %v1337
        %v1374 = vpack.c.bf16 %v1340, %v1339
        %v1375 = vpack.c.bf16 %v1342, %v1341
        %v1376 = vpack.c.bf16 %v1344, %v1343
        %v1377 = vpack.c.bf16 %v1346, %v1345
        %v1378 = vpack.c.bf16 %v1348, %v1347
        %v1379 = vpack.c.bf16 %v1350, %v1349
        %v1380 = vpack.c.bf16 %v1352, %v1351
        %v1381 = vpack.c.bf16 %v1354, %v1353
        %v1382 = vpack.c.bf16 %v1356, %v1355
        %v1383 = vpack.c.bf16 %v1358, %v1357
        %v1384 = vpack.c.bf16 %v1360, %v1359
        %s1385 = scalar_lea.vmem [#allocation7], 384
        %v1386 = vld [vmem:[%s1385] sm:$0xf]
        %v1387 = vld [vmem:[%s1385 + $0x4] sm:$0xf]
        %v1388 = vld [vmem:[%s1385 + $0x8] sm:$0xf]
        %v1389 = vld [vmem:[%s1385 + $0xc] sm:$0xf]
        %v1390 = vld [vmem:[%s1385 + $0x10] sm:$0xf]
        %v1391 = vld [vmem:[%s1385 + $0x14] sm:$0xf]
        %v1392 = vld [vmem:[%s1385 + $0x18] sm:$0xf]
        %v1393 = vld [vmem:[%s1385 + $0x1c] sm:$0xf]
        %v1394 = vld [vmem:[%s1385 + $0x20] sm:$0xf]
        %v1395 = vld [vmem:[%s1385 + $0x24] sm:$0xf]
        %v1396 = vld [vmem:[%s1385 + $0x28] sm:$0xf]
        %v1397 = vld [vmem:[%s1385 + $0x2c] sm:$0xf]
        %v1398 = vld [vmem:[%s1385 + $0x30] sm:$0xf]
        %v1399 = vld [vmem:[%s1385 + $0x34] sm:$0xf]
        %v1400 = vld [vmem:[%s1385 + $0x38] sm:$0xf]
        %v1401 = vld [vmem:[%s1385 + $0x3c] sm:$0xf]
        %v1418 = vunpack.c.l.b16 %v1386
        %v1419 = vunpack.c.l.b16 %v1387
        %v1420 = vunpack.c.l.b16 %v1388
        %v1421 = vunpack.c.l.b16 %v1389
        %v1422 = vunpack.c.l.b16 %v1390
        %v1423 = vunpack.c.l.b16 %v1391
        %v1424 = vunpack.c.l.b16 %v1392
        %v1425 = vunpack.c.l.b16 %v1393
        %v1426 = vunpack.c.l.b16 %v1394
        %v1427 = vunpack.c.l.b16 %v1395
        %v1428 = vunpack.c.l.b16 %v1396
        %v1429 = vunpack.c.l.b16 %v1397
        %v1430 = vunpack.c.l.b16 %v1398
        %v1431 = vunpack.c.l.b16 %v1399
        %v1432 = vunpack.c.l.b16 %v1400
        %v1433 = vunpack.c.l.b16 %v1401
        %v1434 = vpack.c.b16 %v1419, %v1418
        %v1435 = vpack.c.b16 %v1421, %v1420
        %v1436 = vpack.c.b16 %v1423, %v1422
        %v1437 = vpack.c.b16 %v1425, %v1424
        %v1438 = vpack.c.b16 %v1427, %v1426
        %v1439 = vpack.c.b16 %v1429, %v1428
        %v1440 = vpack.c.b16 %v1431, %v1430
        %v1441 = vpack.c.b16 %v1433, %v1432
        %1450 = vmatprep.subr.bf16.mxu0 0
        %1451 = vmatpush1.bf16.msra.mxu0 %v1441
        %1452 = vmatprep.subr.bf16.mxu0 0
        %1453 = vmatpush1.bf16.msra.mxu0 %v1440
        %1454 = vmatprep.subr.bf16.mxu0 0
        %1455 = vmatpush1.bf16.msra.mxu0 %v1439
        %1456 = vmatprep.subr.bf16.mxu0 0
        %1457 = vmatpush1.bf16.msra.mxu0 %v1438
        %1458 = vmatprep.subr.bf16.mxu0 0
        %1459 = vmatpush1.bf16.msra.mxu0 %v1437
        %1460 = vmatprep.subr.bf16.mxu0 0
        %1461 = vmatpush1.bf16.msra.mxu0 %v1436
        %1462 = vmatprep.subr.bf16.mxu0 0
        %1463 = vmatpush1.bf16.msra.mxu0 %v1435
        %1464 = vmatprep.subr.bf16.mxu0 0
        %1465 = vmatpush1.bf16.msra.mxu0 %v1434
        %1466 = vmatprep.subr.bf16.mxu0 0
        %1467 = vmatpush2.bf16.msra.mxu0 0
        %1468 = vmatprep.subr.bf16.mxu0 0
        %1469 = vmatpush2.bf16.msra.mxu0 0
        %1470 = vmatprep.subr.bf16.mxu0 0
        %1471 = vmatpush2.bf16.msra.mxu0 0
        %1472 = vmatprep.subr.bf16.mxu0 0
        %1473 = vmatpush2.bf16.msra.mxu0 0
        %1474 = vmatprep.subr.bf16.mxu0 0
        %1475 = vmatpush2.bf16.msra.mxu0 0
        %1476 = vmatprep.subr.bf16.mxu0 0
        %1477 = vmatpush2.bf16.msra.mxu0 0
        %1478 = vmatprep.subr.bf16.mxu0 0
        %1479 = vmatpush2.bf16.msra.mxu0 0
        %1480 = vmatprep.subr.bf16.mxu0 0
        %1481 = vmatpush2.bf16.msra.mxu0 0
        %1482 = vmatprep.mubr.bf16.mxu0 0
        %1483 = vmatmul.mubr.bf16.gmra.mxu0 %v1361
        %v1484 = vpop.f32.mrf.mxu0
        %v1485 = vadd.f32 0.0, %v1484
        %v1486 = vpop.f32.mrf.mxu0
        %v1487 = vpop.f32.mrf.mxu0
        %v1488 = vadd.f32 0.0, %v1487
        %v1489 = vpop.f32.mrf.mxu0
        %1490 = vmatprep.mubr.bf16.mxu0 0
        %1491 = vmatmul.mubr.bf16.gmra.mxu0 %v1362
        %v1492 = vpop.f32.mrf.mxu0
        %v1493 = vpop.f32.mrf.mxu0
        %v1494 = vpop.f32.mrf.mxu0
        %v1495 = vadd.f32 0.0, %v1494
        %v1496 = vpop.f32.mrf.mxu0
        %1497 = vmatprep.mubr.bf16.mxu0 0
        %1498 = vmatmul.mubr.bf16.gmra.mxu0 %v1363
        %v1499 = vpop.f32.mrf.mxu0
        %v1500 = vadd.f32 0.0, %v1499
        %v1501 = vpop.f32.mrf.mxu0
        %v1502 = vpop.f32.mrf.mxu0
        %v1503 = vpop.f32.mrf.mxu0
        %1504 = vmatprep.mubr.bf16.mxu0 0
        %1505 = vmatmul.mubr.bf16.gmra.mxu0 %v1364
        %v1506 = vpop.f32.mrf.mxu0
        %v1507 = vadd.f32 0.0, %v1506
        %v1508 = vpop.f32.mrf.mxu0
        %v1509 = vpop.f32.mrf.mxu0
        %v1510 = vadd.f32 0.0, %v1509
        %v1511 = vpop.f32.mrf.mxu0
        %1512 = vmatprep.mubr.bf16.mxu0 0
        %1513 = vmatmul.mubr.bf16.gmra.mxu0 %v1365
        %v1514 = vpop.f32.mrf.mxu0
        %v1515 = vpop.f32.mrf.mxu0
        %v1516 = vpop.f32.mrf.mxu0
        %v1517 = vadd.f32 0.0, %v1516
        %v1518 = vpop.f32.mrf.mxu0
        %1519 = vmatprep.mubr.bf16.mxu0 0
        %1520 = vmatmul.mubr.bf16.gmra.mxu0 %v1366
        %v1521 = vpop.f32.mrf.mxu0
        %v1522 = vadd.f32 0.0, %v1521
        %v1523 = vpop.f32.mrf.mxu0
        %v1524 = vpop.f32.mrf.mxu0
        %v1525 = vpop.f32.mrf.mxu0
        %1526 = vmatprep.mubr.bf16.mxu0 0
        %1527 = vmatmul.mubr.bf16.gmra.mxu0 %v1367
        %v1528 = vpop.f32.mrf.mxu0
        %v1529 = vadd.f32 0.0, %v1528
        %v1530 = vpop.f32.mrf.mxu0
        %v1531 = vpop.f32.mrf.mxu0
        %v1532 = vadd.f32 0.0, %v1531
        %v1533 = vpop.f32.mrf.mxu0
        %1534 = vmatprep.mubr.bf16.mxu0 0
        %1535 = vmatmul.mubr.bf16.gmra.mxu0 %v1368
        %v1536 = vpop.f32.mrf.mxu0
        %v1537 = vpop.f32.mrf.mxu0
        %v1538 = vpop.f32.mrf.mxu0
        %v1539 = vadd.f32 0.0, %v1538
        %v1540 = vpop.f32.mrf.mxu0
        %1541 = vmatprep.mubr.bf16.mxu0 0
        %1542 = vmatmul.mubr.bf16.gmra.mxu0 %v1369
        %v1543 = vpop.f32.mrf.mxu0
        %v1544 = vadd.f32 0.0, %v1543
        %v1545 = vpop.f32.mrf.mxu0
        %v1546 = vpop.f32.mrf.mxu0
        %v1547 = vpop.f32.mrf.mxu0
        %1548 = vmatprep.mubr.bf16.mxu0 0
        %1549 = vmatmul.mubr.bf16.gmra.mxu0 %v1370
        %v1550 = vpop.f32.mrf.mxu0
        %v1551 = vadd.f32 0.0, %v1550
        %v1552 = vpop.f32.mrf.mxu0
        %v1553 = vpop.f32.mrf.mxu0
        %v1554 = vadd.f32 0.0, %v1553
        %v1555 = vpop.f32.mrf.mxu0
        %1556 = vmatprep.mubr.bf16.mxu0 0
        %1557 = vmatmul.mubr.bf16.gmra.mxu0 %v1371
        %v1558 = vpop.f32.mrf.mxu0
        %v1559 = vpop.f32.mrf.mxu0
        %v1560 = vpop.f32.mrf.mxu0
        %v1561 = vadd.f32 0.0, %v1560
        %v1562 = vpop.f32.mrf.mxu0
        %1563 = vmatprep.mubr.bf16.mxu0 0
        %1564 = vmatmul.mubr.bf16.gmra.mxu0 %v1372
        %v1565 = vpop.f32.mrf.mxu0
        %v1566 = vadd.f32 0.0, %v1565
        %v1567 = vpop.f32.mrf.mxu0
        %v1568 = vpop.f32.mrf.mxu0
        %v1569 = vpop.f32.mrf.mxu0
        %1570 = vmatprep.mubr.bf16.mxu0 0
        %1571 = vmatmul.mubr.bf16.gmra.mxu0 %v1373
        %v1572 = vpop.f32.mrf.mxu0
        %v1573 = vadd.f32 0.0, %v1572
        %v1574 = vpop.f32.mrf.mxu0
        %v1575 = vpop.f32.mrf.mxu0
        %v1576 = vadd.f32 0.0, %v1575
        %v1577 = vpop.f32.mrf.mxu0
        %1578 = vmatprep.mubr.bf16.mxu0 0
        %1579 = vmatmul.mubr.bf16.gmra.mxu0 %v1374
        %v1580 = vpop.f32.mrf.mxu0
        %v1581 = vpop.f32.mrf.mxu0
        %v1582 = vpop.f32.mrf.mxu0
        %v1583 = vadd.f32 0.0, %v1582
        %v1584 = vpop.f32.mrf.mxu0
        %1585 = vmatprep.mubr.bf16.mxu0 0
        %1586 = vmatmul.mubr.bf16.gmra.mxu0 %v1375
        %v1587 = vpop.f32.mrf.mxu0
        %v1588 = vadd.f32 0.0, %v1587
        %v1589 = vpop.f32.mrf.mxu0
        %v1590 = vpop.f32.mrf.mxu0
        %v1591 = vpop.f32.mrf.mxu0
        %1592 = vmatprep.mubr.bf16.mxu0 0
        %1593 = vmatmul.mubr.bf16.gmra.mxu0 %v1376
        %v1594 = vpop.f32.mrf.mxu0
        %v1595 = vadd.f32 0.0, %v1594
        %v1596 = vpop.f32.mrf.mxu0
        %v1597 = vpop.f32.mrf.mxu0
        %v1598 = vadd.f32 0.0, %v1597
        %v1599 = vpop.f32.mrf.mxu0
        %1600 = vmatprep.mubr.bf16.mxu0 0
        %1601 = vmatmul.mubr.bf16.gmra.mxu0 %v1377
        %v1602 = vpop.f32.mrf.mxu0
        %v1603 = vpop.f32.mrf.mxu0
        %v1604 = vpop.f32.mrf.mxu0
        %v1605 = vadd.f32 0.0, %v1604
        %v1606 = vpop.f32.mrf.mxu0
        %1607 = vmatprep.mubr.bf16.mxu0 0
        %1608 = vmatmul.mubr.bf16.gmra.mxu0 %v1378
        %v1609 = vpop.f32.mrf.mxu0
        %v1610 = vadd.f32 0.0, %v1609
        %v1611 = vpop.f32.mrf.mxu0
        %v1612 = vpop.f32.mrf.mxu0
        %v1613 = vpop.f32.mrf.mxu0
        %1614 = vmatprep.mubr.bf16.mxu0 0
        %1615 = vmatmul.mubr.bf16.gmra.mxu0 %v1379
        %v1616 = vpop.f32.mrf.mxu0
        %v1617 = vadd.f32 0.0, %v1616
        %v1618 = vpop.f32.mrf.mxu0
        %v1619 = vpop.f32.mrf.mxu0
        %v1620 = vadd.f32 0.0, %v1619
        %v1621 = vpop.f32.mrf.mxu0
        %1622 = vmatprep.mubr.bf16.mxu0 0
        %1623 = vmatmul.mubr.bf16.gmra.mxu0 %v1380
        %v1624 = vpop.f32.mrf.mxu0
        %v1625 = vpop.f32.mrf.mxu0
        %v1626 = vpop.f32.mrf.mxu0
        %v1627 = vadd.f32 0.0, %v1626
        %v1628 = vpop.f32.mrf.mxu0
        %1629 = vmatprep.mubr.bf16.mxu0 0
        %1630 = vmatmul.mubr.bf16.gmra.mxu0 %v1381
        %v1631 = vpop.f32.mrf.mxu0
        %v1632 = vadd.f32 0.0, %v1631
        %v1633 = vpop.f32.mrf.mxu0
        %v1634 = vpop.f32.mrf.mxu0
        %v1635 = vpop.f32.mrf.mxu0
        %1636 = vmatprep.mubr.bf16.mxu0 0
        %1637 = vmatmul.mubr.bf16.gmra.mxu0 %v1382
        %v1638 = vpop.f32.mrf.mxu0
        %v1639 = vadd.f32 0.0, %v1638
        %v1640 = vpop.f32.mrf.mxu0
        %v1641 = vpop.f32.mrf.mxu0
        %v1642 = vadd.f32 0.0, %v1641
        %v1643 = vpop.f32.mrf.mxu0
        %1644 = vmatprep.mubr.bf16.mxu0 0
        %1645 = vmatmul.mubr.bf16.gmra.mxu0 %v1383
        %v1646 = vpop.f32.mrf.mxu0
        %v1647 = vpop.f32.mrf.mxu0
        %v1648 = vpop.f32.mrf.mxu0
        %v1649 = vadd.f32 0.0, %v1648
        %v1650 = vpop.f32.mrf.mxu0
        %1651 = vmatprep.mubr.bf16.mxu0 0
        %1652 = vmatmul.mubr.bf16.gmra.mxu0 %v1384
        %v1653 = vpop.f32.mrf.mxu0
        %v1654 = vadd.f32 0.0, %v1653
        %v1655 = vpop.f32.mrf.mxu0
        %v1656 = vpop.f32.mrf.mxu0
        %v1657 = vpop.f32.mrf.mxu0
        %1658 = vdwg.mxu0
        %v1659 = vadd.f32 %v1138, %v1485
        %v1660 = vadd.f32 %v1141, %v1488
        %v1661 = vadd.f32 %v1148, %v1495
        %v1662 = vadd.f32 %v1153, %v1500
        %v1663 = vadd.f32 %v1160, %v1507
        %v1664 = vadd.f32 %v1163, %v1510
        %v1665 = vadd.f32 %v1170, %v1517
        %v1666 = vadd.f32 %v1175, %v1522
        %v1667 = vadd.f32 %v1182, %v1529
        %v1668 = vadd.f32 %v1185, %v1532
        %v1669 = vadd.f32 %v1192, %v1539
        %v1670 = vadd.f32 %v1197, %v1544
        %v1671 = vadd.f32 %v1204, %v1551
        %v1672 = vadd.f32 %v1207, %v1554
        %v1673 = vadd.f32 %v1214, %v1561
        %v1674 = vadd.f32 %v1219, %v1566
        %v1675 = vadd.f32 %v1226, %v1573
        %v1676 = vadd.f32 %v1229, %v1576
        %v1677 = vadd.f32 %v1236, %v1583
        %v1678 = vadd.f32 %v1241, %v1588
        %v1679 = vadd.f32 %v1248, %v1595
        %v1680 = vadd.f32 %v1251, %v1598
        %v1681 = vadd.f32 %v1258, %v1605
        %v1682 = vadd.f32 %v1263, %v1610
        %v1683 = vadd.f32 %v1270, %v1617
        %v1684 = vadd.f32 %v1273, %v1620
        %v1685 = vadd.f32 %v1280, %v1627
        %v1686 = vadd.f32 %v1285, %v1632
        %v1687 = vadd.f32 %v1292, %v1639
        %v1688 = vadd.f32 %v1295, %v1642
        %v1689 = vadd.f32 %v1302, %v1649
        %v1690 = vadd.f32 %v1307, %v1654
        %v1691 = vld [vmem:[#allocation3] sm:$0xff]
        %v1692 = vld [vmem:[#allocation3 + $0x8] sm:$0xff]
        %v1693 = vld [vmem:[#allocation3 + $0x10] sm:$0xff]
        %v1694 = vld [vmem:[#allocation3 + $0x18] sm:$0xff]
        %v1695 = vld [vmem:[#allocation3 + $0x20] sm:$0xff]
        %v1696 = vld [vmem:[#allocation3 + $0x28] sm:$0xff]
        %v1697 = vld [vmem:[#allocation3 + $0x30] sm:$0xff]
        %v1698 = vld [vmem:[#allocation3 + $0x38] sm:$0xff]
        %v1699 = vld [vmem:[#allocation3 + $0x40] sm:$0xff]
        %v1700 = vld [vmem:[#allocation3 + $0x48] sm:$0xff]
        %v1701 = vld [vmem:[#allocation3 + $0x50] sm:$0xff]
        %v1702 = vld [vmem:[#allocation3 + $0x58] sm:$0xff]
        %v1703 = vld [vmem:[#allocation3 + $0x60] sm:$0xff]
        %v1704 = vld [vmem:[#allocation3 + $0x68] sm:$0xff]
        %v1705 = vld [vmem:[#allocation3 + $0x70] sm:$0xff]
        %v1706 = vld [vmem:[#allocation3 + $0x78] sm:$0xff]
        %v1707 = vld [vmem:[#allocation3 + $0x80] sm:$0xff]
        %v1708 = vld [vmem:[#allocation3 + $0x88] sm:$0xff]
        %v1709 = vld [vmem:[#allocation3 + $0x90] sm:$0xff]
        %v1710 = vld [vmem:[#allocation3 + $0x98] sm:$0xff]
        %v1711 = vld [vmem:[#allocation3 + $0xa0] sm:$0xff]
        %v1712 = vld [vmem:[#allocation3 + $0xa8] sm:$0xff]
        %v1713 = vld [vmem:[#allocation3 + $0xb0] sm:$0xff]
        %v1714 = vld [vmem:[#allocation3 + $0xb8] sm:$0xff]
        %v1715 = vld [vmem:[#allocation3 + $0xc0] sm:$0xff]
        %v1716 = vld [vmem:[#allocation3 + $0xc8] sm:$0xff]
        %v1717 = vld [vmem:[#allocation3 + $0xd0] sm:$0xff]
        %v1718 = vld [vmem:[#allocation3 + $0xd8] sm:$0xff]
        %v1719 = vld [vmem:[#allocation3 + $0xe0] sm:$0xff]
        %v1720 = vld [vmem:[#allocation3 + $0xe8] sm:$0xff]
        %v1721 = vld [vmem:[#allocation3 + $0xf0] sm:$0xff]
        %v1722 = vld [vmem:[#allocation3 + $0xf8] sm:$0xff]
        %v1723 = vadd.f32 %v1691, %v1659
        %v1724 = vadd.f32 %v1692, %v1660
        %v1725 = vadd.f32 %v1693, %v1661
        %v1726 = vadd.f32 %v1694, %v1662
        %v1727 = vadd.f32 %v1695, %v1663
        %v1728 = vadd.f32 %v1696, %v1664
        %v1729 = vadd.f32 %v1697, %v1665
        %v1730 = vadd.f32 %v1698, %v1666
        %v1731 = vadd.f32 %v1699, %v1667
        %v1732 = vadd.f32 %v1700, %v1668
        %v1733 = vadd.f32 %v1701, %v1669
        %v1734 = vadd.f32 %v1702, %v1670
        %v1735 = vadd.f32 %v1703, %v1671
        %v1736 = vadd.f32 %v1704, %v1672
        %v1737 = vadd.f32 %v1705, %v1673
        %v1738 = vadd.f32 %v1706, %v1674
        %v1739 = vadd.f32 %v1707, %v1675
        %v1740 = vadd.f32 %v1708, %v1676
        %v1741 = vadd.f32 %v1709, %v1677
        %v1742 = vadd.f32 %v1710, %v1678
        %v1743 = vadd.f32 %v1711, %v1679
        %v1744 = vadd.f32 %v1712, %v1680
        %v1745 = vadd.f32 %v1713, %v1681
        %v1746 = vadd.f32 %v1714, %v1682
        %v1747 = vadd.f32 %v1715, %v1683
        %v1748 = vadd.f32 %v1716, %v1684
        %v1749 = vadd.f32 %v1717, %v1685
        %v1750 = vadd.f32 %v1718, %v1686
        %v1751 = vadd.f32 %v1719, %v1687
        %v1752 = vadd.f32 %v1720, %v1688
        %v1753 = vadd.f32 %v1721, %v1689
        %v1754 = vadd.f32 %v1722, %v1690
        %1755 = vst [vmem:[#allocation3] sm:$0xff] %v1723
        %1756 = vst [vmem:[#allocation3 + $0x8] sm:$0xff] %v1724
        %1757 = vst [vmem:[#allocation3 + $0x10] sm:$0xff] %v1725
        %1758 = vst [vmem:[#allocation3 + $0x18] sm:$0xff] %v1726
        %1759 = vst [vmem:[#allocation3 + $0x20] sm:$0xff] %v1727
        %1760 = vst [vmem:[#allocation3 + $0x28] sm:$0xff] %v1728
        %1761 = vst [vmem:[#allocation3 + $0x30] sm:$0xff] %v1729
        %1762 = vst [vmem:[#allocation3 + $0x38] sm:$0xff] %v1730
        %1763 = vst [vmem:[#allocation3 + $0x40] sm:$0xff] %v1731
        %1764 = vst [vmem:[#allocation3 + $0x48] sm:$0xff] %v1732
        %1765 = vst [vmem:[#allocation3 + $0x50] sm:$0xff] %v1733
        %1766 = vst [vmem:[#allocation3 + $0x58] sm:$0xff] %v1734
        %1767 = vst [vmem:[#allocation3 + $0x60] sm:$0xff] %v1735
        %1768 = vst [vmem:[#allocation3 + $0x68] sm:$0xff] %v1736
        %1769 = vst [vmem:[#allocation3 + $0x70] sm:$0xff] %v1737
        %1770 = vst [vmem:[#allocation3 + $0x78] sm:$0xff] %v1738
        %1771 = vst [vmem:[#allocation3 + $0x80] sm:$0xff] %v1739
        %1772 = vst [vmem:[#allocation3 + $0x88] sm:$0xff] %v1740
        %1773 = vst [vmem:[#allocation3 + $0x90] sm:$0xff] %v1741
        %1774 = vst [vmem:[#allocation3 + $0x98] sm:$0xff] %v1742
        %1775 = vst [vmem:[#allocation3 + $0xa0] sm:$0xff] %v1743
        %1776 = vst [vmem:[#allocation3 + $0xa8] sm:$0xff] %v1744
        %1777 = vst [vmem:[#allocation3 + $0xb0] sm:$0xff] %v1745
        %1778 = vst [vmem:[#allocation3 + $0xb8] sm:$0xff] %v1746
        %1779 = vst [vmem:[#allocation3 + $0xc0] sm:$0xff] %v1747
        %1780 = vst [vmem:[#allocation3 + $0xc8] sm:$0xff] %v1748
        %1781 = vst [vmem:[#allocation3 + $0xd0] sm:$0xff] %v1749
        %1782 = vst [vmem:[#allocation3 + $0xd8] sm:$0xff] %v1750
        %1783 = vst [vmem:[#allocation3 + $0xe0] sm:$0xff] %v1751
        %1784 = vst [vmem:[#allocation3 + $0xe8] sm:$0xff] %v1752
        %1785 = vst [vmem:[#allocation3 + $0xf0] sm:$0xff] %v1753
        %1786 = vst [vmem:[#allocation3 + $0xf8] sm:$0xff] %v1754
        %v1787 = vld [vmem:[#allocation2] sm:$0xff]
        %v1788 = vld [vmem:[#allocation2 + $0x8] sm:$0xff]
        %v1789 = vld [vmem:[#allocation2 + $0x10] sm:$0xff]
        %v1790 = vld [vmem:[#allocation2 + $0x18] sm:$0xff]
        %v1791 = vld [vmem:[#allocation2 + $0x20] sm:$0xff]
        %v1792 = vld [vmem:[#allocation2 + $0x28] sm:$0xff]
        %v1793 = vld [vmem:[#allocation2 + $0x30] sm:$0xff]
        %v1794 = vld [vmem:[#allocation2 + $0x38] sm:$0xff]
        %v1795 = vld [vmem:[#allocation2 + $0x40] sm:$0xff]
        %v1796 = vld [vmem:[#allocation2 + $0x48] sm:$0xff]
        %v1797 = vld [vmem:[#allocation2 + $0x50] sm:$0xff]
        %v1798 = vld [vmem:[#allocation2 + $0x58] sm:$0xff]
        %v1799 = vld [vmem:[#allocation2 + $0x60] sm:$0xff]
        %v1800 = vld [vmem:[#allocation2 + $0x68] sm:$0xff]
        %v1801 = vld [vmem:[#allocation2 + $0x70] sm:$0xff]
        %v1802 = vld [vmem:[#allocation2 + $0x78] sm:$0xff]
        %v1803 = vld [vmem:[#allocation2 + $0x80] sm:$0xff]
        %v1804 = vld [vmem:[#allocation2 + $0x88] sm:$0xff]
        %v1805 = vld [vmem:[#allocation2 + $0x90] sm:$0xff]
        %v1806 = vld [vmem:[#allocation2 + $0x98] sm:$0xff]
        %v1807 = vld [vmem:[#allocation2 + $0xa0] sm:$0xff]
        %v1808 = vld [vmem:[#allocation2 + $0xa8] sm:$0xff]
        %v1809 = vld [vmem:[#allocation2 + $0xb0] sm:$0xff]
        %v1810 = vld [vmem:[#allocation2 + $0xb8] sm:$0xff]
        %v1811 = vld [vmem:[#allocation2 + $0xc0] sm:$0xff]
        %v1812 = vld [vmem:[#allocation2 + $0xc8] sm:$0xff]
        %v1813 = vld [vmem:[#allocation2 + $0xd0] sm:$0xff]
        %v1814 = vld [vmem:[#allocation2 + $0xd8] sm:$0xff]
        %v1815 = vld [vmem:[#allocation2 + $0xe0] sm:$0xff]
        %v1816 = vld [vmem:[#allocation2 + $0xe8] sm:$0xff]
        %v1817 = vld [vmem:[#allocation2 + $0xf0] sm:$0xff]
        %v1818 = vld [vmem:[#allocation2 + $0xf8] sm:$0xff]
        %v1819 = vld [vmem:[#allocation2 + $0x100] sm:$0xff]
        %v1820 = vld [vmem:[#allocation2 + $0x108] sm:$0xff]
        %v1821 = vld [vmem:[#allocation2 + $0x110] sm:$0xff]
        %v1822 = vld [vmem:[#allocation2 + $0x118] sm:$0xff]
        %v1823 = vld [vmem:[#allocation2 + $0x120] sm:$0xff]
        %v1824 = vld [vmem:[#allocation2 + $0x128] sm:$0xff]
        %v1825 = vld [vmem:[#allocation2 + $0x130] sm:$0xff]
        %v1826 = vld [vmem:[#allocation2 + $0x138] sm:$0xff]
        %v1827 = vld [vmem:[#allocation2 + $0x140] sm:$0xff]
        %v1828 = vld [vmem:[#allocation2 + $0x148] sm:$0xff]
        %v1829 = vld [vmem:[#allocation2 + $0x150] sm:$0xff]
        %v1830 = vld [vmem:[#allocation2 + $0x158] sm:$0xff]
        %v1831 = vld [vmem:[#allocation2 + $0x160] sm:$0xff]
        %v1832 = vld [vmem:[#allocation2 + $0x168] sm:$0xff]
        %v1833 = vld [vmem:[#allocation2 + $0x170] sm:$0xff]
        %v1834 = vld [vmem:[#allocation2 + $0x178] sm:$0xff]
        %v1835 = vpack.c.bf16 %v1788, %v1787
        %v1836 = vpack.c.bf16 %v1790, %v1789
        %v1837 = vpack.c.bf16 %v1792, %v1791
        %v1838 = vpack.c.bf16 %v1794, %v1793
        %v1839 = vpack.c.bf16 %v1796, %v1795
        %v1840 = vpack.c.bf16 %v1798, %v1797
        %v1841 = vpack.c.bf16 %v1800, %v1799
        %v1842 = vpack.c.bf16 %v1802, %v1801
        %v1843 = vpack.c.bf16 %v1804, %v1803
        %v1844 = vpack.c.bf16 %v1806, %v1805
        %v1845 = vpack.c.bf16 %v1808, %v1807
        %v1846 = vpack.c.bf16 %v1810, %v1809
        %v1847 = vpack.c.bf16 %v1812, %v1811
        %v1848 = vpack.c.bf16 %v1814, %v1813
        %v1849 = vpack.c.bf16 %v1816, %v1815
        %v1850 = vpack.c.bf16 %v1818, %v1817
        %v1851 = vpack.c.bf16 %v1820, %v1819
        %v1852 = vpack.c.bf16 %v1822, %v1821
        %v1853 = vpack.c.bf16 %v1824, %v1823
        %v1854 = vpack.c.bf16 %v1826, %v1825
        %v1855 = vpack.c.bf16 %v1828, %v1827
        %v1856 = vpack.c.bf16 %v1830, %v1829
        %v1857 = vpack.c.bf16 %v1832, %v1831
        %v1858 = vpack.c.bf16 %v1834, %v1833
        %s1859 = scalar_lea.vmem [#allocation7], 64
        %v1860 = vld [vmem:[%s1859] sm:$0xf]
        %v1861 = vld [vmem:[%s1859 + $0x4] sm:$0xf]
        %v1862 = vld [vmem:[%s1859 + $0x8] sm:$0xf]
        %v1863 = vld [vmem:[%s1859 + $0xc] sm:$0xf]
        %v1864 = vld [vmem:[%s1859 + $0x10] sm:$0xf]
        %v1865 = vld [vmem:[%s1859 + $0x14] sm:$0xf]
        %v1866 = vld [vmem:[%s1859 + $0x18] sm:$0xf]
        %v1867 = vld [vmem:[%s1859 + $0x1c] sm:$0xf]
        %v1868 = vld [vmem:[%s1859 + $0x20] sm:$0xf]
        %v1869 = vld [vmem:[%s1859 + $0x24] sm:$0xf]
        %v1870 = vld [vmem:[%s1859 + $0x28] sm:$0xf]
        %v1871 = vld [vmem:[%s1859 + $0x2c] sm:$0xf]
        %v1872 = vld [vmem:[%s1859 + $0x30] sm:$0xf]
        %v1873 = vld [vmem:[%s1859 + $0x34] sm:$0xf]
        %v1874 = vld [vmem:[%s1859 + $0x38] sm:$0xf]
        %v1875 = vld [vmem:[%s1859 + $0x3c] sm:$0xf]
        %v1876 = vld [vmem:[%s550] sm:$0xff]
        %v1877 = vld [vmem:[%s550 + $0x8] sm:$0xff]
        %v1878 = vld [vmem:[%s550 + $0x10] sm:$0xff]
        %v1879 = vld [vmem:[%s550 + $0x18] sm:$0xff]
        %v1880 = vld [vmem:[%s550 + $0x20] sm:$0xff]
        %v1881 = vld [vmem:[%s550 + $0x28] sm:$0xff]
        %v1882 = vld [vmem:[%s550 + $0x30] sm:$0xff]
        %v1883 = vld [vmem:[%s550 + $0x38] sm:$0xff]
        %v1884 = vld [vmem:[%s550 + $0x40] sm:$0xff]
        %v1885 = vld [vmem:[%s550 + $0x48] sm:$0xff]
        %v1886 = vld [vmem:[%s550 + $0x50] sm:$0xff]
        %v1887 = vld [vmem:[%s550 + $0x58] sm:$0xff]
        %v1888 = vld [vmem:[%s550 + $0x60] sm:$0xff]
        %v1889 = vld [vmem:[%s550 + $0x68] sm:$0xff]
        %v1890 = vld [vmem:[%s550 + $0x70] sm:$0xff]
        %v1891 = vld [vmem:[%s550 + $0x78] sm:$0xff]
        %v1892 = vld [vmem:[%s550 + $0x80] sm:$0xff]
        %v1893 = vld [vmem:[%s550 + $0x88] sm:$0xff]
        %v1894 = vld [vmem:[%s550 + $0x90] sm:$0xff]
        %v1895 = vld [vmem:[%s550 + $0x98] sm:$0xff]
        %v1896 = vld [vmem:[%s550 + $0xa0] sm:$0xff]
        %v1897 = vld [vmem:[%s550 + $0xa8] sm:$0xff]
        %v1898 = vld [vmem:[%s550 + $0xb0] sm:$0xff]
        %v1899 = vld [vmem:[%s550 + $0xb8] sm:$0xff]
        %v1900 = vld [vmem:[%s550 + $0xc0] sm:$0xff]
        %v1901 = vld [vmem:[%s550 + $0xc8] sm:$0xff]
        %v1902 = vld [vmem:[%s550 + $0xd0] sm:$0xff]
        %v1903 = vld [vmem:[%s550 + $0xd8] sm:$0xff]
        %v1904 = vld [vmem:[%s550 + $0xe0] sm:$0xff]
        %v1905 = vld [vmem:[%s550 + $0xe8] sm:$0xff]
        %v1906 = vld [vmem:[%s550 + $0xf0] sm:$0xff]
        %v1907 = vld [vmem:[%s550 + $0xf8] sm:$0xff]
        %v1908 = vld [vmem:[%s550 + $0x100] sm:$0xff]
        %v1909 = vld [vmem:[%s550 + $0x108] sm:$0xff]
        %v1910 = vld [vmem:[%s550 + $0x110] sm:$0xff]
        %v1911 = vld [vmem:[%s550 + $0x118] sm:$0xff]
        %v1912 = vld [vmem:[%s550 + $0x120] sm:$0xff]
        %v1913 = vld [vmem:[%s550 + $0x128] sm:$0xff]
        %v1914 = vld [vmem:[%s550 + $0x130] sm:$0xff]
        %v1915 = vld [vmem:[%s550 + $0x138] sm:$0xff]
        %v1916 = vld [vmem:[%s550 + $0x140] sm:$0xff]
        %v1917 = vld [vmem:[%s550 + $0x148] sm:$0xff]
        %v1918 = vld [vmem:[%s550 + $0x150] sm:$0xff]
        %v1919 = vld [vmem:[%s550 + $0x158] sm:$0xff]
        %v1920 = vld [vmem:[%s550 + $0x160] sm:$0xff]
        %v1921 = vld [vmem:[%s550 + $0x168] sm:$0xff]
        %v1922 = vld [vmem:[%s550 + $0x170] sm:$0xff]
        %v1923 = vld [vmem:[%s550 + $0x178] sm:$0xff]
        %v1924 = vpack.c.bf16 %v1877, %v1876
        %v1925 = vpack.c.bf16 %v1879, %v1878
        %v1926 = vpack.c.bf16 %v1881, %v1880
        %v1927 = vpack.c.bf16 %v1883, %v1882
        %v1928 = vpack.c.bf16 %v1885, %v1884
        %v1929 = vpack.c.bf16 %v1887, %v1886
        %v1930 = vpack.c.bf16 %v1889, %v1888
        %v1931 = vpack.c.bf16 %v1891, %v1890
        %v1932 = vpack.c.bf16 %v1893, %v1892
        %v1933 = vpack.c.bf16 %v1895, %v1894
        %v1934 = vpack.c.bf16 %v1897, %v1896
        %v1935 = vpack.c.bf16 %v1899, %v1898
        %v1936 = vpack.c.bf16 %v1901, %v1900
        %v1937 = vpack.c.bf16 %v1903, %v1902
        %v1938 = vpack.c.bf16 %v1905, %v1904
        %v1939 = vpack.c.bf16 %v1907, %v1906
        %v1940 = vpack.c.bf16 %v1909, %v1908
        %v1941 = vpack.c.bf16 %v1911, %v1910
        %v1942 = vpack.c.bf16 %v1913, %v1912
        %v1943 = vpack.c.bf16 %v1915, %v1914
        %v1944 = vpack.c.bf16 %v1917, %v1916
        %v1945 = vpack.c.bf16 %v1919, %v1918
        %v1946 = vpack.c.bf16 %v1921, %v1920
        %v1947 = vpack.c.bf16 %v1923, %v1922
        %s1948 = scalar_lea.vmem [#allocation7], 256
        %v1949 = vld [vmem:[%s1948] sm:$0xf]
        %v1950 = vld [vmem:[%s1948 + $0x4] sm:$0xf]
        %v1951 = vld [vmem:[%s1948 + $0x8] sm:$0xf]
        %v1952 = vld [vmem:[%s1948 + $0xc] sm:$0xf]
        %v1953 = vld [vmem:[%s1948 + $0x10] sm:$0xf]
        %v1954 = vld [vmem:[%s1948 + $0x14] sm:$0xf]
        %v1955 = vld [vmem:[%s1948 + $0x18] sm:$0xf]
        %v1956 = vld [vmem:[%s1948 + $0x1c] sm:$0xf]
        %v1957 = vld [vmem:[%s1948 + $0x20] sm:$0xf]
        %v1958 = vld [vmem:[%s1948 + $0x24] sm:$0xf]
        %v1959 = vld [vmem:[%s1948 + $0x28] sm:$0xf]
        %v1960 = vld [vmem:[%s1948 + $0x2c] sm:$0xf]
        %v1961 = vld [vmem:[%s1948 + $0x30] sm:$0xf]
        %v1962 = vld [vmem:[%s1948 + $0x34] sm:$0xf]
        %v1963 = vld [vmem:[%s1948 + $0x38] sm:$0xf]
        %v1964 = vld [vmem:[%s1948 + $0x3c] sm:$0xf]
        %v1981 = vunpack.c.l.b16 %v1949
        %v1982 = vunpack.c.l.b16 %v1950
        %v1983 = vunpack.c.l.b16 %v1951
        %v1984 = vunpack.c.l.b16 %v1952
        %v1985 = vunpack.c.l.b16 %v1953
        %v1986 = vunpack.c.l.b16 %v1954
        %v1987 = vunpack.c.l.b16 %v1955
        %v1988 = vunpack.c.l.b16 %v1956
        %v1989 = vunpack.c.l.b16 %v1957
        %v1990 = vunpack.c.l.b16 %v1958
        %v1991 = vunpack.c.l.b16 %v1959
        %v1992 = vunpack.c.l.b16 %v1960
        %v1993 = vunpack.c.l.b16 %v1961
        %v1994 = vunpack.c.l.b16 %v1962
        %v1995 = vunpack.c.l.b16 %v1963
        %v1996 = vunpack.c.l.b16 %v1964
        %v1997 = vpack.c.b16 %v1982, %v1981
        %v1998 = vpack.c.b16 %v1984, %v1983
        %v1999 = vpack.c.b16 %v1986, %v1985
        %v2000 = vpack.c.b16 %v1988, %v1987
        %v2001 = vpack.c.b16 %v1990, %v1989
        %v2002 = vpack.c.b16 %v1992, %v1991
        %v2003 = vpack.c.b16 %v1994, %v1993
        %v2004 = vpack.c.b16 %v1996, %v1995
        %2013 = vmatprep.subr.bf16.mxu0 0
        %2014 = vmatpush1.bf16.msra.mxu0 %v2004
        %2015 = vmatprep.subr.bf16.mxu0 0
        %2016 = vmatpush1.bf16.msra.mxu0 %v2003
        %2017 = vmatprep.subr.bf16.mxu0 0
        %2018 = vmatpush1.bf16.msra.mxu0 %v2002
        %2019 = vmatprep.subr.bf16.mxu0 0
        %2020 = vmatpush1.bf16.msra.mxu0 %v2001
        %2021 = vmatprep.subr.bf16.mxu0 0
        %2022 = vmatpush1.bf16.msra.mxu0 %v2000
        %2023 = vmatprep.subr.bf16.mxu0 0
        %2024 = vmatpush1.bf16.msra.mxu0 %v1999
        %2025 = vmatprep.subr.bf16.mxu0 0
        %2026 = vmatpush1.bf16.msra.mxu0 %v1998
        %2027 = vmatprep.subr.bf16.mxu0 0
        %2028 = vmatpush1.bf16.msra.mxu0 %v1997
        %2029 = vmatprep.subr.bf16.mxu0 0
        %2030 = vmatpush2.bf16.msra.mxu0 0
        %2031 = vmatprep.subr.bf16.mxu0 0
        %2032 = vmatpush2.bf16.msra.mxu0 0
        %2033 = vmatprep.subr.bf16.mxu0 0
        %2034 = vmatpush2.bf16.msra.mxu0 0
        %2035 = vmatprep.subr.bf16.mxu0 0
        %2036 = vmatpush2.bf16.msra.mxu0 0
        %2037 = vmatprep.subr.bf16.mxu0 0
        %2038 = vmatpush2.bf16.msra.mxu0 0
        %2039 = vmatprep.subr.bf16.mxu0 0
        %2040 = vmatpush2.bf16.msra.mxu0 0
        %2041 = vmatprep.subr.bf16.mxu0 0
        %2042 = vmatpush2.bf16.msra.mxu0 0
        %2043 = vmatprep.subr.bf16.mxu0 0
        %2044 = vmatpush2.bf16.msra.mxu0 0
        %2045 = vmatprep.mubr.bf16.mxu0 0
        %2046 = vmatmul.mubr.bf16.gmra.mxu0 %v1924
        %v2047 = vpop.f32.mrf.mxu0
        %v2048 = vadd.f32 0.0, %v2047
        %v2049 = vpop.f32.mrf.mxu0
        %v2050 = vpop.f32.mrf.mxu0
        %v2051 = vadd.f32 0.0, %v2050
        %v2052 = vpop.f32.mrf.mxu0
        %2053 = vmatprep.mubr.bf16.mxu0 0
        %2054 = vmatmul.mubr.bf16.gmra.mxu0 %v1925
        %v2055 = vpop.f32.mrf.mxu0
        %v2056 = vadd.f32 0.0, %v2055
        %v2057 = vpop.f32.mrf.mxu0
        %v2058 = vpop.f32.mrf.mxu0
        %v2059 = vadd.f32 0.0, %v2058
        %v2060 = vpop.f32.mrf.mxu0
        %2061 = vmatprep.mubr.bf16.mxu0 0
        %2062 = vmatmul.mubr.bf16.gmra.mxu0 %v1926
        %v2063 = vpop.f32.mrf.mxu0
        %v2064 = vadd.f32 0.0, %v2063
        %v2065 = vpop.f32.mrf.mxu0
        %v2066 = vpop.f32.mrf.mxu0
        %v2067 = vadd.f32 0.0, %v2066
        %v2068 = vpop.f32.mrf.mxu0
        %2069 = vmatprep.mubr.bf16.mxu0 0
        %2070 = vmatmul.mubr.bf16.gmra.mxu0 %v1927
        %v2071 = vpop.f32.mrf.mxu0
        %v2072 = vadd.f32 0.0, %v2071
        %v2073 = vpop.f32.mrf.mxu0
        %v2074 = vpop.f32.mrf.mxu0
        %v2075 = vadd.f32 0.0, %v2074
        %v2076 = vpop.f32.mrf.mxu0
        %2077 = vmatprep.mubr.bf16.mxu0 0
        %2078 = vmatmul.mubr.bf16.gmra.mxu0 %v1928
        %v2079 = vpop.f32.mrf.mxu0
        %v2080 = vadd.f32 0.0, %v2079
        %v2081 = vpop.f32.mrf.mxu0
        %v2082 = vpop.f32.mrf.mxu0
        %v2083 = vadd.f32 0.0, %v2082
        %v2084 = vpop.f32.mrf.mxu0
        %2085 = vmatprep.mubr.bf16.mxu0 0
        %2086 = vmatmul.mubr.bf16.gmra.mxu0 %v1929
        %v2087 = vpop.f32.mrf.mxu0
        %v2088 = vadd.f32 0.0, %v2087
        %v2089 = vpop.f32.mrf.mxu0
        %v2090 = vpop.f32.mrf.mxu0
        %v2091 = vadd.f32 0.0, %v2090
        %v2092 = vpop.f32.mrf.mxu0
        %2093 = vmatprep.mubr.bf16.mxu0 0
        %2094 = vmatmul.mubr.bf16.gmra.mxu0 %v1930
        %v2095 = vpop.f32.mrf.mxu0
        %v2096 = vadd.f32 0.0, %v2095
        %v2097 = vpop.f32.mrf.mxu0
        %v2098 = vpop.f32.mrf.mxu0
        %v2099 = vadd.f32 0.0, %v2098
        %v2100 = vpop.f32.mrf.mxu0
        %2101 = vmatprep.mubr.bf16.mxu0 0
        %2102 = vmatmul.mubr.bf16.gmra.mxu0 %v1931
        %v2103 = vpop.f32.mrf.mxu0
        %v2104 = vadd.f32 0.0, %v2103
        %v2105 = vpop.f32.mrf.mxu0
        %v2106 = vpop.f32.mrf.mxu0
        %v2107 = vadd.f32 0.0, %v2106
        %v2108 = vpop.f32.mrf.mxu0
        %2109 = vmatprep.mubr.bf16.mxu0 0
        %2110 = vmatmul.mubr.bf16.gmra.mxu0 %v1932
        %v2111 = vpop.f32.mrf.mxu0
        %v2112 = vadd.f32 0.0, %v2111
        %v2113 = vpop.f32.mrf.mxu0
        %v2114 = vpop.f32.mrf.mxu0
        %v2115 = vadd.f32 0.0, %v2114
        %v2116 = vpop.f32.mrf.mxu0
        %2117 = vmatprep.mubr.bf16.mxu0 0
        %2118 = vmatmul.mubr.bf16.gmra.mxu0 %v1933
        %v2119 = vpop.f32.mrf.mxu0
        %v2120 = vadd.f32 0.0, %v2119
        %v2121 = vpop.f32.mrf.mxu0
        %v2122 = vpop.f32.mrf.mxu0
        %v2123 = vadd.f32 0.0, %v2122
        %v2124 = vpop.f32.mrf.mxu0
        %2125 = vmatprep.mubr.bf16.mxu0 0
        %2126 = vmatmul.mubr.bf16.gmra.mxu0 %v1934
        %v2127 = vpop.f32.mrf.mxu0
        %v2128 = vadd.f32 0.0, %v2127
        %v2129 = vpop.f32.mrf.mxu0
        %v2130 = vpop.f32.mrf.mxu0
        %v2131 = vadd.f32 0.0, %v2130
        %v2132 = vpop.f32.mrf.mxu0
        %2133 = vmatprep.mubr.bf16.mxu0 0
        %2134 = vmatmul.mubr.bf16.gmra.mxu0 %v1935
        %v2135 = vpop.f32.mrf.mxu0
        %v2136 = vadd.f32 0.0, %v2135
        %v2137 = vpop.f32.mrf.mxu0
        %v2138 = vpop.f32.mrf.mxu0
        %v2139 = vadd.f32 0.0, %v2138
        %v2140 = vpop.f32.mrf.mxu0
        %2141 = vmatprep.mubr.bf16.mxu0 0
        %2142 = vmatmul.mubr.bf16.gmra.mxu0 %v1936
        %v2143 = vpop.f32.mrf.mxu0
        %v2144 = vadd.f32 0.0, %v2143
        %v2145 = vpop.f32.mrf.mxu0
        %v2146 = vpop.f32.mrf.mxu0
        %v2147 = vadd.f32 0.0, %v2146
        %v2148 = vpop.f32.mrf.mxu0
        %2149 = vmatprep.mubr.bf16.mxu0 0
        %2150 = vmatmul.mubr.bf16.gmra.mxu0 %v1937
        %v2151 = vpop.f32.mrf.mxu0
        %v2152 = vadd.f32 0.0, %v2151
        %v2153 = vpop.f32.mrf.mxu0
        %v2154 = vpop.f32.mrf.mxu0
        %v2155 = vadd.f32 0.0, %v2154
        %v2156 = vpop.f32.mrf.mxu0
        %2157 = vmatprep.mubr.bf16.mxu0 0
        %2158 = vmatmul.mubr.bf16.gmra.mxu0 %v1938
        %v2159 = vpop.f32.mrf.mxu0
        %v2160 = vadd.f32 0.0, %v2159
        %v2161 = vpop.f32.mrf.mxu0
        %v2162 = vpop.f32.mrf.mxu0
        %v2163 = vadd.f32 0.0, %v2162
        %v2164 = vpop.f32.mrf.mxu0
        %2165 = vmatprep.mubr.bf16.mxu0 0
        %2166 = vmatmul.mubr.bf16.gmra.mxu0 %v1939
        %v2167 = vpop.f32.mrf.mxu0
        %v2168 = vadd.f32 0.0, %v2167
        %v2169 = vpop.f32.mrf.mxu0
        %v2170 = vpop.f32.mrf.mxu0
        %v2171 = vadd.f32 0.0, %v2170
        %v2172 = vpop.f32.mrf.mxu0
        %2173 = vmatprep.mubr.bf16.mxu0 0
        %2174 = vmatmul.mubr.bf16.gmra.mxu0 %v1940
        %v2175 = vpop.f32.mrf.mxu0
        %v2176 = vadd.f32 0.0, %v2175
        %v2177 = vpop.f32.mrf.mxu0
        %v2178 = vpop.f32.mrf.mxu0
        %v2179 = vadd.f32 0.0, %v2178
        %v2180 = vpop.f32.mrf.mxu0
        %2181 = vmatprep.mubr.bf16.mxu0 0
        %2182 = vmatmul.mubr.bf16.gmra.mxu0 %v1941
        %v2183 = vpop.f32.mrf.mxu0
        %v2184 = vadd.f32 0.0, %v2183
        %v2185 = vpop.f32.mrf.mxu0
        %v2186 = vpop.f32.mrf.mxu0
        %v2187 = vadd.f32 0.0, %v2186
        %v2188 = vpop.f32.mrf.mxu0
        %2189 = vmatprep.mubr.bf16.mxu0 0
        %2190 = vmatmul.mubr.bf16.gmra.mxu0 %v1942
        %v2191 = vpop.f32.mrf.mxu0
        %v2192 = vadd.f32 0.0, %v2191
        %v2193 = vpop.f32.mrf.mxu0
        %v2194 = vpop.f32.mrf.mxu0
        %v2195 = vadd.f32 0.0, %v2194
        %v2196 = vpop.f32.mrf.mxu0
        %2197 = vmatprep.mubr.bf16.mxu0 0
        %2198 = vmatmul.mubr.bf16.gmra.mxu0 %v1943
        %v2199 = vpop.f32.mrf.mxu0
        %v2200 = vadd.f32 0.0, %v2199
        %v2201 = vpop.f32.mrf.mxu0
        %v2202 = vpop.f32.mrf.mxu0
        %v2203 = vadd.f32 0.0, %v2202
        %v2204 = vpop.f32.mrf.mxu0
        %2205 = vmatprep.mubr.bf16.mxu0 0
        %2206 = vmatmul.mubr.bf16.gmra.mxu0 %v1944
        %v2207 = vpop.f32.mrf.mxu0
        %v2208 = vadd.f32 0.0, %v2207
        %v2209 = vpop.f32.mrf.mxu0
        %v2210 = vpop.f32.mrf.mxu0
        %v2211 = vadd.f32 0.0, %v2210
        %v2212 = vpop.f32.mrf.mxu0
        %2213 = vmatprep.mubr.bf16.mxu0 0
        %2214 = vmatmul.mubr.bf16.gmra.mxu0 %v1945
        %v2215 = vpop.f32.mrf.mxu0
        %v2216 = vadd.f32 0.0, %v2215
        %v2217 = vpop.f32.mrf.mxu0
        %v2218 = vpop.f32.mrf.mxu0
        %v2219 = vadd.f32 0.0, %v2218
        %v2220 = vpop.f32.mrf.mxu0
        %2221 = vmatprep.mubr.bf16.mxu0 0
        %2222 = vmatmul.mubr.bf16.gmra.mxu0 %v1946
        %v2223 = vpop.f32.mrf.mxu0
        %v2224 = vadd.f32 0.0, %v2223
        %v2225 = vpop.f32.mrf.mxu0
        %v2226 = vpop.f32.mrf.mxu0
        %v2227 = vadd.f32 0.0, %v2226
        %v2228 = vpop.f32.mrf.mxu0
        %2229 = vmatprep.mubr.bf16.mxu0 0
        %2230 = vmatmul.mubr.bf16.gmra.mxu0 %v1947
        %v2231 = vpop.f32.mrf.mxu0
        %v2232 = vadd.f32 0.0, %v2231
        %v2233 = vpop.f32.mrf.mxu0
        %v2234 = vpop.f32.mrf.mxu0
        %v2235 = vadd.f32 0.0, %v2234
        %v2236 = vpop.f32.mrf.mxu0
        %2237 = vdwg.mxu0
        %v2254 = vunpack.c.l.b16 %v1860
        %v2255 = vunpack.c.l.b16 %v1861
        %v2256 = vunpack.c.l.b16 %v1862
        %v2257 = vunpack.c.l.b16 %v1863
        %v2258 = vunpack.c.l.b16 %v1864
        %v2259 = vunpack.c.l.b16 %v1865
        %v2260 = vunpack.c.l.b16 %v1866
        %v2261 = vunpack.c.l.b16 %v1867
        %v2262 = vunpack.c.l.b16 %v1868
        %v2263 = vunpack.c.l.b16 %v1869
        %v2264 = vunpack.c.l.b16 %v1870
        %v2265 = vunpack.c.l.b16 %v1871
        %v2266 = vunpack.c.l.b16 %v1872
        %v2267 = vunpack.c.l.b16 %v1873
        %v2268 = vunpack.c.l.b16 %v1874
        %v2269 = vunpack.c.l.b16 %v1875
        %v2270 = vpack.c.b16 %v2255, %v2254
        %v2271 = vpack.c.b16 %v2257, %v2256
        %v2272 = vpack.c.b16 %v2259, %v2258
        %v2273 = vpack.c.b16 %v2261, %v2260
        %v2274 = vpack.c.b16 %v2263, %v2262
        %v2275 = vpack.c.b16 %v2265, %v2264
        %v2276 = vpack.c.b16 %v2267, %v2266
        %v2277 = vpack.c.b16 %v2269, %v2268
        %2286 = vmatprep.subr.bf16.mxu0 0
        %2287 = vmatpush1.bf16.msra.mxu0 %v2277
        %2288 = vmatprep.subr.bf16.mxu0 0
        %2289 = vmatpush1.bf16.msra.mxu0 %v2276
        %2290 = vmatprep.subr.bf16.mxu0 0
        %2291 = vmatpush1.bf16.msra.mxu0 %v2275
        %2292 = vmatprep.subr.bf16.mxu0 0
        %2293 = vmatpush1.bf16.msra.mxu0 %v2274
        %2294 = vmatprep.subr.bf16.mxu0 0
        %2295 = vmatpush1.bf16.msra.mxu0 %v2273
        %2296 = vmatprep.subr.bf16.mxu0 0
        %2297 = vmatpush1.bf16.msra.mxu0 %v2272
        %2298 = vmatprep.subr.bf16.mxu0 0
        %2299 = vmatpush1.bf16.msra.mxu0 %v2271
        %2300 = vmatprep.subr.bf16.mxu0 0
        %2301 = vmatpush1.bf16.msra.mxu0 %v2270
        %2302 = vmatprep.subr.bf16.mxu0 0
        %2303 = vmatpush2.bf16.msra.mxu0 0
        %2304 = vmatprep.subr.bf16.mxu0 0
        %2305 = vmatpush2.bf16.msra.mxu0 0
        %2306 = vmatprep.subr.bf16.mxu0 0
        %2307 = vmatpush2.bf16.msra.mxu0 0
        %2308 = vmatprep.subr.bf16.mxu0 0
        %2309 = vmatpush2.bf16.msra.mxu0 0
        %2310 = vmatprep.subr.bf16.mxu0 0
        %2311 = vmatpush2.bf16.msra.mxu0 0
        %2312 = vmatprep.subr.bf16.mxu0 0
        %2313 = vmatpush2.bf16.msra.mxu0 0
        %2314 = vmatprep.subr.bf16.mxu0 0
        %2315 = vmatpush2.bf16.msra.mxu0 0
        %2316 = vmatprep.subr.bf16.mxu0 0
        %2317 = vmatpush2.bf16.msra.mxu0 0
        %2318 = vmatprep.mubr.bf16.mxu0 0
        %2319 = vmatmul.mubr.bf16.gmra.mxu0 %v1835
        %v2320 = vpop.f32.mrf.mxu0
        %v2321 = vadd.f32 %v2048, %v2320
        %v2322 = vpop.f32.mrf.mxu0
        %v2323 = vpop.f32.mrf.mxu0
        %v2324 = vadd.f32 %v2051, %v2323
        %v2325 = vpop.f32.mrf.mxu0
        %2326 = vmatprep.mubr.bf16.mxu0 0
        %2327 = vmatmul.mubr.bf16.gmra.mxu0 %v1836
        %v2328 = vpop.f32.mrf.mxu0
        %v2329 = vadd.f32 %v2056, %v2328
        %v2330 = vpop.f32.mrf.mxu0
        %v2331 = vpop.f32.mrf.mxu0
        %v2332 = vadd.f32 %v2059, %v2331
        %v2333 = vpop.f32.mrf.mxu0
        %2334 = vmatprep.mubr.bf16.mxu0 0
        %2335 = vmatmul.mubr.bf16.gmra.mxu0 %v1837
        %v2336 = vpop.f32.mrf.mxu0
        %v2337 = vadd.f32 %v2064, %v2336
        %v2338 = vpop.f32.mrf.mxu0
        %v2339 = vpop.f32.mrf.mxu0
        %v2340 = vadd.f32 %v2067, %v2339
        %v2341 = vpop.f32.mrf.mxu0
        %2342 = vmatprep.mubr.bf16.mxu0 0
        %2343 = vmatmul.mubr.bf16.gmra.mxu0 %v1838
        %v2344 = vpop.f32.mrf.mxu0
        %v2345 = vadd.f32 %v2072, %v2344
        %v2346 = vpop.f32.mrf.mxu0
        %v2347 = vpop.f32.mrf.mxu0
        %v2348 = vadd.f32 %v2075, %v2347
        %v2349 = vpop.f32.mrf.mxu0
        %2350 = vmatprep.mubr.bf16.mxu0 0
        %2351 = vmatmul.mubr.bf16.gmra.mxu0 %v1839
        %v2352 = vpop.f32.mrf.mxu0
        %v2353 = vadd.f32 %v2080, %v2352
        %v2354 = vpop.f32.mrf.mxu0
        %v2355 = vpop.f32.mrf.mxu0
        %v2356 = vadd.f32 %v2083, %v2355
        %v2357 = vpop.f32.mrf.mxu0
        %2358 = vmatprep.mubr.bf16.mxu0 0
        %2359 = vmatmul.mubr.bf16.gmra.mxu0 %v1840
        %v2360 = vpop.f32.mrf.mxu0
        %v2361 = vadd.f32 %v2088, %v2360
        %v2362 = vpop.f32.mrf.mxu0
        %v2363 = vpop.f32.mrf.mxu0
        %v2364 = vadd.f32 %v2091, %v2363
        %v2365 = vpop.f32.mrf.mxu0
        %2366 = vmatprep.mubr.bf16.mxu0 0
        %2367 = vmatmul.mubr.bf16.gmra.mxu0 %v1841
        %v2368 = vpop.f32.mrf.mxu0
        %v2369 = vadd.f32 %v2096, %v2368
        %v2370 = vpop.f32.mrf.mxu0
        %v2371 = vpop.f32.mrf.mxu0
        %v2372 = vadd.f32 %v2099, %v2371
        %v2373 = vpop.f32.mrf.mxu0
        %2374 = vmatprep.mubr.bf16.mxu0 0
        %2375 = vmatmul.mubr.bf16.gmra.mxu0 %v1842
        %v2376 = vpop.f32.mrf.mxu0
        %v2377 = vadd.f32 %v2104, %v2376
        %v2378 = vpop.f32.mrf.mxu0
        %v2379 = vpop.f32.mrf.mxu0
        %v2380 = vadd.f32 %v2107, %v2379
        %v2381 = vpop.f32.mrf.mxu0
        %2382 = vmatprep.mubr.bf16.mxu0 0
        %2383 = vmatmul.mubr.bf16.gmra.mxu0 %v1843
        %v2384 = vpop.f32.mrf.mxu0
        %v2385 = vadd.f32 %v2112, %v2384
        %v2386 = vpop.f32.mrf.mxu0
        %v2387 = vpop.f32.mrf.mxu0
        %v2388 = vadd.f32 %v2115, %v2387
        %v2389 = vpop.f32.mrf.mxu0
        %2390 = vmatprep.mubr.bf16.mxu0 0
        %2391 = vmatmul.mubr.bf16.gmra.mxu0 %v1844
        %v2392 = vpop.f32.mrf.mxu0
        %v2393 = vadd.f32 %v2120, %v2392
        %v2394 = vpop.f32.mrf.mxu0
        %v2395 = vpop.f32.mrf.mxu0
        %v2396 = vadd.f32 %v2123, %v2395
        %v2397 = vpop.f32.mrf.mxu0
        %2398 = vmatprep.mubr.bf16.mxu0 0
        %2399 = vmatmul.mubr.bf16.gmra.mxu0 %v1845
        %v2400 = vpop.f32.mrf.mxu0
        %v2401 = vadd.f32 %v2128, %v2400
        %v2402 = vpop.f32.mrf.mxu0
        %v2403 = vpop.f32.mrf.mxu0
        %v2404 = vadd.f32 %v2131, %v2403
        %v2405 = vpop.f32.mrf.mxu0
        %2406 = vmatprep.mubr.bf16.mxu0 0
        %2407 = vmatmul.mubr.bf16.gmra.mxu0 %v1846
        %v2408 = vpop.f32.mrf.mxu0
        %v2409 = vadd.f32 %v2136, %v2408
        %v2410 = vpop.f32.mrf.mxu0
        %v2411 = vpop.f32.mrf.mxu0
        %v2412 = vadd.f32 %v2139, %v2411
        %v2413 = vpop.f32.mrf.mxu0
        %2414 = vmatprep.mubr.bf16.mxu0 0
        %2415 = vmatmul.mubr.bf16.gmra.mxu0 %v1847
        %v2416 = vpop.f32.mrf.mxu0
        %v2417 = vadd.f32 %v2144, %v2416
        %v2418 = vpop.f32.mrf.mxu0
        %v2419 = vpop.f32.mrf.mxu0
        %v2420 = vadd.f32 %v2147, %v2419
        %v2421 = vpop.f32.mrf.mxu0
        %2422 = vmatprep.mubr.bf16.mxu0 0
        %2423 = vmatmul.mubr.bf16.gmra.mxu0 %v1848
        %v2424 = vpop.f32.mrf.mxu0
        %v2425 = vadd.f32 %v2152, %v2424
        %v2426 = vpop.f32.mrf.mxu0
        %v2427 = vpop.f32.mrf.mxu0
        %v2428 = vadd.f32 %v2155, %v2427
        %v2429 = vpop.f32.mrf.mxu0
        %2430 = vmatprep.mubr.bf16.mxu0 0
        %2431 = vmatmul.mubr.bf16.gmra.mxu0 %v1849
        %v2432 = vpop.f32.mrf.mxu0
        %v2433 = vadd.f32 %v2160, %v2432
        %v2434 = vpop.f32.mrf.mxu0
        %v2435 = vpop.f32.mrf.mxu0
        %v2436 = vadd.f32 %v2163, %v2435
        %v2437 = vpop.f32.mrf.mxu0
        %2438 = vmatprep.mubr.bf16.mxu0 0
        %2439 = vmatmul.mubr.bf16.gmra.mxu0 %v1850
        %v2440 = vpop.f32.mrf.mxu0
        %v2441 = vadd.f32 %v2168, %v2440
        %v2442 = vpop.f32.mrf.mxu0
        %v2443 = vpop.f32.mrf.mxu0
        %v2444 = vadd.f32 %v2171, %v2443
        %v2445 = vpop.f32.mrf.mxu0
        %2446 = vmatprep.mubr.bf16.mxu0 0
        %2447 = vmatmul.mubr.bf16.gmra.mxu0 %v1851
        %v2448 = vpop.f32.mrf.mxu0
        %v2449 = vadd.f32 %v2176, %v2448
        %v2450 = vpop.f32.mrf.mxu0
        %v2451 = vpop.f32.mrf.mxu0
        %v2452 = vadd.f32 %v2179, %v2451
        %v2453 = vpop.f32.mrf.mxu0
        %2454 = vmatprep.mubr.bf16.mxu0 0
        %2455 = vmatmul.mubr.bf16.gmra.mxu0 %v1852
        %v2456 = vpop.f32.mrf.mxu0
        %v2457 = vadd.f32 %v2184, %v2456
        %v2458 = vpop.f32.mrf.mxu0
        %v2459 = vpop.f32.mrf.mxu0
        %v2460 = vadd.f32 %v2187, %v2459
        %v2461 = vpop.f32.mrf.mxu0
        %2462 = vmatprep.mubr.bf16.mxu0 0
        %2463 = vmatmul.mubr.bf16.gmra.mxu0 %v1853
        %v2464 = vpop.f32.mrf.mxu0
        %v2465 = vadd.f32 %v2192, %v2464
        %v2466 = vpop.f32.mrf.mxu0
        %v2467 = vpop.f32.mrf.mxu0
        %v2468 = vadd.f32 %v2195, %v2467
        %v2469 = vpop.f32.mrf.mxu0
        %2470 = vmatprep.mubr.bf16.mxu0 0
        %2471 = vmatmul.mubr.bf16.gmra.mxu0 %v1854
        %v2472 = vpop.f32.mrf.mxu0
        %v2473 = vadd.f32 %v2200, %v2472
        %v2474 = vpop.f32.mrf.mxu0
        %v2475 = vpop.f32.mrf.mxu0
        %v2476 = vadd.f32 %v2203, %v2475
        %v2477 = vpop.f32.mrf.mxu0
        %2478 = vmatprep.mubr.bf16.mxu0 0
        %2479 = vmatmul.mubr.bf16.gmra.mxu0 %v1855
        %v2480 = vpop.f32.mrf.mxu0
        %v2481 = vadd.f32 %v2208, %v2480
        %v2482 = vpop.f32.mrf.mxu0
        %v2483 = vpop.f32.mrf.mxu0
        %v2484 = vadd.f32 %v2211, %v2483
        %v2485 = vpop.f32.mrf.mxu0
        %2486 = vmatprep.mubr.bf16.mxu0 0
        %2487 = vmatmul.mubr.bf16.gmra.mxu0 %v1856
        %v2488 = vpop.f32.mrf.mxu0
        %v2489 = vadd.f32 %v2216, %v2488
        %v2490 = vpop.f32.mrf.mxu0
        %v2491 = vpop.f32.mrf.mxu0
        %v2492 = vadd.f32 %v2219, %v2491
        %v2493 = vpop.f32.mrf.mxu0
        %2494 = vmatprep.mubr.bf16.mxu0 0
        %2495 = vmatmul.mubr.bf16.gmra.mxu0 %v1857
        %v2496 = vpop.f32.mrf.mxu0
        %v2497 = vadd.f32 %v2224, %v2496
        %v2498 = vpop.f32.mrf.mxu0
        %v2499 = vpop.f32.mrf.mxu0
        %v2500 = vadd.f32 %v2227, %v2499
        %v2501 = vpop.f32.mrf.mxu0
        %2502 = vmatprep.mubr.bf16.mxu0 0
        %2503 = vmatmul.mubr.bf16.gmra.mxu0 %v1858
        %v2504 = vpop.f32.mrf.mxu0
        %v2505 = vadd.f32 %v2232, %v2504
        %v2506 = vpop.f32.mrf.mxu0
        %v2507 = vpop.f32.mrf.mxu0
        %v2508 = vadd.f32 %v2235, %v2507
        %v2509 = vpop.f32.mrf.mxu0
        %2510 = vdwg.mxu0
        %v2511 = vld [vmem:[%s1312] sm:$0xff]
        %v2512 = vld [vmem:[%s1312 + $0x8] sm:$0xff]
        %v2513 = vld [vmem:[%s1312 + $0x10] sm:$0xff]
        %v2514 = vld [vmem:[%s1312 + $0x18] sm:$0xff]
        %v2515 = vld [vmem:[%s1312 + $0x20] sm:$0xff]
        %v2516 = vld [vmem:[%s1312 + $0x28] sm:$0xff]
        %v2517 = vld [vmem:[%s1312 + $0x30] sm:$0xff]
        %v2518 = vld [vmem:[%s1312 + $0x38] sm:$0xff]
        %v2519 = vld [vmem:[%s1312 + $0x40] sm:$0xff]
        %v2520 = vld [vmem:[%s1312 + $0x48] sm:$0xff]
        %v2521 = vld [vmem:[%s1312 + $0x50] sm:$0xff]
        %v2522 = vld [vmem:[%s1312 + $0x58] sm:$0xff]
        %v2523 = vld [vmem:[%s1312 + $0x60] sm:$0xff]
        %v2524 = vld [vmem:[%s1312 + $0x68] sm:$0xff]
        %v2525 = vld [vmem:[%s1312 + $0x70] sm:$0xff]
        %v2526 = vld [vmem:[%s1312 + $0x78] sm:$0xff]
        %v2527 = vld [vmem:[%s1312 + $0x80] sm:$0xff]
        %v2528 = vld [vmem:[%s1312 + $0x88] sm:$0xff]
        %v2529 = vld [vmem:[%s1312 + $0x90] sm:$0xff]
        %v2530 = vld [vmem:[%s1312 + $0x98] sm:$0xff]
        %v2531 = vld [vmem:[%s1312 + $0xa0] sm:$0xff]
        %v2532 = vld [vmem:[%s1312 + $0xa8] sm:$0xff]
        %v2533 = vld [vmem:[%s1312 + $0xb0] sm:$0xff]
        %v2534 = vld [vmem:[%s1312 + $0xb8] sm:$0xff]
        %v2535 = vld [vmem:[%s1312 + $0xc0] sm:$0xff]
        %v2536 = vld [vmem:[%s1312 + $0xc8] sm:$0xff]
        %v2537 = vld [vmem:[%s1312 + $0xd0] sm:$0xff]
        %v2538 = vld [vmem:[%s1312 + $0xd8] sm:$0xff]
        %v2539 = vld [vmem:[%s1312 + $0xe0] sm:$0xff]
        %v2540 = vld [vmem:[%s1312 + $0xe8] sm:$0xff]
        %v2541 = vld [vmem:[%s1312 + $0xf0] sm:$0xff]
        %v2542 = vld [vmem:[%s1312 + $0xf8] sm:$0xff]
        %v2543 = vld [vmem:[%s1312 + $0x100] sm:$0xff]
        %v2544 = vld [vmem:[%s1312 + $0x108] sm:$0xff]
        %v2545 = vld [vmem:[%s1312 + $0x110] sm:$0xff]
        %v2546 = vld [vmem:[%s1312 + $0x118] sm:$0xff]
        %v2547 = vld [vmem:[%s1312 + $0x120] sm:$0xff]
        %v2548 = vld [vmem:[%s1312 + $0x128] sm:$0xff]
        %v2549 = vld [vmem:[%s1312 + $0x130] sm:$0xff]
        %v2550 = vld [vmem:[%s1312 + $0x138] sm:$0xff]
        %v2551 = vld [vmem:[%s1312 + $0x140] sm:$0xff]
        %v2552 = vld [vmem:[%s1312 + $0x148] sm:$0xff]
        %v2553 = vld [vmem:[%s1312 + $0x150] sm:$0xff]
        %v2554 = vld [vmem:[%s1312 + $0x158] sm:$0xff]
        %v2555 = vld [vmem:[%s1312 + $0x160] sm:$0xff]
        %v2556 = vld [vmem:[%s1312 + $0x168] sm:$0xff]
        %v2557 = vld [vmem:[%s1312 + $0x170] sm:$0xff]
        %v2558 = vld [vmem:[%s1312 + $0x178] sm:$0xff]
        %v2559 = vpack.c.bf16 %v2512, %v2511
        %v2560 = vpack.c.bf16 %v2514, %v2513
        %v2561 = vpack.c.bf16 %v2516, %v2515
        %v2562 = vpack.c.bf16 %v2518, %v2517
        %v2563 = vpack.c.bf16 %v2520, %v2519
        %v2564 = vpack.c.bf16 %v2522, %v2521
        %v2565 = vpack.c.bf16 %v2524, %v2523
        %v2566 = vpack.c.bf16 %v2526, %v2525
        %v2567 = vpack.c.bf16 %v2528, %v2527
        %v2568 = vpack.c.bf16 %v2530, %v2529
        %v2569 = vpack.c.bf16 %v2532, %v2531
        %v2570 = vpack.c.bf16 %v2534, %v2533
        %v2571 = vpack.c.bf16 %v2536, %v2535
        %v2572 = vpack.c.bf16 %v2538, %v2537
        %v2573 = vpack.c.bf16 %v2540, %v2539
        %v2574 = vpack.c.bf16 %v2542, %v2541
        %v2575 = vpack.c.bf16 %v2544, %v2543
        %v2576 = vpack.c.bf16 %v2546, %v2545
        %v2577 = vpack.c.bf16 %v2548, %v2547
        %v2578 = vpack.c.bf16 %v2550, %v2549
        %v2579 = vpack.c.bf16 %v2552, %v2551
        %v2580 = vpack.c.bf16 %v2554, %v2553
        %v2581 = vpack.c.bf16 %v2556, %v2555
        %v2582 = vpack.c.bf16 %v2558, %v2557
        %s2583 = scalar_lea.vmem [#allocation7], 448
        %v2584 = vld [vmem:[%s2583] sm:$0xf]
        %v2585 = vld [vmem:[%s2583 + $0x4] sm:$0xf]
        %v2586 = vld [vmem:[%s2583 + $0x8] sm:$0xf]
        %v2587 = vld [vmem:[%s2583 + $0xc] sm:$0xf]
        %v2588 = vld [vmem:[%s2583 + $0x10] sm:$0xf]
        %v2589 = vld [vmem:[%s2583 + $0x14] sm:$0xf]
        %v2590 = vld [vmem:[%s2583 + $0x18] sm:$0xf]
        %v2591 = vld [vmem:[%s2583 + $0x1c] sm:$0xf]
        %v2592 = vld [vmem:[%s2583 + $0x20] sm:$0xf]
        %v2593 = vld [vmem:[%s2583 + $0x24] sm:$0xf]
        %v2594 = vld [vmem:[%s2583 + $0x28] sm:$0xf]
        %v2595 = vld [vmem:[%s2583 + $0x2c] sm:$0xf]
        %v2596 = vld [vmem:[%s2583 + $0x30] sm:$0xf]
        %v2597 = vld [vmem:[%s2583 + $0x34] sm:$0xf]
        %v2598 = vld [vmem:[%s2583 + $0x38] sm:$0xf]
        %v2599 = vld [vmem:[%s2583 + $0x3c] sm:$0xf]
        %v2616 = vunpack.c.l.b16 %v2584
        %v2617 = vunpack.c.l.b16 %v2585
        %v2618 = vunpack.c.l.b16 %v2586
        %v2619 = vunpack.c.l.b16 %v2587
        %v2620 = vunpack.c.l.b16 %v2588
        %v2621 = vunpack.c.l.b16 %v2589
        %v2622 = vunpack.c.l.b16 %v2590
        %v2623 = vunpack.c.l.b16 %v2591
        %v2624 = vunpack.c.l.b16 %v2592
        %v2625 = vunpack.c.l.b16 %v2593
        %v2626 = vunpack.c.l.b16 %v2594
        %v2627 = vunpack.c.l.b16 %v2595
        %v2628 = vunpack.c.l.b16 %v2596
        %v2629 = vunpack.c.l.b16 %v2597
        %v2630 = vunpack.c.l.b16 %v2598
        %v2631 = vunpack.c.l.b16 %v2599
        %v2632 = vpack.c.b16 %v2617, %v2616
        %v2633 = vpack.c.b16 %v2619, %v2618
        %v2634 = vpack.c.b16 %v2621, %v2620
        %v2635 = vpack.c.b16 %v2623, %v2622
        %v2636 = vpack.c.b16 %v2625, %v2624
        %v2637 = vpack.c.b16 %v2627, %v2626
        %v2638 = vpack.c.b16 %v2629, %v2628
        %v2639 = vpack.c.b16 %v2631, %v2630
        %2648 = vmatprep.subr.bf16.mxu0 0
        %2649 = vmatpush1.bf16.msra.mxu0 %v2639
        %2650 = vmatprep.subr.bf16.mxu0 0
        %2651 = vmatpush1.bf16.msra.mxu0 %v2638
        %2652 = vmatprep.subr.bf16.mxu0 0
        %2653 = vmatpush1.bf16.msra.mxu0 %v2637
        %2654 = vmatprep.subr.bf16.mxu0 0
        %2655 = vmatpush1.bf16.msra.mxu0 %v2636
        %2656 = vmatprep.subr.bf16.mxu0 0
        %2657 = vmatpush1.bf16.msra.mxu0 %v2635
        %2658 = vmatprep.subr.bf16.mxu0 0
        %2659 = vmatpush1.bf16.msra.mxu0 %v2634
        %2660 = vmatprep.subr.bf16.mxu0 0
        %2661 = vmatpush1.bf16.msra.mxu0 %v2633
        %2662 = vmatprep.subr.bf16.mxu0 0
        %2663 = vmatpush1.bf16.msra.mxu0 %v2632
        %2664 = vmatprep.subr.bf16.mxu0 0
        %2665 = vmatpush2.bf16.msra.mxu0 0
        %2666 = vmatprep.subr.bf16.mxu0 0
        %2667 = vmatpush2.bf16.msra.mxu0 0
        %2668 = vmatprep.subr.bf16.mxu0 0
        %2669 = vmatpush2.bf16.msra.mxu0 0
        %2670 = vmatprep.subr.bf16.mxu0 0
        %2671 = vmatpush2.bf16.msra.mxu0 0
        %2672 = vmatprep.subr.bf16.mxu0 0
        %2673 = vmatpush2.bf16.msra.mxu0 0
        %2674 = vmatprep.subr.bf16.mxu0 0
        %2675 = vmatpush2.bf16.msra.mxu0 0
        %2676 = vmatprep.subr.bf16.mxu0 0
        %2677 = vmatpush2.bf16.msra.mxu0 0
        %2678 = vmatprep.subr.bf16.mxu0 0
        %2679 = vmatpush2.bf16.msra.mxu0 0
        %2680 = vmatprep.mubr.bf16.mxu0 0
        %2681 = vmatmul.mubr.bf16.gmra.mxu0 %v2559
        %v2682 = vpop.f32.mrf.mxu0
        %v2683 = vadd.f32 0.0, %v2682
        %v2684 = vpop.f32.mrf.mxu0
        %v2685 = vpop.f32.mrf.mxu0
        %v2686 = vadd.f32 0.0, %v2685
        %v2687 = vpop.f32.mrf.mxu0
        %2688 = vmatprep.mubr.bf16.mxu0 0
        %2689 = vmatmul.mubr.bf16.gmra.mxu0 %v2560
        %v2690 = vpop.f32.mrf.mxu0
        %v2691 = vadd.f32 0.0, %v2690
        %v2692 = vpop.f32.mrf.mxu0
        %v2693 = vpop.f32.mrf.mxu0
        %v2694 = vadd.f32 0.0, %v2693
        %v2695 = vpop.f32.mrf.mxu0
        %2696 = vmatprep.mubr.bf16.mxu0 0
        %2697 = vmatmul.mubr.bf16.gmra.mxu0 %v2561
        %v2698 = vpop.f32.mrf.mxu0
        %v2699 = vadd.f32 0.0, %v2698
        %v2700 = vpop.f32.mrf.mxu0
        %v2701 = vpop.f32.mrf.mxu0
        %v2702 = vadd.f32 0.0, %v2701
        %v2703 = vpop.f32.mrf.mxu0
        %2704 = vmatprep.mubr.bf16.mxu0 0
        %2705 = vmatmul.mubr.bf16.gmra.mxu0 %v2562
        %v2706 = vpop.f32.mrf.mxu0
        %v2707 = vadd.f32 0.0, %v2706
        %v2708 = vpop.f32.mrf.mxu0
        %v2709 = vpop.f32.mrf.mxu0
        %v2710 = vadd.f32 0.0, %v2709
        %v2711 = vpop.f32.mrf.mxu0
        %2712 = vmatprep.mubr.bf16.mxu0 0
        %2713 = vmatmul.mubr.bf16.gmra.mxu0 %v2563
        %v2714 = vpop.f32.mrf.mxu0
        %v2715 = vadd.f32 0.0, %v2714
        %v2716 = vpop.f32.mrf.mxu0
        %v2717 = vpop.f32.mrf.mxu0
        %v2718 = vadd.f32 0.0, %v2717
        %v2719 = vpop.f32.mrf.mxu0
        %2720 = vmatprep.mubr.bf16.mxu0 0
        %2721 = vmatmul.mubr.bf16.gmra.mxu0 %v2564
        %v2722 = vpop.f32.mrf.mxu0
        %v2723 = vadd.f32 0.0, %v2722
        %v2724 = vpop.f32.mrf.mxu0
        %v2725 = vpop.f32.mrf.mxu0
        %v2726 = vadd.f32 0.0, %v2725
        %v2727 = vpop.f32.mrf.mxu0
        %2728 = vmatprep.mubr.bf16.mxu0 0
        %2729 = vmatmul.mubr.bf16.gmra.mxu0 %v2565
        %v2730 = vpop.f32.mrf.mxu0
        %v2731 = vadd.f32 0.0, %v2730
        %v2732 = vpop.f32.mrf.mxu0
        %v2733 = vpop.f32.mrf.mxu0
        %v2734 = vadd.f32 0.0, %v2733
        %v2735 = vpop.f32.mrf.mxu0
        %2736 = vmatprep.mubr.bf16.mxu0 0
        %2737 = vmatmul.mubr.bf16.gmra.mxu0 %v2566
        %v2738 = vpop.f32.mrf.mxu0
        %v2739 = vadd.f32 0.0, %v2738
        %v2740 = vpop.f32.mrf.mxu0
        %v2741 = vpop.f32.mrf.mxu0
        %v2742 = vadd.f32 0.0, %v2741
        %v2743 = vpop.f32.mrf.mxu0
        %2744 = vmatprep.mubr.bf16.mxu0 0
        %2745 = vmatmul.mubr.bf16.gmra.mxu0 %v2567
        %v2746 = vpop.f32.mrf.mxu0
        %v2747 = vadd.f32 0.0, %v2746
        %v2748 = vpop.f32.mrf.mxu0
        %v2749 = vpop.f32.mrf.mxu0
        %v2750 = vadd.f32 0.0, %v2749
        %v2751 = vpop.f32.mrf.mxu0
        %2752 = vmatprep.mubr.bf16.mxu0 0
        %2753 = vmatmul.mubr.bf16.gmra.mxu0 %v2568
        %v2754 = vpop.f32.mrf.mxu0
        %v2755 = vadd.f32 0.0, %v2754
        %v2756 = vpop.f32.mrf.mxu0
        %v2757 = vpop.f32.mrf.mxu0
        %v2758 = vadd.f32 0.0, %v2757
        %v2759 = vpop.f32.mrf.mxu0
        %2760 = vmatprep.mubr.bf16.mxu0 0
        %2761 = vmatmul.mubr.bf16.gmra.mxu0 %v2569
        %v2762 = vpop.f32.mrf.mxu0
        %v2763 = vadd.f32 0.0, %v2762
        %v2764 = vpop.f32.mrf.mxu0
        %v2765 = vpop.f32.mrf.mxu0
        %v2766 = vadd.f32 0.0, %v2765
        %v2767 = vpop.f32.mrf.mxu0
        %2768 = vmatprep.mubr.bf16.mxu0 0
        %2769 = vmatmul.mubr.bf16.gmra.mxu0 %v2570
        %v2770 = vpop.f32.mrf.mxu0
        %v2771 = vadd.f32 0.0, %v2770
        %v2772 = vpop.f32.mrf.mxu0
        %v2773 = vpop.f32.mrf.mxu0
        %v2774 = vadd.f32 0.0, %v2773
        %v2775 = vpop.f32.mrf.mxu0
        %2776 = vmatprep.mubr.bf16.mxu0 0
        %2777 = vmatmul.mubr.bf16.gmra.mxu0 %v2571
        %v2778 = vpop.f32.mrf.mxu0
        %v2779 = vadd.f32 0.0, %v2778
        %v2780 = vpop.f32.mrf.mxu0
        %v2781 = vpop.f32.mrf.mxu0
        %v2782 = vadd.f32 0.0, %v2781
        %v2783 = vpop.f32.mrf.mxu0
        %2784 = vmatprep.mubr.bf16.mxu0 0
        %2785 = vmatmul.mubr.bf16.gmra.mxu0 %v2572
        %v2786 = vpop.f32.mrf.mxu0
        %v2787 = vadd.f32 0.0, %v2786
        %v2788 = vpop.f32.mrf.mxu0
        %v2789 = vpop.f32.mrf.mxu0
        %v2790 = vadd.f32 0.0, %v2789
        %v2791 = vpop.f32.mrf.mxu0
        %2792 = vmatprep.mubr.bf16.mxu0 0
        %2793 = vmatmul.mubr.bf16.gmra.mxu0 %v2573
        %v2794 = vpop.f32.mrf.mxu0
        %v2795 = vadd.f32 0.0, %v2794
        %v2796 = vpop.f32.mrf.mxu0
        %v2797 = vpop.f32.mrf.mxu0
        %v2798 = vadd.f32 0.0, %v2797
        %v2799 = vpop.f32.mrf.mxu0
        %2800 = vmatprep.mubr.bf16.mxu0 0
        %2801 = vmatmul.mubr.bf16.gmra.mxu0 %v2574
        %v2802 = vpop.f32.mrf.mxu0
        %v2803 = vadd.f32 0.0, %v2802
        %v2804 = vpop.f32.mrf.mxu0
        %v2805 = vpop.f32.mrf.mxu0
        %v2806 = vadd.f32 0.0, %v2805
        %v2807 = vpop.f32.mrf.mxu0
        %2808 = vmatprep.mubr.bf16.mxu0 0
        %2809 = vmatmul.mubr.bf16.gmra.mxu0 %v2575
        %v2810 = vpop.f32.mrf.mxu0
        %v2811 = vadd.f32 0.0, %v2810
        %v2812 = vpop.f32.mrf.mxu0
        %v2813 = vpop.f32.mrf.mxu0
        %v2814 = vadd.f32 0.0, %v2813
        %v2815 = vpop.f32.mrf.mxu0
        %2816 = vmatprep.mubr.bf16.mxu0 0
        %2817 = vmatmul.mubr.bf16.gmra.mxu0 %v2576
        %v2818 = vpop.f32.mrf.mxu0
        %v2819 = vadd.f32 0.0, %v2818
        %v2820 = vpop.f32.mrf.mxu0
        %v2821 = vpop.f32.mrf.mxu0
        %v2822 = vadd.f32 0.0, %v2821
        %v2823 = vpop.f32.mrf.mxu0
        %2824 = vmatprep.mubr.bf16.mxu0 0
        %2825 = vmatmul.mubr.bf16.gmra.mxu0 %v2577
        %v2826 = vpop.f32.mrf.mxu0
        %v2827 = vadd.f32 0.0, %v2826
        %v2828 = vpop.f32.mrf.mxu0
        %v2829 = vpop.f32.mrf.mxu0
        %v2830 = vadd.f32 0.0, %v2829
        %v2831 = vpop.f32.mrf.mxu0
        %2832 = vmatprep.mubr.bf16.mxu0 0
        %2833 = vmatmul.mubr.bf16.gmra.mxu0 %v2578
        %v2834 = vpop.f32.mrf.mxu0
        %v2835 = vadd.f32 0.0, %v2834
        %v2836 = vpop.f32.mrf.mxu0
        %v2837 = vpop.f32.mrf.mxu0
        %v2838 = vadd.f32 0.0, %v2837
        %v2839 = vpop.f32.mrf.mxu0
        %2840 = vmatprep.mubr.bf16.mxu0 0
        %2841 = vmatmul.mubr.bf16.gmra.mxu0 %v2579
        %v2842 = vpop.f32.mrf.mxu0
        %v2843 = vadd.f32 0.0, %v2842
        %v2844 = vpop.f32.mrf.mxu0
        %v2845 = vpop.f32.mrf.mxu0
        %v2846 = vadd.f32 0.0, %v2845
        %v2847 = vpop.f32.mrf.mxu0
        %2848 = vmatprep.mubr.bf16.mxu0 0
        %2849 = vmatmul.mubr.bf16.gmra.mxu0 %v2580
        %v2850 = vpop.f32.mrf.mxu0
        %v2851 = vadd.f32 0.0, %v2850
        %v2852 = vpop.f32.mrf.mxu0
        %v2853 = vpop.f32.mrf.mxu0
        %v2854 = vadd.f32 0.0, %v2853
        %v2855 = vpop.f32.mrf.mxu0
        %2856 = vmatprep.mubr.bf16.mxu0 0
        %2857 = vmatmul.mubr.bf16.gmra.mxu0 %v2581
        %v2858 = vpop.f32.mrf.mxu0
        %v2859 = vadd.f32 0.0, %v2858
        %v2860 = vpop.f32.mrf.mxu0
        %v2861 = vpop.f32.mrf.mxu0
        %v2862 = vadd.f32 0.0, %v2861
        %v2863 = vpop.f32.mrf.mxu0
        %2864 = vmatprep.mubr.bf16.mxu0 0
        %2865 = vmatmul.mubr.bf16.gmra.mxu0 %v2582
        %v2866 = vpop.f32.mrf.mxu0
        %v2867 = vadd.f32 0.0, %v2866
        %v2868 = vpop.f32.mrf.mxu0
        %v2869 = vpop.f32.mrf.mxu0
        %v2870 = vadd.f32 0.0, %v2869
        %v2871 = vpop.f32.mrf.mxu0
        %2872 = vdwg.mxu0
        %v2873 = vadd.f32 %v2321, %v2683
        %v2874 = vadd.f32 %v2324, %v2686
        %v2875 = vadd.f32 %v2329, %v2691
        %v2876 = vadd.f32 %v2332, %v2694
        %v2877 = vadd.f32 %v2337, %v2699
        %v2878 = vadd.f32 %v2340, %v2702
        %v2879 = vadd.f32 %v2345, %v2707
        %v2880 = vadd.f32 %v2348, %v2710
        %v2881 = vadd.f32 %v2353, %v2715
        %v2882 = vadd.f32 %v2356, %v2718
        %v2883 = vadd.f32 %v2361, %v2723
        %v2884 = vadd.f32 %v2364, %v2726
        %v2885 = vadd.f32 %v2369, %v2731
        %v2886 = vadd.f32 %v2372, %v2734
        %v2887 = vadd.f32 %v2377, %v2739
        %v2888 = vadd.f32 %v2380, %v2742
        %v2889 = vadd.f32 %v2385, %v2747
        %v2890 = vadd.f32 %v2388, %v2750
        %v2891 = vadd.f32 %v2393, %v2755
        %v2892 = vadd.f32 %v2396, %v2758
        %v2893 = vadd.f32 %v2401, %v2763
        %v2894 = vadd.f32 %v2404, %v2766
        %v2895 = vadd.f32 %v2409, %v2771
        %v2896 = vadd.f32 %v2412, %v2774
        %v2897 = vadd.f32 %v2417, %v2779
        %v2898 = vadd.f32 %v2420, %v2782
        %v2899 = vadd.f32 %v2425, %v2787
        %v2900 = vadd.f32 %v2428, %v2790
        %v2901 = vadd.f32 %v2433, %v2795
        %v2902 = vadd.f32 %v2436, %v2798
        %v2903 = vadd.f32 %v2441, %v2803
        %v2904 = vadd.f32 %v2444, %v2806
        %v2905 = vadd.f32 %v2449, %v2811
        %v2906 = vadd.f32 %v2452, %v2814
        %v2907 = vadd.f32 %v2457, %v2819
        %v2908 = vadd.f32 %v2460, %v2822
        %v2909 = vadd.f32 %v2465, %v2827
        %v2910 = vadd.f32 %v2468, %v2830
        %v2911 = vadd.f32 %v2473, %v2835
        %v2912 = vadd.f32 %v2476, %v2838
        %v2913 = vadd.f32 %v2481, %v2843
        %v2914 = vadd.f32 %v2484, %v2846
        %v2915 = vadd.f32 %v2489, %v2851
        %v2916 = vadd.f32 %v2492, %v2854
        %v2917 = vadd.f32 %v2497, %v2859
        %v2918 = vadd.f32 %v2500, %v2862
        %v2919 = vadd.f32 %v2505, %v2867
        %v2920 = vadd.f32 %v2508, %v2870
        %v2921 = vld [vmem:[#allocation3] sm:$0xff]
        %v2922 = vld [vmem:[#allocation3 + $0x8] sm:$0xff]
        %v2923 = vld [vmem:[#allocation3 + $0x10] sm:$0xff]
        %v2924 = vld [vmem:[#allocation3 + $0x18] sm:$0xff]
        %v2925 = vld [vmem:[#allocation3 + $0x20] sm:$0xff]
        %v2926 = vld [vmem:[#allocation3 + $0x28] sm:$0xff]
        %v2927 = vld [vmem:[#allocation3 + $0x30] sm:$0xff]
        %v2928 = vld [vmem:[#allocation3 + $0x38] sm:$0xff]
        %v2929 = vld [vmem:[#allocation3 + $0x40] sm:$0xff]
        %v2930 = vld [vmem:[#allocation3 + $0x48] sm:$0xff]
        %v2931 = vld [vmem:[#allocation3 + $0x50] sm:$0xff]
        %v2932 = vld [vmem:[#allocation3 + $0x58] sm:$0xff]
        %v2933 = vld [vmem:[#allocation3 + $0x60] sm:$0xff]
        %v2934 = vld [vmem:[#allocation3 + $0x68] sm:$0xff]
        %v2935 = vld [vmem:[#allocation3 + $0x70] sm:$0xff]
        %v2936 = vld [vmem:[#allocation3 + $0x78] sm:$0xff]
        %v2937 = vld [vmem:[#allocation3 + $0x80] sm:$0xff]
        %v2938 = vld [vmem:[#allocation3 + $0x88] sm:$0xff]
        %v2939 = vld [vmem:[#allocation3 + $0x90] sm:$0xff]
        %v2940 = vld [vmem:[#allocation3 + $0x98] sm:$0xff]
        %v2941 = vld [vmem:[#allocation3 + $0xa0] sm:$0xff]
        %v2942 = vld [vmem:[#allocation3 + $0xa8] sm:$0xff]
        %v2943 = vld [vmem:[#allocation3 + $0xb0] sm:$0xff]
        %v2944 = vld [vmem:[#allocation3 + $0xb8] sm:$0xff]
        %v2945 = vld [vmem:[#allocation3 + $0xc0] sm:$0xff]
        %v2946 = vld [vmem:[#allocation3 + $0xc8] sm:$0xff]
        %v2947 = vld [vmem:[#allocation3 + $0xd0] sm:$0xff]
        %v2948 = vld [vmem:[#allocation3 + $0xd8] sm:$0xff]
        %v2949 = vld [vmem:[#allocation3 + $0xe0] sm:$0xff]
        %v2950 = vld [vmem:[#allocation3 + $0xe8] sm:$0xff]
        %v2951 = vld [vmem:[#allocation3 + $0xf0] sm:$0xff]
        %v2952 = vld [vmem:[#allocation3 + $0xf8] sm:$0xff]
        %vm3001 = vcmask 1046528
        %v3002 = vrot.slane %v2873, 1
        %v3003 = vrot.slane %v2874, 1
        %v3004 = vsel %vm3001, %v3002, %v3003
        %v3005 = vrot.slane %v2875, 1
        %v3006 = vsel %vm3001, %v3003, %v3005
        %v3007 = vrot.slane %v2876, 1
        %v3008 = vrot.slane %v2877, 1
        %v3009 = vsel %vm3001, %v3007, %v3008
        %v3010 = vrot.slane %v2878, 1
        %v3011 = vsel %vm3001, %v3008, %v3010
        %v3012 = vrot.slane %v2879, 1
        %v3013 = vrot.slane %v2880, 1
        %v3014 = vsel %vm3001, %v3012, %v3013
        %v3015 = vrot.slane %v2881, 1
        %v3016 = vsel %vm3001, %v3013, %v3015
        %v3017 = vrot.slane %v2882, 1
        %v3018 = vrot.slane %v2883, 1
        %v3019 = vsel %vm3001, %v3017, %v3018
        %v3020 = vrot.slane %v2884, 1
        %v3021 = vsel %vm3001, %v3018, %v3020
        %v3022 = vrot.slane %v2885, 1
        %v3023 = vrot.slane %v2886, 1
        %v3024 = vsel %vm3001, %v3022, %v3023
        %v3025 = vrot.slane %v2887, 1
        %v3026 = vsel %vm3001, %v3023, %v3025
        %v3027 = vrot.slane %v2888, 1
        %v3028 = vrot.slane %v2889, 1
        %v3029 = vsel %vm3001, %v3027, %v3028
        %v3030 = vrot.slane %v2890, 1
        %v3031 = vsel %vm3001, %v3028, %v3030
        %v3032 = vrot.slane %v2891, 1
        %v3033 = vrot.slane %v2892, 1
        %v3034 = vsel %vm3001, %v3032, %v3033
        %v3035 = vrot.slane %v2893, 1
        %v3036 = vsel %vm3001, %v3033, %v3035
        %v3037 = vrot.slane %v2894, 1
        %v3038 = vrot.slane %v2895, 1
        %v3039 = vsel %vm3001, %v3037, %v3038
        %v3040 = vrot.slane %v2896, 1
        %v3041 = vsel %vm3001, %v3038, %v3040
        %v3042 = vrot.slane %v2897, 1
        %v3043 = vrot.slane %v2898, 1
        %v3044 = vsel %vm3001, %v3042, %v3043
        %v3045 = vrot.slane %v2899, 1
        %v3046 = vsel %vm3001, %v3043, %v3045
        %v3047 = vrot.slane %v2900, 1
        %v3048 = vrot.slane %v2901, 1
        %v3049 = vsel %vm3001, %v3047, %v3048
        %v3050 = vrot.slane %v2902, 1
        %v3051 = vsel %vm3001, %v3048, %v3050
        %v3052 = vrot.slane %v2903, 1
        %v3053 = vrot.slane %v2904, 1
        %v3054 = vsel %vm3001, %v3052, %v3053
        %v3055 = vrot.slane %v2905, 1
        %v3056 = vsel %vm3001, %v3053, %v3055
        %v3057 = vrot.slane %v2906, 1
        %v3058 = vrot.slane %v2907, 1
        %v3059 = vsel %vm3001, %v3057, %v3058
        %v3060 = vrot.slane %v2908, 1
        %v3061 = vsel %vm3001, %v3058, %v3060
        %v3062 = vrot.slane %v2909, 1
        %v3063 = vrot.slane %v2910, 1
        %v3064 = vsel %vm3001, %v3062, %v3063
        %v3065 = vrot.slane %v2911, 1
        %v3066 = vsel %vm3001, %v3063, %v3065
        %v3067 = vrot.slane %v2912, 1
        %v3068 = vrot.slane %v2913, 1
        %v3069 = vsel %vm3001, %v3067, %v3068
        %v3070 = vrot.slane %v2914, 1
        %v3071 = vsel %vm3001, %v3068, %v3070
        %v3072 = vrot.slane %v2915, 1
        %v3073 = vrot.slane %v2916, 1
        %v3074 = vsel %vm3001, %v3072, %v3073
        %v3075 = vrot.slane %v2917, 1
        %v3076 = vsel %vm3001, %v3073, %v3075
        %v3077 = vrot.slane %v2918, 1
        %v3078 = vrot.slane %v2919, 1
        %v3079 = vsel %vm3001, %v3077, %v3078
        %v3080 = vrot.slane %v2920, 1
        %v3081 = vsel %vm3001, %v3078, %v3080
        %v3114 = vadd.f32 %v2921, %v3004
        %v3115 = vadd.f32 %v2922, %v3006
        %v3116 = vadd.f32 %v2923, %v3009
        %v3117 = vadd.f32 %v2924, %v3011
        %v3118 = vadd.f32 %v2925, %v3014
        %v3119 = vadd.f32 %v2926, %v3016
        %v3120 = vadd.f32 %v2927, %v3019
        %v3121 = vadd.f32 %v2928, %v3021
        %v3122 = vadd.f32 %v2929, %v3024
        %v3123 = vadd.f32 %v2930, %v3026
        %v3124 = vadd.f32 %v2931, %v3029
        %v3125 = vadd.f32 %v2932, %v3031
        %v3126 = vadd.f32 %v2933, %v3034
        %v3127 = vadd.f32 %v2934, %v3036
        %v3128 = vadd.f32 %v2935, %v3039
        %v3129 = vadd.f32 %v2936, %v3041
        %v3130 = vadd.f32 %v2937, %v3044
        %v3131 = vadd.f32 %v2938, %v3046
        %v3132 = vadd.f32 %v2939, %v3049
        %v3133 = vadd.f32 %v2940, %v3051
        %v3134 = vadd.f32 %v2941, %v3054
        %v3135 = vadd.f32 %v2942, %v3056
        %v3136 = vadd.f32 %v2943, %v3059
        %v3137 = vadd.f32 %v2944, %v3061
        %v3138 = vadd.f32 %v2945, %v3064
        %v3139 = vadd.f32 %v2946, %v3066
        %v3140 = vadd.f32 %v2947, %v3069
        %v3141 = vadd.f32 %v2948, %v3071
        %v3142 = vadd.f32 %v2949, %v3074
        %v3143 = vadd.f32 %v2950, %v3076
        %v3144 = vadd.f32 %v2951, %v3079
        %v3145 = vadd.f32 %v2952, %v3081
        %3146 = vst [vmem:[#allocation3] sm:$0xff] %v3114
        %3147 = vst [vmem:[#allocation3 + $0x8] sm:$0xff] %v3115
        %3148 = vst [vmem:[#allocation3 + $0x10] sm:$0xff] %v3116
        %3149 = vst [vmem:[#allocation3 + $0x18] sm:$0xff] %v3117
        %3150 = vst [vmem:[#allocation3 + $0x20] sm:$0xff] %v3118
        %3151 = vst [vmem:[#allocation3 + $0x28] sm:$0xff] %v3119
        %3152 = vst [vmem:[#allocation3 + $0x30] sm:$0xff] %v3120
        %3153 = vst [vmem:[#allocation3 + $0x38] sm:$0xff] %v3121
        %3154 = vst [vmem:[#allocation3 + $0x40] sm:$0xff] %v3122
        %3155 = vst [vmem:[#allocation3 + $0x48] sm:$0xff] %v3123
        %3156 = vst [vmem:[#allocation3 + $0x50] sm:$0xff] %v3124
        %3157 = vst [vmem:[#allocation3 + $0x58] sm:$0xff] %v3125
        %3158 = vst [vmem:[#allocation3 + $0x60] sm:$0xff] %v3126
        %3159 = vst [vmem:[#allocation3 + $0x68] sm:$0xff] %v3127
        %3160 = vst [vmem:[#allocation3 + $0x70] sm:$0xff] %v3128
        %3161 = vst [vmem:[#allocation3 + $0x78] sm:$0xff] %v3129
        %3162 = vst [vmem:[#allocation3 + $0x80] sm:$0xff] %v3130
        %3163 = vst [vmem:[#allocation3 + $0x88] sm:$0xff] %v3131
        %3164 = vst [vmem:[#allocation3 + $0x90] sm:$0xff] %v3132
        %3165 = vst [vmem:[#allocation3 + $0x98] sm:$0xff] %v3133
        %3166 = vst [vmem:[#allocation3 + $0xa0] sm:$0xff] %v3134
        %3167 = vst [vmem:[#allocation3 + $0xa8] sm:$0xff] %v3135
        %3168 = vst [vmem:[#allocation3 + $0xb0] sm:$0xff] %v3136
        %3169 = vst [vmem:[#allocation3 + $0xb8] sm:$0xff] %v3137
        %3170 = vst [vmem:[#allocation3 + $0xc0] sm:$0xff] %v3138
        %3171 = vst [vmem:[#allocation3 + $0xc8] sm:$0xff] %v3139
        %3172 = vst [vmem:[#allocation3 + $0xd0] sm:$0xff] %v3140
        %3173 = vst [vmem:[#allocation3 + $0xd8] sm:$0xff] %v3141
        %3174 = vst [vmem:[#allocation3 + $0xe0] sm:$0xff] %v3142
        %3175 = vst [vmem:[#allocation3 + $0xe8] sm:$0xff] %v3143
        %3176 = vst [vmem:[#allocation3 + $0xf0] sm:$0xff] %v3144
        %3177 = vst [vmem:[#allocation3 + $0xf8] sm:$0xff] %v3145
        %v3178 = vld [vmem:[#allocation2] sm:$0xff]
        %v3179 = vld [vmem:[#allocation2 + $0x8] sm:$0xff]
        %v3180 = vld [vmem:[#allocation2 + $0x10] sm:$0xff]
        %v3181 = vld [vmem:[#allocation2 + $0x18] sm:$0xff]
        %v3182 = vld [vmem:[#allocation2 + $0x20] sm:$0xff]
        %v3183 = vld [vmem:[#allocation2 + $0x28] sm:$0xff]
        %v3184 = vld [vmem:[#allocation2 + $0x30] sm:$0xff]
        %v3185 = vld [vmem:[#allocation2 + $0x38] sm:$0xff]
        %v3186 = vld [vmem:[#allocation2 + $0x40] sm:$0xff]
        %v3187 = vld [vmem:[#allocation2 + $0x48] sm:$0xff]
        %v3188 = vld [vmem:[#allocation2 + $0x50] sm:$0xff]
        %v3189 = vld [vmem:[#allocation2 + $0x58] sm:$0xff]
        %v3190 = vld [vmem:[#allocation2 + $0x60] sm:$0xff]
        %v3191 = vld [vmem:[#allocation2 + $0x68] sm:$0xff]
        %v3192 = vld [vmem:[#allocation2 + $0x70] sm:$0xff]
        %v3193 = vld [vmem:[#allocation2 + $0x78] sm:$0xff]
        %v3194 = vld [vmem:[#allocation2 + $0x80] sm:$0xff]
        %v3195 = vld [vmem:[#allocation2 + $0x88] sm:$0xff]
        %v3196 = vld [vmem:[#allocation2 + $0x90] sm:$0xff]
        %v3197 = vld [vmem:[#allocation2 + $0x98] sm:$0xff]
        %v3198 = vld [vmem:[#allocation2 + $0xa0] sm:$0xff]
        %v3199 = vld [vmem:[#allocation2 + $0xa8] sm:$0xff]
        %v3200 = vld [vmem:[#allocation2 + $0xb0] sm:$0xff]
        %v3201 = vld [vmem:[#allocation2 + $0xb8] sm:$0xff]
        %v3202 = vld [vmem:[#allocation2 + $0xc0] sm:$0xff]
        %v3203 = vld [vmem:[#allocation2 + $0xc8] sm:$0xff]
        %v3204 = vld [vmem:[#allocation2 + $0xd0] sm:$0xff]
        %v3205 = vld [vmem:[#allocation2 + $0xd8] sm:$0xff]
        %v3206 = vld [vmem:[#allocation2 + $0xe0] sm:$0xff]
        %v3207 = vld [vmem:[#allocation2 + $0xe8] sm:$0xff]
        %v3208 = vld [vmem:[#allocation2 + $0xf0] sm:$0xff]
        %v3209 = vld [vmem:[#allocation2 + $0xf8] sm:$0xff]
        %v3210 = vld [vmem:[#allocation2 + $0x100] sm:$0xff]
        %v3211 = vld [vmem:[#allocation2 + $0x108] sm:$0xff]
        %v3212 = vld [vmem:[#allocation2 + $0x110] sm:$0xff]
        %v3213 = vld [vmem:[#allocation2 + $0x118] sm:$0xff]
        %v3214 = vld [vmem:[#allocation2 + $0x120] sm:$0xff]
        %v3215 = vld [vmem:[#allocation2 + $0x128] sm:$0xff]
        %v3216 = vld [vmem:[#allocation2 + $0x130] sm:$0xff]
        %v3217 = vld [vmem:[#allocation2 + $0x138] sm:$0xff]
        %v3218 = vld [vmem:[#allocation2 + $0x140] sm:$0xff]
        %v3219 = vld [vmem:[#allocation2 + $0x148] sm:$0xff]
        %v3220 = vld [vmem:[#allocation2 + $0x150] sm:$0xff]
        %v3221 = vld [vmem:[#allocation2 + $0x158] sm:$0xff]
        %v3222 = vld [vmem:[#allocation2 + $0x160] sm:$0xff]
        %v3223 = vld [vmem:[#allocation2 + $0x168] sm:$0xff]
        %v3224 = vld [vmem:[#allocation2 + $0x170] sm:$0xff]
        %v3225 = vld [vmem:[#allocation2 + $0x178] sm:$0xff]
        %v3226 = vpack.c.bf16 %v3179, %v3178
        %v3227 = vpack.c.bf16 %v3181, %v3180
        %v3228 = vpack.c.bf16 %v3183, %v3182
        %v3229 = vpack.c.bf16 %v3185, %v3184
        %v3230 = vpack.c.bf16 %v3187, %v3186
        %v3231 = vpack.c.bf16 %v3189, %v3188
        %v3232 = vpack.c.bf16 %v3191, %v3190
        %v3233 = vpack.c.bf16 %v3193, %v3192
        %v3234 = vpack.c.bf16 %v3195, %v3194
        %v3235 = vpack.c.bf16 %v3197, %v3196
        %v3236 = vpack.c.bf16 %v3199, %v3198
        %v3237 = vpack.c.bf16 %v3201, %v3200
        %v3238 = vpack.c.bf16 %v3203, %v3202
        %v3239 = vpack.c.bf16 %v3205, %v3204
        %v3240 = vpack.c.bf16 %v3207, %v3206
        %v3241 = vpack.c.bf16 %v3209, %v3208
        %v3242 = vpack.c.bf16 %v3211, %v3210
        %v3243 = vpack.c.bf16 %v3213, %v3212
        %v3244 = vpack.c.bf16 %v3215, %v3214
        %v3245 = vpack.c.bf16 %v3217, %v3216
        %v3246 = vpack.c.bf16 %v3219, %v3218
        %v3247 = vpack.c.bf16 %v3221, %v3220
        %v3248 = vpack.c.bf16 %v3223, %v3222
        %v3249 = vpack.c.bf16 %v3225, %v3224
        %s3250 = scalar_lea.vmem [#allocation7], 128
        %v3251 = vld [vmem:[%s3250] sm:$0xf]
        %v3252 = vld [vmem:[%s3250 + $0x4] sm:$0xf]
        %v3253 = vld [vmem:[%s3250 + $0x8] sm:$0xf]
        %v3254 = vld [vmem:[%s3250 + $0xc] sm:$0xf]
        %v3255 = vld [vmem:[%s3250 + $0x10] sm:$0xf]
        %v3256 = vld [vmem:[%s3250 + $0x14] sm:$0xf]
        %v3257 = vld [vmem:[%s3250 + $0x18] sm:$0xf]
        %v3258 = vld [vmem:[%s3250 + $0x1c] sm:$0xf]
        %v3259 = vld [vmem:[%s3250 + $0x20] sm:$0xf]
        %v3260 = vld [vmem:[%s3250 + $0x24] sm:$0xf]
        %v3261 = vld [vmem:[%s3250 + $0x28] sm:$0xf]
        %v3262 = vld [vmem:[%s3250 + $0x2c] sm:$0xf]
        %v3263 = vld [vmem:[%s3250 + $0x30] sm:$0xf]
        %v3264 = vld [vmem:[%s3250 + $0x34] sm:$0xf]
        %v3265 = vld [vmem:[%s3250 + $0x38] sm:$0xf]
        %v3266 = vld [vmem:[%s3250 + $0x3c] sm:$0xf]
        %v3267 = vld [vmem:[%s550] sm:$0xff]
        %v3268 = vld [vmem:[%s550 + $0x8] sm:$0xff]
        %v3269 = vld [vmem:[%s550 + $0x10] sm:$0xff]
        %v3270 = vld [vmem:[%s550 + $0x18] sm:$0xff]
        %v3271 = vld [vmem:[%s550 + $0x20] sm:$0xff]
        %v3272 = vld [vmem:[%s550 + $0x28] sm:$0xff]
        %v3273 = vld [vmem:[%s550 + $0x30] sm:$0xff]
        %v3274 = vld [vmem:[%s550 + $0x38] sm:$0xff]
        %v3275 = vld [vmem:[%s550 + $0x40] sm:$0xff]
        %v3276 = vld [vmem:[%s550 + $0x48] sm:$0xff]
        %v3277 = vld [vmem:[%s550 + $0x50] sm:$0xff]
        %v3278 = vld [vmem:[%s550 + $0x58] sm:$0xff]
        %v3279 = vld [vmem:[%s550 + $0x60] sm:$0xff]
        %v3280 = vld [vmem:[%s550 + $0x68] sm:$0xff]
        %v3281 = vld [vmem:[%s550 + $0x70] sm:$0xff]
        %v3282 = vld [vmem:[%s550 + $0x78] sm:$0xff]
        %v3283 = vld [vmem:[%s550 + $0x80] sm:$0xff]
        %v3284 = vld [vmem:[%s550 + $0x88] sm:$0xff]
        %v3285 = vld [vmem:[%s550 + $0x90] sm:$0xff]
        %v3286 = vld [vmem:[%s550 + $0x98] sm:$0xff]
        %v3287 = vld [vmem:[%s550 + $0xa0] sm:$0xff]
        %v3288 = vld [vmem:[%s550 + $0xa8] sm:$0xff]
        %v3289 = vld [vmem:[%s550 + $0xb0] sm:$0xff]
        %v3290 = vld [vmem:[%s550 + $0xb8] sm:$0xff]
        %v3291 = vld [vmem:[%s550 + $0xc0] sm:$0xff]
        %v3292 = vld [vmem:[%s550 + $0xc8] sm:$0xff]
        %v3293 = vld [vmem:[%s550 + $0xd0] sm:$0xff]
        %v3294 = vld [vmem:[%s550 + $0xd8] sm:$0xff]
        %v3295 = vld [vmem:[%s550 + $0xe0] sm:$0xff]
        %v3296 = vld [vmem:[%s550 + $0xe8] sm:$0xff]
        %v3297 = vld [vmem:[%s550 + $0xf0] sm:$0xff]
        %v3298 = vld [vmem:[%s550 + $0xf8] sm:$0xff]
        %v3299 = vld [vmem:[%s550 + $0x100] sm:$0xff]
        %v3300 = vld [vmem:[%s550 + $0x108] sm:$0xff]
        %v3301 = vld [vmem:[%s550 + $0x110] sm:$0xff]
        %v3302 = vld [vmem:[%s550 + $0x118] sm:$0xff]
        %v3303 = vld [vmem:[%s550 + $0x120] sm:$0xff]
        %v3304 = vld [vmem:[%s550 + $0x128] sm:$0xff]
        %v3305 = vld [vmem:[%s550 + $0x130] sm:$0xff]
        %v3306 = vld [vmem:[%s550 + $0x138] sm:$0xff]
        %v3307 = vld [vmem:[%s550 + $0x140] sm:$0xff]
        %v3308 = vld [vmem:[%s550 + $0x148] sm:$0xff]
        %v3309 = vld [vmem:[%s550 + $0x150] sm:$0xff]
        %v3310 = vld [vmem:[%s550 + $0x158] sm:$0xff]
        %v3311 = vld [vmem:[%s550 + $0x160] sm:$0xff]
        %v3312 = vld [vmem:[%s550 + $0x168] sm:$0xff]
        %v3313 = vld [vmem:[%s550 + $0x170] sm:$0xff]
        %v3314 = vld [vmem:[%s550 + $0x178] sm:$0xff]
        %v3315 = vpack.c.bf16 %v3268, %v3267
        %v3316 = vpack.c.bf16 %v3270, %v3269
        %v3317 = vpack.c.bf16 %v3272, %v3271
        %v3318 = vpack.c.bf16 %v3274, %v3273
        %v3319 = vpack.c.bf16 %v3276, %v3275
        %v3320 = vpack.c.bf16 %v3278, %v3277
        %v3321 = vpack.c.bf16 %v3280, %v3279
        %v3322 = vpack.c.bf16 %v3282, %v3281
        %v3323 = vpack.c.bf16 %v3284, %v3283
        %v3324 = vpack.c.bf16 %v3286, %v3285
        %v3325 = vpack.c.bf16 %v3288, %v3287
        %v3326 = vpack.c.bf16 %v3290, %v3289
        %v3327 = vpack.c.bf16 %v3292, %v3291
        %v3328 = vpack.c.bf16 %v3294, %v3293
        %v3329 = vpack.c.bf16 %v3296, %v3295
        %v3330 = vpack.c.bf16 %v3298, %v3297
        %v3331 = vpack.c.bf16 %v3300, %v3299
        %v3332 = vpack.c.bf16 %v3302, %v3301
        %v3333 = vpack.c.bf16 %v3304, %v3303
        %v3334 = vpack.c.bf16 %v3306, %v3305
        %v3335 = vpack.c.bf16 %v3308, %v3307
        %v3336 = vpack.c.bf16 %v3310, %v3309
        %v3337 = vpack.c.bf16 %v3312, %v3311
        %v3338 = vpack.c.bf16 %v3314, %v3313
        %s3339 = scalar_lea.vmem [#allocation7], 320
        %v3340 = vld [vmem:[%s3339] sm:$0xf]
        %v3341 = vld [vmem:[%s3339 + $0x4] sm:$0xf]
        %v3342 = vld [vmem:[%s3339 + $0x8] sm:$0xf]
        %v3343 = vld [vmem:[%s3339 + $0xc] sm:$0xf]
        %v3344 = vld [vmem:[%s3339 + $0x10] sm:$0xf]
        %v3345 = vld [vmem:[%s3339 + $0x14] sm:$0xf]
        %v3346 = vld [vmem:[%s3339 + $0x18] sm:$0xf]
        %v3347 = vld [vmem:[%s3339 + $0x1c] sm:$0xf]
        %v3348 = vld [vmem:[%s3339 + $0x20] sm:$0xf]
        %v3349 = vld [vmem:[%s3339 + $0x24] sm:$0xf]
        %v3350 = vld [vmem:[%s3339 + $0x28] sm:$0xf]
        %v3351 = vld [vmem:[%s3339 + $0x2c] sm:$0xf]
        %v3352 = vld [vmem:[%s3339 + $0x30] sm:$0xf]
        %v3353 = vld [vmem:[%s3339 + $0x34] sm:$0xf]
        %v3354 = vld [vmem:[%s3339 + $0x38] sm:$0xf]
        %v3355 = vld [vmem:[%s3339 + $0x3c] sm:$0xf]
        %v3372 = vunpack.c.l.b16 %v3340
        %v3373 = vunpack.c.l.b16 %v3341
        %v3374 = vunpack.c.l.b16 %v3342
        %v3375 = vunpack.c.l.b16 %v3343
        %v3376 = vunpack.c.l.b16 %v3344
        %v3377 = vunpack.c.l.b16 %v3345
        %v3378 = vunpack.c.l.b16 %v3346
        %v3379 = vunpack.c.l.b16 %v3347
        %v3380 = vunpack.c.l.b16 %v3348
        %v3381 = vunpack.c.l.b16 %v3349
        %v3382 = vunpack.c.l.b16 %v3350
        %v3383 = vunpack.c.l.b16 %v3351
        %v3384 = vunpack.c.l.b16 %v3352
        %v3385 = vunpack.c.l.b16 %v3353
        %v3386 = vunpack.c.l.b16 %v3354
        %v3387 = vunpack.c.l.b16 %v3355
        %v3388 = vpack.c.b16 %v3373, %v3372
        %v3389 = vpack.c.b16 %v3375, %v3374
        %v3390 = vpack.c.b16 %v3377, %v3376
        %v3391 = vpack.c.b16 %v3379, %v3378
        %v3392 = vpack.c.b16 %v3381, %v3380
        %v3393 = vpack.c.b16 %v3383, %v3382
        %v3394 = vpack.c.b16 %v3385, %v3384
        %v3395 = vpack.c.b16 %v3387, %v3386
        %3404 = vmatprep.subr.bf16.mxu0 0
        %3405 = vmatpush1.bf16.msra.mxu0 %v3395
        %3406 = vmatprep.subr.bf16.mxu0 0
        %3407 = vmatpush1.bf16.msra.mxu0 %v3394
        %3408 = vmatprep.subr.bf16.mxu0 0
        %3409 = vmatpush1.bf16.msra.mxu0 %v3393
        %3410 = vmatprep.subr.bf16.mxu0 0
        %3411 = vmatpush1.bf16.msra.mxu0 %v3392
        %3412 = vmatprep.subr.bf16.mxu0 0
        %3413 = vmatpush1.bf16.msra.mxu0 %v3391
        %3414 = vmatprep.subr.bf16.mxu0 0
        %3415 = vmatpush1.bf16.msra.mxu0 %v3390
        %3416 = vmatprep.subr.bf16.mxu0 0
        %3417 = vmatpush1.bf16.msra.mxu0 %v3389
        %3418 = vmatprep.subr.bf16.mxu0 0
        %3419 = vmatpush1.bf16.msra.mxu0 %v3388
        %3420 = vmatprep.subr.bf16.mxu0 0
        %3421 = vmatpush2.bf16.msra.mxu0 0
        %3422 = vmatprep.subr.bf16.mxu0 0
        %3423 = vmatpush2.bf16.msra.mxu0 0
        %3424 = vmatprep.subr.bf16.mxu0 0
        %3425 = vmatpush2.bf16.msra.mxu0 0
        %3426 = vmatprep.subr.bf16.mxu0 0
        %3427 = vmatpush2.bf16.msra.mxu0 0
        %3428 = vmatprep.subr.bf16.mxu0 0
        %3429 = vmatpush2.bf16.msra.mxu0 0
        %3430 = vmatprep.subr.bf16.mxu0 0
        %3431 = vmatpush2.bf16.msra.mxu0 0
        %3432 = vmatprep.subr.bf16.mxu0 0
        %3433 = vmatpush2.bf16.msra.mxu0 0
        %3434 = vmatprep.subr.bf16.mxu0 0
        %3435 = vmatpush2.bf16.msra.mxu0 0
        %3436 = vmatprep.mubr.bf16.mxu0 0
        %3437 = vmatmul.mubr.bf16.gmra.mxu0 %v3315
        %v3438 = vpop.f32.mrf.mxu0
        %v3439 = vadd.f32 0.0, %v3438
        %v3440 = vpop.f32.mrf.mxu0
        %v3441 = vpop.f32.mrf.mxu0
        %v3442 = vadd.f32 0.0, %v3441
        %v3443 = vpop.f32.mrf.mxu0
        %3444 = vmatprep.mubr.bf16.mxu0 0
        %3445 = vmatmul.mubr.bf16.gmra.mxu0 %v3316
        %v3446 = vpop.f32.mrf.mxu0
        %v3447 = vadd.f32 0.0, %v3446
        %v3448 = vpop.f32.mrf.mxu0
        %v3449 = vpop.f32.mrf.mxu0
        %v3450 = vadd.f32 0.0, %v3449
        %v3451 = vpop.f32.mrf.mxu0
        %3452 = vmatprep.mubr.bf16.mxu0 0
        %3453 = vmatmul.mubr.bf16.gmra.mxu0 %v3317
        %v3454 = vpop.f32.mrf.mxu0
        %v3455 = vadd.f32 0.0, %v3454
        %v3456 = vpop.f32.mrf.mxu0
        %v3457 = vpop.f32.mrf.mxu0
        %v3458 = vadd.f32 0.0, %v3457
        %v3459 = vpop.f32.mrf.mxu0
        %3460 = vmatprep.mubr.bf16.mxu0 0
        %3461 = vmatmul.mubr.bf16.gmra.mxu0 %v3318
        %v3462 = vpop.f32.mrf.mxu0
        %v3463 = vadd.f32 0.0, %v3462
        %v3464 = vpop.f32.mrf.mxu0
        %v3465 = vpop.f32.mrf.mxu0
        %v3466 = vadd.f32 0.0, %v3465
        %v3467 = vpop.f32.mrf.mxu0
        %3468 = vmatprep.mubr.bf16.mxu0 0
        %3469 = vmatmul.mubr.bf16.gmra.mxu0 %v3319
        %v3470 = vpop.f32.mrf.mxu0
        %v3471 = vadd.f32 0.0, %v3470
        %v3472 = vpop.f32.mrf.mxu0
        %v3473 = vpop.f32.mrf.mxu0
        %v3474 = vadd.f32 0.0, %v3473
        %v3475 = vpop.f32.mrf.mxu0
        %3476 = vmatprep.mubr.bf16.mxu0 0
        %3477 = vmatmul.mubr.bf16.gmra.mxu0 %v3320
        %v3478 = vpop.f32.mrf.mxu0
        %v3479 = vadd.f32 0.0, %v3478
        %v3480 = vpop.f32.mrf.mxu0
        %v3481 = vpop.f32.mrf.mxu0
        %v3482 = vadd.f32 0.0, %v3481
        %v3483 = vpop.f32.mrf.mxu0
        %3484 = vmatprep.mubr.bf16.mxu0 0
        %3485 = vmatmul.mubr.bf16.gmra.mxu0 %v3321
        %v3486 = vpop.f32.mrf.mxu0
        %v3487 = vadd.f32 0.0, %v3486
        %v3488 = vpop.f32.mrf.mxu0
        %v3489 = vpop.f32.mrf.mxu0
        %v3490 = vadd.f32 0.0, %v3489
        %v3491 = vpop.f32.mrf.mxu0
        %3492 = vmatprep.mubr.bf16.mxu0 0
        %3493 = vmatmul.mubr.bf16.gmra.mxu0 %v3322
        %v3494 = vpop.f32.mrf.mxu0
        %v3495 = vadd.f32 0.0, %v3494
        %v3496 = vpop.f32.mrf.mxu0
        %v3497 = vpop.f32.mrf.mxu0
        %v3498 = vadd.f32 0.0, %v3497
        %v3499 = vpop.f32.mrf.mxu0
        %3500 = vmatprep.mubr.bf16.mxu0 0
        %3501 = vmatmul.mubr.bf16.gmra.mxu0 %v3323
        %v3502 = vpop.f32.mrf.mxu0
        %v3503 = vadd.f32 0.0, %v3502
        %v3504 = vpop.f32.mrf.mxu0
        %v3505 = vpop.f32.mrf.mxu0
        %v3506 = vadd.f32 0.0, %v3505
        %v3507 = vpop.f32.mrf.mxu0
        %3508 = vmatprep.mubr.bf16.mxu0 0
        %3509 = vmatmul.mubr.bf16.gmra.mxu0 %v3324
        %v3510 = vpop.f32.mrf.mxu0
        %v3511 = vadd.f32 0.0, %v3510
        %v3512 = vpop.f32.mrf.mxu0
        %v3513 = vpop.f32.mrf.mxu0
        %v3514 = vadd.f32 0.0, %v3513
        %v3515 = vpop.f32.mrf.mxu0
        %3516 = vmatprep.mubr.bf16.mxu0 0
        %3517 = vmatmul.mubr.bf16.gmra.mxu0 %v3325
        %v3518 = vpop.f32.mrf.mxu0
        %v3519 = vadd.f32 0.0, %v3518
        %v3520 = vpop.f32.mrf.mxu0
        %v3521 = vpop.f32.mrf.mxu0
        %v3522 = vadd.f32 0.0, %v3521
        %v3523 = vpop.f32.mrf.mxu0
        %3524 = vmatprep.mubr.bf16.mxu0 0
        %3525 = vmatmul.mubr.bf16.gmra.mxu0 %v3326
        %v3526 = vpop.f32.mrf.mxu0
        %v3527 = vadd.f32 0.0, %v3526
        %v3528 = vpop.f32.mrf.mxu0
        %v3529 = vpop.f32.mrf.mxu0
        %v3530 = vadd.f32 0.0, %v3529
        %v3531 = vpop.f32.mrf.mxu0
        %3532 = vmatprep.mubr.bf16.mxu0 0
        %3533 = vmatmul.mubr.bf16.gmra.mxu0 %v3327
        %v3534 = vpop.f32.mrf.mxu0
        %v3535 = vadd.f32 0.0, %v3534
        %v3536 = vpop.f32.mrf.mxu0
        %v3537 = vpop.f32.mrf.mxu0
        %v3538 = vadd.f32 0.0, %v3537
        %v3539 = vpop.f32.mrf.mxu0
        %3540 = vmatprep.mubr.bf16.mxu0 0
        %3541 = vmatmul.mubr.bf16.gmra.mxu0 %v3328
        %v3542 = vpop.f32.mrf.mxu0
        %v3543 = vadd.f32 0.0, %v3542
        %v3544 = vpop.f32.mrf.mxu0
        %v3545 = vpop.f32.mrf.mxu0
        %v3546 = vadd.f32 0.0, %v3545
        %v3547 = vpop.f32.mrf.mxu0
        %3548 = vmatprep.mubr.bf16.mxu0 0
        %3549 = vmatmul.mubr.bf16.gmra.mxu0 %v3329
        %v3550 = vpop.f32.mrf.mxu0
        %v3551 = vadd.f32 0.0, %v3550
        %v3552 = vpop.f32.mrf.mxu0
        %v3553 = vpop.f32.mrf.mxu0
        %v3554 = vadd.f32 0.0, %v3553
        %v3555 = vpop.f32.mrf.mxu0
        %3556 = vmatprep.mubr.bf16.mxu0 0
        %3557 = vmatmul.mubr.bf16.gmra.mxu0 %v3330
        %v3558 = vpop.f32.mrf.mxu0
        %v3559 = vadd.f32 0.0, %v3558
        %v3560 = vpop.f32.mrf.mxu0
        %v3561 = vpop.f32.mrf.mxu0
        %v3562 = vadd.f32 0.0, %v3561
        %v3563 = vpop.f32.mrf.mxu0
        %3564 = vmatprep.mubr.bf16.mxu0 0
        %3565 = vmatmul.mubr.bf16.gmra.mxu0 %v3331
        %v3566 = vpop.f32.mrf.mxu0
        %v3567 = vadd.f32 0.0, %v3566
        %v3568 = vpop.f32.mrf.mxu0
        %v3569 = vpop.f32.mrf.mxu0
        %v3570 = vadd.f32 0.0, %v3569
        %v3571 = vpop.f32.mrf.mxu0
        %3572 = vmatprep.mubr.bf16.mxu0 0
        %3573 = vmatmul.mubr.bf16.gmra.mxu0 %v3332
        %v3574 = vpop.f32.mrf.mxu0
        %v3575 = vadd.f32 0.0, %v3574
        %v3576 = vpop.f32.mrf.mxu0
        %v3577 = vpop.f32.mrf.mxu0
        %v3578 = vadd.f32 0.0, %v3577
        %v3579 = vpop.f32.mrf.mxu0
        %3580 = vmatprep.mubr.bf16.mxu0 0
        %3581 = vmatmul.mubr.bf16.gmra.mxu0 %v3333
        %v3582 = vpop.f32.mrf.mxu0
        %v3583 = vadd.f32 0.0, %v3582
        %v3584 = vpop.f32.mrf.mxu0
        %v3585 = vpop.f32.mrf.mxu0
        %v3586 = vadd.f32 0.0, %v3585
        %v3587 = vpop.f32.mrf.mxu0
        %3588 = vmatprep.mubr.bf16.mxu0 0
        %3589 = vmatmul.mubr.bf16.gmra.mxu0 %v3334
        %v3590 = vpop.f32.mrf.mxu0
        %v3591 = vadd.f32 0.0, %v3590
        %v3592 = vpop.f32.mrf.mxu0
        %v3593 = vpop.f32.mrf.mxu0
        %v3594 = vadd.f32 0.0, %v3593
        %v3595 = vpop.f32.mrf.mxu0
        %3596 = vmatprep.mubr.bf16.mxu0 0
        %3597 = vmatmul.mubr.bf16.gmra.mxu0 %v3335
        %v3598 = vpop.f32.mrf.mxu0
        %v3599 = vadd.f32 0.0, %v3598
        %v3600 = vpop.f32.mrf.mxu0
        %v3601 = vpop.f32.mrf.mxu0
        %v3602 = vadd.f32 0.0, %v3601
        %v3603 = vpop.f32.mrf.mxu0
        %3604 = vmatprep.mubr.bf16.mxu0 0
        %3605 = vmatmul.mubr.bf16.gmra.mxu0 %v3336
        %v3606 = vpop.f32.mrf.mxu0
        %v3607 = vadd.f32 0.0, %v3606
        %v3608 = vpop.f32.mrf.mxu0
        %v3609 = vpop.f32.mrf.mxu0
        %v3610 = vadd.f32 0.0, %v3609
        %v3611 = vpop.f32.mrf.mxu0
        %3612 = vmatprep.mubr.bf16.mxu0 0
        %3613 = vmatmul.mubr.bf16.gmra.mxu0 %v3337
        %v3614 = vpop.f32.mrf.mxu0
        %v3615 = vadd.f32 0.0, %v3614
        %v3616 = vpop.f32.mrf.mxu0
        %v3617 = vpop.f32.mrf.mxu0
        %v3618 = vadd.f32 0.0, %v3617
        %v3619 = vpop.f32.mrf.mxu0
        %3620 = vmatprep.mubr.bf16.mxu0 0
        %3621 = vmatmul.mubr.bf16.gmra.mxu0 %v3338
        %v3622 = vpop.f32.mrf.mxu0
        %v3623 = vadd.f32 0.0, %v3622
        %v3624 = vpop.f32.mrf.mxu0
        %v3625 = vpop.f32.mrf.mxu0
        %v3626 = vadd.f32 0.0, %v3625
        %v3627 = vpop.f32.mrf.mxu0
        %3628 = vdwg.mxu0
        %v3645 = vunpack.c.l.b16 %v3251
        %v3646 = vunpack.c.l.b16 %v3252
        %v3647 = vunpack.c.l.b16 %v3253
        %v3648 = vunpack.c.l.b16 %v3254
        %v3649 = vunpack.c.l.b16 %v3255
        %v3650 = vunpack.c.l.b16 %v3256
        %v3651 = vunpack.c.l.b16 %v3257
        %v3652 = vunpack.c.l.b16 %v3258
        %v3653 = vunpack.c.l.b16 %v3259
        %v3654 = vunpack.c.l.b16 %v3260
        %v3655 = vunpack.c.l.b16 %v3261
        %v3656 = vunpack.c.l.b16 %v3262
        %v3657 = vunpack.c.l.b16 %v3263
        %v3658 = vunpack.c.l.b16 %v3264
        %v3659 = vunpack.c.l.b16 %v3265
        %v3660 = vunpack.c.l.b16 %v3266
        %v3661 = vpack.c.b16 %v3646, %v3645
        %v3662 = vpack.c.b16 %v3648, %v3647
        %v3663 = vpack.c.b16 %v3650, %v3649
        %v3664 = vpack.c.b16 %v3652, %v3651
        %v3665 = vpack.c.b16 %v3654, %v3653
        %v3666 = vpack.c.b16 %v3656, %v3655
        %v3667 = vpack.c.b16 %v3658, %v3657
        %v3668 = vpack.c.b16 %v3660, %v3659
        %3677 = vmatprep.subr.bf16.mxu0 0
        %3678 = vmatpush1.bf16.msra.mxu0 %v3668
        %3679 = vmatprep.subr.bf16.mxu0 0
        %3680 = vmatpush1.bf16.msra.mxu0 %v3667
        %3681 = vmatprep.subr.bf16.mxu0 0
        %3682 = vmatpush1.bf16.msra.mxu0 %v3666
        %3683 = vmatprep.subr.bf16.mxu0 0
        %3684 = vmatpush1.bf16.msra.mxu0 %v3665
        %3685 = vmatprep.subr.bf16.mxu0 0
        %3686 = vmatpush1.bf16.msra.mxu0 %v3664
        %3687 = vmatprep.subr.bf16.mxu0 0
        %3688 = vmatpush1.bf16.msra.mxu0 %v3663
        %3689 = vmatprep.subr.bf16.mxu0 0
        %3690 = vmatpush1.bf16.msra.mxu0 %v3662
        %3691 = vmatprep.subr.bf16.mxu0 0
        %3692 = vmatpush1.bf16.msra.mxu0 %v3661
        %3693 = vmatprep.subr.bf16.mxu0 0
        %3694 = vmatpush2.bf16.msra.mxu0 0
        %3695 = vmatprep.subr.bf16.mxu0 0
        %3696 = vmatpush2.bf16.msra.mxu0 0
        %3697 = vmatprep.subr.bf16.mxu0 0
        %3698 = vmatpush2.bf16.msra.mxu0 0
        %3699 = vmatprep.subr.bf16.mxu0 0
        %3700 = vmatpush2.bf16.msra.mxu0 0
        %3701 = vmatprep.subr.bf16.mxu0 0
        %3702 = vmatpush2.bf16.msra.mxu0 0
        %3703 = vmatprep.subr.bf16.mxu0 0
        %3704 = vmatpush2.bf16.msra.mxu0 0
        %3705 = vmatprep.subr.bf16.mxu0 0
        %3706 = vmatpush2.bf16.msra.mxu0 0
        %3707 = vmatprep.subr.bf16.mxu0 0
        %3708 = vmatpush2.bf16.msra.mxu0 0
        %3709 = vmatprep.mubr.bf16.mxu0 0
        %3710 = vmatmul.mubr.bf16.gmra.mxu0 %v3226
        %v3711 = vpop.f32.mrf.mxu0
        %v3712 = vadd.f32 %v3439, %v3711
        %v3713 = vpop.f32.mrf.mxu0
        %v3714 = vpop.f32.mrf.mxu0
        %v3715 = vadd.f32 %v3442, %v3714
        %v3716 = vpop.f32.mrf.mxu0
        %3717 = vmatprep.mubr.bf16.mxu0 0
        %3718 = vmatmul.mubr.bf16.gmra.mxu0 %v3227
        %v3719 = vpop.f32.mrf.mxu0
        %v3720 = vadd.f32 %v3447, %v3719
        %v3721 = vpop.f32.mrf.mxu0
        %v3722 = vpop.f32.mrf.mxu0
        %v3723 = vadd.f32 %v3450, %v3722
        %v3724 = vpop.f32.mrf.mxu0
        %3725 = vmatprep.mubr.bf16.mxu0 0
        %3726 = vmatmul.mubr.bf16.gmra.mxu0 %v3228
        %v3727 = vpop.f32.mrf.mxu0
        %v3728 = vadd.f32 %v3455, %v3727
        %v3729 = vpop.f32.mrf.mxu0
        %v3730 = vpop.f32.mrf.mxu0
        %v3731 = vadd.f32 %v3458, %v3730
        %v3732 = vpop.f32.mrf.mxu0
        %3733 = vmatprep.mubr.bf16.mxu0 0
        %3734 = vmatmul.mubr.bf16.gmra.mxu0 %v3229
        %v3735 = vpop.f32.mrf.mxu0
        %v3736 = vadd.f32 %v3463, %v3735
        %v3737 = vpop.f32.mrf.mxu0
        %v3738 = vpop.f32.mrf.mxu0
        %v3739 = vadd.f32 %v3466, %v3738
        %v3740 = vpop.f32.mrf.mxu0
        %3741 = vmatprep.mubr.bf16.mxu0 0
        %3742 = vmatmul.mubr.bf16.gmra.mxu0 %v3230
        %v3743 = vpop.f32.mrf.mxu0
        %v3744 = vadd.f32 %v3471, %v3743
        %v3745 = vpop.f32.mrf.mxu0
        %v3746 = vpop.f32.mrf.mxu0
        %v3747 = vadd.f32 %v3474, %v3746
        %v3748 = vpop.f32.mrf.mxu0
        %3749 = vmatprep.mubr.bf16.mxu0 0
        %3750 = vmatmul.mubr.bf16.gmra.mxu0 %v3231
        %v3751 = vpop.f32.mrf.mxu0
        %v3752 = vadd.f32 %v3479, %v3751
        %v3753 = vpop.f32.mrf.mxu0
        %v3754 = vpop.f32.mrf.mxu0
        %v3755 = vadd.f32 %v3482, %v3754
        %v3756 = vpop.f32.mrf.mxu0
        %3757 = vmatprep.mubr.bf16.mxu0 0
        %3758 = vmatmul.mubr.bf16.gmra.mxu0 %v3232
        %v3759 = vpop.f32.mrf.mxu0
        %v3760 = vadd.f32 %v3487, %v3759
        %v3761 = vpop.f32.mrf.mxu0
        %v3762 = vpop.f32.mrf.mxu0
        %v3763 = vadd.f32 %v3490, %v3762
        %v3764 = vpop.f32.mrf.mxu0
        %3765 = vmatprep.mubr.bf16.mxu0 0
        %3766 = vmatmul.mubr.bf16.gmra.mxu0 %v3233
        %v3767 = vpop.f32.mrf.mxu0
        %v3768 = vadd.f32 %v3495, %v3767
        %v3769 = vpop.f32.mrf.mxu0
        %v3770 = vpop.f32.mrf.mxu0
        %v3771 = vadd.f32 %v3498, %v3770
        %v3772 = vpop.f32.mrf.mxu0
        %3773 = vmatprep.mubr.bf16.mxu0 0
        %3774 = vmatmul.mubr.bf16.gmra.mxu0 %v3234
        %v3775 = vpop.f32.mrf.mxu0
        %v3776 = vadd.f32 %v3503, %v3775
        %v3777 = vpop.f32.mrf.mxu0
        %v3778 = vpop.f32.mrf.mxu0
        %v3779 = vadd.f32 %v3506, %v3778
        %v3780 = vpop.f32.mrf.mxu0
        %3781 = vmatprep.mubr.bf16.mxu0 0
        %3782 = vmatmul.mubr.bf16.gmra.mxu0 %v3235
        %v3783 = vpop.f32.mrf.mxu0
        %v3784 = vadd.f32 %v3511, %v3783
        %v3785 = vpop.f32.mrf.mxu0
        %v3786 = vpop.f32.mrf.mxu0
        %v3787 = vadd.f32 %v3514, %v3786
        %v3788 = vpop.f32.mrf.mxu0
        %3789 = vmatprep.mubr.bf16.mxu0 0
        %3790 = vmatmul.mubr.bf16.gmra.mxu0 %v3236
        %v3791 = vpop.f32.mrf.mxu0
        %v3792 = vadd.f32 %v3519, %v3791
        %v3793 = vpop.f32.mrf.mxu0
        %v3794 = vpop.f32.mrf.mxu0
        %v3795 = vadd.f32 %v3522, %v3794
        %v3796 = vpop.f32.mrf.mxu0
        %3797 = vmatprep.mubr.bf16.mxu0 0
        %3798 = vmatmul.mubr.bf16.gmra.mxu0 %v3237
        %v3799 = vpop.f32.mrf.mxu0
        %v3800 = vadd.f32 %v3527, %v3799
        %v3801 = vpop.f32.mrf.mxu0
        %v3802 = vpop.f32.mrf.mxu0
        %v3803 = vadd.f32 %v3530, %v3802
        %v3804 = vpop.f32.mrf.mxu0
        %3805 = vmatprep.mubr.bf16.mxu0 0
        %3806 = vmatmul.mubr.bf16.gmra.mxu0 %v3238
        %v3807 = vpop.f32.mrf.mxu0
        %v3808 = vadd.f32 %v3535, %v3807
        %v3809 = vpop.f32.mrf.mxu0
        %v3810 = vpop.f32.mrf.mxu0
        %v3811 = vadd.f32 %v3538, %v3810
        %v3812 = vpop.f32.mrf.mxu0
        %3813 = vmatprep.mubr.bf16.mxu0 0
        %3814 = vmatmul.mubr.bf16.gmra.mxu0 %v3239
        %v3815 = vpop.f32.mrf.mxu0
        %v3816 = vadd.f32 %v3543, %v3815
        %v3817 = vpop.f32.mrf.mxu0
        %v3818 = vpop.f32.mrf.mxu0
        %v3819 = vadd.f32 %v3546, %v3818
        %v3820 = vpop.f32.mrf.mxu0
        %3821 = vmatprep.mubr.bf16.mxu0 0
        %3822 = vmatmul.mubr.bf16.gmra.mxu0 %v3240
        %v3823 = vpop.f32.mrf.mxu0
        %v3824 = vadd.f32 %v3551, %v3823
        %v3825 = vpop.f32.mrf.mxu0
        %v3826 = vpop.f32.mrf.mxu0
        %v3827 = vadd.f32 %v3554, %v3826
        %v3828 = vpop.f32.mrf.mxu0
        %3829 = vmatprep.mubr.bf16.mxu0 0
        %3830 = vmatmul.mubr.bf16.gmra.mxu0 %v3241
        %v3831 = vpop.f32.mrf.mxu0
        %v3832 = vadd.f32 %v3559, %v3831
        %v3833 = vpop.f32.mrf.mxu0
        %v3834 = vpop.f32.mrf.mxu0
        %v3835 = vadd.f32 %v3562, %v3834
        %v3836 = vpop.f32.mrf.mxu0
        %3837 = vmatprep.mubr.bf16.mxu0 0
        %3838 = vmatmul.mubr.bf16.gmra.mxu0 %v3242
        %v3839 = vpop.f32.mrf.mxu0
        %v3840 = vadd.f32 %v3567, %v3839
        %v3841 = vpop.f32.mrf.mxu0
        %v3842 = vpop.f32.mrf.mxu0
        %v3843 = vadd.f32 %v3570, %v3842
        %v3844 = vpop.f32.mrf.mxu0
        %3845 = vmatprep.mubr.bf16.mxu0 0
        %3846 = vmatmul.mubr.bf16.gmra.mxu0 %v3243
        %v3847 = vpop.f32.mrf.mxu0
        %v3848 = vadd.f32 %v3575, %v3847
        %v3849 = vpop.f32.mrf.mxu0
        %v3850 = vpop.f32.mrf.mxu0
        %v3851 = vadd.f32 %v3578, %v3850
        %v3852 = vpop.f32.mrf.mxu0
        %3853 = vmatprep.mubr.bf16.mxu0 0
        %3854 = vmatmul.mubr.bf16.gmra.mxu0 %v3244
        %v3855 = vpop.f32.mrf.mxu0
        %v3856 = vadd.f32 %v3583, %v3855
        %v3857 = vpop.f32.mrf.mxu0
        %v3858 = vpop.f32.mrf.mxu0
        %v3859 = vadd.f32 %v3586, %v3858
        %v3860 = vpop.f32.mrf.mxu0
        %3861 = vmatprep.mubr.bf16.mxu0 0
        %3862 = vmatmul.mubr.bf16.gmra.mxu0 %v3245
        %v3863 = vpop.f32.mrf.mxu0
        %v3864 = vadd.f32 %v3591, %v3863
        %v3865 = vpop.f32.mrf.mxu0
        %v3866 = vpop.f32.mrf.mxu0
        %v3867 = vadd.f32 %v3594, %v3866
        %v3868 = vpop.f32.mrf.mxu0
        %3869 = vmatprep.mubr.bf16.mxu0 0
        %3870 = vmatmul.mubr.bf16.gmra.mxu0 %v3246
        %v3871 = vpop.f32.mrf.mxu0
        %v3872 = vadd.f32 %v3599, %v3871
        %v3873 = vpop.f32.mrf.mxu0
        %v3874 = vpop.f32.mrf.mxu0
        %v3875 = vadd.f32 %v3602, %v3874
        %v3876 = vpop.f32.mrf.mxu0
        %3877 = vmatprep.mubr.bf16.mxu0 0
        %3878 = vmatmul.mubr.bf16.gmra.mxu0 %v3247
        %v3879 = vpop.f32.mrf.mxu0
        %v3880 = vadd.f32 %v3607, %v3879
        %v3881 = vpop.f32.mrf.mxu0
        %v3882 = vpop.f32.mrf.mxu0
        %v3883 = vadd.f32 %v3610, %v3882
        %v3884 = vpop.f32.mrf.mxu0
        %3885 = vmatprep.mubr.bf16.mxu0 0
        %3886 = vmatmul.mubr.bf16.gmra.mxu0 %v3248
        %v3887 = vpop.f32.mrf.mxu0
        %v3888 = vadd.f32 %v3615, %v3887
        %v3889 = vpop.f32.mrf.mxu0
        %v3890 = vpop.f32.mrf.mxu0
        %v3891 = vadd.f32 %v3618, %v3890
        %v3892 = vpop.f32.mrf.mxu0
        %3893 = vmatprep.mubr.bf16.mxu0 0
        %3894 = vmatmul.mubr.bf16.gmra.mxu0 %v3249
        %v3895 = vpop.f32.mrf.mxu0
        %v3896 = vadd.f32 %v3623, %v3895
        %v3897 = vpop.f32.mrf.mxu0
        %v3898 = vpop.f32.mrf.mxu0
        %v3899 = vadd.f32 %v3626, %v3898
        %v3900 = vpop.f32.mrf.mxu0
        %3901 = vdwg.mxu0
        %v3902 = vld [vmem:[%s1312] sm:$0xff]
        %v3903 = vld [vmem:[%s1312 + $0x8] sm:$0xff]
        %v3904 = vld [vmem:[%s1312 + $0x10] sm:$0xff]
        %v3905 = vld [vmem:[%s1312 + $0x18] sm:$0xff]
        %v3906 = vld [vmem:[%s1312 + $0x20] sm:$0xff]
        %v3907 = vld [vmem:[%s1312 + $0x28] sm:$0xff]
        %v3908 = vld [vmem:[%s1312 + $0x30] sm:$0xff]
        %v3909 = vld [vmem:[%s1312 + $0x38] sm:$0xff]
        %v3910 = vld [vmem:[%s1312 + $0x40] sm:$0xff]
        %v3911 = vld [vmem:[%s1312 + $0x48] sm:$0xff]
        %v3912 = vld [vmem:[%s1312 + $0x50] sm:$0xff]
        %v3913 = vld [vmem:[%s1312 + $0x58] sm:$0xff]
        %v3914 = vld [vmem:[%s1312 + $0x60] sm:$0xff]
        %v3915 = vld [vmem:[%s1312 + $0x68] sm:$0xff]
        %v3916 = vld [vmem:[%s1312 + $0x70] sm:$0xff]
        %v3917 = vld [vmem:[%s1312 + $0x78] sm:$0xff]
        %v3918 = vld [vmem:[%s1312 + $0x80] sm:$0xff]
        %v3919 = vld [vmem:[%s1312 + $0x88] sm:$0xff]
        %v3920 = vld [vmem:[%s1312 + $0x90] sm:$0xff]
        %v3921 = vld [vmem:[%s1312 + $0x98] sm:$0xff]
        %v3922 = vld [vmem:[%s1312 + $0xa0] sm:$0xff]
        %v3923 = vld [vmem:[%s1312 + $0xa8] sm:$0xff]
        %v3924 = vld [vmem:[%s1312 + $0xb0] sm:$0xff]
        %v3925 = vld [vmem:[%s1312 + $0xb8] sm:$0xff]
        %v3926 = vld [vmem:[%s1312 + $0xc0] sm:$0xff]
        %v3927 = vld [vmem:[%s1312 + $0xc8] sm:$0xff]
        %v3928 = vld [vmem:[%s1312 + $0xd0] sm:$0xff]
        %v3929 = vld [vmem:[%s1312 + $0xd8] sm:$0xff]
        %v3930 = vld [vmem:[%s1312 + $0xe0] sm:$0xff]
        %v3931 = vld [vmem:[%s1312 + $0xe8] sm:$0xff]
        %v3932 = vld [vmem:[%s1312 + $0xf0] sm:$0xff]
        %v3933 = vld [vmem:[%s1312 + $0xf8] sm:$0xff]
        %v3934 = vld [vmem:[%s1312 + $0x100] sm:$0xff]
        %v3935 = vld [vmem:[%s1312 + $0x108] sm:$0xff]
        %v3936 = vld [vmem:[%s1312 + $0x110] sm:$0xff]
        %v3937 = vld [vmem:[%s1312 + $0x118] sm:$0xff]
        %v3938 = vld [vmem:[%s1312 + $0x120] sm:$0xff]
        %v3939 = vld [vmem:[%s1312 + $0x128] sm:$0xff]
        %v3940 = vld [vmem:[%s1312 + $0x130] sm:$0xff]
        %v3941 = vld [vmem:[%s1312 + $0x138] sm:$0xff]
        %v3942 = vld [vmem:[%s1312 + $0x140] sm:$0xff]
        %v3943 = vld [vmem:[%s1312 + $0x148] sm:$0xff]
        %v3944 = vld [vmem:[%s1312 + $0x150] sm:$0xff]
        %v3945 = vld [vmem:[%s1312 + $0x158] sm:$0xff]
        %v3946 = vld [vmem:[%s1312 + $0x160] sm:$0xff]
        %v3947 = vld [vmem:[%s1312 + $0x168] sm:$0xff]
        %v3948 = vld [vmem:[%s1312 + $0x170] sm:$0xff]
        %v3949 = vld [vmem:[%s1312 + $0x178] sm:$0xff]
        %v3950 = vpack.c.bf16 %v3903, %v3902
        %v3951 = vpack.c.bf16 %v3905, %v3904
        %v3952 = vpack.c.bf16 %v3907, %v3906
        %v3953 = vpack.c.bf16 %v3909, %v3908
        %v3954 = vpack.c.bf16 %v3911, %v3910
        %v3955 = vpack.c.bf16 %v3913, %v3912
        %v3956 = vpack.c.bf16 %v3915, %v3914
        %v3957 = vpack.c.bf16 %v3917, %v3916
        %v3958 = vpack.c.bf16 %v3919, %v3918
        %v3959 = vpack.c.bf16 %v3921, %v3920
        %v3960 = vpack.c.bf16 %v3923, %v3922
        %v3961 = vpack.c.bf16 %v3925, %v3924
        %v3962 = vpack.c.bf16 %v3927, %v3926
        %v3963 = vpack.c.bf16 %v3929, %v3928
        %v3964 = vpack.c.bf16 %v3931, %v3930
        %v3965 = vpack.c.bf16 %v3933, %v3932
        %v3966 = vpack.c.bf16 %v3935, %v3934
        %v3967 = vpack.c.bf16 %v3937, %v3936
        %v3968 = vpack.c.bf16 %v3939, %v3938
        %v3969 = vpack.c.bf16 %v3941, %v3940
        %v3970 = vpack.c.bf16 %v3943, %v3942
        %v3971 = vpack.c.bf16 %v3945, %v3944
        %v3972 = vpack.c.bf16 %v3947, %v3946
        %v3973 = vpack.c.bf16 %v3949, %v3948
        %s3974 = scalar_lea.vmem [#allocation7], 512
        %v3975 = vld [vmem:[%s3974] sm:$0xf]
        %v3976 = vld [vmem:[%s3974 + $0x4] sm:$0xf]
        %v3977 = vld [vmem:[%s3974 + $0x8] sm:$0xf]
        %v3978 = vld [vmem:[%s3974 + $0xc] sm:$0xf]
        %v3979 = vld [vmem:[%s3974 + $0x10] sm:$0xf]
        %v3980 = vld [vmem:[%s3974 + $0x14] sm:$0xf]
        %v3981 = vld [vmem:[%s3974 + $0x18] sm:$0xf]
        %v3982 = vld [vmem:[%s3974 + $0x1c] sm:$0xf]
        %v3983 = vld [vmem:[%s3974 + $0x20] sm:$0xf]
        %v3984 = vld [vmem:[%s3974 + $0x24] sm:$0xf]
        %v3985 = vld [vmem:[%s3974 + $0x28] sm:$0xf]
        %v3986 = vld [vmem:[%s3974 + $0x2c] sm:$0xf]
        %v3987 = vld [vmem:[%s3974 + $0x30] sm:$0xf]
        %v3988 = vld [vmem:[%s3974 + $0x34] sm:$0xf]
        %v3989 = vld [vmem:[%s3974 + $0x38] sm:$0xf]
        %v3990 = vld [vmem:[%s3974 + $0x3c] sm:$0xf]
        %v4007 = vunpack.c.l.b16 %v3975
        %v4008 = vunpack.c.l.b16 %v3976
        %v4009 = vunpack.c.l.b16 %v3977
        %v4010 = vunpack.c.l.b16 %v3978
        %v4011 = vunpack.c.l.b16 %v3979
        %v4012 = vunpack.c.l.b16 %v3980
        %v4013 = vunpack.c.l.b16 %v3981
        %v4014 = vunpack.c.l.b16 %v3982
        %v4015 = vunpack.c.l.b16 %v3983
        %v4016 = vunpack.c.l.b16 %v3984
        %v4017 = vunpack.c.l.b16 %v3985
        %v4018 = vunpack.c.l.b16 %v3986
        %v4019 = vunpack.c.l.b16 %v3987
        %v4020 = vunpack.c.l.b16 %v3988
        %v4021 = vunpack.c.l.b16 %v3989
        %v4022 = vunpack.c.l.b16 %v3990
        %v4023 = vpack.c.b16 %v4008, %v4007
        %v4024 = vpack.c.b16 %v4010, %v4009
        %v4025 = vpack.c.b16 %v4012, %v4011
        %v4026 = vpack.c.b16 %v4014, %v4013
        %v4027 = vpack.c.b16 %v4016, %v4015
        %v4028 = vpack.c.b16 %v4018, %v4017
        %v4029 = vpack.c.b16 %v4020, %v4019
        %v4030 = vpack.c.b16 %v4022, %v4021
        %4039 = vmatprep.subr.bf16.mxu0 0
        %4040 = vmatpush1.bf16.msra.mxu0 %v4030
        %4041 = vmatprep.subr.bf16.mxu0 0
        %4042 = vmatpush1.bf16.msra.mxu0 %v4029
        %4043 = vmatprep.subr.bf16.mxu0 0
        %4044 = vmatpush1.bf16.msra.mxu0 %v4028
        %4045 = vmatprep.subr.bf16.mxu0 0
        %4046 = vmatpush1.bf16.msra.mxu0 %v4027
        %4047 = vmatprep.subr.bf16.mxu0 0
        %4048 = vmatpush1.bf16.msra.mxu0 %v4026
        %4049 = vmatprep.subr.bf16.mxu0 0
        %4050 = vmatpush1.bf16.msra.mxu0 %v4025
        %4051 = vmatprep.subr.bf16.mxu0 0
        %4052 = vmatpush1.bf16.msra.mxu0 %v4024
        %4053 = vmatprep.subr.bf16.mxu0 0
        %4054 = vmatpush1.bf16.msra.mxu0 %v4023
        %4055 = vmatprep.subr.bf16.mxu0 0
        %4056 = vmatpush2.bf16.msra.mxu0 0
        %4057 = vmatprep.subr.bf16.mxu0 0
        %4058 = vmatpush2.bf16.msra.mxu0 0
        %4059 = vmatprep.subr.bf16.mxu0 0
        %4060 = vmatpush2.bf16.msra.mxu0 0
        %4061 = vmatprep.subr.bf16.mxu0 0
        %4062 = vmatpush2.bf16.msra.mxu0 0
        %4063 = vmatprep.subr.bf16.mxu0 0
        %4064 = vmatpush2.bf16.msra.mxu0 0
        %4065 = vmatprep.subr.bf16.mxu0 0
        %4066 = vmatpush2.bf16.msra.mxu0 0
        %4067 = vmatprep.subr.bf16.mxu0 0
        %4068 = vmatpush2.bf16.msra.mxu0 0
        %4069 = vmatprep.subr.bf16.mxu0 0
        %4070 = vmatpush2.bf16.msra.mxu0 0
        %4071 = vmatprep.mubr.bf16.mxu0 0
        %4072 = vmatmul.mubr.bf16.gmra.mxu0 %v3950
        %v4073 = vpop.f32.mrf.mxu0
        %v4074 = vadd.f32 0.0, %v4073
        %v4075 = vpop.f32.mrf.mxu0
        %v4076 = vpop.f32.mrf.mxu0
        %v4077 = vadd.f32 0.0, %v4076
        %v4078 = vpop.f32.mrf.mxu0
        %4079 = vmatprep.mubr.bf16.mxu0 0
        %4080 = vmatmul.mubr.bf16.gmra.mxu0 %v3951
        %v4081 = vpop.f32.mrf.mxu0
        %v4082 = vadd.f32 0.0, %v4081
        %v4083 = vpop.f32.mrf.mxu0
        %v4084 = vpop.f32.mrf.mxu0
        %v4085 = vadd.f32 0.0, %v4084
        %v4086 = vpop.f32.mrf.mxu0
        %4087 = vmatprep.mubr.bf16.mxu0 0
        %4088 = vmatmul.mubr.bf16.gmra.mxu0 %v3952
        %v4089 = vpop.f32.mrf.mxu0
        %v4090 = vadd.f32 0.0, %v4089
        %v4091 = vpop.f32.mrf.mxu0
        %v4092 = vpop.f32.mrf.mxu0
        %v4093 = vadd.f32 0.0, %v4092
        %v4094 = vpop.f32.mrf.mxu0
        %4095 = vmatprep.mubr.bf16.mxu0 0
        %4096 = vmatmul.mubr.bf16.gmra.mxu0 %v3953
        %v4097 = vpop.f32.mrf.mxu0
        %v4098 = vadd.f32 0.0, %v4097
        %v4099 = vpop.f32.mrf.mxu0
        %v4100 = vpop.f32.mrf.mxu0
        %v4101 = vadd.f32 0.0, %v4100
        %v4102 = vpop.f32.mrf.mxu0
        %4103 = vmatprep.mubr.bf16.mxu0 0
        %4104 = vmatmul.mubr.bf16.gmra.mxu0 %v3954
        %v4105 = vpop.f32.mrf.mxu0
        %v4106 = vadd.f32 0.0, %v4105
        %v4107 = vpop.f32.mrf.mxu0
        %v4108 = vpop.f32.mrf.mxu0
        %v4109 = vadd.f32 0.0, %v4108
        %v4110 = vpop.f32.mrf.mxu0
        %4111 = vmatprep.mubr.bf16.mxu0 0
        %4112 = vmatmul.mubr.bf16.gmra.mxu0 %v3955
        %v4113 = vpop.f32.mrf.mxu0
        %v4114 = vadd.f32 0.0, %v4113
        %v4115 = vpop.f32.mrf.mxu0
        %v4116 = vpop.f32.mrf.mxu0
        %v4117 = vadd.f32 0.0, %v4116
        %v4118 = vpop.f32.mrf.mxu0
        %4119 = vmatprep.mubr.bf16.mxu0 0
        %4120 = vmatmul.mubr.bf16.gmra.mxu0 %v3956
        %v4121 = vpop.f32.mrf.mxu0
        %v4122 = vadd.f32 0.0, %v4121
        %v4123 = vpop.f32.mrf.mxu0
        %v4124 = vpop.f32.mrf.mxu0
        %v4125 = vadd.f32 0.0, %v4124
        %v4126 = vpop.f32.mrf.mxu0
        %4127 = vmatprep.mubr.bf16.mxu0 0
        %4128 = vmatmul.mubr.bf16.gmra.mxu0 %v3957
        %v4129 = vpop.f32.mrf.mxu0
        %v4130 = vadd.f32 0.0, %v4129
        %v4131 = vpop.f32.mrf.mxu0
        %v4132 = vpop.f32.mrf.mxu0
        %v4133 = vadd.f32 0.0, %v4132
        %v4134 = vpop.f32.mrf.mxu0
        %4135 = vmatprep.mubr.bf16.mxu0 0
        %4136 = vmatmul.mubr.bf16.gmra.mxu0 %v3958
        %v4137 = vpop.f32.mrf.mxu0
        %v4138 = vadd.f32 0.0, %v4137
        %v4139 = vpop.f32.mrf.mxu0
        %v4140 = vpop.f32.mrf.mxu0
        %v4141 = vadd.f32 0.0, %v4140
        %v4142 = vpop.f32.mrf.mxu0
        %4143 = vmatprep.mubr.bf16.mxu0 0
        %4144 = vmatmul.mubr.bf16.gmra.mxu0 %v3959
        %v4145 = vpop.f32.mrf.mxu0
        %v4146 = vadd.f32 0.0, %v4145
        %v4147 = vpop.f32.mrf.mxu0
        %v4148 = vpop.f32.mrf.mxu0
        %v4149 = vadd.f32 0.0, %v4148
        %v4150 = vpop.f32.mrf.mxu0
        %4151 = vmatprep.mubr.bf16.mxu0 0
        %4152 = vmatmul.mubr.bf16.gmra.mxu0 %v3960
        %v4153 = vpop.f32.mrf.mxu0
        %v4154 = vadd.f32 0.0, %v4153
        %v4155 = vpop.f32.mrf.mxu0
        %v4156 = vpop.f32.mrf.mxu0
        %v4157 = vadd.f32 0.0, %v4156
        %v4158 = vpop.f32.mrf.mxu0
        %4159 = vmatprep.mubr.bf16.mxu0 0
        %4160 = vmatmul.mubr.bf16.gmra.mxu0 %v3961
        %v4161 = vpop.f32.mrf.mxu0
        %v4162 = vadd.f32 0.0, %v4161
        %v4163 = vpop.f32.mrf.mxu0
        %v4164 = vpop.f32.mrf.mxu0
        %v4165 = vadd.f32 0.0, %v4164
        %v4166 = vpop.f32.mrf.mxu0
        %4167 = vmatprep.mubr.bf16.mxu0 0
        %4168 = vmatmul.mubr.bf16.gmra.mxu0 %v3962
        %v4169 = vpop.f32.mrf.mxu0
        %v4170 = vadd.f32 0.0, %v4169
        %v4171 = vpop.f32.mrf.mxu0
        %v4172 = vpop.f32.mrf.mxu0
        %v4173 = vadd.f32 0.0, %v4172
        %v4174 = vpop.f32.mrf.mxu0
        %4175 = vmatprep.mubr.bf16.mxu0 0
        %4176 = vmatmul.mubr.bf16.gmra.mxu0 %v3963
        %v4177 = vpop.f32.mrf.mxu0
        %v4178 = vadd.f32 0.0, %v4177
        %v4179 = vpop.f32.mrf.mxu0
        %v4180 = vpop.f32.mrf.mxu0
        %v4181 = vadd.f32 0.0, %v4180
        %v4182 = vpop.f32.mrf.mxu0
        %4183 = vmatprep.mubr.bf16.mxu0 0
        %4184 = vmatmul.mubr.bf16.gmra.mxu0 %v3964
        %v4185 = vpop.f32.mrf.mxu0
        %v4186 = vadd.f32 0.0, %v4185
        %v4187 = vpop.f32.mrf.mxu0
        %v4188 = vpop.f32.mrf.mxu0
        %v4189 = vadd.f32 0.0, %v4188
        %v4190 = vpop.f32.mrf.mxu0
        %4191 = vmatprep.mubr.bf16.mxu0 0
        %4192 = vmatmul.mubr.bf16.gmra.mxu0 %v3965
        %v4193 = vpop.f32.mrf.mxu0
        %v4194 = vadd.f32 0.0, %v4193
        %v4195 = vpop.f32.mrf.mxu0
        %v4196 = vpop.f32.mrf.mxu0
        %v4197 = vadd.f32 0.0, %v4196
        %v4198 = vpop.f32.mrf.mxu0
        %4199 = vmatprep.mubr.bf16.mxu0 0
        %4200 = vmatmul.mubr.bf16.gmra.mxu0 %v3966
        %v4201 = vpop.f32.mrf.mxu0
        %v4202 = vadd.f32 0.0, %v4201
        %v4203 = vpop.f32.mrf.mxu0
        %v4204 = vpop.f32.mrf.mxu0
        %v4205 = vadd.f32 0.0, %v4204
        %v4206 = vpop.f32.mrf.mxu0
        %4207 = vmatprep.mubr.bf16.mxu0 0
        %4208 = vmatmul.mubr.bf16.gmra.mxu0 %v3967
        %v4209 = vpop.f32.mrf.mxu0
        %v4210 = vadd.f32 0.0, %v4209
        %v4211 = vpop.f32.mrf.mxu0
        %v4212 = vpop.f32.mrf.mxu0
        %v4213 = vadd.f32 0.0, %v4212
        %v4214 = vpop.f32.mrf.mxu0
        %4215 = vmatprep.mubr.bf16.mxu0 0
        %4216 = vmatmul.mubr.bf16.gmra.mxu0 %v3968
        %v4217 = vpop.f32.mrf.mxu0
        %v4218 = vadd.f32 0.0, %v4217
        %v4219 = vpop.f32.mrf.mxu0
        %v4220 = vpop.f32.mrf.mxu0
        %v4221 = vadd.f32 0.0, %v4220
        %v4222 = vpop.f32.mrf.mxu0
        %4223 = vmatprep.mubr.bf16.mxu0 0
        %4224 = vmatmul.mubr.bf16.gmra.mxu0 %v3969
        %v4225 = vpop.f32.mrf.mxu0
        %v4226 = vadd.f32 0.0, %v4225
        %v4227 = vpop.f32.mrf.mxu0
        %v4228 = vpop.f32.mrf.mxu0
        %v4229 = vadd.f32 0.0, %v4228
        %v4230 = vpop.f32.mrf.mxu0
        %4231 = vmatprep.mubr.bf16.mxu0 0
        %4232 = vmatmul.mubr.bf16.gmra.mxu0 %v3970
        %v4233 = vpop.f32.mrf.mxu0
        %v4234 = vadd.f32 0.0, %v4233
        %v4235 = vpop.f32.mrf.mxu0
        %v4236 = vpop.f32.mrf.mxu0
        %v4237 = vadd.f32 0.0, %v4236
        %v4238 = vpop.f32.mrf.mxu0
        %4239 = vmatprep.mubr.bf16.mxu0 0
        %4240 = vmatmul.mubr.bf16.gmra.mxu0 %v3971
        %v4241 = vpop.f32.mrf.mxu0
        %v4242 = vadd.f32 0.0, %v4241
        %v4243 = vpop.f32.mrf.mxu0
        %v4244 = vpop.f32.mrf.mxu0
        %v4245 = vadd.f32 0.0, %v4244
        %v4246 = vpop.f32.mrf.mxu0
        %4247 = vmatprep.mubr.bf16.mxu0 0
        %4248 = vmatmul.mubr.bf16.gmra.mxu0 %v3972
        %v4249 = vpop.f32.mrf.mxu0
        %v4250 = vadd.f32 0.0, %v4249
        %v4251 = vpop.f32.mrf.mxu0
        %v4252 = vpop.f32.mrf.mxu0
        %v4253 = vadd.f32 0.0, %v4252
        %v4254 = vpop.f32.mrf.mxu0
        %4255 = vmatprep.mubr.bf16.mxu0 0
        %4256 = vmatmul.mubr.bf16.gmra.mxu0 %v3973
        %v4257 = vpop.f32.mrf.mxu0
        %v4258 = vadd.f32 0.0, %v4257
        %v4259 = vpop.f32.mrf.mxu0
        %v4260 = vpop.f32.mrf.mxu0
        %v4261 = vadd.f32 0.0, %v4260
        %v4262 = vpop.f32.mrf.mxu0
        %4263 = vdwg.mxu0
        %v4264 = vadd.f32 %v3712, %v4074
        %v4265 = vadd.f32 %v3715, %v4077
        %v4266 = vadd.f32 %v3720, %v4082
        %v4267 = vadd.f32 %v3723, %v4085
        %v4268 = vadd.f32 %v3728, %v4090
        %v4269 = vadd.f32 %v3731, %v4093
        %v4270 = vadd.f32 %v3736, %v4098
        %v4271 = vadd.f32 %v3739, %v4101
        %v4272 = vadd.f32 %v3744, %v4106
        %v4273 = vadd.f32 %v3747, %v4109
        %v4274 = vadd.f32 %v3752, %v4114
        %v4275 = vadd.f32 %v3755, %v4117
        %v4276 = vadd.f32 %v3760, %v4122
        %v4277 = vadd.f32 %v3763, %v4125
        %v4278 = vadd.f32 %v3768, %v4130
        %v4279 = vadd.f32 %v3771, %v4133
        %v4280 = vadd.f32 %v3776, %v4138
        %v4281 = vadd.f32 %v3779, %v4141
        %v4282 = vadd.f32 %v3784, %v4146
        %v4283 = vadd.f32 %v3787, %v4149
        %v4284 = vadd.f32 %v3792, %v4154
        %v4285 = vadd.f32 %v3795, %v4157
        %v4286 = vadd.f32 %v3800, %v4162
        %v4287 = vadd.f32 %v3803, %v4165
        %v4288 = vadd.f32 %v3808, %v4170
        %v4289 = vadd.f32 %v3811, %v4173
        %v4290 = vadd.f32 %v3816, %v4178
        %v4291 = vadd.f32 %v3819, %v4181
        %v4292 = vadd.f32 %v3824, %v4186
        %v4293 = vadd.f32 %v3827, %v4189
        %v4294 = vadd.f32 %v3832, %v4194
        %v4295 = vadd.f32 %v3835, %v4197
        %v4296 = vadd.f32 %v3840, %v4202
        %v4297 = vadd.f32 %v3843, %v4205
        %v4298 = vadd.f32 %v3848, %v4210
        %v4299 = vadd.f32 %v3851, %v4213
        %v4300 = vadd.f32 %v3856, %v4218
        %v4301 = vadd.f32 %v3859, %v4221
        %v4302 = vadd.f32 %v3864, %v4226
        %v4303 = vadd.f32 %v3867, %v4229
        %v4304 = vadd.f32 %v3872, %v4234
        %v4305 = vadd.f32 %v3875, %v4237
        %v4306 = vadd.f32 %v3880, %v4242
        %v4307 = vadd.f32 %v3883, %v4245
        %v4308 = vadd.f32 %v3888, %v4250
        %v4309 = vadd.f32 %v3891, %v4253
        %v4310 = vadd.f32 %v3896, %v4258
        %v4311 = vadd.f32 %v3899, %v4261
        %v4312 = vld [vmem:[#allocation3] sm:$0xff]
        %v4313 = vld [vmem:[#allocation3 + $0x8] sm:$0xff]
        %v4314 = vld [vmem:[#allocation3 + $0x10] sm:$0xff]
        %v4315 = vld [vmem:[#allocation3 + $0x18] sm:$0xff]
        %v4316 = vld [vmem:[#allocation3 + $0x20] sm:$0xff]
        %v4317 = vld [vmem:[#allocation3 + $0x28] sm:$0xff]
        %v4318 = vld [vmem:[#allocation3 + $0x30] sm:$0xff]
        %v4319 = vld [vmem:[#allocation3 + $0x38] sm:$0xff]
        %v4320 = vld [vmem:[#allocation3 + $0x40] sm:$0xff]
        %v4321 = vld [vmem:[#allocation3 + $0x48] sm:$0xff]
        %v4322 = vld [vmem:[#allocation3 + $0x50] sm:$0xff]
        %v4323 = vld [vmem:[#allocation3 + $0x58] sm:$0xff]
        %v4324 = vld [vmem:[#allocation3 + $0x60] sm:$0xff]
        %v4325 = vld [vmem:[#allocation3 + $0x68] sm:$0xff]
        %v4326 = vld [vmem:[#allocation3 + $0x70] sm:$0xff]
        %v4327 = vld [vmem:[#allocation3 + $0x78] sm:$0xff]
        %v4328 = vld [vmem:[#allocation3 + $0x80] sm:$0xff]
        %v4329 = vld [vmem:[#allocation3 + $0x88] sm:$0xff]
        %v4330 = vld [vmem:[#allocation3 + $0x90] sm:$0xff]
        %v4331 = vld [vmem:[#allocation3 + $0x98] sm:$0xff]
        %v4332 = vld [vmem:[#allocation3 + $0xa0] sm:$0xff]
        %v4333 = vld [vmem:[#allocation3 + $0xa8] sm:$0xff]
        %v4334 = vld [vmem:[#allocation3 + $0xb0] sm:$0xff]
        %v4335 = vld [vmem:[#allocation3 + $0xb8] sm:$0xff]
        %v4336 = vld [vmem:[#allocation3 + $0xc0] sm:$0xff]
        %v4337 = vld [vmem:[#allocation3 + $0xc8] sm:$0xff]
        %v4338 = vld [vmem:[#allocation3 + $0xd0] sm:$0xff]
        %v4339 = vld [vmem:[#allocation3 + $0xd8] sm:$0xff]
        %v4340 = vld [vmem:[#allocation3 + $0xe0] sm:$0xff]
        %v4341 = vld [vmem:[#allocation3 + $0xe8] sm:$0xff]
        %v4342 = vld [vmem:[#allocation3 + $0xf0] sm:$0xff]
        %v4343 = vld [vmem:[#allocation3 + $0xf8] sm:$0xff]
        %vm4392 = vcmask 1045504
        %v4393 = vrot.slane %v4264, 2
        %v4394 = vrot.slane %v4265, 2
        %v4395 = vsel %vm4392, %v4393, %v4394
        %v4396 = vrot.slane %v4266, 2
        %v4397 = vsel %vm4392, %v4394, %v4396
        %v4398 = vrot.slane %v4267, 2
        %v4399 = vrot.slane %v4268, 2
        %v4400 = vsel %vm4392, %v4398, %v4399
        %v4401 = vrot.slane %v4269, 2
        %v4402 = vsel %vm4392, %v4399, %v4401
        %v4403 = vrot.slane %v4270, 2
        %v4404 = vrot.slane %v4271, 2
        %v4405 = vsel %vm4392, %v4403, %v4404
        %v4406 = vrot.slane %v4272, 2
        %v4407 = vsel %vm4392, %v4404, %v4406
        %v4408 = vrot.slane %v4273, 2
        %v4409 = vrot.slane %v4274, 2
        %v4410 = vsel %vm4392, %v4408, %v4409
        %v4411 = vrot.slane %v4275, 2
        %v4412 = vsel %vm4392, %v4409, %v4411
        %v4413 = vrot.slane %v4276, 2
        %v4414 = vrot.slane %v4277, 2
        %v4415 = vsel %vm4392, %v4413, %v4414
        %v4416 = vrot.slane %v4278, 2
        %v4417 = vsel %vm4392, %v4414, %v4416
        %v4418 = vrot.slane %v4279, 2
        %v4419 = vrot.slane %v4280, 2
        %v4420 = vsel %vm4392, %v4418, %v4419
        %v4421 = vrot.slane %v4281, 2
        %v4422 = vsel %vm4392, %v4419, %v4421
        %v4423 = vrot.slane %v4282, 2
        %v4424 = vrot.slane %v4283, 2
        %v4425 = vsel %vm4392, %v4423, %v4424
        %v4426 = vrot.slane %v4284, 2
        %v4427 = vsel %vm4392, %v4424, %v4426
        %v4428 = vrot.slane %v4285, 2
        %v4429 = vrot.slane %v4286, 2
        %v4430 = vsel %vm4392, %v4428, %v4429
        %v4431 = vrot.slane %v4287, 2
        %v4432 = vsel %vm4392, %v4429, %v4431
        %v4433 = vrot.slane %v4288, 2
        %v4434 = vrot.slane %v4289, 2
        %v4435 = vsel %vm4392, %v4433, %v4434
        %v4436 = vrot.slane %v4290, 2
        %v4437 = vsel %vm4392, %v4434, %v4436
        %v4438 = vrot.slane %v4291, 2
        %v4439 = vrot.slane %v4292, 2
        %v4440 = vsel %vm4392, %v4438, %v4439
        %v4441 = vrot.slane %v4293, 2
        %v4442 = vsel %vm4392, %v4439, %v4441
        %v4443 = vrot.slane %v4294, 2
        %v4444 = vrot.slane %v4295, 2
        %v4445 = vsel %vm4392, %v4443, %v4444
        %v4446 = vrot.slane %v4296, 2
        %v4447 = vsel %vm4392, %v4444, %v4446
        %v4448 = vrot.slane %v4297, 2
        %v4449 = vrot.slane %v4298, 2
        %v4450 = vsel %vm4392, %v4448, %v4449
        %v4451 = vrot.slane %v4299, 2
        %v4452 = vsel %vm4392, %v4449, %v4451
        %v4453 = vrot.slane %v4300, 2
        %v4454 = vrot.slane %v4301, 2
        %v4455 = vsel %vm4392, %v4453, %v4454
        %v4456 = vrot.slane %v4302, 2
        %v4457 = vsel %vm4392, %v4454, %v4456
        %v4458 = vrot.slane %v4303, 2
        %v4459 = vrot.slane %v4304, 2
        %v4460 = vsel %vm4392, %v4458, %v4459
        %v4461 = vrot.slane %v4305, 2
        %v4462 = vsel %vm4392, %v4459, %v4461
        %v4463 = vrot.slane %v4306, 2
        %v4464 = vrot.slane %v4307, 2
        %v4465 = vsel %vm4392, %v4463, %v4464
        %v4466 = vrot.slane %v4308, 2
        %v4467 = vsel %vm4392, %v4464, %v4466
        %v4468 = vrot.slane %v4309, 2
        %v4469 = vrot.slane %v4310, 2
        %v4470 = vsel %vm4392, %v4468, %v4469
        %v4471 = vrot.slane %v4311, 2
        %v4472 = vsel %vm4392, %v4469, %v4471
        %v4505 = vadd.f32 %v4312, %v4395
        %v4506 = vadd.f32 %v4313, %v4397
        %v4507 = vadd.f32 %v4314, %v4400
        %v4508 = vadd.f32 %v4315, %v4402
        %v4509 = vadd.f32 %v4316, %v4405
        %v4510 = vadd.f32 %v4317, %v4407
        %v4511 = vadd.f32 %v4318, %v4410
        %v4512 = vadd.f32 %v4319, %v4412
        %v4513 = vadd.f32 %v4320, %v4415
        %v4514 = vadd.f32 %v4321, %v4417
        %v4515 = vadd.f32 %v4322, %v4420
        %v4516 = vadd.f32 %v4323, %v4422
        %v4517 = vadd.f32 %v4324, %v4425
        %v4518 = vadd.f32 %v4325, %v4427
        %v4519 = vadd.f32 %v4326, %v4430
        %v4520 = vadd.f32 %v4327, %v4432
        %v4521 = vadd.f32 %v4328, %v4435
        %v4522 = vadd.f32 %v4329, %v4437
        %v4523 = vadd.f32 %v4330, %v4440
        %v4524 = vadd.f32 %v4331, %v4442
        %v4525 = vadd.f32 %v4332, %v4445
        %v4526 = vadd.f32 %v4333, %v4447
        %v4527 = vadd.f32 %v4334, %v4450
        %v4528 = vadd.f32 %v4335, %v4452
        %v4529 = vadd.f32 %v4336, %v4455
        %v4530 = vadd.f32 %v4337, %v4457
        %v4531 = vadd.f32 %v4338, %v4460
        %v4532 = vadd.f32 %v4339, %v4462
        %v4533 = vadd.f32 %v4340, %v4465
        %v4534 = vadd.f32 %v4341, %v4467
        %v4535 = vadd.f32 %v4342, %v4470
        %v4536 = vadd.f32 %v4343, %v4472
        %4537 = vst [vmem:[#allocation3] sm:$0xff] %v4505
        %4538 = vst [vmem:[#allocation3 + $0x8] sm:$0xff] %v4506
        %4539 = vst [vmem:[#allocation3 + $0x10] sm:$0xff] %v4507
        %4540 = vst [vmem:[#allocation3 + $0x18] sm:$0xff] %v4508
        %4541 = vst [vmem:[#allocation3 + $0x20] sm:$0xff] %v4509
        %4542 = vst [vmem:[#allocation3 + $0x28] sm:$0xff] %v4510
        %4543 = vst [vmem:[#allocation3 + $0x30] sm:$0xff] %v4511
        %4544 = vst [vmem:[#allocation3 + $0x38] sm:$0xff] %v4512
        %4545 = vst [vmem:[#allocation3 + $0x40] sm:$0xff] %v4513
        %4546 = vst [vmem:[#allocation3 + $0x48] sm:$0xff] %v4514
        %4547 = vst [vmem:[#allocation3 + $0x50] sm:$0xff] %v4515
        %4548 = vst [vmem:[#allocation3 + $0x58] sm:$0xff] %v4516
        %4549 = vst [vmem:[#allocation3 + $0x60] sm:$0xff] %v4517
        %4550 = vst [vmem:[#allocation3 + $0x68] sm:$0xff] %v4518
        %4551 = vst [vmem:[#allocation3 + $0x70] sm:$0xff] %v4519
        %4552 = vst [vmem:[#allocation3 + $0x78] sm:$0xff] %v4520
        %4553 = vst [vmem:[#allocation3 + $0x80] sm:$0xff] %v4521
        %4554 = vst [vmem:[#allocation3 + $0x88] sm:$0xff] %v4522
        %4555 = vst [vmem:[#allocation3 + $0x90] sm:$0xff] %v4523
        %4556 = vst [vmem:[#allocation3 + $0x98] sm:$0xff] %v4524
        %4557 = vst [vmem:[#allocation3 + $0xa0] sm:$0xff] %v4525
        %4558 = vst [vmem:[#allocation3 + $0xa8] sm:$0xff] %v4526
        %4559 = vst [vmem:[#allocation3 + $0xb0] sm:$0xff] %v4527
        %4560 = vst [vmem:[#allocation3 + $0xb8] sm:$0xff] %v4528
        %4561 = vst [vmem:[#allocation3 + $0xc0] sm:$0xff] %v4529
        %4562 = vst [vmem:[#allocation3 + $0xc8] sm:$0xff] %v4530
        %4563 = vst [vmem:[#allocation3 + $0xd0] sm:$0xff] %v4531
        %4564 = vst [vmem:[#allocation3 + $0xd8] sm:$0xff] %v4532
        %4565 = vst [vmem:[#allocation3 + $0xe0] sm:$0xff] %v4533
        %4566 = vst [vmem:[#allocation3 + $0xe8] sm:$0xff] %v4534
        %4567 = vst [vmem:[#allocation3 + $0xf0] sm:$0xff] %v4535
        %4568 = vst [vmem:[#allocation3 + $0xf8] sm:$0xff] %v4536
        %v4569 = vld [vmem:[#allocation3] sm:$0xff]
        %v4570 = vld [vmem:[#allocation3 + $0x8] sm:$0xff]
        %v4571 = vld [vmem:[#allocation3 + $0x10] sm:$0xff]
        %v4572 = vld [vmem:[#allocation3 + $0x18] sm:$0xff]
        %v4573 = vld [vmem:[#allocation3 + $0x20] sm:$0xff]
        %v4574 = vld [vmem:[#allocation3 + $0x28] sm:$0xff]
        %v4575 = vld [vmem:[#allocation3 + $0x30] sm:$0xff]
        %v4576 = vld [vmem:[#allocation3 + $0x38] sm:$0xff]
        %v4577 = vld [vmem:[#allocation3 + $0x40] sm:$0xff]
        %v4578 = vld [vmem:[#allocation3 + $0x48] sm:$0xff]
        %v4579 = vld [vmem:[#allocation3 + $0x50] sm:$0xff]
        %v4580 = vld [vmem:[#allocation3 + $0x58] sm:$0xff]
        %v4581 = vld [vmem:[#allocation3 + $0x60] sm:$0xff]
        %v4582 = vld [vmem:[#allocation3 + $0x68] sm:$0xff]
        %v4583 = vld [vmem:[#allocation3 + $0x70] sm:$0xff]
        %v4584 = vld [vmem:[#allocation3 + $0x78] sm:$0xff]
        %v4585 = vld [vmem:[#allocation3 + $0x80] sm:$0xff]
        %v4586 = vld [vmem:[#allocation3 + $0x88] sm:$0xff]
        %v4587 = vld [vmem:[#allocation3 + $0x90] sm:$0xff]
        %v4588 = vld [vmem:[#allocation3 + $0x98] sm:$0xff]
        %v4589 = vld [vmem:[#allocation3 + $0xa0] sm:$0xff]
        %v4590 = vld [vmem:[#allocation3 + $0xa8] sm:$0xff]
        %v4591 = vld [vmem:[#allocation3 + $0xb0] sm:$0xff]
        %v4592 = vld [vmem:[#allocation3 + $0xb8] sm:$0xff]
        %v4593 = vld [vmem:[#allocation3 + $0xc0] sm:$0xff]
        %v4594 = vld [vmem:[#allocation3 + $0xc8] sm:$0xff]
        %v4595 = vld [vmem:[#allocation3 + $0xd0] sm:$0xff]
        %v4596 = vld [vmem:[#allocation3 + $0xd8] sm:$0xff]
        %v4597 = vld [vmem:[#allocation3 + $0xe0] sm:$0xff]
        %v4598 = vld [vmem:[#allocation3 + $0xe8] sm:$0xff]
        %v4599 = vld [vmem:[#allocation3 + $0xf0] sm:$0xff]
        %v4600 = vld [vmem:[#allocation3 + $0xf8] sm:$0xff]
        %4601 = vst [vmem:[%s550 + $0x1] sm:$0xff] %v4569
        %4602 = vst [vmem:[%s550 + $0x9] sm:$0xff] %v4570
        %4603 = vst [vmem:[%s550 + $0x19] sm:$0xff] %v4571
        %4604 = vst [vmem:[%s550 + $0x21] sm:$0xff] %v4572
        %4605 = vst [vmem:[%s550 + $0x31] sm:$0xff] %v4573
        %4606 = vst [vmem:[%s550 + $0x39] sm:$0xff] %v4574
        %4607 = vst [vmem:[%s550 + $0x49] sm:$0xff] %v4575
        %4608 = vst [vmem:[%s550 + $0x51] sm:$0xff] %v4576
        %4609 = vst [vmem:[%s550 + $0x61] sm:$0xff] %v4577
        %4610 = vst [vmem:[%s550 + $0x69] sm:$0xff] %v4578
        %4611 = vst [vmem:[%s550 + $0x79] sm:$0xff] %v4579
        %4612 = vst [vmem:[%s550 + $0x81] sm:$0xff] %v4580
        %4613 = vst [vmem:[%s550 + $0x91] sm:$0xff] %v4581
        %4614 = vst [vmem:[%s550 + $0x99] sm:$0xff] %v4582
        %4615 = vst [vmem:[%s550 + $0xa9] sm:$0xff] %v4583
        %4616 = vst [vmem:[%s550 + $0xb1] sm:$0xff] %v4584
        %4617 = vst [vmem:[%s550 + $0xc1] sm:$0xff] %v4585
        %4618 = vst [vmem:[%s550 + $0xc9] sm:$0xff] %v4586
        %4619 = vst [vmem:[%s550 + $0xd9] sm:$0xff] %v4587
        %4620 = vst [vmem:[%s550 + $0xe1] sm:$0xff] %v4588
        %4621 = vst [vmem:[%s550 + $0xf1] sm:$0xff] %v4589
        %4622 = vst [vmem:[%s550 + $0xf9] sm:$0xff] %v4590
        %4623 = vst [vmem:[%s550 + $0x109] sm:$0xff] %v4591
        %4624 = vst [vmem:[%s550 + $0x111] sm:$0xff] %v4592
        %4625 = vst [vmem:[%s550 + $0x121] sm:$0xff] %v4593
        %4626 = vst [vmem:[%s550 + $0x129] sm:$0xff] %v4594
        %4627 = vst [vmem:[%s550 + $0x139] sm:$0xff] %v4595
        %4628 = vst [vmem:[%s550 + $0x141] sm:$0xff] %v4596
        %4629 = vst [vmem:[%s550 + $0x151] sm:$0xff] %v4597
        %4630 = vst [vmem:[%s550 + $0x159] sm:$0xff] %v4598
        %4631 = vst [vmem:[%s550 + $0x169] sm:$0xff] %v4599
        %4632 = vst [vmem:[%s550 + $0x171] sm:$0xff] %v4600
        %v4633 = vld [vmem:[%s262] sm:$0xff]
        %v4634 = vld [vmem:[%s262 + $0x8] sm:$0xff]
        %v4635 = vld [vmem:[%s262 + $0x10] sm:$0xff]
        %v4636 = vld [vmem:[%s262 + $0x18] sm:$0xff]
        %v4637 = vld [vmem:[%s262 + $0x20] sm:$0xff]
        %v4638 = vld [vmem:[%s262 + $0x28] sm:$0xff]
        %v4639 = vld [vmem:[%s262 + $0x30] sm:$0xff]
        %v4640 = vld [vmem:[%s262 + $0x38] sm:$0xff]
        %v4641 = vld [vmem:[%s262 + $0x40] sm:$0xff]
        %v4642 = vld [vmem:[%s262 + $0x48] sm:$0xff]
        %v4643 = vld [vmem:[%s262 + $0x50] sm:$0xff]
        %v4644 = vld [vmem:[%s262 + $0x58] sm:$0xff]
        %v4645 = vld [vmem:[%s262 + $0x60] sm:$0xff]
        %v4646 = vld [vmem:[%s262 + $0x68] sm:$0xff]
        %v4647 = vld [vmem:[%s262 + $0x70] sm:$0xff]
        %v4648 = vld [vmem:[%s262 + $0x78] sm:$0xff]
        %v4649 = vld [vmem:[%s262 + $0x80] sm:$0xff]
        %v4650 = vld [vmem:[%s262 + $0x88] sm:$0xff]
        %v4651 = vld [vmem:[%s262 + $0x90] sm:$0xff]
        %v4652 = vld [vmem:[%s262 + $0x98] sm:$0xff]
        %v4653 = vld [vmem:[%s262 + $0xa0] sm:$0xff]
        %v4654 = vld [vmem:[%s262 + $0xa8] sm:$0xff]
        %v4655 = vld [vmem:[%s262 + $0xb0] sm:$0xff]
        %v4656 = vld [vmem:[%s262 + $0xb8] sm:$0xff]
        %v4657 = vld [vmem:[%s262 + $0xc0] sm:$0xff]
        %v4658 = vld [vmem:[%s262 + $0xc8] sm:$0xff]
        %v4659 = vld [vmem:[%s262 + $0xd0] sm:$0xff]
        %v4660 = vld [vmem:[%s262 + $0xd8] sm:$0xff]
        %v4661 = vld [vmem:[%s262 + $0xe0] sm:$0xff]
        %v4662 = vld [vmem:[%s262 + $0xe8] sm:$0xff]
        %v4663 = vld [vmem:[%s262 + $0xf0] sm:$0xff]
        %v4664 = vld [vmem:[%s262 + $0xf8] sm:$0xff]
        %4665 = vst [vmem:[#allocation3] sm:$0xff] %v4633
        %4666 = vst [vmem:[#allocation3 + $0x8] sm:$0xff] %v4634
        %4667 = vst [vmem:[#allocation3 + $0x10] sm:$0xff] %v4635
        %4668 = vst [vmem:[#allocation3 + $0x18] sm:$0xff] %v4636
        %4669 = vst [vmem:[#allocation3 + $0x20] sm:$0xff] %v4637
        %4670 = vst [vmem:[#allocation3 + $0x28] sm:$0xff] %v4638
        %4671 = vst [vmem:[#allocation3 + $0x30] sm:$0xff] %v4639
        %4672 = vst [vmem:[#allocation3 + $0x38] sm:$0xff] %v4640
        %4673 = vst [vmem:[#allocation3 + $0x40] sm:$0xff] %v4641
        %4674 = vst [vmem:[#allocation3 + $0x48] sm:$0xff] %v4642
        %4675 = vst [vmem:[#allocation3 + $0x50] sm:$0xff] %v4643
        %4676 = vst [vmem:[#allocation3 + $0x58] sm:$0xff] %v4644
        %4677 = vst [vmem:[#allocation3 + $0x60] sm:$0xff] %v4645
        %4678 = vst [vmem:[#allocation3 + $0x68] sm:$0xff] %v4646
        %4679 = vst [vmem:[#allocation3 + $0x70] sm:$0xff] %v4647
        %4680 = vst [vmem:[#allocation3 + $0x78] sm:$0xff] %v4648
        %4681 = vst [vmem:[#allocation3 + $0x80] sm:$0xff] %v4649
        %4682 = vst [vmem:[#allocation3 + $0x88] sm:$0xff] %v4650
        %4683 = vst [vmem:[#allocation3 + $0x90] sm:$0xff] %v4651
        %4684 = vst [vmem:[#allocation3 + $0x98] sm:$0xff] %v4652
        %4685 = vst [vmem:[#allocation3 + $0xa0] sm:$0xff] %v4653
        %4686 = vst [vmem:[#allocation3 + $0xa8] sm:$0xff] %v4654
        %4687 = vst [vmem:[#allocation3 + $0xb0] sm:$0xff] %v4655
        %4688 = vst [vmem:[#allocation3 + $0xb8] sm:$0xff] %v4656
        %4689 = vst [vmem:[#allocation3 + $0xc0] sm:$0xff] %v4657
        %4690 = vst [vmem:[#allocation3 + $0xc8] sm:$0xff] %v4658
        %4691 = vst [vmem:[#allocation3 + $0xd0] sm:$0xff] %v4659
        %4692 = vst [vmem:[#allocation3 + $0xd8] sm:$0xff] %v4660
        %4693 = vst [vmem:[#allocation3 + $0xe0] sm:$0xff] %v4661
        %4694 = vst [vmem:[#allocation3 + $0xe8] sm:$0xff] %v4662
        %4695 = vst [vmem:[#allocation3 + $0xf0] sm:$0xff] %v4663
        %4696 = vst [vmem:[#allocation3 + $0xf8] sm:$0xff] %v4664
        %v4697 = vld [vmem:[#allocation2] sm:$0xff]
        %v4698 = vld [vmem:[#allocation2 + $0x8] sm:$0xff]
        %v4699 = vld [vmem:[#allocation2 + $0x10] sm:$0xff]
        %v4700 = vld [vmem:[#allocation2 + $0x18] sm:$0xff]
        %v4701 = vld [vmem:[#allocation2 + $0x20] sm:$0xff]
        %v4702 = vld [vmem:[#allocation2 + $0x28] sm:$0xff]
        %v4703 = vld [vmem:[#allocation2 + $0x30] sm:$0xff]
        %v4704 = vld [vmem:[#allocation2 + $0x38] sm:$0xff]
        %v4705 = vld [vmem:[#allocation2 + $0x40] sm:$0xff]
        %v4706 = vld [vmem:[#allocation2 + $0x48] sm:$0xff]
        %v4707 = vld [vmem:[#allocation2 + $0x50] sm:$0xff]
        %v4708 = vld [vmem:[#allocation2 + $0x58] sm:$0xff]
        %v4709 = vld [vmem:[#allocation2 + $0x60] sm:$0xff]
        %v4710 = vld [vmem:[#allocation2 + $0x68] sm:$0xff]
        %v4711 = vld [vmem:[#allocation2 + $0x70] sm:$0xff]
        %v4712 = vld [vmem:[#allocation2 + $0x78] sm:$0xff]
        %v4713 = vld [vmem:[#allocation2 + $0x80] sm:$0xff]
        %v4714 = vld [vmem:[#allocation2 + $0x88] sm:$0xff]
        %v4715 = vld [vmem:[#allocation2 + $0x90] sm:$0xff]
        %v4716 = vld [vmem:[#allocation2 + $0x98] sm:$0xff]
        %v4717 = vld [vmem:[#allocation2 + $0xa0] sm:$0xff]
        %v4718 = vld [vmem:[#allocation2 + $0xa8] sm:$0xff]
        %v4719 = vld [vmem:[#allocation2 + $0xb0] sm:$0xff]
        %v4720 = vld [vmem:[#allocation2 + $0xb8] sm:$0xff]
        %v4721 = vld [vmem:[#allocation2 + $0xc0] sm:$0xff]
        %v4722 = vld [vmem:[#allocation2 + $0xc8] sm:$0xff]
        %v4723 = vld [vmem:[#allocation2 + $0xd0] sm:$0xff]
        %v4724 = vld [vmem:[#allocation2 + $0xd8] sm:$0xff]
        %v4725 = vld [vmem:[#allocation2 + $0xe0] sm:$0xff]
        %v4726 = vld [vmem:[#allocation2 + $0xe8] sm:$0xff]
        %v4727 = vld [vmem:[#allocation2 + $0xf0] sm:$0xff]
        %v4728 = vld [vmem:[#allocation2 + $0xf8] sm:$0xff]
        %v4729 = vld [vmem:[#allocation2 + $0x100] sm:$0xff]
        %v4730 = vld [vmem:[#allocation2 + $0x108] sm:$0xff]
        %v4731 = vld [vmem:[#allocation2 + $0x110] sm:$0xff]
        %v4732 = vld [vmem:[#allocation2 + $0x118] sm:$0xff]
        %v4733 = vld [vmem:[#allocation2 + $0x120] sm:$0xff]
        %v4734 = vld [vmem:[#allocation2 + $0x128] sm:$0xff]
        %v4735 = vld [vmem:[#allocation2 + $0x130] sm:$0xff]
        %v4736 = vld [vmem:[#allocation2 + $0x138] sm:$0xff]
        %v4737 = vld [vmem:[#allocation2 + $0x140] sm:$0xff]
        %v4738 = vld [vmem:[#allocation2 + $0x148] sm:$0xff]
        %v4739 = vld [vmem:[#allocation2 + $0x150] sm:$0xff]
        %v4740 = vld [vmem:[#allocation2 + $0x158] sm:$0xff]
        %v4741 = vld [vmem:[#allocation2 + $0x160] sm:$0xff]
        %v4742 = vld [vmem:[#allocation2 + $0x168] sm:$0xff]
        %v4743 = vld [vmem:[#allocation2 + $0x170] sm:$0xff]
        %v4744 = vld [vmem:[#allocation2 + $0x178] sm:$0xff]
        %v4745 = vpack.c.bf16 %v4698, %v4697
        %v4746 = vpack.c.bf16 %v4700, %v4699
        %v4747 = vpack.c.bf16 %v4702, %v4701
        %v4748 = vpack.c.bf16 %v4704, %v4703
        %v4749 = vpack.c.bf16 %v4706, %v4705
        %v4750 = vpack.c.bf16 %v4708, %v4707
        %v4751 = vpack.c.bf16 %v4710, %v4709
        %v4752 = vpack.c.bf16 %v4712, %v4711
        %v4753 = vpack.c.bf16 %v4714, %v4713
        %v4754 = vpack.c.bf16 %v4716, %v4715
        %v4755 = vpack.c.bf16 %v4718, %v4717
        %v4756 = vpack.c.bf16 %v4720, %v4719
        %v4757 = vpack.c.bf16 %v4722, %v4721
        %v4758 = vpack.c.bf16 %v4724, %v4723
        %v4759 = vpack.c.bf16 %v4726, %v4725
        %v4760 = vpack.c.bf16 %v4728, %v4727
        %v4761 = vpack.c.bf16 %v4730, %v4729
        %v4762 = vpack.c.bf16 %v4732, %v4731
        %v4763 = vpack.c.bf16 %v4734, %v4733
        %v4764 = vpack.c.bf16 %v4736, %v4735
        %v4765 = vpack.c.bf16 %v4738, %v4737
        %v4766 = vpack.c.bf16 %v4740, %v4739
        %v4767 = vpack.c.bf16 %v4742, %v4741
        %v4768 = vpack.c.bf16 %v4744, %v4743
        %v4769 = vld [vmem:[#allocation9] sm:$0xf]
        %v4770 = vld [vmem:[#allocation9 + $0x4] sm:$0xf]
        %v4771 = vld [vmem:[#allocation9 + $0x8] sm:$0xf]
        %v4772 = vld [vmem:[#allocation9 + $0xc] sm:$0xf]
        %v4773 = vld [vmem:[#allocation9 + $0x10] sm:$0xf]
        %v4774 = vld [vmem:[#allocation9 + $0x14] sm:$0xf]
        %v4775 = vld [vmem:[#allocation9 + $0x18] sm:$0xf]
        %v4776 = vld [vmem:[#allocation9 + $0x1c] sm:$0xf]
        %v4777 = vld [vmem:[#allocation9 + $0x20] sm:$0xf]
        %v4778 = vld [vmem:[#allocation9 + $0x24] sm:$0xf]
        %v4779 = vld [vmem:[#allocation9 + $0x28] sm:$0xf]
        %v4780 = vld [vmem:[#allocation9 + $0x2c] sm:$0xf]
        %v4781 = vld [vmem:[#allocation9 + $0x30] sm:$0xf]
        %v4782 = vld [vmem:[#allocation9 + $0x34] sm:$0xf]
        %v4783 = vld [vmem:[#allocation9 + $0x38] sm:$0xf]
        %v4784 = vld [vmem:[#allocation9 + $0x3c] sm:$0xf]
        %v4785 = vld [vmem:[%s550] sm:$0xff]
        %v4786 = vld [vmem:[%s550 + $0x8] sm:$0xff]
        %v4787 = vld [vmem:[%s550 + $0x10] sm:$0xff]
        %v4788 = vld [vmem:[%s550 + $0x18] sm:$0xff]
        %v4789 = vld [vmem:[%s550 + $0x20] sm:$0xff]
        %v4790 = vld [vmem:[%s550 + $0x28] sm:$0xff]
        %v4791 = vld [vmem:[%s550 + $0x30] sm:$0xff]
        %v4792 = vld [vmem:[%s550 + $0x38] sm:$0xff]
        %v4793 = vld [vmem:[%s550 + $0x40] sm:$0xff]
        %v4794 = vld [vmem:[%s550 + $0x48] sm:$0xff]
        %v4795 = vld [vmem:[%s550 + $0x50] sm:$0xff]
        %v4796 = vld [vmem:[%s550 + $0x58] sm:$0xff]
        %v4797 = vld [vmem:[%s550 + $0x60] sm:$0xff]
        %v4798 = vld [vmem:[%s550 + $0x68] sm:$0xff]
        %v4799 = vld [vmem:[%s550 + $0x70] sm:$0xff]
        %v4800 = vld [vmem:[%s550 + $0x78] sm:$0xff]
        %v4801 = vld [vmem:[%s550 + $0x80] sm:$0xff]
        %v4802 = vld [vmem:[%s550 + $0x88] sm:$0xff]
        %v4803 = vld [vmem:[%s550 + $0x90] sm:$0xff]
        %v4804 = vld [vmem:[%s550 + $0x98] sm:$0xff]
        %v4805 = vld [vmem:[%s550 + $0xa0] sm:$0xff]
        %v4806 = vld [vmem:[%s550 + $0xa8] sm:$0xff]
        %v4807 = vld [vmem:[%s550 + $0xb0] sm:$0xff]
        %v4808 = vld [vmem:[%s550 + $0xb8] sm:$0xff]
        %v4809 = vld [vmem:[%s550 + $0xc0] sm:$0xff]
        %v4810 = vld [vmem:[%s550 + $0xc8] sm:$0xff]
        %v4811 = vld [vmem:[%s550 + $0xd0] sm:$0xff]
        %v4812 = vld [vmem:[%s550 + $0xd8] sm:$0xff]
        %v4813 = vld [vmem:[%s550 + $0xe0] sm:$0xff]
        %v4814 = vld [vmem:[%s550 + $0xe8] sm:$0xff]
        %v4815 = vld [vmem:[%s550 + $0xf0] sm:$0xff]
        %v4816 = vld [vmem:[%s550 + $0xf8] sm:$0xff]
        %v4817 = vld [vmem:[%s550 + $0x100] sm:$0xff]
        %v4818 = vld [vmem:[%s550 + $0x108] sm:$0xff]
        %v4819 = vld [vmem:[%s550 + $0x110] sm:$0xff]
        %v4820 = vld [vmem:[%s550 + $0x118] sm:$0xff]
        %v4821 = vld [vmem:[%s550 + $0x120] sm:$0xff]
        %v4822 = vld [vmem:[%s550 + $0x128] sm:$0xff]
        %v4823 = vld [vmem:[%s550 + $0x130] sm:$0xff]
        %v4824 = vld [vmem:[%s550 + $0x138] sm:$0xff]
        %v4825 = vld [vmem:[%s550 + $0x140] sm:$0xff]
        %v4826 = vld [vmem:[%s550 + $0x148] sm:$0xff]
        %v4827 = vld [vmem:[%s550 + $0x150] sm:$0xff]
        %v4828 = vld [vmem:[%s550 + $0x158] sm:$0xff]
        %v4829 = vld [vmem:[%s550 + $0x160] sm:$0xff]
        %v4830 = vld [vmem:[%s550 + $0x168] sm:$0xff]
        %v4831 = vld [vmem:[%s550 + $0x170] sm:$0xff]
        %v4832 = vld [vmem:[%s550 + $0x178] sm:$0xff]
        %v4833 = vpack.c.bf16 %v4786, %v4785
        %v4834 = vpack.c.bf16 %v4788, %v4787
        %v4835 = vpack.c.bf16 %v4790, %v4789
        %v4836 = vpack.c.bf16 %v4792, %v4791
        %v4837 = vpack.c.bf16 %v4794, %v4793
        %v4838 = vpack.c.bf16 %v4796, %v4795
        %v4839 = vpack.c.bf16 %v4798, %v4797
        %v4840 = vpack.c.bf16 %v4800, %v4799
        %v4841 = vpack.c.bf16 %v4802, %v4801
        %v4842 = vpack.c.bf16 %v4804, %v4803
        %v4843 = vpack.c.bf16 %v4806, %v4805
        %v4844 = vpack.c.bf16 %v4808, %v4807
        %v4845 = vpack.c.bf16 %v4810, %v4809
        %v4846 = vpack.c.bf16 %v4812, %v4811
        %v4847 = vpack.c.bf16 %v4814, %v4813
        %v4848 = vpack.c.bf16 %v4816, %v4815
        %v4849 = vpack.c.bf16 %v4818, %v4817
        %v4850 = vpack.c.bf16 %v4820, %v4819
        %v4851 = vpack.c.bf16 %v4822, %v4821
        %v4852 = vpack.c.bf16 %v4824, %v4823
        %v4853 = vpack.c.bf16 %v4826, %v4825
        %v4854 = vpack.c.bf16 %v4828, %v4827
        %v4855 = vpack.c.bf16 %v4830, %v4829
        %v4856 = vpack.c.bf16 %v4832, %v4831
        %s4857 = scalar_lea.vmem [#allocation9], 192
        %v4858 = vld [vmem:[%s4857] sm:$0xf]
        %v4859 = vld [vmem:[%s4857 + $0x4] sm:$0xf]
        %v4860 = vld [vmem:[%s4857 + $0x8] sm:$0xf]
        %v4861 = vld [vmem:[%s4857 + $0xc] sm:$0xf]
        %v4862 = vld [vmem:[%s4857 + $0x10] sm:$0xf]
        %v4863 = vld [vmem:[%s4857 + $0x14] sm:$0xf]
        %v4864 = vld [vmem:[%s4857 + $0x18] sm:$0xf]
        %v4865 = vld [vmem:[%s4857 + $0x1c] sm:$0xf]
        %v4866 = vld [vmem:[%s4857 + $0x20] sm:$0xf]
        %v4867 = vld [vmem:[%s4857 + $0x24] sm:$0xf]
        %v4868 = vld [vmem:[%s4857 + $0x28] sm:$0xf]
        %v4869 = vld [vmem:[%s4857 + $0x2c] sm:$0xf]
        %v4870 = vld [vmem:[%s4857 + $0x30] sm:$0xf]
        %v4871 = vld [vmem:[%s4857 + $0x34] sm:$0xf]
        %v4872 = vld [vmem:[%s4857 + $0x38] sm:$0xf]
        %v4873 = vld [vmem:[%s4857 + $0x3c] sm:$0xf]
        %v4890 = vunpack.c.l.b16 %v4858
        %v4891 = vunpack.c.l.b16 %v4859
        %v4892 = vunpack.c.l.b16 %v4860
        %v4893 = vunpack.c.l.b16 %v4861
        %v4894 = vunpack.c.l.b16 %v4862
        %v4895 = vunpack.c.l.b16 %v4863
        %v4896 = vunpack.c.l.b16 %v4864
        %v4897 = vunpack.c.l.b16 %v4865
        %v4898 = vunpack.c.l.b16 %v4866
        %v4899 = vunpack.c.l.b16 %v4867
        %v4900 = vunpack.c.l.b16 %v4868
        %v4901 = vunpack.c.l.b16 %v4869
        %v4902 = vunpack.c.l.b16 %v4870
        %v4903 = vunpack.c.l.b16 %v4871
        %v4904 = vunpack.c.l.b16 %v4872
        %v4905 = vunpack.c.l.b16 %v4873
        %v4906 = vpack.c.b16 %v4891, %v4890
        %v4907 = vpack.c.b16 %v4893, %v4892
        %v4908 = vpack.c.b16 %v4895, %v4894
        %v4909 = vpack.c.b16 %v4897, %v4896
        %v4910 = vpack.c.b16 %v4899, %v4898
        %v4911 = vpack.c.b16 %v4901, %v4900
        %v4912 = vpack.c.b16 %v4903, %v4902
        %v4913 = vpack.c.b16 %v4905, %v4904
        %4922 = vmatprep.subr.bf16.mxu0 0
        %4923 = vmatpush1.bf16.msra.mxu0 %v4913
        %4924 = vmatprep.subr.bf16.mxu0 0
        %4925 = vmatpush1.bf16.msra.mxu0 %v4912
        %4926 = vmatprep.subr.bf16.mxu0 0
        %4927 = vmatpush1.bf16.msra.mxu0 %v4911
        %4928 = vmatprep.subr.bf16.mxu0 0
        %4929 = vmatpush1.bf16.msra.mxu0 %v4910
        %4930 = vmatprep.subr.bf16.mxu0 0
        %4931 = vmatpush1.bf16.msra.mxu0 %v4909
        %4932 = vmatprep.subr.bf16.mxu0 0
        %4933 = vmatpush1.bf16.msra.mxu0 %v4908
        %4934 = vmatprep.subr.bf16.mxu0 0
        %4935 = vmatpush1.bf16.msra.mxu0 %v4907
        %4936 = vmatprep.subr.bf16.mxu0 0
        %4937 = vmatpush1.bf16.msra.mxu0 %v4906
        %4938 = vmatprep.subr.bf16.mxu0 0
        %4939 = vmatpush2.bf16.msra.mxu0 0
        %4940 = vmatprep.subr.bf16.mxu0 0
        %4941 = vmatpush2.bf16.msra.mxu0 0
        %4942 = vmatprep.subr.bf16.mxu0 0
        %4943 = vmatpush2.bf16.msra.mxu0 0
        %4944 = vmatprep.subr.bf16.mxu0 0
        %4945 = vmatpush2.bf16.msra.mxu0 0
        %4946 = vmatprep.subr.bf16.mxu0 0
        %4947 = vmatpush2.bf16.msra.mxu0 0
        %4948 = vmatprep.subr.bf16.mxu0 0
        %4949 = vmatpush2.bf16.msra.mxu0 0
        %4950 = vmatprep.subr.bf16.mxu0 0
        %4951 = vmatpush2.bf16.msra.mxu0 0
        %4952 = vmatprep.subr.bf16.mxu0 0
        %4953 = vmatpush2.bf16.msra.mxu0 0
        %4954 = vmatprep.mubr.bf16.mxu0 0
        %4955 = vmatmul.mubr.bf16.gmra.mxu0 %v4833
        %v4956 = vpop.f32.mrf.mxu0
        %v4957 = vadd.f32 0.0, %v4956
        %v4958 = vpop.f32.mrf.mxu0
        %v4959 = vpop.f32.mrf.mxu0
        %v4960 = vadd.f32 0.0, %v4959
        %v4961 = vpop.f32.mrf.mxu0
        %4962 = vmatprep.mubr.bf16.mxu0 0
        %4963 = vmatmul.mubr.bf16.gmra.mxu0 %v4834
        %v4964 = vpop.f32.mrf.mxu0
        %v4965 = vpop.f32.mrf.mxu0
        %v4966 = vpop.f32.mrf.mxu0
        %v4967 = vadd.f32 0.0, %v4966
        %v4968 = vpop.f32.mrf.mxu0
        %4969 = vmatprep.mubr.bf16.mxu0 0
        %4970 = vmatmul.mubr.bf16.gmra.mxu0 %v4835
        %v4971 = vpop.f32.mrf.mxu0
        %v4972 = vadd.f32 0.0, %v4971
        %v4973 = vpop.f32.mrf.mxu0
        %v4974 = vpop.f32.mrf.mxu0
        %v4975 = vpop.f32.mrf.mxu0
        %4976 = vmatprep.mubr.bf16.mxu0 0
        %4977 = vmatmul.mubr.bf16.gmra.mxu0 %v4836
        %v4978 = vpop.f32.mrf.mxu0
        %v4979 = vadd.f32 0.0, %v4978
        %v4980 = vpop.f32.mrf.mxu0
        %v4981 = vpop.f32.mrf.mxu0
        %v4982 = vadd.f32 0.0, %v4981
        %v4983 = vpop.f32.mrf.mxu0
        %4984 = vmatprep.mubr.bf16.mxu0 0
        %4985 = vmatmul.mubr.bf16.gmra.mxu0 %v4837
        %v4986 = vpop.f32.mrf.mxu0
        %v4987 = vpop.f32.mrf.mxu0
        %v4988 = vpop.f32.mrf.mxu0
        %v4989 = vadd.f32 0.0, %v4988
        %v4990 = vpop.f32.mrf.mxu0
        %4991 = vmatprep.mubr.bf16.mxu0 0
        %4992 = vmatmul.mubr.bf16.gmra.mxu0 %v4838
        %v4993 = vpop.f32.mrf.mxu0
        %v4994 = vadd.f32 0.0, %v4993
        %v4995 = vpop.f32.mrf.mxu0
        %v4996 = vpop.f32.mrf.mxu0
        %v4997 = vpop.f32.mrf.mxu0
        %4998 = vmatprep.mubr.bf16.mxu0 0
        %4999 = vmatmul.mubr.bf16.gmra.mxu0 %v4839
        %v5000 = vpop.f32.mrf.mxu0
        %v5001 = vadd.f32 0.0, %v5000
        %v5002 = vpop.f32.mrf.mxu0
        %v5003 = vpop.f32.mrf.mxu0
        %v5004 = vadd.f32 0.0, %v5003
        %v5005 = vpop.f32.mrf.mxu0
        %5006 = vmatprep.mubr.bf16.mxu0 0
        %5007 = vmatmul.mubr.bf16.gmra.mxu0 %v4840
        %v5008 = vpop.f32.mrf.mxu0
        %v5009 = vpop.f32.mrf.mxu0
        %v5010 = vpop.f32.mrf.mxu0
        %v5011 = vadd.f32 0.0, %v5010
        %v5012 = vpop.f32.mrf.mxu0
        %5013 = vmatprep.mubr.bf16.mxu0 0
        %5014 = vmatmul.mubr.bf16.gmra.mxu0 %v4841
        %v5015 = vpop.f32.mrf.mxu0
        %v5016 = vadd.f32 0.0, %v5015
        %v5017 = vpop.f32.mrf.mxu0
        %v5018 = vpop.f32.mrf.mxu0
        %v5019 = vpop.f32.mrf.mxu0
        %5020 = vmatprep.mubr.bf16.mxu0 0
        %5021 = vmatmul.mubr.bf16.gmra.mxu0 %v4842
        %v5022 = vpop.f32.mrf.mxu0
        %v5023 = vadd.f32 0.0, %v5022
        %v5024 = vpop.f32.mrf.mxu0
        %v5025 = vpop.f32.mrf.mxu0
        %v5026 = vadd.f32 0.0, %v5025
        %v5027 = vpop.f32.mrf.mxu0
        %5028 = vmatprep.mubr.bf16.mxu0 0
        %5029 = vmatmul.mubr.bf16.gmra.mxu0 %v4843
        %v5030 = vpop.f32.mrf.mxu0
        %v5031 = vpop.f32.mrf.mxu0
        %v5032 = vpop.f32.mrf.mxu0
        %v5033 = vadd.f32 0.0, %v5032
        %v5034 = vpop.f32.mrf.mxu0
        %5035 = vmatprep.mubr.bf16.mxu0 0
        %5036 = vmatmul.mubr.bf16.gmra.mxu0 %v4844
        %v5037 = vpop.f32.mrf.mxu0
        %v5038 = vadd.f32 0.0, %v5037
        %v5039 = vpop.f32.mrf.mxu0
        %v5040 = vpop.f32.mrf.mxu0
        %v5041 = vpop.f32.mrf.mxu0
        %5042 = vmatprep.mubr.bf16.mxu0 0
        %5043 = vmatmul.mubr.bf16.gmra.mxu0 %v4845
        %v5044 = vpop.f32.mrf.mxu0
        %v5045 = vadd.f32 0.0, %v5044
        %v5046 = vpop.f32.mrf.mxu0
        %v5047 = vpop.f32.mrf.mxu0
        %v5048 = vadd.f32 0.0, %v5047
        %v5049 = vpop.f32.mrf.mxu0
        %5050 = vmatprep.mubr.bf16.mxu0 0
        %5051 = vmatmul.mubr.bf16.gmra.mxu0 %v4846
        %v5052 = vpop.f32.mrf.mxu0
        %v5053 = vpop.f32.mrf.mxu0
        %v5054 = vpop.f32.mrf.mxu0
        %v5055 = vadd.f32 0.0, %v5054
        %v5056 = vpop.f32.mrf.mxu0
        %5057 = vmatprep.mubr.bf16.mxu0 0
        %5058 = vmatmul.mubr.bf16.gmra.mxu0 %v4847
        %v5059 = vpop.f32.mrf.mxu0
        %v5060 = vadd.f32 0.0, %v5059
        %v5061 = vpop.f32.mrf.mxu0
        %v5062 = vpop.f32.mrf.mxu0
        %v5063 = vpop.f32.mrf.mxu0
        %5064 = vmatprep.mubr.bf16.mxu0 0
        %5065 = vmatmul.mubr.bf16.gmra.mxu0 %v4848
        %v5066 = vpop.f32.mrf.mxu0
        %v5067 = vadd.f32 0.0, %v5066
        %v5068 = vpop.f32.mrf.mxu0
        %v5069 = vpop.f32.mrf.mxu0
        %v5070 = vadd.f32 0.0, %v5069
        %v5071 = vpop.f32.mrf.mxu0
        %5072 = vmatprep.mubr.bf16.mxu0 0
        %5073 = vmatmul.mubr.bf16.gmra.mxu0 %v4849
        %v5074 = vpop.f32.mrf.mxu0
        %v5075 = vpop.f32.mrf.mxu0
        %v5076 = vpop.f32.mrf.mxu0
        %v5077 = vadd.f32 0.0, %v5076
        %v5078 = vpop.f32.mrf.mxu0
        %5079 = vmatprep.mubr.bf16.mxu0 0
        %5080 = vmatmul.mubr.bf16.gmra.mxu0 %v4850
        %v5081 = vpop.f32.mrf.mxu0
        %v5082 = vadd.f32 0.0, %v5081
        %v5083 = vpop.f32.mrf.mxu0
        %v5084 = vpop.f32.mrf.mxu0
        %v5085 = vpop.f32.mrf.mxu0
        %5086 = vmatprep.mubr.bf16.mxu0 0
        %5087 = vmatmul.mubr.bf16.gmra.mxu0 %v4851
        %v5088 = vpop.f32.mrf.mxu0
        %v5089 = vadd.f32 0.0, %v5088
        %v5090 = vpop.f32.mrf.mxu0
        %v5091 = vpop.f32.mrf.mxu0
        %v5092 = vadd.f32 0.0, %v5091
        %v5093 = vpop.f32.mrf.mxu0
        %5094 = vmatprep.mubr.bf16.mxu0 0
        %5095 = vmatmul.mubr.bf16.gmra.mxu0 %v4852
        %v5096 = vpop.f32.mrf.mxu0
        %v5097 = vpop.f32.mrf.mxu0
        %v5098 = vpop.f32.mrf.mxu0
        %v5099 = vadd.f32 0.0, %v5098
        %v5100 = vpop.f32.mrf.mxu0
        %5101 = vmatprep.mubr.bf16.mxu0 0
        %5102 = vmatmul.mubr.bf16.gmra.mxu0 %v4853
        %v5103 = vpop.f32.mrf.mxu0
        %v5104 = vadd.f32 0.0, %v5103
        %v5105 = vpop.f32.mrf.mxu0
        %v5106 = vpop.f32.mrf.mxu0
        %v5107 = vpop.f32.mrf.mxu0
        %5108 = vmatprep.mubr.bf16.mxu0 0
        %5109 = vmatmul.mubr.bf16.gmra.mxu0 %v4854
        %v5110 = vpop.f32.mrf.mxu0
        %v5111 = vadd.f32 0.0, %v5110
        %v5112 = vpop.f32.mrf.mxu0
        %v5113 = vpop.f32.mrf.mxu0
        %v5114 = vadd.f32 0.0, %v5113
        %v5115 = vpop.f32.mrf.mxu0
        %5116 = vmatprep.mubr.bf16.mxu0 0
        %5117 = vmatmul.mubr.bf16.gmra.mxu0 %v4855
        %v5118 = vpop.f32.mrf.mxu0
        %v5119 = vpop.f32.mrf.mxu0
        %v5120 = vpop.f32.mrf.mxu0
        %v5121 = vadd.f32 0.0, %v5120
        %v5122 = vpop.f32.mrf.mxu0
        %5123 = vmatprep.mubr.bf16.mxu0 0
        %5124 = vmatmul.mubr.bf16.gmra.mxu0 %v4856
        %v5125 = vpop.f32.mrf.mxu0
        %v5126 = vadd.f32 0.0, %v5125
        %v5127 = vpop.f32.mrf.mxu0
        %v5128 = vpop.f32.mrf.mxu0
        %v5129 = vpop.f32.mrf.mxu0
        %5130 = vdwg.mxu0
        %v5147 = vunpack.c.l.b16 %v4769
        %v5148 = vunpack.c.l.b16 %v4770
        %v5149 = vunpack.c.l.b16 %v4771
        %v5150 = vunpack.c.l.b16 %v4772
        %v5151 = vunpack.c.l.b16 %v4773
        %v5152 = vunpack.c.l.b16 %v4774
        %v5153 = vunpack.c.l.b16 %v4775
        %v5154 = vunpack.c.l.b16 %v4776
        %v5155 = vunpack.c.l.b16 %v4777
        %v5156 = vunpack.c.l.b16 %v4778
        %v5157 = vunpack.c.l.b16 %v4779
        %v5158 = vunpack.c.l.b16 %v4780
        %v5159 = vunpack.c.l.b16 %v4781
        %v5160 = vunpack.c.l.b16 %v4782
        %v5161 = vunpack.c.l.b16 %v4783
        %v5162 = vunpack.c.l.b16 %v4784
        %v5163 = vpack.c.b16 %v5148, %v5147
        %v5164 = vpack.c.b16 %v5150, %v5149
        %v5165 = vpack.c.b16 %v5152, %v5151
        %v5166 = vpack.c.b16 %v5154, %v5153
        %v5167 = vpack.c.b16 %v5156, %v5155
        %v5168 = vpack.c.b16 %v5158, %v5157
        %v5169 = vpack.c.b16 %v5160, %v5159
        %v5170 = vpack.c.b16 %v5162, %v5161
        %5179 = vmatprep.subr.bf16.mxu0 0
        %5180 = vmatpush1.bf16.msra.mxu0 %v5170
        %5181 = vmatprep.subr.bf16.mxu0 0
        %5182 = vmatpush1.bf16.msra.mxu0 %v5169
        %5183 = vmatprep.subr.bf16.mxu0 0
        %5184 = vmatpush1.bf16.msra.mxu0 %v5168
        %5185 = vmatprep.subr.bf16.mxu0 0
        %5186 = vmatpush1.bf16.msra.mxu0 %v5167
        %5187 = vmatprep.subr.bf16.mxu0 0
        %5188 = vmatpush1.bf16.msra.mxu0 %v5166
        %5189 = vmatprep.subr.bf16.mxu0 0
        %5190 = vmatpush1.bf16.msra.mxu0 %v5165
        %5191 = vmatprep.subr.bf16.mxu0 0
        %5192 = vmatpush1.bf16.msra.mxu0 %v5164
        %5193 = vmatprep.subr.bf16.mxu0 0
        %5194 = vmatpush1.bf16.msra.mxu0 %v5163
        %5195 = vmatprep.subr.bf16.mxu0 0
        %5196 = vmatpush2.bf16.msra.mxu0 0
        %5197 = vmatprep.subr.bf16.mxu0 0
        %5198 = vmatpush2.bf16.msra.mxu0 0
        %5199 = vmatprep.subr.bf16.mxu0 0
        %5200 = vmatpush2.bf16.msra.mxu0 0
        %5201 = vmatprep.subr.bf16.mxu0 0
        %5202 = vmatpush2.bf16.msra.mxu0 0
        %5203 = vmatprep.subr.bf16.mxu0 0
        %5204 = vmatpush2.bf16.msra.mxu0 0
        %5205 = vmatprep.subr.bf16.mxu0 0
        %5206 = vmatpush2.bf16.msra.mxu0 0
        %5207 = vmatprep.subr.bf16.mxu0 0
        %5208 = vmatpush2.bf16.msra.mxu0 0
        %5209 = vmatprep.subr.bf16.mxu0 0
        %5210 = vmatpush2.bf16.msra.mxu0 0
        %5211 = vmatprep.mubr.bf16.mxu0 0
        %5212 = vmatmul.mubr.bf16.gmra.mxu0 %v4745
        %v5213 = vpop.f32.mrf.mxu0
        %v5214 = vadd.f32 %v4957, %v5213
        %v5215 = vpop.f32.mrf.mxu0
        %v5216 = vpop.f32.mrf.mxu0
        %v5217 = vadd.f32 %v4960, %v5216
        %v5218 = vpop.f32.mrf.mxu0
        %5219 = vmatprep.mubr.bf16.mxu0 0
        %5220 = vmatmul.mubr.bf16.gmra.mxu0 %v4746
        %v5221 = vpop.f32.mrf.mxu0
        %v5222 = vpop.f32.mrf.mxu0
        %v5223 = vpop.f32.mrf.mxu0
        %v5224 = vadd.f32 %v4967, %v5223
        %v5225 = vpop.f32.mrf.mxu0
        %5226 = vmatprep.mubr.bf16.mxu0 0
        %5227 = vmatmul.mubr.bf16.gmra.mxu0 %v4747
        %v5228 = vpop.f32.mrf.mxu0
        %v5229 = vadd.f32 %v4972, %v5228
        %v5230 = vpop.f32.mrf.mxu0
        %v5231 = vpop.f32.mrf.mxu0
        %v5232 = vpop.f32.mrf.mxu0
        %5233 = vmatprep.mubr.bf16.mxu0 0
        %5234 = vmatmul.mubr.bf16.gmra.mxu0 %v4748
        %v5235 = vpop.f32.mrf.mxu0
        %v5236 = vadd.f32 %v4979, %v5235
        %v5237 = vpop.f32.mrf.mxu0
        %v5238 = vpop.f32.mrf.mxu0
        %v5239 = vadd.f32 %v4982, %v5238
        %v5240 = vpop.f32.mrf.mxu0
        %5241 = vmatprep.mubr.bf16.mxu0 0
        %5242 = vmatmul.mubr.bf16.gmra.mxu0 %v4749
        %v5243 = vpop.f32.mrf.mxu0
        %v5244 = vpop.f32.mrf.mxu0
        %v5245 = vpop.f32.mrf.mxu0
        %v5246 = vadd.f32 %v4989, %v5245
        %v5247 = vpop.f32.mrf.mxu0
        %5248 = vmatprep.mubr.bf16.mxu0 0
        %5249 = vmatmul.mubr.bf16.gmra.mxu0 %v4750
        %v5250 = vpop.f32.mrf.mxu0
        %v5251 = vadd.f32 %v4994, %v5250
        %v5252 = vpop.f32.mrf.mxu0
        %v5253 = vpop.f32.mrf.mxu0
        %v5254 = vpop.f32.mrf.mxu0
        %5255 = vmatprep.mubr.bf16.mxu0 0
        %5256 = vmatmul.mubr.bf16.gmra.mxu0 %v4751
        %v5257 = vpop.f32.mrf.mxu0
        %v5258 = vadd.f32 %v5001, %v5257
        %v5259 = vpop.f32.mrf.mxu0
        %v5260 = vpop.f32.mrf.mxu0
        %v5261 = vadd.f32 %v5004, %v5260
        %v5262 = vpop.f32.mrf.mxu0
        %5263 = vmatprep.mubr.bf16.mxu0 0
        %5264 = vmatmul.mubr.bf16.gmra.mxu0 %v4752
        %v5265 = vpop.f32.mrf.mxu0
        %v5266 = vpop.f32.mrf.mxu0
        %v5267 = vpop.f32.mrf.mxu0
        %v5268 = vadd.f32 %v5011, %v5267
        %v5269 = vpop.f32.mrf.mxu0
        %5270 = vmatprep.mubr.bf16.mxu0 0
        %5271 = vmatmul.mubr.bf16.gmra.mxu0 %v4753
        %v5272 = vpop.f32.mrf.mxu0
        %v5273 = vadd.f32 %v5016, %v5272
        %v5274 = vpop.f32.mrf.mxu0
        %v5275 = vpop.f32.mrf.mxu0
        %v5276 = vpop.f32.mrf.mxu0
        %5277 = vmatprep.mubr.bf16.mxu0 0
        %5278 = vmatmul.mubr.bf16.gmra.mxu0 %v4754
        %v5279 = vpop.f32.mrf.mxu0
        %v5280 = vadd.f32 %v5023, %v5279
        %v5281 = vpop.f32.mrf.mxu0
        %v5282 = vpop.f32.mrf.mxu0
        %v5283 = vadd.f32 %v5026, %v5282
        %v5284 = vpop.f32.mrf.mxu0
        %5285 = vmatprep.mubr.bf16.mxu0 0
        %5286 = vmatmul.mubr.bf16.gmra.mxu0 %v4755
        %v5287 = vpop.f32.mrf.mxu0
        %v5288 = vpop.f32.mrf.mxu0
        %v5289 = vpop.f32.mrf.mxu0
        %v5290 = vadd.f32 %v5033, %v5289
        %v5291 = vpop.f32.mrf.mxu0
        %5292 = vmatprep.mubr.bf16.mxu0 0
        %5293 = vmatmul.mubr.bf16.gmra.mxu0 %v4756
        %v5294 = vpop.f32.mrf.mxu0
        %v5295 = vadd.f32 %v5038, %v5294
        %v5296 = vpop.f32.mrf.mxu0
        %v5297 = vpop.f32.mrf.mxu0
        %v5298 = vpop.f32.mrf.mxu0
        %5299 = vmatprep.mubr.bf16.mxu0 0
        %5300 = vmatmul.mubr.bf16.gmra.mxu0 %v4757
        %v5301 = vpop.f32.mrf.mxu0
        %v5302 = vadd.f32 %v5045, %v5301
        %v5303 = vpop.f32.mrf.mxu0
        %v5304 = vpop.f32.mrf.mxu0
        %v5305 = vadd.f32 %v5048, %v5304
        %v5306 = vpop.f32.mrf.mxu0
        %5307 = vmatprep.mubr.bf16.mxu0 0
        %5308 = vmatmul.mubr.bf16.gmra.mxu0 %v4758
        %v5309 = vpop.f32.mrf.mxu0
        %v5310 = vpop.f32.mrf.mxu0
        %v5311 = vpop.f32.mrf.mxu0
        %v5312 = vadd.f32 %v5055, %v5311
        %v5313 = vpop.f32.mrf.mxu0
        %5314 = vmatprep.mubr.bf16.mxu0 0
        %5315 = vmatmul.mubr.bf16.gmra.mxu0 %v4759
        %v5316 = vpop.f32.mrf.mxu0
        %v5317 = vadd.f32 %v5060, %v5316
        %v5318 = vpop.f32.mrf.mxu0
        %v5319 = vpop.f32.mrf.mxu0
        %v5320 = vpop.f32.mrf.mxu0
        %5321 = vmatprep.mubr.bf16.mxu0 0
        %5322 = vmatmul.mubr.bf16.gmra.mxu0 %v4760
        %v5323 = vpop.f32.mrf.mxu0
        %v5324 = vadd.f32 %v5067, %v5323
        %v5325 = vpop.f32.mrf.mxu0
        %v5326 = vpop.f32.mrf.mxu0
        %v5327 = vadd.f32 %v5070, %v5326
        %v5328 = vpop.f32.mrf.mxu0
        %5329 = vmatprep.mubr.bf16.mxu0 0
        %5330 = vmatmul.mubr.bf16.gmra.mxu0 %v4761
        %v5331 = vpop.f32.mrf.mxu0
        %v5332 = vpop.f32.mrf.mxu0
        %v5333 = vpop.f32.mrf.mxu0
        %v5334 = vadd.f32 %v5077, %v5333
        %v5335 = vpop.f32.mrf.mxu0
        %5336 = vmatprep.mubr.bf16.mxu0 0
        %5337 = vmatmul.mubr.bf16.gmra.mxu0 %v4762
        %v5338 = vpop.f32.mrf.mxu0
        %v5339 = vadd.f32 %v5082, %v5338
        %v5340 = vpop.f32.mrf.mxu0
        %v5341 = vpop.f32.mrf.mxu0
        %v5342 = vpop.f32.mrf.mxu0
        %5343 = vmatprep.mubr.bf16.mxu0 0
        %5344 = vmatmul.mubr.bf16.gmra.mxu0 %v4763
        %v5345 = vpop.f32.mrf.mxu0
        %v5346 = vadd.f32 %v5089, %v5345
        %v5347 = vpop.f32.mrf.mxu0
        %v5348 = vpop.f32.mrf.mxu0
        %v5349 = vadd.f32 %v5092, %v5348
        %v5350 = vpop.f32.mrf.mxu0
        %5351 = vmatprep.mubr.bf16.mxu0 0
        %5352 = vmatmul.mubr.bf16.gmra.mxu0 %v4764
        %v5353 = vpop.f32.mrf.mxu0
        %v5354 = vpop.f32.mrf.mxu0
        %v5355 = vpop.f32.mrf.mxu0
        %v5356 = vadd.f32 %v5099, %v5355
        %v5357 = vpop.f32.mrf.mxu0
        %5358 = vmatprep.mubr.bf16.mxu0 0
        %5359 = vmatmul.mubr.bf16.gmra.mxu0 %v4765
        %v5360 = vpop.f32.mrf.mxu0
        %v5361 = vadd.f32 %v5104, %v5360
        %v5362 = vpop.f32.mrf.mxu0
        %v5363 = vpop.f32.mrf.mxu0
        %v5364 = vpop.f32.mrf.mxu0
        %5365 = vmatprep.mubr.bf16.mxu0 0
        %5366 = vmatmul.mubr.bf16.gmra.mxu0 %v4766
        %v5367 = vpop.f32.mrf.mxu0
        %v5368 = vadd.f32 %v5111, %v5367
        %v5369 = vpop.f32.mrf.mxu0
        %v5370 = vpop.f32.mrf.mxu0
        %v5371 = vadd.f32 %v5114, %v5370
        %v5372 = vpop.f32.mrf.mxu0
        %5373 = vmatprep.mubr.bf16.mxu0 0
        %5374 = vmatmul.mubr.bf16.gmra.mxu0 %v4767
        %v5375 = vpop.f32.mrf.mxu0
        %v5376 = vpop.f32.mrf.mxu0
        %v5377 = vpop.f32.mrf.mxu0
        %v5378 = vadd.f32 %v5121, %v5377
        %v5379 = vpop.f32.mrf.mxu0
        %5380 = vmatprep.mubr.bf16.mxu0 0
        %5381 = vmatmul.mubr.bf16.gmra.mxu0 %v4768
        %v5382 = vpop.f32.mrf.mxu0
        %v5383 = vadd.f32 %v5126, %v5382
        %v5384 = vpop.f32.mrf.mxu0
        %v5385 = vpop.f32.mrf.mxu0
        %v5386 = vpop.f32.mrf.mxu0
        %5387 = vdwg.mxu0
        %v5388 = vld [vmem:[%s1312] sm:$0xff]
        %v5389 = vld [vmem:[%s1312 + $0x8] sm:$0xff]
        %v5390 = vld [vmem:[%s1312 + $0x10] sm:$0xff]
        %v5391 = vld [vmem:[%s1312 + $0x18] sm:$0xff]
        %v5392 = vld [vmem:[%s1312 + $0x20] sm:$0xff]
        %v5393 = vld [vmem:[%s1312 + $0x28] sm:$0xff]
        %v5394 = vld [vmem:[%s1312 + $0x30] sm:$0xff]
        %v5395 = vld [vmem:[%s1312 + $0x38] sm:$0xff]
        %v5396 = vld [vmem:[%s1312 + $0x40] sm:$0xff]
        %v5397 = vld [vmem:[%s1312 + $0x48] sm:$0xff]
        %v5398 = vld [vmem:[%s1312 + $0x50] sm:$0xff]
        %v5399 = vld [vmem:[%s1312 + $0x58] sm:$0xff]
        %v5400 = vld [vmem:[%s1312 + $0x60] sm:$0xff]
        %v5401 = vld [vmem:[%s1312 + $0x68] sm:$0xff]
        %v5402 = vld [vmem:[%s1312 + $0x70] sm:$0xff]
        %v5403 = vld [vmem:[%s1312 + $0x78] sm:$0xff]
        %v5404 = vld [vmem:[%s1312 + $0x80] sm:$0xff]
        %v5405 = vld [vmem:[%s1312 + $0x88] sm:$0xff]
        %v5406 = vld [vmem:[%s1312 + $0x90] sm:$0xff]
        %v5407 = vld [vmem:[%s1312 + $0x98] sm:$0xff]
        %v5408 = vld [vmem:[%s1312 + $0xa0] sm:$0xff]
        %v5409 = vld [vmem:[%s1312 + $0xa8] sm:$0xff]
        %v5410 = vld [vmem:[%s1312 + $0xb0] sm:$0xff]
        %v5411 = vld [vmem:[%s1312 + $0xb8] sm:$0xff]
        %v5412 = vld [vmem:[%s1312 + $0xc0] sm:$0xff]
        %v5413 = vld [vmem:[%s1312 + $0xc8] sm:$0xff]
        %v5414 = vld [vmem:[%s1312 + $0xd0] sm:$0xff]
        %v5415 = vld [vmem:[%s1312 + $0xd8] sm:$0xff]
        %v5416 = vld [vmem:[%s1312 + $0xe0] sm:$0xff]
        %v5417 = vld [vmem:[%s1312 + $0xe8] sm:$0xff]
        %v5418 = vld [vmem:[%s1312 + $0xf0] sm:$0xff]
        %v5419 = vld [vmem:[%s1312 + $0xf8] sm:$0xff]
        %v5420 = vld [vmem:[%s1312 + $0x100] sm:$0xff]
        %v5421 = vld [vmem:[%s1312 + $0x108] sm:$0xff]
        %v5422 = vld [vmem:[%s1312 + $0x110] sm:$0xff]
        %v5423 = vld [vmem:[%s1312 + $0x118] sm:$0xff]
        %v5424 = vld [vmem:[%s1312 + $0x120] sm:$0xff]
        %v5425 = vld [vmem:[%s1312 + $0x128] sm:$0xff]
        %v5426 = vld [vmem:[%s1312 + $0x130] sm:$0xff]
        %v5427 = vld [vmem:[%s1312 + $0x138] sm:$0xff]
        %v5428 = vld [vmem:[%s1312 + $0x140] sm:$0xff]
        %v5429 = vld [vmem:[%s1312 + $0x148] sm:$0xff]
        %v5430 = vld [vmem:[%s1312 + $0x150] sm:$0xff]
        %v5431 = vld [vmem:[%s1312 + $0x158] sm:$0xff]
        %v5432 = vld [vmem:[%s1312 + $0x160] sm:$0xff]
        %v5433 = vld [vmem:[%s1312 + $0x168] sm:$0xff]
        %v5434 = vld [vmem:[%s1312 + $0x170] sm:$0xff]
        %v5435 = vld [vmem:[%s1312 + $0x178] sm:$0xff]
        %v5436 = vpack.c.bf16 %v5389, %v5388
        %v5437 = vpack.c.bf16 %v5391, %v5390
        %v5438 = vpack.c.bf16 %v5393, %v5392
        %v5439 = vpack.c.bf16 %v5395, %v5394
        %v5440 = vpack.c.bf16 %v5397, %v5396
        %v5441 = vpack.c.bf16 %v5399, %v5398
        %v5442 = vpack.c.bf16 %v5401, %v5400
        %v5443 = vpack.c.bf16 %v5403, %v5402
        %v5444 = vpack.c.bf16 %v5405, %v5404
        %v5445 = vpack.c.bf16 %v5407, %v5406
        %v5446 = vpack.c.bf16 %v5409, %v5408
        %v5447 = vpack.c.bf16 %v5411, %v5410
        %v5448 = vpack.c.bf16 %v5413, %v5412
        %v5449 = vpack.c.bf16 %v5415, %v5414
        %v5450 = vpack.c.bf16 %v5417, %v5416
        %v5451 = vpack.c.bf16 %v5419, %v5418
        %v5452 = vpack.c.bf16 %v5421, %v5420
        %v5453 = vpack.c.bf16 %v5423, %v5422
        %v5454 = vpack.c.bf16 %v5425, %v5424
        %v5455 = vpack.c.bf16 %v5427, %v5426
        %v5456 = vpack.c.bf16 %v5429, %v5428
        %v5457 = vpack.c.bf16 %v5431, %v5430
        %v5458 = vpack.c.bf16 %v5433, %v5432
        %v5459 = vpack.c.bf16 %v5435, %v5434
        %s5460 = scalar_lea.vmem [#allocation9], 384
        %v5461 = vld [vmem:[%s5460] sm:$0xf]
        %v5462 = vld [vmem:[%s5460 + $0x4] sm:$0xf]
        %v5463 = vld [vmem:[%s5460 + $0x8] sm:$0xf]
        %v5464 = vld [vmem:[%s5460 + $0xc] sm:$0xf]
        %v5465 = vld [vmem:[%s5460 + $0x10] sm:$0xf]
        %v5466 = vld [vmem:[%s5460 + $0x14] sm:$0xf]
        %v5467 = vld [vmem:[%s5460 + $0x18] sm:$0xf]
        %v5468 = vld [vmem:[%s5460 + $0x1c] sm:$0xf]
        %v5469 = vld [vmem:[%s5460 + $0x20] sm:$0xf]
        %v5470 = vld [vmem:[%s5460 + $0x24] sm:$0xf]
        %v5471 = vld [vmem:[%s5460 + $0x28] sm:$0xf]
        %v5472 = vld [vmem:[%s5460 + $0x2c] sm:$0xf]
        %v5473 = vld [vmem:[%s5460 + $0x30] sm:$0xf]
        %v5474 = vld [vmem:[%s5460 + $0x34] sm:$0xf]
        %v5475 = vld [vmem:[%s5460 + $0x38] sm:$0xf]
        %v5476 = vld [vmem:[%s5460 + $0x3c] sm:$0xf]
        %v5493 = vunpack.c.l.b16 %v5461
        %v5494 = vunpack.c.l.b16 %v5462
        %v5495 = vunpack.c.l.b16 %v5463
        %v5496 = vunpack.c.l.b16 %v5464
        %v5497 = vunpack.c.l.b16 %v5465
        %v5498 = vunpack.c.l.b16 %v5466
        %v5499 = vunpack.c.l.b16 %v5467
        %v5500 = vunpack.c.l.b16 %v5468
        %v5501 = vunpack.c.l.b16 %v5469
        %v5502 = vunpack.c.l.b16 %v5470
        %v5503 = vunpack.c.l.b16 %v5471
        %v5504 = vunpack.c.l.b16 %v5472
        %v5505 = vunpack.c.l.b16 %v5473
        %v5506 = vunpack.c.l.b16 %v5474
        %v5507 = vunpack.c.l.b16 %v5475
        %v5508 = vunpack.c.l.b16 %v5476
        %v5509 = vpack.c.b16 %v5494, %v5493
        %v5510 = vpack.c.b16 %v5496, %v5495
        %v5511 = vpack.c.b16 %v5498, %v5497
        %v5512 = vpack.c.b16 %v5500, %v5499
        %v5513 = vpack.c.b16 %v5502, %v5501
        %v5514 = vpack.c.b16 %v5504, %v5503
        %v5515 = vpack.c.b16 %v5506, %v5505
        %v5516 = vpack.c.b16 %v5508, %v5507
        %5525 = vmatprep.subr.bf16.mxu0 0
        %5526 = vmatpush1.bf16.msra.mxu0 %v5516
        %5527 = vmatprep.subr.bf16.mxu0 0
        %5528 = vmatpush1.bf16.msra.mxu0 %v5515
        %5529 = vmatprep.subr.bf16.mxu0 0
        %5530 = vmatpush1.bf16.msra.mxu0 %v5514
        %5531 = vmatprep.subr.bf16.mxu0 0
        %5532 = vmatpush1.bf16.msra.mxu0 %v5513
        %5533 = vmatprep.subr.bf16.mxu0 0
        %5534 = vmatpush1.bf16.msra.mxu0 %v5512
        %5535 = vmatprep.subr.bf16.mxu0 0
        %5536 = vmatpush1.bf16.msra.mxu0 %v5511
        %5537 = vmatprep.subr.bf16.mxu0 0
        %5538 = vmatpush1.bf16.msra.mxu0 %v5510
        %5539 = vmatprep.subr.bf16.mxu0 0
        %5540 = vmatpush1.bf16.msra.mxu0 %v5509
        %5541 = vmatprep.subr.bf16.mxu0 0
        %5542 = vmatpush2.bf16.msra.mxu0 0
        %5543 = vmatprep.subr.bf16.mxu0 0
        %5544 = vmatpush2.bf16.msra.mxu0 0
        %5545 = vmatprep.subr.bf16.mxu0 0
        %5546 = vmatpush2.bf16.msra.mxu0 0
        %5547 = vmatprep.subr.bf16.mxu0 0
        %5548 = vmatpush2.bf16.msra.mxu0 0
        %5549 = vmatprep.subr.bf16.mxu0 0
        %5550 = vmatpush2.bf16.msra.mxu0 0
        %5551 = vmatprep.subr.bf16.mxu0 0
        %5552 = vmatpush2.bf16.msra.mxu0 0
        %5553 = vmatprep.subr.bf16.mxu0 0
        %5554 = vmatpush2.bf16.msra.mxu0 0
        %5555 = vmatprep.subr.bf16.mxu0 0
        %5556 = vmatpush2.bf16.msra.mxu0 0
        %5557 = vmatprep.mubr.bf16.mxu0 0
        %5558 = vmatmul.mubr.bf16.gmra.mxu0 %v5436
        %v5559 = vpop.f32.mrf.mxu0
        %v5560 = vadd.f32 0.0, %v5559
        %v5561 = vpop.f32.mrf.mxu0
        %v5562 = vpop.f32.mrf.mxu0
        %v5563 = vadd.f32 0.0, %v5562
        %v5564 = vpop.f32.mrf.mxu0
        %5565 = vmatprep.mubr.bf16.mxu0 0
        %5566 = vmatmul.mubr.bf16.gmra.mxu0 %v5437
        %v5567 = vpop.f32.mrf.mxu0
        %v5568 = vpop.f32.mrf.mxu0
        %v5569 = vpop.f32.mrf.mxu0
        %v5570 = vadd.f32 0.0, %v5569
        %v5571 = vpop.f32.mrf.mxu0
        %5572 = vmatprep.mubr.bf16.mxu0 0
        %5573 = vmatmul.mubr.bf16.gmra.mxu0 %v5438
        %v5574 = vpop.f32.mrf.mxu0
        %v5575 = vadd.f32 0.0, %v5574
        %v5576 = vpop.f32.mrf.mxu0
        %v5577 = vpop.f32.mrf.mxu0
        %v5578 = vpop.f32.mrf.mxu0
        %5579 = vmatprep.mubr.bf16.mxu0 0
        %5580 = vmatmul.mubr.bf16.gmra.mxu0 %v5439
        %v5581 = vpop.f32.mrf.mxu0
        %v5582 = vadd.f32 0.0, %v5581
        %v5583 = vpop.f32.mrf.mxu0
        %v5584 = vpop.f32.mrf.mxu0
        %v5585 = vadd.f32 0.0, %v5584
        %v5586 = vpop.f32.mrf.mxu0
        %5587 = vmatprep.mubr.bf16.mxu0 0
        %5588 = vmatmul.mubr.bf16.gmra.mxu0 %v5440
        %v5589 = vpop.f32.mrf.mxu0
        %v5590 = vpop.f32.mrf.mxu0
        %v5591 = vpop.f32.mrf.mxu0
        %v5592 = vadd.f32 0.0, %v5591
        %v5593 = vpop.f32.mrf.mxu0
        %5594 = vmatprep.mubr.bf16.mxu0 0
        %5595 = vmatmul.mubr.bf16.gmra.mxu0 %v5441
        %v5596 = vpop.f32.mrf.mxu0
        %v5597 = vadd.f32 0.0, %v5596
        %v5598 = vpop.f32.mrf.mxu0
        %v5599 = vpop.f32.mrf.mxu0
        %v5600 = vpop.f32.mrf.mxu0
        %5601 = vmatprep.mubr.bf16.mxu0 0
        %5602 = vmatmul.mubr.bf16.gmra.mxu0 %v5442
        %v5603 = vpop.f32.mrf.mxu0
        %v5604 = vadd.f32 0.0, %v5603
        %v5605 = vpop.f32.mrf.mxu0
        %v5606 = vpop.f32.mrf.mxu0
        %v5607 = vadd.f32 0.0, %v5606
        %v5608 = vpop.f32.mrf.mxu0
        %5609 = vmatprep.mubr.bf16.mxu0 0
        %5610 = vmatmul.mubr.bf16.gmra.mxu0 %v5443
        %v5611 = vpop.f32.mrf.mxu0
        %v5612 = vpop.f32.mrf.mxu0
        %v5613 = vpop.f32.mrf.mxu0
        %v5614 = vadd.f32 0.0, %v5613
        %v5615 = vpop.f32.mrf.mxu0
        %5616 = vmatprep.mubr.bf16.mxu0 0
        %5617 = vmatmul.mubr.bf16.gmra.mxu0 %v5444
        %v5618 = vpop.f32.mrf.mxu0
        %v5619 = vadd.f32 0.0, %v5618
        %v5620 = vpop.f32.mrf.mxu0
        %v5621 = vpop.f32.mrf.mxu0
        %v5622 = vpop.f32.mrf.mxu0
        %5623 = vmatprep.mubr.bf16.mxu0 0
        %5624 = vmatmul.mubr.bf16.gmra.mxu0 %v5445
        %v5625 = vpop.f32.mrf.mxu0
        %v5626 = vadd.f32 0.0, %v5625
        %v5627 = vpop.f32.mrf.mxu0
        %v5628 = vpop.f32.mrf.mxu0
        %v5629 = vadd.f32 0.0, %v5628
        %v5630 = vpop.f32.mrf.mxu0
        %5631 = vmatprep.mubr.bf16.mxu0 0
        %5632 = vmatmul.mubr.bf16.gmra.mxu0 %v5446
        %v5633 = vpop.f32.mrf.mxu0
        %v5634 = vpop.f32.mrf.mxu0
        %v5635 = vpop.f32.mrf.mxu0
        %v5636 = vadd.f32 0.0, %v5635
        %v5637 = vpop.f32.mrf.mxu0
        %5638 = vmatprep.mubr.bf16.mxu0 0
        %5639 = vmatmul.mubr.bf16.gmra.mxu0 %v5447
        %v5640 = vpop.f32.mrf.mxu0
        %v5641 = vadd.f32 0.0, %v5640
        %v5642 = vpop.f32.mrf.mxu0
        %v5643 = vpop.f32.mrf.mxu0
        %v5644 = vpop.f32.mrf.mxu0
        %5645 = vmatprep.mubr.bf16.mxu0 0
        %5646 = vmatmul.mubr.bf16.gmra.mxu0 %v5448
        %v5647 = vpop.f32.mrf.mxu0
        %v5648 = vadd.f32 0.0, %v5647
        %v5649 = vpop.f32.mrf.mxu0
        %v5650 = vpop.f32.mrf.mxu0
        %v5651 = vadd.f32 0.0, %v5650
        %v5652 = vpop.f32.mrf.mxu0
        %5653 = vmatprep.mubr.bf16.mxu0 0
        %5654 = vmatmul.mubr.bf16.gmra.mxu0 %v5449
        %v5655 = vpop.f32.mrf.mxu0
        %v5656 = vpop.f32.mrf.mxu0
        %v5657 = vpop.f32.mrf.mxu0
        %v5658 = vadd.f32 0.0, %v5657
        %v5659 = vpop.f32.mrf.mxu0
        %5660 = vmatprep.mubr.bf16.mxu0 0
        %5661 = vmatmul.mubr.bf16.gmra.mxu0 %v5450
        %v5662 = vpop.f32.mrf.mxu0
        %v5663 = vadd.f32 0.0, %v5662
        %v5664 = vpop.f32.mrf.mxu0
        %v5665 = vpop.f32.mrf.mxu0
        %v5666 = vpop.f32.mrf.mxu0
        %5667 = vmatprep.mubr.bf16.mxu0 0
        %5668 = vmatmul.mubr.bf16.gmra.mxu0 %v5451
        %v5669 = vpop.f32.mrf.mxu0
        %v5670 = vadd.f32 0.0, %v5669
        %v5671 = vpop.f32.mrf.mxu0
        %v5672 = vpop.f32.mrf.mxu0
        %v5673 = vadd.f32 0.0, %v5672
        %v5674 = vpop.f32.mrf.mxu0
        %5675 = vmatprep.mubr.bf16.mxu0 0
        %5676 = vmatmul.mubr.bf16.gmra.mxu0 %v5452
        %v5677 = vpop.f32.mrf.mxu0
        %v5678 = vpop.f32.mrf.mxu0
        %v5679 = vpop.f32.mrf.mxu0
        %v5680 = vadd.f32 0.0, %v5679
        %v5681 = vpop.f32.mrf.mxu0
        %5682 = vmatprep.mubr.bf16.mxu0 0
        %5683 = vmatmul.mubr.bf16.gmra.mxu0 %v5453
        %v5684 = vpop.f32.mrf.mxu0
        %v5685 = vadd.f32 0.0, %v5684
        %v5686 = vpop.f32.mrf.mxu0
        %v5687 = vpop.f32.mrf.mxu0
        %v5688 = vpop.f32.mrf.mxu0
        %5689 = vmatprep.mubr.bf16.mxu0 0
        %5690 = vmatmul.mubr.bf16.gmra.mxu0 %v5454
        %v5691 = vpop.f32.mrf.mxu0
        %v5692 = vadd.f32 0.0, %v5691
        %v5693 = vpop.f32.mrf.mxu0
        %v5694 = vpop.f32.mrf.mxu0
        %v5695 = vadd.f32 0.0, %v5694
        %v5696 = vpop.f32.mrf.mxu0
        %5697 = vmatprep.mubr.bf16.mxu0 0
        %5698 = vmatmul.mubr.bf16.gmra.mxu0 %v5455
        %v5699 = vpop.f32.mrf.mxu0
        %v5700 = vpop.f32.mrf.mxu0
        %v5701 = vpop.f32.mrf.mxu0
        %v5702 = vadd.f32 0.0, %v5701
        %v5703 = vpop.f32.mrf.mxu0
        %5704 = vmatprep.mubr.bf16.mxu0 0
        %5705 = vmatmul.mubr.bf16.gmra.mxu0 %v5456
        %v5706 = vpop.f32.mrf.mxu0
        %v5707 = vadd.f32 0.0, %v5706
        %v5708 = vpop.f32.mrf.mxu0
        %v5709 = vpop.f32.mrf.mxu0
        %v5710 = vpop.f32.mrf.mxu0
        %5711 = vmatprep.mubr.bf16.mxu0 0
        %5712 = vmatmul.mubr.bf16.gmra.mxu0 %v5457
        %v5713 = vpop.f32.mrf.mxu0
        %v5714 = vadd.f32 0.0, %v5713
        %v5715 = vpop.f32.mrf.mxu0
        %v5716 = vpop.f32.mrf.mxu0
        %v5717 = vadd.f32 0.0, %v5716
        %v5718 = vpop.f32.mrf.mxu0
        %5719 = vmatprep.mubr.bf16.mxu0 0
        %5720 = vmatmul.mubr.bf16.gmra.mxu0 %v5458
        %v5721 = vpop.f32.mrf.mxu0
        %v5722 = vpop.f32.mrf.mxu0
        %v5723 = vpop.f32.mrf.mxu0
        %v5724 = vadd.f32 0.0, %v5723
        %v5725 = vpop.f32.mrf.mxu0
        %5726 = vmatprep.mubr.bf16.mxu0 0
        %5727 = vmatmul.mubr.bf16.gmra.mxu0 %v5459
        %v5728 = vpop.f32.mrf.mxu0
        %v5729 = vadd.f32 0.0, %v5728
        %v5730 = vpop.f32.mrf.mxu0
        %v5731 = vpop.f32.mrf.mxu0
        %v5732 = vpop.f32.mrf.mxu0
        %5733 = vdwg.mxu0
        %v5734 = vadd.f32 %v5214, %v5560
        %v5735 = vadd.f32 %v5217, %v5563
        %v5736 = vadd.f32 %v5224, %v5570
        %v5737 = vadd.f32 %v5229, %v5575
        %v5738 = vadd.f32 %v5236, %v5582
        %v5739 = vadd.f32 %v5239, %v5585
        %v5740 = vadd.f32 %v5246, %v5592
        %v5741 = vadd.f32 %v5251, %v5597
        %v5742 = vadd.f32 %v5258, %v5604
        %v5743 = vadd.f32 %v5261, %v5607
        %v5744 = vadd.f32 %v5268, %v5614
        %v5745 = vadd.f32 %v5273, %v5619
        %v5746 = vadd.f32 %v5280, %v5626
        %v5747 = vadd.f32 %v5283, %v5629
        %v5748 = vadd.f32 %v5290, %v5636
        %v5749 = vadd.f32 %v5295, %v5641
        %v5750 = vadd.f32 %v5302, %v5648
        %v5751 = vadd.f32 %v5305, %v5651
        %v5752 = vadd.f32 %v5312, %v5658
        %v5753 = vadd.f32 %v5317, %v5663
        %v5754 = vadd.f32 %v5324, %v5670
        %v5755 = vadd.f32 %v5327, %v5673
        %v5756 = vadd.f32 %v5334, %v5680
        %v5757 = vadd.f32 %v5339, %v5685
        %v5758 = vadd.f32 %v5346, %v5692
        %v5759 = vadd.f32 %v5349, %v5695
        %v5760 = vadd.f32 %v5356, %v5702
        %v5761 = vadd.f32 %v5361, %v5707
        %v5762 = vadd.f32 %v5368, %v5714
        %v5763 = vadd.f32 %v5371, %v5717
        %v5764 = vadd.f32 %v5378, %v5724
        %v5765 = vadd.f32 %v5383, %v5729
        %v5766 = vld [vmem:[#allocation3] sm:$0xff]
        %v5767 = vld [vmem:[#allocation3 + $0x8] sm:$0xff]
        %v5768 = vld [vmem:[#allocation3 + $0x10] sm:$0xff]
        %v5769 = vld [vmem:[#allocation3 + $0x18] sm:$0xff]
        %v5770 = vld [vmem:[#allocation3 + $0x20] sm:$0xff]
        %v5771 = vld [vmem:[#allocation3 + $0x28] sm:$0xff]
        %v5772 = vld [vmem:[#allocation3 + $0x30] sm:$0xff]
        %v5773 = vld [vmem:[#allocation3 + $0x38] sm:$0xff]
        %v5774 = vld [vmem:[#allocation3 + $0x40] sm:$0xff]
        %v5775 = vld [vmem:[#allocation3 + $0x48] sm:$0xff]
        %v5776 = vld [vmem:[#allocation3 + $0x50] sm:$0xff]
        %v5777 = vld [vmem:[#allocation3 + $0x58] sm:$0xff]
        %v5778 = vld [vmem:[#allocation3 + $0x60] sm:$0xff]
        %v5779 = vld [vmem:[#allocation3 + $0x68] sm:$0xff]
        %v5780 = vld [vmem:[#allocation3 + $0x70] sm:$0xff]
        %v5781 = vld [vmem:[#allocation3 + $0x78] sm:$0xff]
        %v5782 = vld [vmem:[#allocation3 + $0x80] sm:$0xff]
        %v5783 = vld [vmem:[#allocation3 + $0x88] sm:$0xff]
        %v5784 = vld [vmem:[#allocation3 + $0x90] sm:$0xff]
        %v5785 = vld [vmem:[#allocation3 + $0x98] sm:$0xff]
        %v5786 = vld [vmem:[#allocation3 + $0xa0] sm:$0xff]
        %v5787 = vld [vmem:[#allocation3 + $0xa8] sm:$0xff]
        %v5788 = vld [vmem:[#allocation3 + $0xb0] sm:$0xff]
        %v5789 = vld [vmem:[#allocation3 + $0xb8] sm:$0xff]
        %v5790 = vld [vmem:[#allocation3 + $0xc0] sm:$0xff]
        %v5791 = vld [vmem:[#allocation3 + $0xc8] sm:$0xff]
        %v5792 = vld [vmem:[#allocation3 + $0xd0] sm:$0xff]
        %v5793 = vld [vmem:[#allocation3 + $0xd8] sm:$0xff]
        %v5794 = vld [vmem:[#allocation3 + $0xe0] sm:$0xff]
        %v5795 = vld [vmem:[#allocation3 + $0xe8] sm:$0xff]
        %v5796 = vld [vmem:[#allocation3 + $0xf0] sm:$0xff]
        %v5797 = vld [vmem:[#allocation3 + $0xf8] sm:$0xff]
        %v5798 = vadd.f32 %v5766, %v5734
        %v5799 = vadd.f32 %v5767, %v5735
        %v5800 = vadd.f32 %v5768, %v5736
        %v5801 = vadd.f32 %v5769, %v5737
        %v5802 = vadd.f32 %v5770, %v5738
        %v5803 = vadd.f32 %v5771, %v5739
        %v5804 = vadd.f32 %v5772, %v5740
        %v5805 = vadd.f32 %v5773, %v5741
        %v5806 = vadd.f32 %v5774, %v5742
        %v5807 = vadd.f32 %v5775, %v5743
        %v5808 = vadd.f32 %v5776, %v5744
        %v5809 = vadd.f32 %v5777, %v5745
        %v5810 = vadd.f32 %v5778, %v5746
        %v5811 = vadd.f32 %v5779, %v5747
        %v5812 = vadd.f32 %v5780, %v5748
        %v5813 = vadd.f32 %v5781, %v5749
        %v5814 = vadd.f32 %v5782, %v5750
        %v5815 = vadd.f32 %v5783, %v5751
        %v5816 = vadd.f32 %v5784, %v5752
        %v5817 = vadd.f32 %v5785, %v5753
        %v5818 = vadd.f32 %v5786, %v5754
        %v5819 = vadd.f32 %v5787, %v5755
        %v5820 = vadd.f32 %v5788, %v5756
        %v5821 = vadd.f32 %v5789, %v5757
        %v5822 = vadd.f32 %v5790, %v5758
        %v5823 = vadd.f32 %v5791, %v5759
        %v5824 = vadd.f32 %v5792, %v5760
        %v5825 = vadd.f32 %v5793, %v5761
        %v5826 = vadd.f32 %v5794, %v5762
        %v5827 = vadd.f32 %v5795, %v5763
        %v5828 = vadd.f32 %v5796, %v5764
        %v5829 = vadd.f32 %v5797, %v5765
        %5830 = vst [vmem:[#allocation3] sm:$0xff] %v5798
        %5831 = vst [vmem:[#allocation3 + $0x8] sm:$0xff] %v5799
        %5832 = vst [vmem:[#allocation3 + $0x10] sm:$0xff] %v5800
        %5833 = vst [vmem:[#allocation3 + $0x18] sm:$0xff] %v5801
        %5834 = vst [vmem:[#allocation3 + $0x20] sm:$0xff] %v5802
        %5835 = vst [vmem:[#allocation3 + $0x28] sm:$0xff] %v5803
        %5836 = vst [vmem:[#allocation3 + $0x30] sm:$0xff] %v5804
        %5837 = vst [vmem:[#allocation3 + $0x38] sm:$0xff] %v5805
        %5838 = vst [vmem:[#allocation3 + $0x40] sm:$0xff] %v5806
        %5839 = vst [vmem:[#allocation3 + $0x48] sm:$0xff] %v5807
        %5840 = vst [vmem:[#allocation3 + $0x50] sm:$0xff] %v5808
        %5841 = vst [vmem:[#allocation3 + $0x58] sm:$0xff] %v5809
        %5842 = vst [vmem:[#allocation3 + $0x60] sm:$0xff] %v5810
        %5843 = vst [vmem:[#allocation3 + $0x68] sm:$0xff] %v5811
        %5844 = vst [vmem:[#allocation3 + $0x70] sm:$0xff] %v5812
        %5845 = vst [vmem:[#allocation3 + $0x78] sm:$0xff] %v5813
        %5846 = vst [vmem:[#allocation3 + $0x80] sm:$0xff] %v5814
        %5847 = vst [vmem:[#allocation3 + $0x88] sm:$0xff] %v5815
        %5848 = vst [vmem:[#allocation3 + $0x90] sm:$0xff] %v5816
        %5849 = vst [vmem:[#allocation3 + $0x98] sm:$0xff] %v5817
        %5850 = vst [vmem:[#allocation3 + $0xa0] sm:$0xff] %v5818
        %5851 = vst [vmem:[#allocation3 + $0xa8] sm:$0xff] %v5819
        %5852 = vst [vmem:[#allocation3 + $0xb0] sm:$0xff] %v5820
        %5853 = vst [vmem:[#allocation3 + $0xb8] sm:$0xff] %v5821
        %5854 = vst [vmem:[#allocation3 + $0xc0] sm:$0xff] %v5822
        %5855 = vst [vmem:[#allocation3 + $0xc8] sm:$0xff] %v5823
        %5856 = vst [vmem:[#allocation3 + $0xd0] sm:$0xff] %v5824
        %5857 = vst [vmem:[#allocation3 + $0xd8] sm:$0xff] %v5825
        %5858 = vst [vmem:[#allocation3 + $0xe0] sm:$0xff] %v5826
        %5859 = vst [vmem:[#allocation3 + $0xe8] sm:$0xff] %v5827
        %5860 = vst [vmem:[#allocation3 + $0xf0] sm:$0xff] %v5828
        %5861 = vst [vmem:[#allocation3 + $0xf8] sm:$0xff] %v5829
        %v5862 = vld [vmem:[#allocation2] sm:$0xff]
        %v5863 = vld [vmem:[#allocation2 + $0x8] sm:$0xff]
        %v5864 = vld [vmem:[#allocation2 + $0x10] sm:$0xff]
        %v5865 = vld [vmem:[#allocation2 + $0x18] sm:$0xff]
        %v5866 = vld [vmem:[#allocation2 + $0x20] sm:$0xff]
        %v5867 = vld [vmem:[#allocation2 + $0x28] sm:$0xff]
        %v5868 = vld [vmem:[#allocation2 + $0x30] sm:$0xff]
        %v5869 = vld [vmem:[#allocation2 + $0x38] sm:$0xff]
        %v5870 = vld [vmem:[#allocation2 + $0x40] sm:$0xff]
        %v5871 = vld [vmem:[#allocation2 + $0x48] sm:$0xff]
        %v5872 = vld [vmem:[#allocation2 + $0x50] sm:$0xff]
        %v5873 = vld [vmem:[#allocation2 + $0x58] sm:$0xff]
        %v5874 = vld [vmem:[#allocation2 + $0x60] sm:$0xff]
        %v5875 = vld [vmem:[#allocation2 + $0x68] sm:$0xff]
        %v5876 = vld [vmem:[#allocation2 + $0x70] sm:$0xff]
        %v5877 = vld [vmem:[#allocation2 + $0x78] sm:$0xff]
        %v5878 = vld [vmem:[#allocation2 + $0x80] sm:$0xff]
        %v5879 = vld [vmem:[#allocation2 + $0x88] sm:$0xff]
        %v5880 = vld [vmem:[#allocation2 + $0x90] sm:$0xff]
        %v5881 = vld [vmem:[#allocation2 + $0x98] sm:$0xff]
        %v5882 = vld [vmem:[#allocation2 + $0xa0] sm:$0xff]
        %v5883 = vld [vmem:[#allocation2 + $0xa8] sm:$0xff]
        %v5884 = vld [vmem:[#allocation2 + $0xb0] sm:$0xff]
        %v5885 = vld [vmem:[#allocation2 + $0xb8] sm:$0xff]
        %v5886 = vld [vmem:[#allocation2 + $0xc0] sm:$0xff]
        %v5887 = vld [vmem:[#allocation2 + $0xc8] sm:$0xff]
        %v5888 = vld [vmem:[#allocation2 + $0xd0] sm:$0xff]
        %v5889 = vld [vmem:[#allocation2 + $0xd8] sm:$0xff]
        %v5890 = vld [vmem:[#allocation2 + $0xe0] sm:$0xff]
        %v5891 = vld [vmem:[#allocation2 + $0xe8] sm:$0xff]
        %v5892 = vld [vmem:[#allocation2 + $0xf0] sm:$0xff]
        %v5893 = vld [vmem:[#allocation2 + $0xf8] sm:$0xff]
        %v5894 = vld [vmem:[#allocation2 + $0x100] sm:$0xff]
        %v5895 = vld [vmem:[#allocation2 + $0x108] sm:$0xff]
        %v5896 = vld [vmem:[#allocation2 + $0x110] sm:$0xff]
        %v5897 = vld [vmem:[#allocation2 + $0x118] sm:$0xff]
        %v5898 = vld [vmem:[#allocation2 + $0x120] sm:$0xff]
        %v5899 = vld [vmem:[#allocation2 + $0x128] sm:$0xff]
        %v5900 = vld [vmem:[#allocation2 + $0x130] sm:$0xff]
        %v5901 = vld [vmem:[#allocation2 + $0x138] sm:$0xff]
        %v5902 = vld [vmem:[#allocation2 + $0x140] sm:$0xff]
        %v5903 = vld [vmem:[#allocation2 + $0x148] sm:$0xff]
        %v5904 = vld [vmem:[#allocation2 + $0x150] sm:$0xff]
        %v5905 = vld [vmem:[#allocation2 + $0x158] sm:$0xff]
        %v5906 = vld [vmem:[#allocation2 + $0x160] sm:$0xff]
        %v5907 = vld [vmem:[#allocation2 + $0x168] sm:$0xff]
        %v5908 = vld [vmem:[#allocation2 + $0x170] sm:$0xff]
        %v5909 = vld [vmem:[#allocation2 + $0x178] sm:$0xff]
        %v5910 = vpack.c.bf16 %v5863, %v5862
        %v5911 = vpack.c.bf16 %v5865, %v5864
        %v5912 = vpack.c.bf16 %v5867, %v5866
        %v5913 = vpack.c.bf16 %v5869, %v5868
        %v5914 = vpack.c.bf16 %v5871, %v5870
        %v5915 = vpack.c.bf16 %v5873, %v5872
        %v5916 = vpack.c.bf16 %v5875, %v5874
        %v5917 = vpack.c.bf16 %v5877, %v5876
        %v5918 = vpack.c.bf16 %v5879, %v5878
        %v5919 = vpack.c.bf16 %v5881, %v5880
        %v5920 = vpack.c.bf16 %v5883, %v5882
        %v5921 = vpack.c.bf16 %v5885, %v5884
        %v5922 = vpack.c.bf16 %v5887, %v5886
        %v5923 = vpack.c.bf16 %v5889, %v5888
        %v5924 = vpack.c.bf16 %v5891, %v5890
        %v5925 = vpack.c.bf16 %v5893, %v5892
        %v5926 = vpack.c.bf16 %v5895, %v5894
        %v5927 = vpack.c.bf16 %v5897, %v5896
        %v5928 = vpack.c.bf16 %v5899, %v5898
        %v5929 = vpack.c.bf16 %v5901, %v5900
        %v5930 = vpack.c.bf16 %v5903, %v5902
        %v5931 = vpack.c.bf16 %v5905, %v5904
        %v5932 = vpack.c.bf16 %v5907, %v5906
        %v5933 = vpack.c.bf16 %v5909, %v5908
        %s5934 = scalar_lea.vmem [#allocation9], 64
        %v5935 = vld [vmem:[%s5934] sm:$0xf]
        %v5936 = vld [vmem:[%s5934 + $0x4] sm:$0xf]
        %v5937 = vld [vmem:[%s5934 + $0x8] sm:$0xf]
        %v5938 = vld [vmem:[%s5934 + $0xc] sm:$0xf]
        %v5939 = vld [vmem:[%s5934 + $0x10] sm:$0xf]
        %v5940 = vld [vmem:[%s5934 + $0x14] sm:$0xf]
        %v5941 = vld [vmem:[%s5934 + $0x18] sm:$0xf]
        %v5942 = vld [vmem:[%s5934 + $0x1c] sm:$0xf]
        %v5943 = vld [vmem:[%s5934 + $0x20] sm:$0xf]
        %v5944 = vld [vmem:[%s5934 + $0x24] sm:$0xf]
        %v5945 = vld [vmem:[%s5934 + $0x28] sm:$0xf]
        %v5946 = vld [vmem:[%s5934 + $0x2c] sm:$0xf]
        %v5947 = vld [vmem:[%s5934 + $0x30] sm:$0xf]
        %v5948 = vld [vmem:[%s5934 + $0x34] sm:$0xf]
        %v5949 = vld [vmem:[%s5934 + $0x38] sm:$0xf]
        %v5950 = vld [vmem:[%s5934 + $0x3c] sm:$0xf]
        %v5951 = vld [vmem:[%s550] sm:$0xff]
        %v5952 = vld [vmem:[%s550 + $0x8] sm:$0xff]
        %v5953 = vld [vmem:[%s550 + $0x10] sm:$0xff]
        %v5954 = vld [vmem:[%s550 + $0x18] sm:$0xff]
        %v5955 = vld [vmem:[%s550 + $0x20] sm:$0xff]
        %v5956 = vld [vmem:[%s550 + $0x28] sm:$0xff]
        %v5957 = vld [vmem:[%s550 + $0x30] sm:$0xff]
        %v5958 = vld [vmem:[%s550 + $0x38] sm:$0xff]
        %v5959 = vld [vmem:[%s550 + $0x40] sm:$0xff]
        %v5960 = vld [vmem:[%s550 + $0x48] sm:$0xff]
        %v5961 = vld [vmem:[%s550 + $0x50] sm:$0xff]
        %v5962 = vld [vmem:[%s550 + $0x58] sm:$0xff]
        %v5963 = vld [vmem:[%s550 + $0x60] sm:$0xff]
        %v5964 = vld [vmem:[%s550 + $0x68] sm:$0xff]
        %v5965 = vld [vmem:[%s550 + $0x70] sm:$0xff]
        %v5966 = vld [vmem:[%s550 + $0x78] sm:$0xff]
        %v5967 = vld [vmem:[%s550 + $0x80] sm:$0xff]
        %v5968 = vld [vmem:[%s550 + $0x88] sm:$0xff]
        %v5969 = vld [vmem:[%s550 + $0x90] sm:$0xff]
        %v5970 = vld [vmem:[%s550 + $0x98] sm:$0xff]
        %v5971 = vld [vmem:[%s550 + $0xa0] sm:$0xff]
        %v5972 = vld [vmem:[%s550 + $0xa8] sm:$0xff]
        %v5973 = vld [vmem:[%s550 + $0xb0] sm:$0xff]
        %v5974 = vld [vmem:[%s550 + $0xb8] sm:$0xff]
        %v5975 = vld [vmem:[%s550 + $0xc0] sm:$0xff]
        %v5976 = vld [vmem:[%s550 + $0xc8] sm:$0xff]
        %v5977 = vld [vmem:[%s550 + $0xd0] sm:$0xff]
        %v5978 = vld [vmem:[%s550 + $0xd8] sm:$0xff]
        %v5979 = vld [vmem:[%s550 + $0xe0] sm:$0xff]
        %v5980 = vld [vmem:[%s550 + $0xe8] sm:$0xff]
        %v5981 = vld [vmem:[%s550 + $0xf0] sm:$0xff]
        %v5982 = vld [vmem:[%s550 + $0xf8] sm:$0xff]
        %v5983 = vld [vmem:[%s550 + $0x100] sm:$0xff]
        %v5984 = vld [vmem:[%s550 + $0x108] sm:$0xff]
        %v5985 = vld [vmem:[%s550 + $0x110] sm:$0xff]
        %v5986 = vld [vmem:[%s550 + $0x118] sm:$0xff]
        %v5987 = vld [vmem:[%s550 + $0x120] sm:$0xff]
        %v5988 = vld [vmem:[%s550 + $0x128] sm:$0xff]
        %v5989 = vld [vmem:[%s550 + $0x130] sm:$0xff]
        %v5990 = vld [vmem:[%s550 + $0x138] sm:$0xff]
        %v5991 = vld [vmem:[%s550 + $0x140] sm:$0xff]
        %v5992 = vld [vmem:[%s550 + $0x148] sm:$0xff]
        %v5993 = vld [vmem:[%s550 + $0x150] sm:$0xff]
        %v5994 = vld [vmem:[%s550 + $0x158] sm:$0xff]
        %v5995 = vld [vmem:[%s550 + $0x160] sm:$0xff]
        %v5996 = vld [vmem:[%s550 + $0x168] sm:$0xff]
        %v5997 = vld [vmem:[%s550 + $0x170] sm:$0xff]
        %v5998 = vld [vmem:[%s550 + $0x178] sm:$0xff]
        %v5999 = vpack.c.bf16 %v5952, %v5951
        %v6000 = vpack.c.bf16 %v5954, %v5953
        %v6001 = vpack.c.bf16 %v5956, %v5955
        %v6002 = vpack.c.bf16 %v5958, %v5957
        %v6003 = vpack.c.bf16 %v5960, %v5959
        %v6004 = vpack.c.bf16 %v5962, %v5961
        %v6005 = vpack.c.bf16 %v5964, %v5963
        %v6006 = vpack.c.bf16 %v5966, %v5965
        %v6007 = vpack.c.bf16 %v5968, %v5967
        %v6008 = vpack.c.bf16 %v5970, %v5969
        %v6009 = vpack.c.bf16 %v5972, %v5971
        %v6010 = vpack.c.bf16 %v5974, %v5973
        %v6011 = vpack.c.bf16 %v5976, %v5975
        %v6012 = vpack.c.bf16 %v5978, %v5977
        %v6013 = vpack.c.bf16 %v5980, %v5979
        %v6014 = vpack.c.bf16 %v5982, %v5981
        %v6015 = vpack.c.bf16 %v5984, %v5983
        %v6016 = vpack.c.bf16 %v5986, %v5985
        %v6017 = vpack.c.bf16 %v5988, %v5987
        %v6018 = vpack.c.bf16 %v5990, %v5989
        %v6019 = vpack.c.bf16 %v5992, %v5991
        %v6020 = vpack.c.bf16 %v5994, %v5993
        %v6021 = vpack.c.bf16 %v5996, %v5995
        %v6022 = vpack.c.bf16 %v5998, %v5997
        %s6023 = scalar_lea.vmem [#allocation9], 256
        %v6024 = vld [vmem:[%s6023] sm:$0xf]
        %v6025 = vld [vmem:[%s6023 + $0x4] sm:$0xf]
        %v6026 = vld [vmem:[%s6023 + $0x8] sm:$0xf]
        %v6027 = vld [vmem:[%s6023 + $0xc] sm:$0xf]
        %v6028 = vld [vmem:[%s6023 + $0x10] sm:$0xf]
        %v6029 = vld [vmem:[%s6023 + $0x14] sm:$0xf]
        %v6030 = vld [vmem:[%s6023 + $0x18] sm:$0xf]
        %v6031 = vld [vmem:[%s6023 + $0x1c] sm:$0xf]
        %v6032 = vld [vmem:[%s6023 + $0x20] sm:$0xf]
        %v6033 = vld [vmem:[%s6023 + $0x24] sm:$0xf]
        %v6034 = vld [vmem:[%s6023 + $0x28] sm:$0xf]
        %v6035 = vld [vmem:[%s6023 + $0x2c] sm:$0xf]
        %v6036 = vld [vmem:[%s6023 + $0x30] sm:$0xf]
        %v6037 = vld [vmem:[%s6023 + $0x34] sm:$0xf]
        %v6038 = vld [vmem:[%s6023 + $0x38] sm:$0xf]
        %v6039 = vld [vmem:[%s6023 + $0x3c] sm:$0xf]
        %v6056 = vunpack.c.l.b16 %v6024
        %v6057 = vunpack.c.l.b16 %v6025
        %v6058 = vunpack.c.l.b16 %v6026
        %v6059 = vunpack.c.l.b16 %v6027
        %v6060 = vunpack.c.l.b16 %v6028
        %v6061 = vunpack.c.l.b16 %v6029
        %v6062 = vunpack.c.l.b16 %v6030
        %v6063 = vunpack.c.l.b16 %v6031
        %v6064 = vunpack.c.l.b16 %v6032
        %v6065 = vunpack.c.l.b16 %v6033
        %v6066 = vunpack.c.l.b16 %v6034
        %v6067 = vunpack.c.l.b16 %v6035
        %v6068 = vunpack.c.l.b16 %v6036
        %v6069 = vunpack.c.l.b16 %v6037
        %v6070 = vunpack.c.l.b16 %v6038
        %v6071 = vunpack.c.l.b16 %v6039
        %v6072 = vpack.c.b16 %v6057, %v6056
        %v6073 = vpack.c.b16 %v6059, %v6058
        %v6074 = vpack.c.b16 %v6061, %v6060
        %v6075 = vpack.c.b16 %v6063, %v6062
        %v6076 = vpack.c.b16 %v6065, %v6064
        %v6077 = vpack.c.b16 %v6067, %v6066
        %v6078 = vpack.c.b16 %v6069, %v6068
        %v6079 = vpack.c.b16 %v6071, %v6070
        %6088 = vmatprep.subr.bf16.mxu0 0
        %6089 = vmatpush1.bf16.msra.mxu0 %v6079
        %6090 = vmatprep.subr.bf16.mxu0 0
        %6091 = vmatpush1.bf16.msra.mxu0 %v6078
        %6092 = vmatprep.subr.bf16.mxu0 0
        %6093 = vmatpush1.bf16.msra.mxu0 %v6077
        %6094 = vmatprep.subr.bf16.mxu0 0
        %6095 = vmatpush1.bf16.msra.mxu0 %v6076
        %6096 = vmatprep.subr.bf16.mxu0 0
        %6097 = vmatpush1.bf16.msra.mxu0 %v6075
        %6098 = vmatprep.subr.bf16.mxu0 0
        %6099 = vmatpush1.bf16.msra.mxu0 %v6074
        %6100 = vmatprep.subr.bf16.mxu0 0
        %6101 = vmatpush1.bf16.msra.mxu0 %v6073
        %6102 = vmatprep.subr.bf16.mxu0 0
        %6103 = vmatpush1.bf16.msra.mxu0 %v6072
        %6104 = vmatprep.subr.bf16.mxu0 0
        %6105 = vmatpush2.bf16.msra.mxu0 0
        %6106 = vmatprep.subr.bf16.mxu0 0
        %6107 = vmatpush2.bf16.msra.mxu0 0
        %6108 = vmatprep.subr.bf16.mxu0 0
        %6109 = vmatpush2.bf16.msra.mxu0 0
        %6110 = vmatprep.subr.bf16.mxu0 0
        %6111 = vmatpush2.bf16.msra.mxu0 0
        %6112 = vmatprep.subr.bf16.mxu0 0
        %6113 = vmatpush2.bf16.msra.mxu0 0
        %6114 = vmatprep.subr.bf16.mxu0 0
        %6115 = vmatpush2.bf16.msra.mxu0 0
        %6116 = vmatprep.subr.bf16.mxu0 0
        %6117 = vmatpush2.bf16.msra.mxu0 0
        %6118 = vmatprep.subr.bf16.mxu0 0
        %6119 = vmatpush2.bf16.msra.mxu0 0
        %6120 = vmatprep.mubr.bf16.mxu0 0
        %6121 = vmatmul.mubr.bf16.gmra.mxu0 %v5999
        %v6122 = vpop.f32.mrf.mxu0
        %v6123 = vadd.f32 0.0, %v6122
        %v6124 = vpop.f32.mrf.mxu0
        %v6125 = vpop.f32.mrf.mxu0
        %v6126 = vadd.f32 0.0, %v6125
        %v6127 = vpop.f32.mrf.mxu0
        %6128 = vmatprep.mubr.bf16.mxu0 0
        %6129 = vmatmul.mubr.bf16.gmra.mxu0 %v6000
        %v6130 = vpop.f32.mrf.mxu0
        %v6131 = vadd.f32 0.0, %v6130
        %v6132 = vpop.f32.mrf.mxu0
        %v6133 = vpop.f32.mrf.mxu0
        %v6134 = vadd.f32 0.0, %v6133
        %v6135 = vpop.f32.mrf.mxu0
        %6136 = vmatprep.mubr.bf16.mxu0 0
        %6137 = vmatmul.mubr.bf16.gmra.mxu0 %v6001
        %v6138 = vpop.f32.mrf.mxu0
        %v6139 = vadd.f32 0.0, %v6138
        %v6140 = vpop.f32.mrf.mxu0
        %v6141 = vpop.f32.mrf.mxu0
        %v6142 = vadd.f32 0.0, %v6141
        %v6143 = vpop.f32.mrf.mxu0
        %6144 = vmatprep.mubr.bf16.mxu0 0
        %6145 = vmatmul.mubr.bf16.gmra.mxu0 %v6002
        %v6146 = vpop.f32.mrf.mxu0
        %v6147 = vadd.f32 0.0, %v6146
        %v6148 = vpop.f32.mrf.mxu0
        %v6149 = vpop.f32.mrf.mxu0
        %v6150 = vadd.f32 0.0, %v6149
        %v6151 = vpop.f32.mrf.mxu0
        %6152 = vmatprep.mubr.bf16.mxu0 0
        %6153 = vmatmul.mubr.bf16.gmra.mxu0 %v6003
        %v6154 = vpop.f32.mrf.mxu0
        %v6155 = vadd.f32 0.0, %v6154
        %v6156 = vpop.f32.mrf.mxu0
        %v6157 = vpop.f32.mrf.mxu0
        %v6158 = vadd.f32 0.0, %v6157
        %v6159 = vpop.f32.mrf.mxu0
        %6160 = vmatprep.mubr.bf16.mxu0 0
        %6161 = vmatmul.mubr.bf16.gmra.mxu0 %v6004
        %v6162 = vpop.f32.mrf.mxu0
        %v6163 = vadd.f32 0.0, %v6162
        %v6164 = vpop.f32.mrf.mxu0
        %v6165 = vpop.f32.mrf.mxu0
        %v6166 = vadd.f32 0.0, %v6165
        %v6167 = vpop.f32.mrf.mxu0
        %6168 = vmatprep.mubr.bf16.mxu0 0
        %6169 = vmatmul.mubr.bf16.gmra.mxu0 %v6005
        %v6170 = vpop.f32.mrf.mxu0
        %v6171 = vadd.f32 0.0, %v6170
        %v6172 = vpop.f32.mrf.mxu0
        %v6173 = vpop.f32.mrf.mxu0
        %v6174 = vadd.f32 0.0, %v6173
        %v6175 = vpop.f32.mrf.mxu0
        %6176 = vmatprep.mubr.bf16.mxu0 0
        %6177 = vmatmul.mubr.bf16.gmra.mxu0 %v6006
        %v6178 = vpop.f32.mrf.mxu0
        %v6179 = vadd.f32 0.0, %v6178
        %v6180 = vpop.f32.mrf.mxu0
        %v6181 = vpop.f32.mrf.mxu0
        %v6182 = vadd.f32 0.0, %v6181
        %v6183 = vpop.f32.mrf.mxu0
        %6184 = vmatprep.mubr.bf16.mxu0 0
        %6185 = vmatmul.mubr.bf16.gmra.mxu0 %v6007
        %v6186 = vpop.f32.mrf.mxu0
        %v6187 = vadd.f32 0.0, %v6186
        %v6188 = vpop.f32.mrf.mxu0
        %v6189 = vpop.f32.mrf.mxu0
        %v6190 = vadd.f32 0.0, %v6189
        %v6191 = vpop.f32.mrf.mxu0
        %6192 = vmatprep.mubr.bf16.mxu0 0
        %6193 = vmatmul.mubr.bf16.gmra.mxu0 %v6008
        %v6194 = vpop.f32.mrf.mxu0
        %v6195 = vadd.f32 0.0, %v6194
        %v6196 = vpop.f32.mrf.mxu0
        %v6197 = vpop.f32.mrf.mxu0
        %v6198 = vadd.f32 0.0, %v6197
        %v6199 = vpop.f32.mrf.mxu0
        %6200 = vmatprep.mubr.bf16.mxu0 0
        %6201 = vmatmul.mubr.bf16.gmra.mxu0 %v6009
        %v6202 = vpop.f32.mrf.mxu0
        %v6203 = vadd.f32 0.0, %v6202
        %v6204 = vpop.f32.mrf.mxu0
        %v6205 = vpop.f32.mrf.mxu0
        %v6206 = vadd.f32 0.0, %v6205
        %v6207 = vpop.f32.mrf.mxu0
        %6208 = vmatprep.mubr.bf16.mxu0 0
        %6209 = vmatmul.mubr.bf16.gmra.mxu0 %v6010
        %v6210 = vpop.f32.mrf.mxu0
        %v6211 = vadd.f32 0.0, %v6210
        %v6212 = vpop.f32.mrf.mxu0
        %v6213 = vpop.f32.mrf.mxu0
        %v6214 = vadd.f32 0.0, %v6213
        %v6215 = vpop.f32.mrf.mxu0
        %6216 = vmatprep.mubr.bf16.mxu0 0
        %6217 = vmatmul.mubr.bf16.gmra.mxu0 %v6011
        %v6218 = vpop.f32.mrf.mxu0
        %v6219 = vadd.f32 0.0, %v6218
        %v6220 = vpop.f32.mrf.mxu0
        %v6221 = vpop.f32.mrf.mxu0
        %v6222 = vadd.f32 0.0, %v6221
        %v6223 = vpop.f32.mrf.mxu0
        %6224 = vmatprep.mubr.bf16.mxu0 0
        %6225 = vmatmul.mubr.bf16.gmra.mxu0 %v6012
        %v6226 = vpop.f32.mrf.mxu0
        %v6227 = vadd.f32 0.0, %v6226
        %v6228 = vpop.f32.mrf.mxu0
        %v6229 = vpop.f32.mrf.mxu0
        %v6230 = vadd.f32 0.0, %v6229
        %v6231 = vpop.f32.mrf.mxu0
        %6232 = vmatprep.mubr.bf16.mxu0 0
        %6233 = vmatmul.mubr.bf16.gmra.mxu0 %v6013
        %v6234 = vpop.f32.mrf.mxu0
        %v6235 = vadd.f32 0.0, %v6234
        %v6236 = vpop.f32.mrf.mxu0
        %v6237 = vpop.f32.mrf.mxu0
        %v6238 = vadd.f32 0.0, %v6237
        %v6239 = vpop.f32.mrf.mxu0
        %6240 = vmatprep.mubr.bf16.mxu0 0
        %6241 = vmatmul.mubr.bf16.gmra.mxu0 %v6014
        %v6242 = vpop.f32.mrf.mxu0
        %v6243 = vadd.f32 0.0, %v6242
        %v6244 = vpop.f32.mrf.mxu0
        %v6245 = vpop.f32.mrf.mxu0
        %v6246 = vadd.f32 0.0, %v6245
        %v6247 = vpop.f32.mrf.mxu0
        %6248 = vmatprep.mubr.bf16.mxu0 0
        %6249 = vmatmul.mubr.bf16.gmra.mxu0 %v6015
        %v6250 = vpop.f32.mrf.mxu0
        %v6251 = vadd.f32 0.0, %v6250
        %v6252 = vpop.f32.mrf.mxu0
        %v6253 = vpop.f32.mrf.mxu0
        %v6254 = vadd.f32 0.0, %v6253
        %v6255 = vpop.f32.mrf.mxu0
        %6256 = vmatprep.mubr.bf16.mxu0 0
        %6257 = vmatmul.mubr.bf16.gmra.mxu0 %v6016
        %v6258 = vpop.f32.mrf.mxu0
        %v6259 = vadd.f32 0.0, %v6258
        %v6260 = vpop.f32.mrf.mxu0
        %v6261 = vpop.f32.mrf.mxu0
        %v6262 = vadd.f32 0.0, %v6261
        %v6263 = vpop.f32.mrf.mxu0
        %6264 = vmatprep.mubr.bf16.mxu0 0
        %6265 = vmatmul.mubr.bf16.gmra.mxu0 %v6017
        %v6266 = vpop.f32.mrf.mxu0
        %v6267 = vadd.f32 0.0, %v6266
        %v6268 = vpop.f32.mrf.mxu0
        %v6269 = vpop.f32.mrf.mxu0
        %v6270 = vadd.f32 0.0, %v6269
        %v6271 = vpop.f32.mrf.mxu0
        %6272 = vmatprep.mubr.bf16.mxu0 0
        %6273 = vmatmul.mubr.bf16.gmra.mxu0 %v6018
        %v6274 = vpop.f32.mrf.mxu0
        %v6275 = vadd.f32 0.0, %v6274
        %v6276 = vpop.f32.mrf.mxu0
        %v6277 = vpop.f32.mrf.mxu0
        %v6278 = vadd.f32 0.0, %v6277
        %v6279 = vpop.f32.mrf.mxu0
        %6280 = vmatprep.mubr.bf16.mxu0 0
        %6281 = vmatmul.mubr.bf16.gmra.mxu0 %v6019
        %v6282 = vpop.f32.mrf.mxu0
        %v6283 = vadd.f32 0.0, %v6282
        %v6284 = vpop.f32.mrf.mxu0
        %v6285 = vpop.f32.mrf.mxu0
        %v6286 = vadd.f32 0.0, %v6285
        %v6287 = vpop.f32.mrf.mxu0
        %6288 = vmatprep.mubr.bf16.mxu0 0
        %6289 = vmatmul.mubr.bf16.gmra.mxu0 %v6020
        %v6290 = vpop.f32.mrf.mxu0
        %v6291 = vadd.f32 0.0, %v6290
        %v6292 = vpop.f32.mrf.mxu0
        %v6293 = vpop.f32.mrf.mxu0
        %v6294 = vadd.f32 0.0, %v6293
        %v6295 = vpop.f32.mrf.mxu0
        %6296 = vmatprep.mubr.bf16.mxu0 0
        %6297 = vmatmul.mubr.bf16.gmra.mxu0 %v6021
        %v6298 = vpop.f32.mrf.mxu0
        %v6299 = vadd.f32 0.0, %v6298
        %v6300 = vpop.f32.mrf.mxu0
        %v6301 = vpop.f32.mrf.mxu0
        %v6302 = vadd.f32 0.0, %v6301
        %v6303 = vpop.f32.mrf.mxu0
        %6304 = vmatprep.mubr.bf16.mxu0 0
        %6305 = vmatmul.mubr.bf16.gmra.mxu0 %v6022
        %v6306 = vpop.f32.mrf.mxu0
        %v6307 = vadd.f32 0.0, %v6306
        %v6308 = vpop.f32.mrf.mxu0
        %v6309 = vpop.f32.mrf.mxu0
        %v6310 = vadd.f32 0.0, %v6309
        %v6311 = vpop.f32.mrf.mxu0
        %6312 = vdwg.mxu0
        %v6329 = vunpack.c.l.b16 %v5935
        %v6330 = vunpack.c.l.b16 %v5936
        %v6331 = vunpack.c.l.b16 %v5937
        %v6332 = vunpack.c.l.b16 %v5938
        %v6333 = vunpack.c.l.b16 %v5939
        %v6334 = vunpack.c.l.b16 %v5940
        %v6335 = vunpack.c.l.b16 %v5941
        %v6336 = vunpack.c.l.b16 %v5942
        %v6337 = vunpack.c.l.b16 %v5943
        %v6338 = vunpack.c.l.b16 %v5944
        %v6339 = vunpack.c.l.b16 %v5945
        %v6340 = vunpack.c.l.b16 %v5946
        %v6341 = vunpack.c.l.b16 %v5947
        %v6342 = vunpack.c.l.b16 %v5948
        %v6343 = vunpack.c.l.b16 %v5949
        %v6344 = vunpack.c.l.b16 %v5950
        %v6345 = vpack.c.b16 %v6330, %v6329
        %v6346 = vpack.c.b16 %v6332, %v6331
        %v6347 = vpack.c.b16 %v6334, %v6333
        %v6348 = vpack.c.b16 %v6336, %v6335
        %v6349 = vpack.c.b16 %v6338, %v6337
        %v6350 = vpack.c.b16 %v6340, %v6339
        %v6351 = vpack.c.b16 %v6342, %v6341
        %v6352 = vpack.c.b16 %v6344, %v6343
        %6361 = vmatprep.subr.bf16.mxu0 0
        %6362 = vmatpush1.bf16.msra.mxu0 %v6352
        %6363 = vmatprep.subr.bf16.mxu0 0
        %6364 = vmatpush1.bf16.msra.mxu0 %v6351
        %6365 = vmatprep.subr.bf16.mxu0 0
        %6366 = vmatpush1.bf16.msra.mxu0 %v6350
        %6367 = vmatprep.subr.bf16.mxu0 0
        %6368 = vmatpush1.bf16.msra.mxu0 %v6349
        %6369 = vmatprep.subr.bf16.mxu0 0
        %6370 = vmatpush1.bf16.msra.mxu0 %v6348
        %6371 = vmatprep.subr.bf16.mxu0 0
        %6372 = vmatpush1.bf16.msra.mxu0 %v6347
        %6373 = vmatprep.subr.bf16.mxu0 0
        %6374 = vmatpush1.bf16.msra.mxu0 %v6346
        %6375 = vmatprep.subr.bf16.mxu0 0
        %6376 = vmatpush1.bf16.msra.mxu0 %v6345
        %6377 = vmatprep.subr.bf16.mxu0 0
        %6378 = vmatpush2.bf16.msra.mxu0 0
        %6379 = vmatprep.subr.bf16.mxu0 0
        %6380 = vmatpush2.bf16.msra.mxu0 0
        %6381 = vmatprep.subr.bf16.mxu0 0
        %6382 = vmatpush2.bf16.msra.mxu0 0
        %6383 = vmatprep.subr.bf16.mxu0 0
        %6384 = vmatpush2.bf16.msra.mxu0 0
        %6385 = vmatprep.subr.bf16.mxu0 0
        %6386 = vmatpush2.bf16.msra.mxu0 0
        %6387 = vmatprep.subr.bf16.mxu0 0
        %6388 = vmatpush2.bf16.msra.mxu0 0
        %6389 = vmatprep.subr.bf16.mxu0 0
        %6390 = vmatpush2.bf16.msra.mxu0 0
        %6391 = vmatprep.subr.bf16.mxu0 0
        %6392 = vmatpush2.bf16.msra.mxu0 0
        %6393 = vmatprep.mubr.bf16.mxu0 0
        %6394 = vmatmul.mubr.bf16.gmra.mxu0 %v5910
        %v6395 = vpop.f32.mrf.mxu0
        %v6396 = vadd.f32 %v6123, %v6395
        %v6397 = vpop.f32.mrf.mxu0
        %v6398 = vpop.f32.mrf.mxu0
        %v6399 = vadd.f32 %v6126, %v6398
        %v6400 = vpop.f32.mrf.mxu0
        %6401 = vmatprep.mubr.bf16.mxu0 0
        %6402 = vmatmul.mubr.bf16.gmra.mxu0 %v5911
        %v6403 = vpop.f32.mrf.mxu0
        %v6404 = vadd.f32 %v6131, %v6403
        %v6405 = vpop.f32.mrf.mxu0
        %v6406 = vpop.f32.mrf.mxu0
        %v6407 = vadd.f32 %v6134, %v6406
        %v6408 = vpop.f32.mrf.mxu0
        %6409 = vmatprep.mubr.bf16.mxu0 0
        %6410 = vmatmul.mubr.bf16.gmra.mxu0 %v5912
        %v6411 = vpop.f32.mrf.mxu0
        %v6412 = vadd.f32 %v6139, %v6411
        %v6413 = vpop.f32.mrf.mxu0
        %v6414 = vpop.f32.mrf.mxu0
        %v6415 = vadd.f32 %v6142, %v6414
        %v6416 = vpop.f32.mrf.mxu0
        %6417 = vmatprep.mubr.bf16.mxu0 0
        %6418 = vmatmul.mubr.bf16.gmra.mxu0 %v5913
        %v6419 = vpop.f32.mrf.mxu0
        %v6420 = vadd.f32 %v6147, %v6419
        %v6421 = vpop.f32.mrf.mxu0
        %v6422 = vpop.f32.mrf.mxu0
        %v6423 = vadd.f32 %v6150, %v6422
        %v6424 = vpop.f32.mrf.mxu0
        %6425 = vmatprep.mubr.bf16.mxu0 0
        %6426 = vmatmul.mubr.bf16.gmra.mxu0 %v5914
        %v6427 = vpop.f32.mrf.mxu0
        %v6428 = vadd.f32 %v6155, %v6427
        %v6429 = vpop.f32.mrf.mxu0
        %v6430 = vpop.f32.mrf.mxu0
        %v6431 = vadd.f32 %v6158, %v6430
        %v6432 = vpop.f32.mrf.mxu0
        %6433 = vmatprep.mubr.bf16.mxu0 0
        %6434 = vmatmul.mubr.bf16.gmra.mxu0 %v5915
        %v6435 = vpop.f32.mrf.mxu0
        %v6436 = vadd.f32 %v6163, %v6435
        %v6437 = vpop.f32.mrf.mxu0
        %v6438 = vpop.f32.mrf.mxu0
        %v6439 = vadd.f32 %v6166, %v6438
        %v6440 = vpop.f32.mrf.mxu0
        %6441 = vmatprep.mubr.bf16.mxu0 0
        %6442 = vmatmul.mubr.bf16.gmra.mxu0 %v5916
        %v6443 = vpop.f32.mrf.mxu0
        %v6444 = vadd.f32 %v6171, %v6443
        %v6445 = vpop.f32.mrf.mxu0
        %v6446 = vpop.f32.mrf.mxu0
        %v6447 = vadd.f32 %v6174, %v6446
        %v6448 = vpop.f32.mrf.mxu0
        %6449 = vmatprep.mubr.bf16.mxu0 0
        %6450 = vmatmul.mubr.bf16.gmra.mxu0 %v5917
        %v6451 = vpop.f32.mrf.mxu0
        %v6452 = vadd.f32 %v6179, %v6451
        %v6453 = vpop.f32.mrf.mxu0
        %v6454 = vpop.f32.mrf.mxu0
        %v6455 = vadd.f32 %v6182, %v6454
        %v6456 = vpop.f32.mrf.mxu0
        %6457 = vmatprep.mubr.bf16.mxu0 0
        %6458 = vmatmul.mubr.bf16.gmra.mxu0 %v5918
        %v6459 = vpop.f32.mrf.mxu0
        %v6460 = vadd.f32 %v6187, %v6459
        %v6461 = vpop.f32.mrf.mxu0
        %v6462 = vpop.f32.mrf.mxu0
        %v6463 = vadd.f32 %v6190, %v6462
        %v6464 = vpop.f32.mrf.mxu0
        %6465 = vmatprep.mubr.bf16.mxu0 0
        %6466 = vmatmul.mubr.bf16.gmra.mxu0 %v5919
        %v6467 = vpop.f32.mrf.mxu0
        %v6468 = vadd.f32 %v6195, %v6467
        %v6469 = vpop.f32.mrf.mxu0
        %v6470 = vpop.f32.mrf.mxu0
        %v6471 = vadd.f32 %v6198, %v6470
        %v6472 = vpop.f32.mrf.mxu0
        %6473 = vmatprep.mubr.bf16.mxu0 0
        %6474 = vmatmul.mubr.bf16.gmra.mxu0 %v5920
        %v6475 = vpop.f32.mrf.mxu0
        %v6476 = vadd.f32 %v6203, %v6475
        %v6477 = vpop.f32.mrf.mxu0
        %v6478 = vpop.f32.mrf.mxu0
        %v6479 = vadd.f32 %v6206, %v6478
        %v6480 = vpop.f32.mrf.mxu0
        %6481 = vmatprep.mubr.bf16.mxu0 0
        %6482 = vmatmul.mubr.bf16.gmra.mxu0 %v5921
        %v6483 = vpop.f32.mrf.mxu0
        %v6484 = vadd.f32 %v6211, %v6483
        %v6485 = vpop.f32.mrf.mxu0
        %v6486 = vpop.f32.mrf.mxu0
        %v6487 = vadd.f32 %v6214, %v6486
        %v6488 = vpop.f32.mrf.mxu0
        %6489 = vmatprep.mubr.bf16.mxu0 0
        %6490 = vmatmul.mubr.bf16.gmra.mxu0 %v5922
        %v6491 = vpop.f32.mrf.mxu0
        %v6492 = vadd.f32 %v6219, %v6491
        %v6493 = vpop.f32.mrf.mxu0
        %v6494 = vpop.f32.mrf.mxu0
        %v6495 = vadd.f32 %v6222, %v6494
        %v6496 = vpop.f32.mrf.mxu0
        %6497 = vmatprep.mubr.bf16.mxu0 0
        %6498 = vmatmul.mubr.bf16.gmra.mxu0 %v5923
        %v6499 = vpop.f32.mrf.mxu0
        %v6500 = vadd.f32 %v6227, %v6499
        %v6501 = vpop.f32.mrf.mxu0
        %v6502 = vpop.f32.mrf.mxu0
        %v6503 = vadd.f32 %v6230, %v6502
        %v6504 = vpop.f32.mrf.mxu0
        %6505 = vmatprep.mubr.bf16.mxu0 0
        %6506 = vmatmul.mubr.bf16.gmra.mxu0 %v5924
        %v6507 = vpop.f32.mrf.mxu0
        %v6508 = vadd.f32 %v6235, %v6507
        %v6509 = vpop.f32.mrf.mxu0
        %v6510 = vpop.f32.mrf.mxu0
        %v6511 = vadd.f32 %v6238, %v6510
        %v6512 = vpop.f32.mrf.mxu0
        %6513 = vmatprep.mubr.bf16.mxu0 0
        %6514 = vmatmul.mubr.bf16.gmra.mxu0 %v5925
        %v6515 = vpop.f32.mrf.mxu0
        %v6516 = vadd.f32 %v6243, %v6515
        %v6517 = vpop.f32.mrf.mxu0
        %v6518 = vpop.f32.mrf.mxu0
        %v6519 = vadd.f32 %v6246, %v6518
        %v6520 = vpop.f32.mrf.mxu0
        %6521 = vmatprep.mubr.bf16.mxu0 0
        %6522 = vmatmul.mubr.bf16.gmra.mxu0 %v5926
        %v6523 = vpop.f32.mrf.mxu0
        %v6524 = vadd.f32 %v6251, %v6523
        %v6525 = vpop.f32.mrf.mxu0
        %v6526 = vpop.f32.mrf.mxu0
        %v6527 = vadd.f32 %v6254, %v6526
        %v6528 = vpop.f32.mrf.mxu0
        %6529 = vmatprep.mubr.bf16.mxu0 0
        %6530 = vmatmul.mubr.bf16.gmra.mxu0 %v5927
        %v6531 = vpop.f32.mrf.mxu0
        %v6532 = vadd.f32 %v6259, %v6531
        %v6533 = vpop.f32.mrf.mxu0
        %v6534 = vpop.f32.mrf.mxu0
        %v6535 = vadd.f32 %v6262, %v6534
        %v6536 = vpop.f32.mrf.mxu0
        %6537 = vmatprep.mubr.bf16.mxu0 0
        %6538 = vmatmul.mubr.bf16.gmra.mxu0 %v5928
        %v6539 = vpop.f32.mrf.mxu0
        %v6540 = vadd.f32 %v6267, %v6539
        %v6541 = vpop.f32.mrf.mxu0
        %v6542 = vpop.f32.mrf.mxu0
        %v6543 = vadd.f32 %v6270, %v6542
        %v6544 = vpop.f32.mrf.mxu0
        %6545 = vmatprep.mubr.bf16.mxu0 0
        %6546 = vmatmul.mubr.bf16.gmra.mxu0 %v5929
        %v6547 = vpop.f32.mrf.mxu0
        %v6548 = vadd.f32 %v6275, %v6547
        %v6549 = vpop.f32.mrf.mxu0
        %v6550 = vpop.f32.mrf.mxu0
        %v6551 = vadd.f32 %v6278, %v6550
        %v6552 = vpop.f32.mrf.mxu0
        %6553 = vmatprep.mubr.bf16.mxu0 0
        %6554 = vmatmul.mubr.bf16.gmra.mxu0 %v5930
        %v6555 = vpop.f32.mrf.mxu0
        %v6556 = vadd.f32 %v6283, %v6555
        %v6557 = vpop.f32.mrf.mxu0
        %v6558 = vpop.f32.mrf.mxu0
        %v6559 = vadd.f32 %v6286, %v6558
        %v6560 = vpop.f32.mrf.mxu0
        %6561 = vmatprep.mubr.bf16.mxu0 0
        %6562 = vmatmul.mubr.bf16.gmra.mxu0 %v5931
        %v6563 = vpop.f32.mrf.mxu0
        %v6564 = vadd.f32 %v6291, %v6563
        %v6565 = vpop.f32.mrf.mxu0
        %v6566 = vpop.f32.mrf.mxu0
        %v6567 = vadd.f32 %v6294, %v6566
        %v6568 = vpop.f32.mrf.mxu0
        %6569 = vmatprep.mubr.bf16.mxu0 0
        %6570 = vmatmul.mubr.bf16.gmra.mxu0 %v5932
        %v6571 = vpop.f32.mrf.mxu0
        %v6572 = vadd.f32 %v6299, %v6571
        %v6573 = vpop.f32.mrf.mxu0
        %v6574 = vpop.f32.mrf.mxu0
        %v6575 = vadd.f32 %v6302, %v6574
        %v6576 = vpop.f32.mrf.mxu0
        %6577 = vmatprep.mubr.bf16.mxu0 0
        %6578 = vmatmul.mubr.bf16.gmra.mxu0 %v5933
        %v6579 = vpop.f32.mrf.mxu0
        %v6580 = vadd.f32 %v6307, %v6579
        %v6581 = vpop.f32.mrf.mxu0
        %v6582 = vpop.f32.mrf.mxu0
        %v6583 = vadd.f32 %v6310, %v6582
        %v6584 = vpop.f32.mrf.mxu0
        %6585 = vdwg.mxu0
        %v6586 = vld [vmem:[%s1312] sm:$0xff]
        %v6587 = vld [vmem:[%s1312 + $0x8] sm:$0xff]
        %v6588 = vld [vmem:[%s1312 + $0x10] sm:$0xff]
        %v6589 = vld [vmem:[%s1312 + $0x18] sm:$0xff]
        %v6590 = vld [vmem:[%s1312 + $0x20] sm:$0xff]
        %v6591 = vld [vmem:[%s1312 + $0x28] sm:$0xff]
        %v6592 = vld [vmem:[%s1312 + $0x30] sm:$0xff]
        %v6593 = vld [vmem:[%s1312 + $0x38] sm:$0xff]
        %v6594 = vld [vmem:[%s1312 + $0x40] sm:$0xff]
        %v6595 = vld [vmem:[%s1312 + $0x48] sm:$0xff]
        %v6596 = vld [vmem:[%s1312 + $0x50] sm:$0xff]
        %v6597 = vld [vmem:[%s1312 + $0x58] sm:$0xff]
        %v6598 = vld [vmem:[%s1312 + $0x60] sm:$0xff]
        %v6599 = vld [vmem:[%s1312 + $0x68] sm:$0xff]
        %v6600 = vld [vmem:[%s1312 + $0x70] sm:$0xff]
        %v6601 = vld [vmem:[%s1312 + $0x78] sm:$0xff]
        %v6602 = vld [vmem:[%s1312 + $0x80] sm:$0xff]
        %v6603 = vld [vmem:[%s1312 + $0x88] sm:$0xff]
        %v6604 = vld [vmem:[%s1312 + $0x90] sm:$0xff]
        %v6605 = vld [vmem:[%s1312 + $0x98] sm:$0xff]
        %v6606 = vld [vmem:[%s1312 + $0xa0] sm:$0xff]
        %v6607 = vld [vmem:[%s1312 + $0xa8] sm:$0xff]
        %v6608 = vld [vmem:[%s1312 + $0xb0] sm:$0xff]
        %v6609 = vld [vmem:[%s1312 + $0xb8] sm:$0xff]
        %v6610 = vld [vmem:[%s1312 + $0xc0] sm:$0xff]
        %v6611 = vld [vmem:[%s1312 + $0xc8] sm:$0xff]
        %v6612 = vld [vmem:[%s1312 + $0xd0] sm:$0xff]
        %v6613 = vld [vmem:[%s1312 + $0xd8] sm:$0xff]
        %v6614 = vld [vmem:[%s1312 + $0xe0] sm:$0xff]
        %v6615 = vld [vmem:[%s1312 + $0xe8] sm:$0xff]
        %v6616 = vld [vmem:[%s1312 + $0xf0] sm:$0xff]
        %v6617 = vld [vmem:[%s1312 + $0xf8] sm:$0xff]
        %v6618 = vld [vmem:[%s1312 + $0x100] sm:$0xff]
        %v6619 = vld [vmem:[%s1312 + $0x108] sm:$0xff]
        %v6620 = vld [vmem:[%s1312 + $0x110] sm:$0xff]
        %v6621 = vld [vmem:[%s1312 + $0x118] sm:$0xff]
        %v6622 = vld [vmem:[%s1312 + $0x120] sm:$0xff]
        %v6623 = vld [vmem:[%s1312 + $0x128] sm:$0xff]
        %v6624 = vld [vmem:[%s1312 + $0x130] sm:$0xff]
        %v6625 = vld [vmem:[%s1312 + $0x138] sm:$0xff]
        %v6626 = vld [vmem:[%s1312 + $0x140] sm:$0xff]
        %v6627 = vld [vmem:[%s1312 + $0x148] sm:$0xff]
        %v6628 = vld [vmem:[%s1312 + $0x150] sm:$0xff]
        %v6629 = vld [vmem:[%s1312 + $0x158] sm:$0xff]
        %v6630 = vld [vmem:[%s1312 + $0x160] sm:$0xff]
        %v6631 = vld [vmem:[%s1312 + $0x168] sm:$0xff]
        %v6632 = vld [vmem:[%s1312 + $0x170] sm:$0xff]
        %v6633 = vld [vmem:[%s1312 + $0x178] sm:$0xff]
        %v6634 = vpack.c.bf16 %v6587, %v6586
        %v6635 = vpack.c.bf16 %v6589, %v6588
        %v6636 = vpack.c.bf16 %v6591, %v6590
        %v6637 = vpack.c.bf16 %v6593, %v6592
        %v6638 = vpack.c.bf16 %v6595, %v6594
        %v6639 = vpack.c.bf16 %v6597, %v6596
        %v6640 = vpack.c.bf16 %v6599, %v6598
        %v6641 = vpack.c.bf16 %v6601, %v6600
        %v6642 = vpack.c.bf16 %v6603, %v6602
        %v6643 = vpack.c.bf16 %v6605, %v6604
        %v6644 = vpack.c.bf16 %v6607, %v6606
        %v6645 = vpack.c.bf16 %v6609, %v6608
        %v6646 = vpack.c.bf16 %v6611, %v6610
        %v6647 = vpack.c.bf16 %v6613, %v6612
        %v6648 = vpack.c.bf16 %v6615, %v6614
        %v6649 = vpack.c.bf16 %v6617, %v6616
        %v6650 = vpack.c.bf16 %v6619, %v6618
        %v6651 = vpack.c.bf16 %v6621, %v6620
        %v6652 = vpack.c.bf16 %v6623, %v6622
        %v6653 = vpack.c.bf16 %v6625, %v6624
        %v6654 = vpack.c.bf16 %v6627, %v6626
        %v6655 = vpack.c.bf16 %v6629, %v6628
        %v6656 = vpack.c.bf16 %v6631, %v6630
        %v6657 = vpack.c.bf16 %v6633, %v6632
        %s6658 = scalar_lea.vmem [#allocation9], 448
        %v6659 = vld [vmem:[%s6658] sm:$0xf]
        %v6660 = vld [vmem:[%s6658 + $0x4] sm:$0xf]
        %v6661 = vld [vmem:[%s6658 + $0x8] sm:$0xf]
        %v6662 = vld [vmem:[%s6658 + $0xc] sm:$0xf]
        %v6663 = vld [vmem:[%s6658 + $0x10] sm:$0xf]
        %v6664 = vld [vmem:[%s6658 + $0x14] sm:$0xf]
        %v6665 = vld [vmem:[%s6658 + $0x18] sm:$0xf]
        %v6666 = vld [vmem:[%s6658 + $0x1c] sm:$0xf]
        %v6667 = vld [vmem:[%s6658 + $0x20] sm:$0xf]
        %v6668 = vld [vmem:[%s6658 + $0x24] sm:$0xf]
        %v6669 = vld [vmem:[%s6658 + $0x28] sm:$0xf]
        %v6670 = vld [vmem:[%s6658 + $0x2c] sm:$0xf]
        %v6671 = vld [vmem:[%s6658 + $0x30] sm:$0xf]
        %v6672 = vld [vmem:[%s6658 + $0x34] sm:$0xf]
        %v6673 = vld [vmem:[%s6658 + $0x38] sm:$0xf]
        %v6674 = vld [vmem:[%s6658 + $0x3c] sm:$0xf]
        %v6691 = vunpack.c.l.b16 %v6659
        %v6692 = vunpack.c.l.b16 %v6660
        %v6693 = vunpack.c.l.b16 %v6661
        %v6694 = vunpack.c.l.b16 %v6662
        %v6695 = vunpack.c.l.b16 %v6663
        %v6696 = vunpack.c.l.b16 %v6664
        %v6697 = vunpack.c.l.b16 %v6665
        %v6698 = vunpack.c.l.b16 %v6666
        %v6699 = vunpack.c.l.b16 %v6667
        %v6700 = vunpack.c.l.b16 %v6668
        %v6701 = vunpack.c.l.b16 %v6669
        %v6702 = vunpack.c.l.b16 %v6670
        %v6703 = vunpack.c.l.b16 %v6671
        %v6704 = vunpack.c.l.b16 %v6672
        %v6705 = vunpack.c.l.b16 %v6673
        %v6706 = vunpack.c.l.b16 %v6674
        %v6707 = vpack.c.b16 %v6692, %v6691
        %v6708 = vpack.c.b16 %v6694, %v6693
        %v6709 = vpack.c.b16 %v6696, %v6695
        %v6710 = vpack.c.b16 %v6698, %v6697
        %v6711 = vpack.c.b16 %v6700, %v6699
        %v6712 = vpack.c.b16 %v6702, %v6701
        %v6713 = vpack.c.b16 %v6704, %v6703
        %v6714 = vpack.c.b16 %v6706, %v6705
        %6723 = vmatprep.subr.bf16.mxu0 0
        %6724 = vmatpush1.bf16.msra.mxu0 %v6714
        %6725 = vmatprep.subr.bf16.mxu0 0
        %6726 = vmatpush1.bf16.msra.mxu0 %v6713
        %6727 = vmatprep.subr.bf16.mxu0 0
        %6728 = vmatpush1.bf16.msra.mxu0 %v6712
        %6729 = vmatprep.subr.bf16.mxu0 0
        %6730 = vmatpush1.bf16.msra.mxu0 %v6711
        %6731 = vmatprep.subr.bf16.mxu0 0
        %6732 = vmatpush1.bf16.msra.mxu0 %v6710
        %6733 = vmatprep.subr.bf16.mxu0 0
        %6734 = vmatpush1.bf16.msra.mxu0 %v6709
        %6735 = vmatprep.subr.bf16.mxu0 0
        %6736 = vmatpush1.bf16.msra.mxu0 %v6708
        %6737 = vmatprep.subr.bf16.mxu0 0
        %6738 = vmatpush1.bf16.msra.mxu0 %v6707
        %6739 = vmatprep.subr.bf16.mxu0 0
        %6740 = vmatpush2.bf16.msra.mxu0 0
        %6741 = vmatprep.subr.bf16.mxu0 0
        %6742 = vmatpush2.bf16.msra.mxu0 0
        %6743 = vmatprep.subr.bf16.mxu0 0
        %6744 = vmatpush2.bf16.msra.mxu0 0
        %6745 = vmatprep.subr.bf16.mxu0 0
        %6746 = vmatpush2.bf16.msra.mxu0 0
        %6747 = vmatprep.subr.bf16.mxu0 0
        %6748 = vmatpush2.bf16.msra.mxu0 0
        %6749 = vmatprep.subr.bf16.mxu0 0
        %6750 = vmatpush2.bf16.msra.mxu0 0
        %6751 = vmatprep.subr.bf16.mxu0 0
        %6752 = vmatpush2.bf16.msra.mxu0 0
        %6753 = vmatprep.subr.bf16.mxu0 0
        %6754 = vmatpush2.bf16.msra.mxu0 0
        %6755 = vmatprep.mubr.bf16.mxu0 0
        %6756 = vmatmul.mubr.bf16.gmra.mxu0 %v6634
        %v6757 = vpop.f32.mrf.mxu0
        %v6758 = vadd.f32 0.0, %v6757
        %v6759 = vpop.f32.mrf.mxu0
        %v6760 = vpop.f32.mrf.mxu0
        %v6761 = vadd.f32 0.0, %v6760
        %v6762 = vpop.f32.mrf.mxu0
        %6763 = vmatprep.mubr.bf16.mxu0 0
        %6764 = vmatmul.mubr.bf16.gmra.mxu0 %v6635
        %v6765 = vpop.f32.mrf.mxu0
        %v6766 = vadd.f32 0.0, %v6765
        %v6767 = vpop.f32.mrf.mxu0
        %v6768 = vpop.f32.mrf.mxu0
        %v6769 = vadd.f32 0.0, %v6768
        %v6770 = vpop.f32.mrf.mxu0
        %6771 = vmatprep.mubr.bf16.mxu0 0
        %6772 = vmatmul.mubr.bf16.gmra.mxu0 %v6636
        %v6773 = vpop.f32.mrf.mxu0
        %v6774 = vadd.f32 0.0, %v6773
        %v6775 = vpop.f32.mrf.mxu0
        %v6776 = vpop.f32.mrf.mxu0
        %v6777 = vadd.f32 0.0, %v6776
        %v6778 = vpop.f32.mrf.mxu0
        %6779 = vmatprep.mubr.bf16.mxu0 0
        %6780 = vmatmul.mubr.bf16.gmra.mxu0 %v6637
        %v6781 = vpop.f32.mrf.mxu0
        %v6782 = vadd.f32 0.0, %v6781
        %v6783 = vpop.f32.mrf.mxu0
        %v6784 = vpop.f32.mrf.mxu0
        %v6785 = vadd.f32 0.0, %v6784
        %v6786 = vpop.f32.mrf.mxu0
        %6787 = vmatprep.mubr.bf16.mxu0 0
        %6788 = vmatmul.mubr.bf16.gmra.mxu0 %v6638
        %v6789 = vpop.f32.mrf.mxu0
        %v6790 = vadd.f32 0.0, %v6789
        %v6791 = vpop.f32.mrf.mxu0
        %v6792 = vpop.f32.mrf.mxu0
        %v6793 = vadd.f32 0.0, %v6792
        %v6794 = vpop.f32.mrf.mxu0
        %6795 = vmatprep.mubr.bf16.mxu0 0
        %6796 = vmatmul.mubr.bf16.gmra.mxu0 %v6639
        %v6797 = vpop.f32.mrf.mxu0
        %v6798 = vadd.f32 0.0, %v6797
        %v6799 = vpop.f32.mrf.mxu0
        %v6800 = vpop.f32.mrf.mxu0
        %v6801 = vadd.f32 0.0, %v6800
        %v6802 = vpop.f32.mrf.mxu0
        %6803 = vmatprep.mubr.bf16.mxu0 0
        %6804 = vmatmul.mubr.bf16.gmra.mxu0 %v6640
        %v6805 = vpop.f32.mrf.mxu0
        %v6806 = vadd.f32 0.0, %v6805
        %v6807 = vpop.f32.mrf.mxu0
        %v6808 = vpop.f32.mrf.mxu0
        %v6809 = vadd.f32 0.0, %v6808
        %v6810 = vpop.f32.mrf.mxu0
        %6811 = vmatprep.mubr.bf16.mxu0 0
        %6812 = vmatmul.mubr.bf16.gmra.mxu0 %v6641
        %v6813 = vpop.f32.mrf.mxu0
        %v6814 = vadd.f32 0.0, %v6813
        %v6815 = vpop.f32.mrf.mxu0
        %v6816 = vpop.f32.mrf.mxu0
        %v6817 = vadd.f32 0.0, %v6816
        %v6818 = vpop.f32.mrf.mxu0
        %6819 = vmatprep.mubr.bf16.mxu0 0
        %6820 = vmatmul.mubr.bf16.gmra.mxu0 %v6642
        %v6821 = vpop.f32.mrf.mxu0
        %v6822 = vadd.f32 0.0, %v6821
        %v6823 = vpop.f32.mrf.mxu0
        %v6824 = vpop.f32.mrf.mxu0
        %v6825 = vadd.f32 0.0, %v6824
        %v6826 = vpop.f32.mrf.mxu0
        %6827 = vmatprep.mubr.bf16.mxu0 0
        %6828 = vmatmul.mubr.bf16.gmra.mxu0 %v6643
        %v6829 = vpop.f32.mrf.mxu0
        %v6830 = vadd.f32 0.0, %v6829
        %v6831 = vpop.f32.mrf.mxu0
        %v6832 = vpop.f32.mrf.mxu0
        %v6833 = vadd.f32 0.0, %v6832
        %v6834 = vpop.f32.mrf.mxu0
        %6835 = vmatprep.mubr.bf16.mxu0 0
        %6836 = vmatmul.mubr.bf16.gmra.mxu0 %v6644
        %v6837 = vpop.f32.mrf.mxu0
        %v6838 = vadd.f32 0.0, %v6837
        %v6839 = vpop.f32.mrf.mxu0
        %v6840 = vpop.f32.mrf.mxu0
        %v6841 = vadd.f32 0.0, %v6840
        %v6842 = vpop.f32.mrf.mxu0
        %6843 = vmatprep.mubr.bf16.mxu0 0
        %6844 = vmatmul.mubr.bf16.gmra.mxu0 %v6645
        %v6845 = vpop.f32.mrf.mxu0
        %v6846 = vadd.f32 0.0, %v6845
        %v6847 = vpop.f32.mrf.mxu0
        %v6848 = vpop.f32.mrf.mxu0
        %v6849 = vadd.f32 0.0, %v6848
        %v6850 = vpop.f32.mrf.mxu0
        %6851 = vmatprep.mubr.bf16.mxu0 0
        %6852 = vmatmul.mubr.bf16.gmra.mxu0 %v6646
        %v6853 = vpop.f32.mrf.mxu0
        %v6854 = vadd.f32 0.0, %v6853
        %v6855 = vpop.f32.mrf.mxu0
        %v6856 = vpop.f32.mrf.mxu0
        %v6857 = vadd.f32 0.0, %v6856
        %v6858 = vpop.f32.mrf.mxu0
        %6859 = vmatprep.mubr.bf16.mxu0 0
        %6860 = vmatmul.mubr.bf16.gmra.mxu0 %v6647
        %v6861 = vpop.f32.mrf.mxu0
        %v6862 = vadd.f32 0.0, %v6861
        %v6863 = vpop.f32.mrf.mxu0
        %v6864 = vpop.f32.mrf.mxu0
        %v6865 = vadd.f32 0.0, %v6864
        %v6866 = vpop.f32.mrf.mxu0
        %6867 = vmatprep.mubr.bf16.mxu0 0
        %6868 = vmatmul.mubr.bf16.gmra.mxu0 %v6648
        %v6869 = vpop.f32.mrf.mxu0
        %v6870 = vadd.f32 0.0, %v6869
        %v6871 = vpop.f32.mrf.mxu0
        %v6872 = vpop.f32.mrf.mxu0
        %v6873 = vadd.f32 0.0, %v6872
        %v6874 = vpop.f32.mrf.mxu0
        %6875 = vmatprep.mubr.bf16.mxu0 0
        %6876 = vmatmul.mubr.bf16.gmra.mxu0 %v6649
        %v6877 = vpop.f32.mrf.mxu0
        %v6878 = vadd.f32 0.0, %v6877
        %v6879 = vpop.f32.mrf.mxu0
        %v6880 = vpop.f32.mrf.mxu0
        %v6881 = vadd.f32 0.0, %v6880
        %v6882 = vpop.f32.mrf.mxu0
        %6883 = vmatprep.mubr.bf16.mxu0 0
        %6884 = vmatmul.mubr.bf16.gmra.mxu0 %v6650
        %v6885 = vpop.f32.mrf.mxu0
        %v6886 = vadd.f32 0.0, %v6885
        %v6887 = vpop.f32.mrf.mxu0
        %v6888 = vpop.f32.mrf.mxu0
        %v6889 = vadd.f32 0.0, %v6888
        %v6890 = vpop.f32.mrf.mxu0
        %6891 = vmatprep.mubr.bf16.mxu0 0
        %6892 = vmatmul.mubr.bf16.gmra.mxu0 %v6651
        %v6893 = vpop.f32.mrf.mxu0
        %v6894 = vadd.f32 0.0, %v6893
        %v6895 = vpop.f32.mrf.mxu0
        %v6896 = vpop.f32.mrf.mxu0
        %v6897 = vadd.f32 0.0, %v6896
        %v6898 = vpop.f32.mrf.mxu0
        %6899 = vmatprep.mubr.bf16.mxu0 0
        %6900 = vmatmul.mubr.bf16.gmra.mxu0 %v6652
        %v6901 = vpop.f32.mrf.mxu0
        %v6902 = vadd.f32 0.0, %v6901
        %v6903 = vpop.f32.mrf.mxu0
        %v6904 = vpop.f32.mrf.mxu0
        %v6905 = vadd.f32 0.0, %v6904
        %v6906 = vpop.f32.mrf.mxu0
        %6907 = vmatprep.mubr.bf16.mxu0 0
        %6908 = vmatmul.mubr.bf16.gmra.mxu0 %v6653
        %v6909 = vpop.f32.mrf.mxu0
        %v6910 = vadd.f32 0.0, %v6909
        %v6911 = vpop.f32.mrf.mxu0
        %v6912 = vpop.f32.mrf.mxu0
        %v6913 = vadd.f32 0.0, %v6912
        %v6914 = vpop.f32.mrf.mxu0
        %6915 = vmatprep.mubr.bf16.mxu0 0
        %6916 = vmatmul.mubr.bf16.gmra.mxu0 %v6654
        %v6917 = vpop.f32.mrf.mxu0
        %v6918 = vadd.f32 0.0, %v6917
        %v6919 = vpop.f32.mrf.mxu0
        %v6920 = vpop.f32.mrf.mxu0
        %v6921 = vadd.f32 0.0, %v6920
        %v6922 = vpop.f32.mrf.mxu0
        %6923 = vmatprep.mubr.bf16.mxu0 0
        %6924 = vmatmul.mubr.bf16.gmra.mxu0 %v6655
        %v6925 = vpop.f32.mrf.mxu0
        %v6926 = vadd.f32 0.0, %v6925
        %v6927 = vpop.f32.mrf.mxu0
        %v6928 = vpop.f32.mrf.mxu0
        %v6929 = vadd.f32 0.0, %v6928
        %v6930 = vpop.f32.mrf.mxu0
        %6931 = vmatprep.mubr.bf16.mxu0 0
        %6932 = vmatmul.mubr.bf16.gmra.mxu0 %v6656
        %v6933 = vpop.f32.mrf.mxu0
        %v6934 = vadd.f32 0.0, %v6933
        %v6935 = vpop.f32.mrf.mxu0
        %v6936 = vpop.f32.mrf.mxu0
        %v6937 = vadd.f32 0.0, %v6936
        %v6938 = vpop.f32.mrf.mxu0
        %6939 = vmatprep.mubr.bf16.mxu0 0
        %6940 = vmatmul.mubr.bf16.gmra.mxu0 %v6657
        %v6941 = vpop.f32.mrf.mxu0
        %v6942 = vadd.f32 0.0, %v6941
        %v6943 = vpop.f32.mrf.mxu0
        %v6944 = vpop.f32.mrf.mxu0
        %v6945 = vadd.f32 0.0, %v6944
        %v6946 = vpop.f32.mrf.mxu0
        %6947 = vdwg.mxu0
        %v6948 = vadd.f32 %v6396, %v6758
        %v6949 = vadd.f32 %v6399, %v6761
        %v6950 = vadd.f32 %v6404, %v6766
        %v6951 = vadd.f32 %v6407, %v6769
        %v6952 = vadd.f32 %v6412, %v6774
        %v6953 = vadd.f32 %v6415, %v6777
        %v6954 = vadd.f32 %v6420, %v6782
        %v6955 = vadd.f32 %v6423, %v6785
        %v6956 = vadd.f32 %v6428, %v6790
        %v6957 = vadd.f32 %v6431, %v6793
        %v6958 = vadd.f32 %v6436, %v6798
        %v6959 = vadd.f32 %v6439, %v6801
        %v6960 = vadd.f32 %v6444, %v6806
        %v6961 = vadd.f32 %v6447, %v6809
        %v6962 = vadd.f32 %v6452, %v6814
        %v6963 = vadd.f32 %v6455, %v6817
        %v6964 = vadd.f32 %v6460, %v6822
        %v6965 = vadd.f32 %v6463, %v6825
        %v6966 = vadd.f32 %v6468, %v6830
        %v6967 = vadd.f32 %v6471, %v6833
        %v6968 = vadd.f32 %v6476, %v6838
        %v6969 = vadd.f32 %v6479, %v6841
        %v6970 = vadd.f32 %v6484, %v6846
        %v6971 = vadd.f32 %v6487, %v6849
        %v6972 = vadd.f32 %v6492, %v6854
        %v6973 = vadd.f32 %v6495, %v6857
        %v6974 = vadd.f32 %v6500, %v6862
        %v6975 = vadd.f32 %v6503, %v6865
        %v6976 = vadd.f32 %v6508, %v6870
        %v6977 = vadd.f32 %v6511, %v6873
        %v6978 = vadd.f32 %v6516, %v6878
        %v6979 = vadd.f32 %v6519, %v6881
        %v6980 = vadd.f32 %v6524, %v6886
        %v6981 = vadd.f32 %v6527, %v6889
        %v6982 = vadd.f32 %v6532, %v6894
        %v6983 = vadd.f32 %v6535, %v6897
        %v6984 = vadd.f32 %v6540, %v6902
        %v6985 = vadd.f32 %v6543, %v6905
        %v6986 = vadd.f32 %v6548, %v6910
        %v6987 = vadd.f32 %v6551, %v6913
        %v6988 = vadd.f32 %v6556, %v6918
        %v6989 = vadd.f32 %v6559, %v6921
        %v6990 = vadd.f32 %v6564, %v6926
        %v6991 = vadd.f32 %v6567, %v6929
        %v6992 = vadd.f32 %v6572, %v6934
        %v6993 = vadd.f32 %v6575, %v6937
        %v6994 = vadd.f32 %v6580, %v6942
        %v6995 = vadd.f32 %v6583, %v6945
        %v6996 = vld [vmem:[#allocation3] sm:$0xff]
        %v6997 = vld [vmem:[#allocation3 + $0x8] sm:$0xff]
        %v6998 = vld [vmem:[#allocation3 + $0x10] sm:$0xff]
        %v6999 = vld [vmem:[#allocation3 + $0x18] sm:$0xff]
        %v7000 = vld [vmem:[#allocation3 + $0x20] sm:$0xff]
        %v7001 = vld [vmem:[#allocation3 + $0x28] sm:$0xff]
        %v7002 = vld [vmem:[#allocation3 + $0x30] sm:$0xff]
        %v7003 = vld [vmem:[#allocation3 + $0x38] sm:$0xff]
        %v7004 = vld [vmem:[#allocation3 + $0x40] sm:$0xff]
        %v7005 = vld [vmem:[#allocation3 + $0x48] sm:$0xff]
        %v7006 = vld [vmem:[#allocation3 + $0x50] sm:$0xff]
        %v7007 = vld [vmem:[#allocation3 + $0x58] sm:$0xff]
        %v7008 = vld [vmem:[#allocation3 + $0x60] sm:$0xff]
        %v7009 = vld [vmem:[#allocation3 + $0x68] sm:$0xff]
        %v7010 = vld [vmem:[#allocation3 + $0x70] sm:$0xff]
        %v7011 = vld [vmem:[#allocation3 + $0x78] sm:$0xff]
        %v7012 = vld [vmem:[#allocation3 + $0x80] sm:$0xff]
        %v7013 = vld [vmem:[#allocation3 + $0x88] sm:$0xff]
        %v7014 = vld [vmem:[#allocation3 + $0x90] sm:$0xff]
        %v7015 = vld [vmem:[#allocation3 + $0x98] sm:$0xff]
        %v7016 = vld [vmem:[#allocation3 + $0xa0] sm:$0xff]
        %v7017 = vld [vmem:[#allocation3 + $0xa8] sm:$0xff]
        %v7018 = vld [vmem:[#allocation3 + $0xb0] sm:$0xff]
        %v7019 = vld [vmem:[#allocation3 + $0xb8] sm:$0xff]
        %v7020 = vld [vmem:[#allocation3 + $0xc0] sm:$0xff]
        %v7021 = vld [vmem:[#allocation3 + $0xc8] sm:$0xff]
        %v7022 = vld [vmem:[#allocation3 + $0xd0] sm:$0xff]
        %v7023 = vld [vmem:[#allocation3 + $0xd8] sm:$0xff]
        %v7024 = vld [vmem:[#allocation3 + $0xe0] sm:$0xff]
        %v7025 = vld [vmem:[#allocation3 + $0xe8] sm:$0xff]
        %v7026 = vld [vmem:[#allocation3 + $0xf0] sm:$0xff]
        %v7027 = vld [vmem:[#allocation3 + $0xf8] sm:$0xff]
        %v7076 = vrot.slane %v6948, 1
        %v7077 = vrot.slane %v6949, 1
        %v7078 = vsel %vm3001, %v7076, %v7077
        %v7079 = vrot.slane %v6950, 1
        %v7080 = vsel %vm3001, %v7077, %v7079
        %v7081 = vrot.slane %v6951, 1
        %v7082 = vrot.slane %v6952, 1
        %v7083 = vsel %vm3001, %v7081, %v7082
        %v7084 = vrot.slane %v6953, 1
        %v7085 = vsel %vm3001, %v7082, %v7084
        %v7086 = vrot.slane %v6954, 1
        %v7087 = vrot.slane %v6955, 1
        %v7088 = vsel %vm3001, %v7086, %v7087
        %v7089 = vrot.slane %v6956, 1
        %v7090 = vsel %vm3001, %v7087, %v7089
        %v7091 = vrot.slane %v6957, 1
        %v7092 = vrot.slane %v6958, 1
        %v7093 = vsel %vm3001, %v7091, %v7092
        %v7094 = vrot.slane %v6959, 1
        %v7095 = vsel %vm3001, %v7092, %v7094
        %v7096 = vrot.slane %v6960, 1
        %v7097 = vrot.slane %v6961, 1
        %v7098 = vsel %vm3001, %v7096, %v7097
        %v7099 = vrot.slane %v6962, 1
        %v7100 = vsel %vm3001, %v7097, %v7099
        %v7101 = vrot.slane %v6963, 1
        %v7102 = vrot.slane %v6964, 1
        %v7103 = vsel %vm3001, %v7101, %v7102
        %v7104 = vrot.slane %v6965, 1
        %v7105 = vsel %vm3001, %v7102, %v7104
        %v7106 = vrot.slane %v6966, 1
        %v7107 = vrot.slane %v6967, 1
        %v7108 = vsel %vm3001, %v7106, %v7107
        %v7109 = vrot.slane %v6968, 1
        %v7110 = vsel %vm3001, %v7107, %v7109
        %v7111 = vrot.slane %v6969, 1
        %v7112 = vrot.slane %v6970, 1
        %v7113 = vsel %vm3001, %v7111, %v7112
        %v7114 = vrot.slane %v6971, 1
        %v7115 = vsel %vm3001, %v7112, %v7114
        %v7116 = vrot.slane %v6972, 1
        %v7117 = vrot.slane %v6973, 1
        %v7118 = vsel %vm3001, %v7116, %v7117
        %v7119 = vrot.slane %v6974, 1
        %v7120 = vsel %vm3001, %v7117, %v7119
        %v7121 = vrot.slane %v6975, 1
        %v7122 = vrot.slane %v6976, 1
        %v7123 = vsel %vm3001, %v7121, %v7122
        %v7124 = vrot.slane %v6977, 1
        %v7125 = vsel %vm3001, %v7122, %v7124
        %v7126 = vrot.slane %v6978, 1
        %v7127 = vrot.slane %v6979, 1
        %v7128 = vsel %vm3001, %v7126, %v7127
        %v7129 = vrot.slane %v6980, 1
        %v7130 = vsel %vm3001, %v7127, %v7129
        %v7131 = vrot.slane %v6981, 1
        %v7132 = vrot.slane %v6982, 1
        %v7133 = vsel %vm3001, %v7131, %v7132
        %v7134 = vrot.slane %v6983, 1
        %v7135 = vsel %vm3001, %v7132, %v7134
        %v7136 = vrot.slane %v6984, 1
        %v7137 = vrot.slane %v6985, 1
        %v7138 = vsel %vm3001, %v7136, %v7137
        %v7139 = vrot.slane %v6986, 1
        %v7140 = vsel %vm3001, %v7137, %v7139
        %v7141 = vrot.slane %v6987, 1
        %v7142 = vrot.slane %v6988, 1
        %v7143 = vsel %vm3001, %v7141, %v7142
        %v7144 = vrot.slane %v6989, 1
        %v7145 = vsel %vm3001, %v7142, %v7144
        %v7146 = vrot.slane %v6990, 1
        %v7147 = vrot.slane %v6991, 1
        %v7148 = vsel %vm3001, %v7146, %v7147
        %v7149 = vrot.slane %v6992, 1
        %v7150 = vsel %vm3001, %v7147, %v7149
        %v7151 = vrot.slane %v6993, 1
        %v7152 = vrot.slane %v6994, 1
        %v7153 = vsel %vm3001, %v7151, %v7152
        %v7154 = vrot.slane %v6995, 1
        %v7155 = vsel %vm3001, %v7152, %v7154
        %v7188 = vadd.f32 %v6996, %v7078
        %v7189 = vadd.f32 %v6997, %v7080
        %v7190 = vadd.f32 %v6998, %v7083
        %v7191 = vadd.f32 %v6999, %v7085
        %v7192 = vadd.f32 %v7000, %v7088
        %v7193 = vadd.f32 %v7001, %v7090
        %v7194 = vadd.f32 %v7002, %v7093
        %v7195 = vadd.f32 %v7003, %v7095
        %v7196 = vadd.f32 %v7004, %v7098
        %v7197 = vadd.f32 %v7005, %v7100
        %v7198 = vadd.f32 %v7006, %v7103
        %v7199 = vadd.f32 %v7007, %v7105
        %v7200 = vadd.f32 %v7008, %v7108
        %v7201 = vadd.f32 %v7009, %v7110
        %v7202 = vadd.f32 %v7010, %v7113
        %v7203 = vadd.f32 %v7011, %v7115
        %v7204 = vadd.f32 %v7012, %v7118
        %v7205 = vadd.f32 %v7013, %v7120
        %v7206 = vadd.f32 %v7014, %v7123
        %v7207 = vadd.f32 %v7015, %v7125
        %v7208 = vadd.f32 %v7016, %v7128
        %v7209 = vadd.f32 %v7017, %v7130
        %v7210 = vadd.f32 %v7018, %v7133
        %v7211 = vadd.f32 %v7019, %v7135
        %v7212 = vadd.f32 %v7020, %v7138
        %v7213 = vadd.f32 %v7021, %v7140
        %v7214 = vadd.f32 %v7022, %v7143
        %v7215 = vadd.f32 %v7023, %v7145
        %v7216 = vadd.f32 %v7024, %v7148
        %v7217 = vadd.f32 %v7025, %v7150
        %v7218 = vadd.f32 %v7026, %v7153
        %v7219 = vadd.f32 %v7027, %v7155
        %7220 = vst [vmem:[#allocation3] sm:$0xff] %v7188
        %7221 = vst [vmem:[#allocation3 + $0x8] sm:$0xff] %v7189
        %7222 = vst [vmem:[#allocation3 + $0x10] sm:$0xff] %v7190
        %7223 = vst [vmem:[#allocation3 + $0x18] sm:$0xff] %v7191
        %7224 = vst [vmem:[#allocation3 + $0x20] sm:$0xff] %v7192
        %7225 = vst [vmem:[#allocation3 + $0x28] sm:$0xff] %v7193
        %7226 = vst [vmem:[#allocation3 + $0x30] sm:$0xff] %v7194
        %7227 = vst [vmem:[#allocation3 + $0x38] sm:$0xff] %v7195
        %7228 = vst [vmem:[#allocation3 + $0x40] sm:$0xff] %v7196
        %7229 = vst [vmem:[#allocation3 + $0x48] sm:$0xff] %v7197
        %7230 = vst [vmem:[#allocation3 + $0x50] sm:$0xff] %v7198
        %7231 = vst [vmem:[#allocation3 + $0x58] sm:$0xff] %v7199
        %7232 = vst [vmem:[#allocation3 + $0x60] sm:$0xff] %v7200
        %7233 = vst [vmem:[#allocation3 + $0x68] sm:$0xff] %v7201
        %7234 = vst [vmem:[#allocation3 + $0x70] sm:$0xff] %v7202
        %7235 = vst [vmem:[#allocation3 + $0x78] sm:$0xff] %v7203
        %7236 = vst [vmem:[#allocation3 + $0x80] sm:$0xff] %v7204
        %7237 = vst [vmem:[#allocation3 + $0x88] sm:$0xff] %v7205
        %7238 = vst [vmem:[#allocation3 + $0x90] sm:$0xff] %v7206
        %7239 = vst [vmem:[#allocation3 + $0x98] sm:$0xff] %v7207
        %7240 = vst [vmem:[#allocation3 + $0xa0] sm:$0xff] %v7208
        %7241 = vst [vmem:[#allocation3 + $0xa8] sm:$0xff] %v7209
        %7242 = vst [vmem:[#allocation3 + $0xb0] sm:$0xff] %v7210
        %7243 = vst [vmem:[#allocation3 + $0xb8] sm:$0xff] %v7211
        %7244 = vst [vmem:[#allocation3 + $0xc0] sm:$0xff] %v7212
        %7245 = vst [vmem:[#allocation3 + $0xc8] sm:$0xff] %v7213
        %7246 = vst [vmem:[#allocation3 + $0xd0] sm:$0xff] %v7214
        %7247 = vst [vmem:[#allocation3 + $0xd8] sm:$0xff] %v7215
        %7248 = vst [vmem:[#allocation3 + $0xe0] sm:$0xff] %v7216
        %7249 = vst [vmem:[#allocation3 + $0xe8] sm:$0xff] %v7217
        %7250 = vst [vmem:[#allocation3 + $0xf0] sm:$0xff] %v7218
        %7251 = vst [vmem:[#allocation3 + $0xf8] sm:$0xff] %v7219
        %v7252 = vld [vmem:[#allocation2] sm:$0xff]
        %v7253 = vld [vmem:[#allocation2 + $0x8] sm:$0xff]
        %v7254 = vld [vmem:[#allocation2 + $0x10] sm:$0xff]
        %v7255 = vld [vmem:[#allocation2 + $0x18] sm:$0xff]
        %v7256 = vld [vmem:[#allocation2 + $0x20] sm:$0xff]
        %v7257 = vld [vmem:[#allocation2 + $0x28] sm:$0xff]
        %v7258 = vld [vmem:[#allocation2 + $0x30] sm:$0xff]
        %v7259 = vld [vmem:[#allocation2 + $0x38] sm:$0xff]
        %v7260 = vld [vmem:[#allocation2 + $0x40] sm:$0xff]
        %v7261 = vld [vmem:[#allocation2 + $0x48] sm:$0xff]
        %v7262 = vld [vmem:[#allocation2 + $0x50] sm:$0xff]
        %v7263 = vld [vmem:[#allocation2 + $0x58] sm:$0xff]
        %v7264 = vld [vmem:[#allocation2 + $0x60] sm:$0xff]
        %v7265 = vld [vmem:[#allocation2 + $0x68] sm:$0xff]
        %v7266 = vld [vmem:[#allocation2 + $0x70] sm:$0xff]
        %v7267 = vld [vmem:[#allocation2 + $0x78] sm:$0xff]
        %v7268 = vld [vmem:[#allocation2 + $0x80] sm:$0xff]
        %v7269 = vld [vmem:[#allocation2 + $0x88] sm:$0xff]
        %v7270 = vld [vmem:[#allocation2 + $0x90] sm:$0xff]
        %v7271 = vld [vmem:[#allocation2 + $0x98] sm:$0xff]
        %v7272 = vld [vmem:[#allocation2 + $0xa0] sm:$0xff]
        %v7273 = vld [vmem:[#allocation2 + $0xa8] sm:$0xff]
        %v7274 = vld [vmem:[#allocation2 + $0xb0] sm:$0xff]
        %v7275 = vld [vmem:[#allocation2 + $0xb8] sm:$0xff]
        %v7276 = vld [vmem:[#allocation2 + $0xc0] sm:$0xff]
        %v7277 = vld [vmem:[#allocation2 + $0xc8] sm:$0xff]
        %v7278 = vld [vmem:[#allocation2 + $0xd0] sm:$0xff]
        %v7279 = vld [vmem:[#allocation2 + $0xd8] sm:$0xff]
        %v7280 = vld [vmem:[#allocation2 + $0xe0] sm:$0xff]
        %v7281 = vld [vmem:[#allocation2 + $0xe8] sm:$0xff]
        %v7282 = vld [vmem:[#allocation2 + $0xf0] sm:$0xff]
        %v7283 = vld [vmem:[#allocation2 + $0xf8] sm:$0xff]
        %v7284 = vld [vmem:[#allocation2 + $0x100] sm:$0xff]
        %v7285 = vld [vmem:[#allocation2 + $0x108] sm:$0xff]
        %v7286 = vld [vmem:[#allocation2 + $0x110] sm:$0xff]
        %v7287 = vld [vmem:[#allocation2 + $0x118] sm:$0xff]
        %v7288 = vld [vmem:[#allocation2 + $0x120] sm:$0xff]
        %v7289 = vld [vmem:[#allocation2 + $0x128] sm:$0xff]
        %v7290 = vld [vmem:[#allocation2 + $0x130] sm:$0xff]
        %v7291 = vld [vmem:[#allocation2 + $0x138] sm:$0xff]
        %v7292 = vld [vmem:[#allocation2 + $0x140] sm:$0xff]
        %v7293 = vld [vmem:[#allocation2 + $0x148] sm:$0xff]
        %v7294 = vld [vmem:[#allocation2 + $0x150] sm:$0xff]
        %v7295 = vld [vmem:[#allocation2 + $0x158] sm:$0xff]
        %v7296 = vld [vmem:[#allocation2 + $0x160] sm:$0xff]
        %v7297 = vld [vmem:[#allocation2 + $0x168] sm:$0xff]
        %v7298 = vld [vmem:[#allocation2 + $0x170] sm:$0xff]
        %v7299 = vld [vmem:[#allocation2 + $0x178] sm:$0xff]
        %v7300 = vpack.c.bf16 %v7253, %v7252
        %v7301 = vpack.c.bf16 %v7255, %v7254
        %v7302 = vpack.c.bf16 %v7257, %v7256
        %v7303 = vpack.c.bf16 %v7259, %v7258
        %v7304 = vpack.c.bf16 %v7261, %v7260
        %v7305 = vpack.c.bf16 %v7263, %v7262
        %v7306 = vpack.c.bf16 %v7265, %v7264
        %v7307 = vpack.c.bf16 %v7267, %v7266
        %v7308 = vpack.c.bf16 %v7269, %v7268
        %v7309 = vpack.c.bf16 %v7271, %v7270
        %v7310 = vpack.c.bf16 %v7273, %v7272
        %v7311 = vpack.c.bf16 %v7275, %v7274
        %v7312 = vpack.c.bf16 %v7277, %v7276
        %v7313 = vpack.c.bf16 %v7279, %v7278
        %v7314 = vpack.c.bf16 %v7281, %v7280
        %v7315 = vpack.c.bf16 %v7283, %v7282
        %v7316 = vpack.c.bf16 %v7285, %v7284
        %v7317 = vpack.c.bf16 %v7287, %v7286
        %v7318 = vpack.c.bf16 %v7289, %v7288
        %v7319 = vpack.c.bf16 %v7291, %v7290
        %v7320 = vpack.c.bf16 %v7293, %v7292
        %v7321 = vpack.c.bf16 %v7295, %v7294
        %v7322 = vpack.c.bf16 %v7297, %v7296
        %v7323 = vpack.c.bf16 %v7299, %v7298
        %s7324 = scalar_lea.vmem [#allocation9], 128
        %v7325 = vld [vmem:[%s7324] sm:$0xf]
        %v7326 = vld [vmem:[%s7324 + $0x4] sm:$0xf]
        %v7327 = vld [vmem:[%s7324 + $0x8] sm:$0xf]
        %v7328 = vld [vmem:[%s7324 + $0xc] sm:$0xf]
        %v7329 = vld [vmem:[%s7324 + $0x10] sm:$0xf]
        %v7330 = vld [vmem:[%s7324 + $0x14] sm:$0xf]
        %v7331 = vld [vmem:[%s7324 + $0x18] sm:$0xf]
        %v7332 = vld [vmem:[%s7324 + $0x1c] sm:$0xf]
        %v7333 = vld [vmem:[%s7324 + $0x20] sm:$0xf]
        %v7334 = vld [vmem:[%s7324 + $0x24] sm:$0xf]
        %v7335 = vld [vmem:[%s7324 + $0x28] sm:$0xf]
        %v7336 = vld [vmem:[%s7324 + $0x2c] sm:$0xf]
        %v7337 = vld [vmem:[%s7324 + $0x30] sm:$0xf]
        %v7338 = vld [vmem:[%s7324 + $0x34] sm:$0xf]
        %v7339 = vld [vmem:[%s7324 + $0x38] sm:$0xf]
        %v7340 = vld [vmem:[%s7324 + $0x3c] sm:$0xf]
        %v7341 = vld [vmem:[%s550] sm:$0xff]
        %v7342 = vld [vmem:[%s550 + $0x8] sm:$0xff]
        %v7343 = vld [vmem:[%s550 + $0x10] sm:$0xff]
        %v7344 = vld [vmem:[%s550 + $0x18] sm:$0xff]
        %v7345 = vld [vmem:[%s550 + $0x20] sm:$0xff]
        %v7346 = vld [vmem:[%s550 + $0x28] sm:$0xff]
        %v7347 = vld [vmem:[%s550 + $0x30] sm:$0xff]
        %v7348 = vld [vmem:[%s550 + $0x38] sm:$0xff]
        %v7349 = vld [vmem:[%s550 + $0x40] sm:$0xff]
        %v7350 = vld [vmem:[%s550 + $0x48] sm:$0xff]
        %v7351 = vld [vmem:[%s550 + $0x50] sm:$0xff]
        %v7352 = vld [vmem:[%s550 + $0x58] sm:$0xff]
        %v7353 = vld [vmem:[%s550 + $0x60] sm:$0xff]
        %v7354 = vld [vmem:[%s550 + $0x68] sm:$0xff]
        %v7355 = vld [vmem:[%s550 + $0x70] sm:$0xff]
        %v7356 = vld [vmem:[%s550 + $0x78] sm:$0xff]
        %v7357 = vld [vmem:[%s550 + $0x80] sm:$0xff]
        %v7358 = vld [vmem:[%s550 + $0x88] sm:$0xff]
        %v7359 = vld [vmem:[%s550 + $0x90] sm:$0xff]
        %v7360 = vld [vmem:[%s550 + $0x98] sm:$0xff]
        %v7361 = vld [vmem:[%s550 + $0xa0] sm:$0xff]
        %v7362 = vld [vmem:[%s550 + $0xa8] sm:$0xff]
        %v7363 = vld [vmem:[%s550 + $0xb0] sm:$0xff]
        %v7364 = vld [vmem:[%s550 + $0xb8] sm:$0xff]
        %v7365 = vld [vmem:[%s550 + $0xc0] sm:$0xff]
        %v7366 = vld [vmem:[%s550 + $0xc8] sm:$0xff]
        %v7367 = vld [vmem:[%s550 + $0xd0] sm:$0xff]
        %v7368 = vld [vmem:[%s550 + $0xd8] sm:$0xff]
        %v7369 = vld [vmem:[%s550 + $0xe0] sm:$0xff]
        %v7370 = vld [vmem:[%s550 + $0xe8] sm:$0xff]
        %v7371 = vld [vmem:[%s550 + $0xf0] sm:$0xff]
        %v7372 = vld [vmem:[%s550 + $0xf8] sm:$0xff]
        %v7373 = vld [vmem:[%s550 + $0x100] sm:$0xff]
        %v7374 = vld [vmem:[%s550 + $0x108] sm:$0xff]
        %v7375 = vld [vmem:[%s550 + $0x110] sm:$0xff]
        %v7376 = vld [vmem:[%s550 + $0x118] sm:$0xff]
        %v7377 = vld [vmem:[%s550 + $0x120] sm:$0xff]
        %v7378 = vld [vmem:[%s550 + $0x128] sm:$0xff]
        %v7379 = vld [vmem:[%s550 + $0x130] sm:$0xff]
        %v7380 = vld [vmem:[%s550 + $0x138] sm:$0xff]
        %v7381 = vld [vmem:[%s550 + $0x140] sm:$0xff]
        %v7382 = vld [vmem:[%s550 + $0x148] sm:$0xff]
        %v7383 = vld [vmem:[%s550 + $0x150] sm:$0xff]
        %v7384 = vld [vmem:[%s550 + $0x158] sm:$0xff]
        %v7385 = vld [vmem:[%s550 + $0x160] sm:$0xff]
        %v7386 = vld [vmem:[%s550 + $0x168] sm:$0xff]
        %v7387 = vld [vmem:[%s550 + $0x170] sm:$0xff]
        %v7388 = vld [vmem:[%s550 + $0x178] sm:$0xff]
        %v7389 = vpack.c.bf16 %v7342, %v7341
        %v7390 = vpack.c.bf16 %v7344, %v7343
        %v7391 = vpack.c.bf16 %v7346, %v7345
        %v7392 = vpack.c.bf16 %v7348, %v7347
        %v7393 = vpack.c.bf16 %v7350, %v7349
        %v7394 = vpack.c.bf16 %v7352, %v7351
        %v7395 = vpack.c.bf16 %v7354, %v7353
        %v7396 = vpack.c.bf16 %v7356, %v7355
        %v7397 = vpack.c.bf16 %v7358, %v7357
        %v7398 = vpack.c.bf16 %v7360, %v7359
        %v7399 = vpack.c.bf16 %v7362, %v7361
        %v7400 = vpack.c.bf16 %v7364, %v7363
        %v7401 = vpack.c.bf16 %v7366, %v7365
        %v7402 = vpack.c.bf16 %v7368, %v7367
        %v7403 = vpack.c.bf16 %v7370, %v7369
        %v7404 = vpack.c.bf16 %v7372, %v7371
        %v7405 = vpack.c.bf16 %v7374, %v7373
        %v7406 = vpack.c.bf16 %v7376, %v7375
        %v7407 = vpack.c.bf16 %v7378, %v7377
        %v7408 = vpack.c.bf16 %v7380, %v7379
        %v7409 = vpack.c.bf16 %v7382, %v7381
        %v7410 = vpack.c.bf16 %v7384, %v7383
        %v7411 = vpack.c.bf16 %v7386, %v7385
        %v7412 = vpack.c.bf16 %v7388, %v7387
        %s7413 = scalar_lea.vmem [#allocation9], 320
        %v7414 = vld [vmem:[%s7413] sm:$0xf]
        %v7415 = vld [vmem:[%s7413 + $0x4] sm:$0xf]
        %v7416 = vld [vmem:[%s7413 + $0x8] sm:$0xf]
        %v7417 = vld [vmem:[%s7413 + $0xc] sm:$0xf]
        %v7418 = vld [vmem:[%s7413 + $0x10] sm:$0xf]
        %v7419 = vld [vmem:[%s7413 + $0x14] sm:$0xf]
        %v7420 = vld [vmem:[%s7413 + $0x18] sm:$0xf]
        %v7421 = vld [vmem:[%s7413 + $0x1c] sm:$0xf]
        %v7422 = vld [vmem:[%s7413 + $0x20] sm:$0xf]
        %v7423 = vld [vmem:[%s7413 + $0x24] sm:$0xf]
        %v7424 = vld [vmem:[%s7413 + $0x28] sm:$0xf]
        %v7425 = vld [vmem:[%s7413 + $0x2c] sm:$0xf]
        %v7426 = vld [vmem:[%s7413 + $0x30] sm:$0xf]
        %v7427 = vld [vmem:[%s7413 + $0x34] sm:$0xf]
        %v7428 = vld [vmem:[%s7413 + $0x38] sm:$0xf]
        %v7429 = vld [vmem:[%s7413 + $0x3c] sm:$0xf]
        %v7446 = vunpack.c.l.b16 %v7414
        %v7447 = vunpack.c.l.b16 %v7415
        %v7448 = vunpack.c.l.b16 %v7416
        %v7449 = vunpack.c.l.b16 %v7417
        %v7450 = vunpack.c.l.b16 %v7418
        %v7451 = vunpack.c.l.b16 %v7419
        %v7452 = vunpack.c.l.b16 %v7420
        %v7453 = vunpack.c.l.b16 %v7421
        %v7454 = vunpack.c.l.b16 %v7422
        %v7455 = vunpack.c.l.b16 %v7423
        %v7456 = vunpack.c.l.b16 %v7424
        %v7457 = vunpack.c.l.b16 %v7425
        %v7458 = vunpack.c.l.b16 %v7426
        %v7459 = vunpack.c.l.b16 %v7427
        %v7460 = vunpack.c.l.b16 %v7428
        %v7461 = vunpack.c.l.b16 %v7429
        %v7462 = vpack.c.b16 %v7447, %v7446
        %v7463 = vpack.c.b16 %v7449, %v7448
        %v7464 = vpack.c.b16 %v7451, %v7450
        %v7465 = vpack.c.b16 %v7453, %v7452
        %v7466 = vpack.c.b16 %v7455, %v7454
        %v7467 = vpack.c.b16 %v7457, %v7456
        %v7468 = vpack.c.b16 %v7459, %v7458
        %v7469 = vpack.c.b16 %v7461, %v7460
        %7478 = vmatprep.subr.bf16.mxu0 0
        %7479 = vmatpush1.bf16.msra.mxu0 %v7469
        %7480 = vmatprep.subr.bf16.mxu0 0
        %7481 = vmatpush1.bf16.msra.mxu0 %v7468
        %7482 = vmatprep.subr.bf16.mxu0 0
        %7483 = vmatpush1.bf16.msra.mxu0 %v7467
        %7484 = vmatprep.subr.bf16.mxu0 0
        %7485 = vmatpush1.bf16.msra.mxu0 %v7466
        %7486 = vmatprep.subr.bf16.mxu0 0
        %7487 = vmatpush1.bf16.msra.mxu0 %v7465
        %7488 = vmatprep.subr.bf16.mxu0 0
        %7489 = vmatpush1.bf16.msra.mxu0 %v7464
        %7490 = vmatprep.subr.bf16.mxu0 0
        %7491 = vmatpush1.bf16.msra.mxu0 %v7463
        %7492 = vmatprep.subr.bf16.mxu0 0
        %7493 = vmatpush1.bf16.msra.mxu0 %v7462
        %7494 = vmatprep.subr.bf16.mxu0 0
        %7495 = vmatpush2.bf16.msra.mxu0 0
        %7496 = vmatprep.subr.bf16.mxu0 0
        %7497 = vmatpush2.bf16.msra.mxu0 0
        %7498 = vmatprep.subr.bf16.mxu0 0
        %7499 = vmatpush2.bf16.msra.mxu0 0
        %7500 = vmatprep.subr.bf16.mxu0 0
        %7501 = vmatpush2.bf16.msra.mxu0 0
        %7502 = vmatprep.subr.bf16.mxu0 0
        %7503 = vmatpush2.bf16.msra.mxu0 0
        %7504 = vmatprep.subr.bf16.mxu0 0
        %7505 = vmatpush2.bf16.msra.mxu0 0
        %7506 = vmatprep.subr.bf16.mxu0 0
        %7507 = vmatpush2.bf16.msra.mxu0 0
        %7508 = vmatprep.subr.bf16.mxu0 0
        %7509 = vmatpush2.bf16.msra.mxu0 0
        %7510 = vmatprep.mubr.bf16.mxu0 0
        %7511 = vmatmul.mubr.bf16.gmra.mxu0 %v7389
        %v7512 = vpop.f32.mrf.mxu0
        %v7513 = vadd.f32 0.0, %v7512
        %v7514 = vpop.f32.mrf.mxu0
        %v7515 = vpop.f32.mrf.mxu0
        %v7516 = vadd.f32 0.0, %v7515
        %v7517 = vpop.f32.mrf.mxu0
        %7518 = vmatprep.mubr.bf16.mxu0 0
        %7519 = vmatmul.mubr.bf16.gmra.mxu0 %v7390
        %v7520 = vpop.f32.mrf.mxu0
        %v7521 = vadd.f32 0.0, %v7520
        %v7522 = vpop.f32.mrf.mxu0
        %v7523 = vpop.f32.mrf.mxu0
        %v7524 = vadd.f32 0.0, %v7523
        %v7525 = vpop.f32.mrf.mxu0
        %7526 = vmatprep.mubr.bf16.mxu0 0
        %7527 = vmatmul.mubr.bf16.gmra.mxu0 %v7391
        %v7528 = vpop.f32.mrf.mxu0
        %v7529 = vadd.f32 0.0, %v7528
        %v7530 = vpop.f32.mrf.mxu0
        %v7531 = vpop.f32.mrf.mxu0
        %v7532 = vadd.f32 0.0, %v7531
        %v7533 = vpop.f32.mrf.mxu0
        %7534 = vmatprep.mubr.bf16.mxu0 0
        %7535 = vmatmul.mubr.bf16.gmra.mxu0 %v7392
        %v7536 = vpop.f32.mrf.mxu0
        %v7537 = vadd.f32 0.0, %v7536
        %v7538 = vpop.f32.mrf.mxu0
        %v7539 = vpop.f32.mrf.mxu0
        %v7540 = vadd.f32 0.0, %v7539
        %v7541 = vpop.f32.mrf.mxu0
        %7542 = vmatprep.mubr.bf16.mxu0 0
        %7543 = vmatmul.mubr.bf16.gmra.mxu0 %v7393
        %v7544 = vpop.f32.mrf.mxu0
        %v7545 = vadd.f32 0.0, %v7544
        %v7546 = vpop.f32.mrf.mxu0
        %v7547 = vpop.f32.mrf.mxu0
        %v7548 = vadd.f32 0.0, %v7547
        %v7549 = vpop.f32.mrf.mxu0
        %7550 = vmatprep.mubr.bf16.mxu0 0
        %7551 = vmatmul.mubr.bf16.gmra.mxu0 %v7394
        %v7552 = vpop.f32.mrf.mxu0
        %v7553 = vadd.f32 0.0, %v7552
        %v7554 = vpop.f32.mrf.mxu0
        %v7555 = vpop.f32.mrf.mxu0
        %v7556 = vadd.f32 0.0, %v7555
        %v7557 = vpop.f32.mrf.mxu0
        %7558 = vmatprep.mubr.bf16.mxu0 0
        %7559 = vmatmul.mubr.bf16.gmra.mxu0 %v7395
        %v7560 = vpop.f32.mrf.mxu0
        %v7561 = vadd.f32 0.0, %v7560
        %v7562 = vpop.f32.mrf.mxu0
        %v7563 = vpop.f32.mrf.mxu0
        %v7564 = vadd.f32 0.0, %v7563
        %v7565 = vpop.f32.mrf.mxu0
        %7566 = vmatprep.mubr.bf16.mxu0 0
        %7567 = vmatmul.mubr.bf16.gmra.mxu0 %v7396
        %v7568 = vpop.f32.mrf.mxu0
        %v7569 = vadd.f32 0.0, %v7568
        %v7570 = vpop.f32.mrf.mxu0
        %v7571 = vpop.f32.mrf.mxu0
        %v7572 = vadd.f32 0.0, %v7571
        %v7573 = vpop.f32.mrf.mxu0
        %7574 = vmatprep.mubr.bf16.mxu0 0
        %7575 = vmatmul.mubr.bf16.gmra.mxu0 %v7397
        %v7576 = vpop.f32.mrf.mxu0
        %v7577 = vadd.f32 0.0, %v7576
        %v7578 = vpop.f32.mrf.mxu0
        %v7579 = vpop.f32.mrf.mxu0
        %v7580 = vadd.f32 0.0, %v7579
        %v7581 = vpop.f32.mrf.mxu0
        %7582 = vmatprep.mubr.bf16.mxu0 0
        %7583 = vmatmul.mubr.bf16.gmra.mxu0 %v7398
        %v7584 = vpop.f32.mrf.mxu0
        %v7585 = vadd.f32 0.0, %v7584
        %v7586 = vpop.f32.mrf.mxu0
        %v7587 = vpop.f32.mrf.mxu0
        %v7588 = vadd.f32 0.0, %v7587
        %v7589 = vpop.f32.mrf.mxu0
        %7590 = vmatprep.mubr.bf16.mxu0 0
        %7591 = vmatmul.mubr.bf16.gmra.mxu0 %v7399
        %v7592 = vpop.f32.mrf.mxu0
        %v7593 = vadd.f32 0.0, %v7592
        %v7594 = vpop.f32.mrf.mxu0
        %v7595 = vpop.f32.mrf.mxu0
        %v7596 = vadd.f32 0.0, %v7595
        %v7597 = vpop.f32.mrf.mxu0
        %7598 = vmatprep.mubr.bf16.mxu0 0
        %7599 = vmatmul.mubr.bf16.gmra.mxu0 %v7400
        %v7600 = vpop.f32.mrf.mxu0
        %v7601 = vadd.f32 0.0, %v7600
        %v7602 = vpop.f32.mrf.mxu0
        %v7603 = vpop.f32.mrf.mxu0
        %v7604 = vadd.f32 0.0, %v7603
        %v7605 = vpop.f32.mrf.mxu0
        %7606 = vmatprep.mubr.bf16.mxu0 0
        %7607 = vmatmul.mubr.bf16.gmra.mxu0 %v7401
        %v7608 = vpop.f32.mrf.mxu0
        %v7609 = vadd.f32 0.0, %v7608
        %v7610 = vpop.f32.mrf.mxu0
        %v7611 = vpop.f32.mrf.mxu0
        %v7612 = vadd.f32 0.0, %v7611
        %v7613 = vpop.f32.mrf.mxu0
        %7614 = vmatprep.mubr.bf16.mxu0 0
        %7615 = vmatmul.mubr.bf16.gmra.mxu0 %v7402
        %v7616 = vpop.f32.mrf.mxu0
        %v7617 = vadd.f32 0.0, %v7616
        %v7618 = vpop.f32.mrf.mxu0
        %v7619 = vpop.f32.mrf.mxu0
        %v7620 = vadd.f32 0.0, %v7619
        %v7621 = vpop.f32.mrf.mxu0
        %7622 = vmatprep.mubr.bf16.mxu0 0
        %7623 = vmatmul.mubr.bf16.gmra.mxu0 %v7403
        %v7624 = vpop.f32.mrf.mxu0
        %v7625 = vadd.f32 0.0, %v7624
        %v7626 = vpop.f32.mrf.mxu0
        %v7627 = vpop.f32.mrf.mxu0
        %v7628 = vadd.f32 0.0, %v7627
        %v7629 = vpop.f32.mrf.mxu0
        %7630 = vmatprep.mubr.bf16.mxu0 0
        %7631 = vmatmul.mubr.bf16.gmra.mxu0 %v7404
        %v7632 = vpop.f32.mrf.mxu0
        %v7633 = vadd.f32 0.0, %v7632
        %v7634 = vpop.f32.mrf.mxu0
        %v7635 = vpop.f32.mrf.mxu0
        %v7636 = vadd.f32 0.0, %v7635
        %v7637 = vpop.f32.mrf.mxu0
        %7638 = vmatprep.mubr.bf16.mxu0 0
        %7639 = vmatmul.mubr.bf16.gmra.mxu0 %v7405
        %v7640 = vpop.f32.mrf.mxu0
        %v7641 = vadd.f32 0.0, %v7640
        %v7642 = vpop.f32.mrf.mxu0
        %v7643 = vpop.f32.mrf.mxu0
        %v7644 = vadd.f32 0.0, %v7643
        %v7645 = vpop.f32.mrf.mxu0
        %7646 = vmatprep.mubr.bf16.mxu0 0
        %7647 = vmatmul.mubr.bf16.gmra.mxu0 %v7406
        %v7648 = vpop.f32.mrf.mxu0
        %v7649 = vadd.f32 0.0, %v7648
        %v7650 = vpop.f32.mrf.mxu0
        %v7651 = vpop.f32.mrf.mxu0
        %v7652 = vadd.f32 0.0, %v7651
        %v7653 = vpop.f32.mrf.mxu0
        %7654 = vmatprep.mubr.bf16.mxu0 0
        %7655 = vmatmul.mubr.bf16.gmra.mxu0 %v7407
        %v7656 = vpop.f32.mrf.mxu0
        %v7657 = vadd.f32 0.0, %v7656
        %v7658 = vpop.f32.mrf.mxu0
        %v7659 = vpop.f32.mrf.mxu0
        %v7660 = vadd.f32 0.0, %v7659
        %v7661 = vpop.f32.mrf.mxu0
        %7662 = vmatprep.mubr.bf16.mxu0 0
        %7663 = vmatmul.mubr.bf16.gmra.mxu0 %v7408
        %v7664 = vpop.f32.mrf.mxu0
        %v7665 = vadd.f32 0.0, %v7664
        %v7666 = vpop.f32.mrf.mxu0
        %v7667 = vpop.f32.mrf.mxu0
        %v7668 = vadd.f32 0.0, %v7667
        %v7669 = vpop.f32.mrf.mxu0
        %7670 = vmatprep.mubr.bf16.mxu0 0
        %7671 = vmatmul.mubr.bf16.gmra.mxu0 %v7409
        %v7672 = vpop.f32.mrf.mxu0
        %v7673 = vadd.f32 0.0, %v7672
        %v7674 = vpop.f32.mrf.mxu0
        %v7675 = vpop.f32.mrf.mxu0
        %v7676 = vadd.f32 0.0, %v7675
        %v7677 = vpop.f32.mrf.mxu0
        %7678 = vmatprep.mubr.bf16.mxu0 0
        %7679 = vmatmul.mubr.bf16.gmra.mxu0 %v7410
        %v7680 = vpop.f32.mrf.mxu0
        %v7681 = vadd.f32 0.0, %v7680
        %v7682 = vpop.f32.mrf.mxu0
        %v7683 = vpop.f32.mrf.mxu0
        %v7684 = vadd.f32 0.0, %v7683
        %v7685 = vpop.f32.mrf.mxu0
        %7686 = vmatprep.mubr.bf16.mxu0 0
        %7687 = vmatmul.mubr.bf16.gmra.mxu0 %v7411
        %v7688 = vpop.f32.mrf.mxu0
        %v7689 = vadd.f32 0.0, %v7688
        %v7690 = vpop.f32.mrf.mxu0
        %v7691 = vpop.f32.mrf.mxu0
        %v7692 = vadd.f32 0.0, %v7691
        %v7693 = vpop.f32.mrf.mxu0
        %7694 = vmatprep.mubr.bf16.mxu0 0
        %7695 = vmatmul.mubr.bf16.gmra.mxu0 %v7412
        %v7696 = vpop.f32.mrf.mxu0
        %v7697 = vadd.f32 0.0, %v7696
        %v7698 = vpop.f32.mrf.mxu0
        %v7699 = vpop.f32.mrf.mxu0
        %v7700 = vadd.f32 0.0, %v7699
        %v7701 = vpop.f32.mrf.mxu0
        %7702 = vdwg.mxu0
        %v7719 = vunpack.c.l.b16 %v7325
        %v7720 = vunpack.c.l.b16 %v7326
        %v7721 = vunpack.c.l.b16 %v7327
        %v7722 = vunpack.c.l.b16 %v7328
        %v7723 = vunpack.c.l.b16 %v7329
        %v7724 = vunpack.c.l.b16 %v7330
        %v7725 = vunpack.c.l.b16 %v7331
        %v7726 = vunpack.c.l.b16 %v7332
        %v7727 = vunpack.c.l.b16 %v7333
        %v7728 = vunpack.c.l.b16 %v7334
        %v7729 = vunpack.c.l.b16 %v7335
        %v7730 = vunpack.c.l.b16 %v7336
        %v7731 = vunpack.c.l.b16 %v7337
        %v7732 = vunpack.c.l.b16 %v7338
        %v7733 = vunpack.c.l.b16 %v7339
        %v7734 = vunpack.c.l.b16 %v7340
        %v7735 = vpack.c.b16 %v7720, %v7719
        %v7736 = vpack.c.b16 %v7722, %v7721
        %v7737 = vpack.c.b16 %v7724, %v7723
        %v7738 = vpack.c.b16 %v7726, %v7725
        %v7739 = vpack.c.b16 %v7728, %v7727
        %v7740 = vpack.c.b16 %v7730, %v7729
        %v7741 = vpack.c.b16 %v7732, %v7731
        %v7742 = vpack.c.b16 %v7734, %v7733
        %7751 = vmatprep.subr.bf16.mxu0 0
        %7752 = vmatpush1.bf16.msra.mxu0 %v7742
        %7753 = vmatprep.subr.bf16.mxu0 0
        %7754 = vmatpush1.bf16.msra.mxu0 %v7741
        %7755 = vmatprep.subr.bf16.mxu0 0
        %7756 = vmatpush1.bf16.msra.mxu0 %v7740
        %7757 = vmatprep.subr.bf16.mxu0 0
        %7758 = vmatpush1.bf16.msra.mxu0 %v7739
        %7759 = vmatprep.subr.bf16.mxu0 0
        %7760 = vmatpush1.bf16.msra.mxu0 %v7738
        %7761 = vmatprep.subr.bf16.mxu0 0
        %7762 = vmatpush1.bf16.msra.mxu0 %v7737
        %7763 = vmatprep.subr.bf16.mxu0 0
        %7764 = vmatpush1.bf16.msra.mxu0 %v7736
        %7765 = vmatprep.subr.bf16.mxu0 0
        %7766 = vmatpush1.bf16.msra.mxu0 %v7735
        %7767 = vmatprep.subr.bf16.mxu0 0
        %7768 = vmatpush2.bf16.msra.mxu0 0
        %7769 = vmatprep.subr.bf16.mxu0 0
        %7770 = vmatpush2.bf16.msra.mxu0 0
        %7771 = vmatprep.subr.bf16.mxu0 0
        %7772 = vmatpush2.bf16.msra.mxu0 0
        %7773 = vmatprep.subr.bf16.mxu0 0
        %7774 = vmatpush2.bf16.msra.mxu0 0
        %7775 = vmatprep.subr.bf16.mxu0 0
        %7776 = vmatpush2.bf16.msra.mxu0 0
        %7777 = vmatprep.subr.bf16.mxu0 0
        %7778 = vmatpush2.bf16.msra.mxu0 0
        %7779 = vmatprep.subr.bf16.mxu0 0
        %7780 = vmatpush2.bf16.msra.mxu0 0
        %7781 = vmatprep.subr.bf16.mxu0 0
        %7782 = vmatpush2.bf16.msra.mxu0 0
        %7783 = vmatprep.mubr.bf16.mxu0 0
        %7784 = vmatmul.mubr.bf16.gmra.mxu0 %v7300
        %v7785 = vpop.f32.mrf.mxu0
        %v7786 = vadd.f32 %v7513, %v7785
        %v7787 = vpop.f32.mrf.mxu0
        %v7788 = vpop.f32.mrf.mxu0
        %v7789 = vadd.f32 %v7516, %v7788
        %v7790 = vpop.f32.mrf.mxu0
        %7791 = vmatprep.mubr.bf16.mxu0 0
        %7792 = vmatmul.mubr.bf16.gmra.mxu0 %v7301
        %v7793 = vpop.f32.mrf.mxu0
        %v7794 = vadd.f32 %v7521, %v7793
        %v7795 = vpop.f32.mrf.mxu0
        %v7796 = vpop.f32.mrf.mxu0
        %v7797 = vadd.f32 %v7524, %v7796
        %v7798 = vpop.f32.mrf.mxu0
        %7799 = vmatprep.mubr.bf16.mxu0 0
        %7800 = vmatmul.mubr.bf16.gmra.mxu0 %v7302
        %v7801 = vpop.f32.mrf.mxu0
        %v7802 = vadd.f32 %v7529, %v7801
        %v7803 = vpop.f32.mrf.mxu0
        %v7804 = vpop.f32.mrf.mxu0
        %v7805 = vadd.f32 %v7532, %v7804
        %v7806 = vpop.f32.mrf.mxu0
        %7807 = vmatprep.mubr.bf16.mxu0 0
        %7808 = vmatmul.mubr.bf16.gmra.mxu0 %v7303
        %v7809 = vpop.f32.mrf.mxu0
        %v7810 = vadd.f32 %v7537, %v7809
        %v7811 = vpop.f32.mrf.mxu0
        %v7812 = vpop.f32.mrf.mxu0
        %v7813 = vadd.f32 %v7540, %v7812
        %v7814 = vpop.f32.mrf.mxu0
        %7815 = vmatprep.mubr.bf16.mxu0 0
        %7816 = vmatmul.mubr.bf16.gmra.mxu0 %v7304
        %v7817 = vpop.f32.mrf.mxu0
        %v7818 = vadd.f32 %v7545, %v7817
        %v7819 = vpop.f32.mrf.mxu0
        %v7820 = vpop.f32.mrf.mxu0
        %v7821 = vadd.f32 %v7548, %v7820
        %v7822 = vpop.f32.mrf.mxu0
        %7823 = vmatprep.mubr.bf16.mxu0 0
        %7824 = vmatmul.mubr.bf16.gmra.mxu0 %v7305
        %v7825 = vpop.f32.mrf.mxu0
        %v7826 = vadd.f32 %v7553, %v7825
        %v7827 = vpop.f32.mrf.mxu0
        %v7828 = vpop.f32.mrf.mxu0
        %v7829 = vadd.f32 %v7556, %v7828
        %v7830 = vpop.f32.mrf.mxu0
        %7831 = vmatprep.mubr.bf16.mxu0 0
        %7832 = vmatmul.mubr.bf16.gmra.mxu0 %v7306
        %v7833 = vpop.f32.mrf.mxu0
        %v7834 = vadd.f32 %v7561, %v7833
        %v7835 = vpop.f32.mrf.mxu0
        %v7836 = vpop.f32.mrf.mxu0
        %v7837 = vadd.f32 %v7564, %v7836
        %v7838 = vpop.f32.mrf.mxu0
        %7839 = vmatprep.mubr.bf16.mxu0 0
        %7840 = vmatmul.mubr.bf16.gmra.mxu0 %v7307
        %v7841 = vpop.f32.mrf.mxu0
        %v7842 = vadd.f32 %v7569, %v7841
        %v7843 = vpop.f32.mrf.mxu0
        %v7844 = vpop.f32.mrf.mxu0
        %v7845 = vadd.f32 %v7572, %v7844
        %v7846 = vpop.f32.mrf.mxu0
        %7847 = vmatprep.mubr.bf16.mxu0 0
        %7848 = vmatmul.mubr.bf16.gmra.mxu0 %v7308
        %v7849 = vpop.f32.mrf.mxu0
        %v7850 = vadd.f32 %v7577, %v7849
        %v7851 = vpop.f32.mrf.mxu0
        %v7852 = vpop.f32.mrf.mxu0
        %v7853 = vadd.f32 %v7580, %v7852
        %v7854 = vpop.f32.mrf.mxu0
        %7855 = vmatprep.mubr.bf16.mxu0 0
        %7856 = vmatmul.mubr.bf16.gmra.mxu0 %v7309
        %v7857 = vpop.f32.mrf.mxu0
        %v7858 = vadd.f32 %v7585, %v7857
        %v7859 = vpop.f32.mrf.mxu0
        %v7860 = vpop.f32.mrf.mxu0
        %v7861 = vadd.f32 %v7588, %v7860
        %v7862 = vpop.f32.mrf.mxu0
        %7863 = vmatprep.mubr.bf16.mxu0 0
        %7864 = vmatmul.mubr.bf16.gmra.mxu0 %v7310
        %v7865 = vpop.f32.mrf.mxu0
        %v7866 = vadd.f32 %v7593, %v7865
        %v7867 = vpop.f32.mrf.mxu0
        %v7868 = vpop.f32.mrf.mxu0
        %v7869 = vadd.f32 %v7596, %v7868
        %v7870 = vpop.f32.mrf.mxu0
        %7871 = vmatprep.mubr.bf16.mxu0 0
        %7872 = vmatmul.mubr.bf16.gmra.mxu0 %v7311
        %v7873 = vpop.f32.mrf.mxu0
        %v7874 = vadd.f32 %v7601, %v7873
        %v7875 = vpop.f32.mrf.mxu0
        %v7876 = vpop.f32.mrf.mxu0
        %v7877 = vadd.f32 %v7604, %v7876
        %v7878 = vpop.f32.mrf.mxu0
        %7879 = vmatprep.mubr.bf16.mxu0 0
        %7880 = vmatmul.mubr.bf16.gmra.mxu0 %v7312
        %v7881 = vpop.f32.mrf.mxu0
        %v7882 = vadd.f32 %v7609, %v7881
        %v7883 = vpop.f32.mrf.mxu0
        %v7884 = vpop.f32.mrf.mxu0
        %v7885 = vadd.f32 %v7612, %v7884
        %v7886 = vpop.f32.mrf.mxu0
        %7887 = vmatprep.mubr.bf16.mxu0 0
        %7888 = vmatmul.mubr.bf16.gmra.mxu0 %v7313
        %v7889 = vpop.f32.mrf.mxu0
        %v7890 = vadd.f32 %v7617, %v7889
        %v7891 = vpop.f32.mrf.mxu0
        %v7892 = vpop.f32.mrf.mxu0
        %v7893 = vadd.f32 %v7620, %v7892
        %v7894 = vpop.f32.mrf.mxu0
        %7895 = vmatprep.mubr.bf16.mxu0 0
        %7896 = vmatmul.mubr.bf16.gmra.mxu0 %v7314
        %v7897 = vpop.f32.mrf.mxu0
        %v7898 = vadd.f32 %v7625, %v7897
        %v7899 = vpop.f32.mrf.mxu0
        %v7900 = vpop.f32.mrf.mxu0
        %v7901 = vadd.f32 %v7628, %v7900
        %v7902 = vpop.f32.mrf.mxu0
        %7903 = vmatprep.mubr.bf16.mxu0 0
        %7904 = vmatmul.mubr.bf16.gmra.mxu0 %v7315
        %v7905 = vpop.f32.mrf.mxu0
        %v7906 = vadd.f32 %v7633, %v7905
        %v7907 = vpop.f32.mrf.mxu0
        %v7908 = vpop.f32.mrf.mxu0
        %v7909 = vadd.f32 %v7636, %v7908
        %v7910 = vpop.f32.mrf.mxu0
        %7911 = vmatprep.mubr.bf16.mxu0 0
        %7912 = vmatmul.mubr.bf16.gmra.mxu0 %v7316
        %v7913 = vpop.f32.mrf.mxu0
        %v7914 = vadd.f32 %v7641, %v7913
        %v7915 = vpop.f32.mrf.mxu0
        %v7916 = vpop.f32.mrf.mxu0
        %v7917 = vadd.f32 %v7644, %v7916
        %v7918 = vpop.f32.mrf.mxu0
        %7919 = vmatprep.mubr.bf16.mxu0 0
        %7920 = vmatmul.mubr.bf16.gmra.mxu0 %v7317
        %v7921 = vpop.f32.mrf.mxu0
        %v7922 = vadd.f32 %v7649, %v7921
        %v7923 = vpop.f32.mrf.mxu0
        %v7924 = vpop.f32.mrf.mxu0
        %v7925 = vadd.f32 %v7652, %v7924
        %v7926 = vpop.f32.mrf.mxu0
        %7927 = vmatprep.mubr.bf16.mxu0 0
        %7928 = vmatmul.mubr.bf16.gmra.mxu0 %v7318
        %v7929 = vpop.f32.mrf.mxu0
        %v7930 = vadd.f32 %v7657, %v7929
        %v7931 = vpop.f32.mrf.mxu0
        %v7932 = vpop.f32.mrf.mxu0
        %v7933 = vadd.f32 %v7660, %v7932
        %v7934 = vpop.f32.mrf.mxu0
        %7935 = vmatprep.mubr.bf16.mxu0 0
        %7936 = vmatmul.mubr.bf16.gmra.mxu0 %v7319
        %v7937 = vpop.f32.mrf.mxu0
        %v7938 = vadd.f32 %v7665, %v7937
        %v7939 = vpop.f32.mrf.mxu0
        %v7940 = vpop.f32.mrf.mxu0
        %v7941 = vadd.f32 %v7668, %v7940
        %v7942 = vpop.f32.mrf.mxu0
        %7943 = vmatprep.mubr.bf16.mxu0 0
        %7944 = vmatmul.mubr.bf16.gmra.mxu0 %v7320
        %v7945 = vpop.f32.mrf.mxu0
        %v7946 = vadd.f32 %v7673, %v7945
        %v7947 = vpop.f32.mrf.mxu0
        %v7948 = vpop.f32.mrf.mxu0
        %v7949 = vadd.f32 %v7676, %v7948
        %v7950 = vpop.f32.mrf.mxu0
        %7951 = vmatprep.mubr.bf16.mxu0 0
        %7952 = vmatmul.mubr.bf16.gmra.mxu0 %v7321
        %v7953 = vpop.f32.mrf.mxu0
        %v7954 = vadd.f32 %v7681, %v7953
        %v7955 = vpop.f32.mrf.mxu0
        %v7956 = vpop.f32.mrf.mxu0
        %v7957 = vadd.f32 %v7684, %v7956
        %v7958 = vpop.f32.mrf.mxu0
        %7959 = vmatprep.mubr.bf16.mxu0 0
        %7960 = vmatmul.mubr.bf16.gmra.mxu0 %v7322
        %v7961 = vpop.f32.mrf.mxu0
        %v7962 = vadd.f32 %v7689, %v7961
        %v7963 = vpop.f32.mrf.mxu0
        %v7964 = vpop.f32.mrf.mxu0
        %v7965 = vadd.f32 %v7692, %v7964
        %v7966 = vpop.f32.mrf.mxu0
        %7967 = vmatprep.mubr.bf16.mxu0 0
        %7968 = vmatmul.mubr.bf16.gmra.mxu0 %v7323
        %v7969 = vpop.f32.mrf.mxu0
        %v7970 = vadd.f32 %v7697, %v7969
        %v7971 = vpop.f32.mrf.mxu0
        %v7972 = vpop.f32.mrf.mxu0
        %v7973 = vadd.f32 %v7700, %v7972
        %v7974 = vpop.f32.mrf.mxu0
        %7975 = vdwg.mxu0
        %v7976 = vld [vmem:[%s1312] sm:$0xff]
        %v7977 = vld [vmem:[%s1312 + $0x8] sm:$0xff]
        %v7978 = vld [vmem:[%s1312 + $0x10] sm:$0xff]
        %v7979 = vld [vmem:[%s1312 + $0x18] sm:$0xff]
        %v7980 = vld [vmem:[%s1312 + $0x20] sm:$0xff]
        %v7981 = vld [vmem:[%s1312 + $0x28] sm:$0xff]
        %v7982 = vld [vmem:[%s1312 + $0x30] sm:$0xff]
        %v7983 = vld [vmem:[%s1312 + $0x38] sm:$0xff]
        %v7984 = vld [vmem:[%s1312 + $0x40] sm:$0xff]
        %v7985 = vld [vmem:[%s1312 + $0x48] sm:$0xff]
        %v7986 = vld [vmem:[%s1312 + $0x50] sm:$0xff]
        %v7987 = vld [vmem:[%s1312 + $0x58] sm:$0xff]
        %v7988 = vld [vmem:[%s1312 + $0x60] sm:$0xff]
        %v7989 = vld [vmem:[%s1312 + $0x68] sm:$0xff]
        %v7990 = vld [vmem:[%s1312 + $0x70] sm:$0xff]
        %v7991 = vld [vmem:[%s1312 + $0x78] sm:$0xff]
        %v7992 = vld [vmem:[%s1312 + $0x80] sm:$0xff]
        %v7993 = vld [vmem:[%s1312 + $0x88] sm:$0xff]
        %v7994 = vld [vmem:[%s1312 + $0x90] sm:$0xff]
        %v7995 = vld [vmem:[%s1312 + $0x98] sm:$0xff]
        %v7996 = vld [vmem:[%s1312 + $0xa0] sm:$0xff]
        %v7997 = vld [vmem:[%s1312 + $0xa8] sm:$0xff]
        %v7998 = vld [vmem:[%s1312 + $0xb0] sm:$0xff]
        %v7999 = vld [vmem:[%s1312 + $0xb8] sm:$0xff]
        %v8000 = vld [vmem:[%s1312 + $0xc0] sm:$0xff]
        %v8001 = vld [vmem:[%s1312 + $0xc8] sm:$0xff]
        %v8002 = vld [vmem:[%s1312 + $0xd0] sm:$0xff]
        %v8003 = vld [vmem:[%s1312 + $0xd8] sm:$0xff]
        %v8004 = vld [vmem:[%s1312 + $0xe0] sm:$0xff]
        %v8005 = vld [vmem:[%s1312 + $0xe8] sm:$0xff]
        %v8006 = vld [vmem:[%s1312 + $0xf0] sm:$0xff]
        %v8007 = vld [vmem:[%s1312 + $0xf8] sm:$0xff]
        %v8008 = vld [vmem:[%s1312 + $0x100] sm:$0xff]
        %v8009 = vld [vmem:[%s1312 + $0x108] sm:$0xff]
        %v8010 = vld [vmem:[%s1312 + $0x110] sm:$0xff]
        %v8011 = vld [vmem:[%s1312 + $0x118] sm:$0xff]
        %v8012 = vld [vmem:[%s1312 + $0x120] sm:$0xff]
        %v8013 = vld [vmem:[%s1312 + $0x128] sm:$0xff]
        %v8014 = vld [vmem:[%s1312 + $0x130] sm:$0xff]
        %v8015 = vld [vmem:[%s1312 + $0x138] sm:$0xff]
        %v8016 = vld [vmem:[%s1312 + $0x140] sm:$0xff]
        %v8017 = vld [vmem:[%s1312 + $0x148] sm:$0xff]
        %v8018 = vld [vmem:[%s1312 + $0x150] sm:$0xff]
        %v8019 = vld [vmem:[%s1312 + $0x158] sm:$0xff]
        %v8020 = vld [vmem:[%s1312 + $0x160] sm:$0xff]
        %v8021 = vld [vmem:[%s1312 + $0x168] sm:$0xff]
        %v8022 = vld [vmem:[%s1312 + $0x170] sm:$0xff]
        %v8023 = vld [vmem:[%s1312 + $0x178] sm:$0xff]
        %v8024 = vpack.c.bf16 %v7977, %v7976
        %v8025 = vpack.c.bf16 %v7979, %v7978
        %v8026 = vpack.c.bf16 %v7981, %v7980
        %v8027 = vpack.c.bf16 %v7983, %v7982
        %v8028 = vpack.c.bf16 %v7985, %v7984
        %v8029 = vpack.c.bf16 %v7987, %v7986
        %v8030 = vpack.c.bf16 %v7989, %v7988
        %v8031 = vpack.c.bf16 %v7991, %v7990
        %v8032 = vpack.c.bf16 %v7993, %v7992
        %v8033 = vpack.c.bf16 %v7995, %v7994
        %v8034 = vpack.c.bf16 %v7997, %v7996
        %v8035 = vpack.c.bf16 %v7999, %v7998
        %v8036 = vpack.c.bf16 %v8001, %v8000
        %v8037 = vpack.c.bf16 %v8003, %v8002
        %v8038 = vpack.c.bf16 %v8005, %v8004
        %v8039 = vpack.c.bf16 %v8007, %v8006
        %v8040 = vpack.c.bf16 %v8009, %v8008
        %v8041 = vpack.c.bf16 %v8011, %v8010
        %v8042 = vpack.c.bf16 %v8013, %v8012
        %v8043 = vpack.c.bf16 %v8015, %v8014
        %v8044 = vpack.c.bf16 %v8017, %v8016
        %v8045 = vpack.c.bf16 %v8019, %v8018
        %v8046 = vpack.c.bf16 %v8021, %v8020
        %v8047 = vpack.c.bf16 %v8023, %v8022
        %s8048 = scalar_lea.vmem [#allocation9], 512
        %v8049 = vld [vmem:[%s8048] sm:$0xf]
        %v8050 = vld [vmem:[%s8048 + $0x4] sm:$0xf]
        %v8051 = vld [vmem:[%s8048 + $0x8] sm:$0xf]
        %v8052 = vld [vmem:[%s8048 + $0xc] sm:$0xf]
        %v8053 = vld [vmem:[%s8048 + $0x10] sm:$0xf]
        %v8054 = vld [vmem:[%s8048 + $0x14] sm:$0xf]
        %v8055 = vld [vmem:[%s8048 + $0x18] sm:$0xf]
        %v8056 = vld [vmem:[%s8048 + $0x1c] sm:$0xf]
        %v8057 = vld [vmem:[%s8048 + $0x20] sm:$0xf]
        %v8058 = vld [vmem:[%s8048 + $0x24] sm:$0xf]
        %v8059 = vld [vmem:[%s8048 + $0x28] sm:$0xf]
        %v8060 = vld [vmem:[%s8048 + $0x2c] sm:$0xf]
        %v8061 = vld [vmem:[%s8048 + $0x30] sm:$0xf]
        %v8062 = vld [vmem:[%s8048 + $0x34] sm:$0xf]
        %v8063 = vld [vmem:[%s8048 + $0x38] sm:$0xf]
        %v8064 = vld [vmem:[%s8048 + $0x3c] sm:$0xf]
        %v8081 = vunpack.c.l.b16 %v8049
        %v8082 = vunpack.c.l.b16 %v8050
        %v8083 = vunpack.c.l.b16 %v8051
        %v8084 = vunpack.c.l.b16 %v8052
        %v8085 = vunpack.c.l.b16 %v8053
        %v8086 = vunpack.c.l.b16 %v8054
        %v8087 = vunpack.c.l.b16 %v8055
        %v8088 = vunpack.c.l.b16 %v8056
        %v8089 = vunpack.c.l.b16 %v8057
        %v8090 = vunpack.c.l.b16 %v8058
        %v8091 = vunpack.c.l.b16 %v8059
        %v8092 = vunpack.c.l.b16 %v8060
        %v8093 = vunpack.c.l.b16 %v8061
        %v8094 = vunpack.c.l.b16 %v8062
        %v8095 = vunpack.c.l.b16 %v8063
        %v8096 = vunpack.c.l.b16 %v8064
        %v8097 = vpack.c.b16 %v8082, %v8081
        %v8098 = vpack.c.b16 %v8084, %v8083
        %v8099 = vpack.c.b16 %v8086, %v8085
        %v8100 = vpack.c.b16 %v8088, %v8087
        %v8101 = vpack.c.b16 %v8090, %v8089
        %v8102 = vpack.c.b16 %v8092, %v8091
        %v8103 = vpack.c.b16 %v8094, %v8093
        %v8104 = vpack.c.b16 %v8096, %v8095
        %8113 = vmatprep.subr.bf16.mxu0 0
        %8114 = vmatpush1.bf16.msra.mxu0 %v8104
        %8115 = vmatprep.subr.bf16.mxu0 0
        %8116 = vmatpush1.bf16.msra.mxu0 %v8103
        %8117 = vmatprep.subr.bf16.mxu0 0
        %8118 = vmatpush1.bf16.msra.mxu0 %v8102
        %8119 = vmatprep.subr.bf16.mxu0 0
        %8120 = vmatpush1.bf16.msra.mxu0 %v8101
        %8121 = vmatprep.subr.bf16.mxu0 0
        %8122 = vmatpush1.bf16.msra.mxu0 %v8100
        %8123 = vmatprep.subr.bf16.mxu0 0
        %8124 = vmatpush1.bf16.msra.mxu0 %v8099
        %8125 = vmatprep.subr.bf16.mxu0 0
        %8126 = vmatpush1.bf16.msra.mxu0 %v8098
        %8127 = vmatprep.subr.bf16.mxu0 0
        %8128 = vmatpush1.bf16.msra.mxu0 %v8097
        %8129 = vmatprep.subr.bf16.mxu0 0
        %8130 = vmatpush2.bf16.msra.mxu0 0
        %8131 = vmatprep.subr.bf16.mxu0 0
        %8132 = vmatpush2.bf16.msra.mxu0 0
        %8133 = vmatprep.subr.bf16.mxu0 0
        %8134 = vmatpush2.bf16.msra.mxu0 0
        %8135 = vmatprep.subr.bf16.mxu0 0
        %8136 = vmatpush2.bf16.msra.mxu0 0
        %8137 = vmatprep.subr.bf16.mxu0 0
        %8138 = vmatpush2.bf16.msra.mxu0 0
        %8139 = vmatprep.subr.bf16.mxu0 0
        %8140 = vmatpush2.bf16.msra.mxu0 0
        %8141 = vmatprep.subr.bf16.mxu0 0
        %8142 = vmatpush2.bf16.msra.mxu0 0
        %8143 = vmatprep.subr.bf16.mxu0 0
        %8144 = vmatpush2.bf16.msra.mxu0 0
        %8145 = vmatprep.mubr.bf16.mxu0 0
        %8146 = vmatmul.mubr.bf16.gmra.mxu0 %v8024
        %v8147 = vpop.f32.mrf.mxu0
        %v8148 = vadd.f32 0.0, %v8147
        %v8149 = vpop.f32.mrf.mxu0
        %v8150 = vpop.f32.mrf.mxu0
        %v8151 = vadd.f32 0.0, %v8150
        %v8152 = vpop.f32.mrf.mxu0
        %8153 = vmatprep.mubr.bf16.mxu0 0
        %8154 = vmatmul.mubr.bf16.gmra.mxu0 %v8025
        %v8155 = vpop.f32.mrf.mxu0
        %v8156 = vadd.f32 0.0, %v8155
        %v8157 = vpop.f32.mrf.mxu0
        %v8158 = vpop.f32.mrf.mxu0
        %v8159 = vadd.f32 0.0, %v8158
        %v8160 = vpop.f32.mrf.mxu0
        %8161 = vmatprep.mubr.bf16.mxu0 0
        %8162 = vmatmul.mubr.bf16.gmra.mxu0 %v8026
        %v8163 = vpop.f32.mrf.mxu0
        %v8164 = vadd.f32 0.0, %v8163
        %v8165 = vpop.f32.mrf.mxu0
        %v8166 = vpop.f32.mrf.mxu0
        %v8167 = vadd.f32 0.0, %v8166
        %v8168 = vpop.f32.mrf.mxu0
        %8169 = vmatprep.mubr.bf16.mxu0 0
        %8170 = vmatmul.mubr.bf16.gmra.mxu0 %v8027
        %v8171 = vpop.f32.mrf.mxu0
        %v8172 = vadd.f32 0.0, %v8171
        %v8173 = vpop.f32.mrf.mxu0
        %v8174 = vpop.f32.mrf.mxu0
        %v8175 = vadd.f32 0.0, %v8174
        %v8176 = vpop.f32.mrf.mxu0
        %8177 = vmatprep.mubr.bf16.mxu0 0
        %8178 = vmatmul.mubr.bf16.gmra.mxu0 %v8028
        %v8179 = vpop.f32.mrf.mxu0
        %v8180 = vadd.f32 0.0, %v8179
        %v8181 = vpop.f32.mrf.mxu0
        %v8182 = vpop.f32.mrf.mxu0
        %v8183 = vadd.f32 0.0, %v8182
        %v8184 = vpop.f32.mrf.mxu0
        %8185 = vmatprep.mubr.bf16.mxu0 0
        %8186 = vmatmul.mubr.bf16.gmra.mxu0 %v8029
        %v8187 = vpop.f32.mrf.mxu0
        %v8188 = vadd.f32 0.0, %v8187
        %v8189 = vpop.f32.mrf.mxu0
        %v8190 = vpop.f32.mrf.mxu0
        %v8191 = vadd.f32 0.0, %v8190
        %v8192 = vpop.f32.mrf.mxu0
        %8193 = vmatprep.mubr.bf16.mxu0 0
        %8194 = vmatmul.mubr.bf16.gmra.mxu0 %v8030
        %v8195 = vpop.f32.mrf.mxu0
        %v8196 = vadd.f32 0.0, %v8195
        %v8197 = vpop.f32.mrf.mxu0
        %v8198 = vpop.f32.mrf.mxu0
        %v8199 = vadd.f32 0.0, %v8198
        %v8200 = vpop.f32.mrf.mxu0
        %8201 = vmatprep.mubr.bf16.mxu0 0
        %8202 = vmatmul.mubr.bf16.gmra.mxu0 %v8031
        %v8203 = vpop.f32.mrf.mxu0
        %v8204 = vadd.f32 0.0, %v8203
        %v8205 = vpop.f32.mrf.mxu0
        %v8206 = vpop.f32.mrf.mxu0
        %v8207 = vadd.f32 0.0, %v8206
        %v8208 = vpop.f32.mrf.mxu0
        %8209 = vmatprep.mubr.bf16.mxu0 0
        %8210 = vmatmul.mubr.bf16.gmra.mxu0 %v8032
        %v8211 = vpop.f32.mrf.mxu0
        %v8212 = vadd.f32 0.0, %v8211
        %v8213 = vpop.f32.mrf.mxu0
        %v8214 = vpop.f32.mrf.mxu0
        %v8215 = vadd.f32 0.0, %v8214
        %v8216 = vpop.f32.mrf.mxu0
        %8217 = vmatprep.mubr.bf16.mxu0 0
        %8218 = vmatmul.mubr.bf16.gmra.mxu0 %v8033
        %v8219 = vpop.f32.mrf.mxu0
        %v8220 = vadd.f32 0.0, %v8219
        %v8221 = vpop.f32.mrf.mxu0
        %v8222 = vpop.f32.mrf.mxu0
        %v8223 = vadd.f32 0.0, %v8222
        %v8224 = vpop.f32.mrf.mxu0
        %8225 = vmatprep.mubr.bf16.mxu0 0
        %8226 = vmatmul.mubr.bf16.gmra.mxu0 %v8034
        %v8227 = vpop.f32.mrf.mxu0
        %v8228 = vadd.f32 0.0, %v8227
        %v8229 = vpop.f32.mrf.mxu0
        %v8230 = vpop.f32.mrf.mxu0
        %v8231 = vadd.f32 0.0, %v8230
        %v8232 = vpop.f32.mrf.mxu0
        %8233 = vmatprep.mubr.bf16.mxu0 0
        %8234 = vmatmul.mubr.bf16.gmra.mxu0 %v8035
        %v8235 = vpop.f32.mrf.mxu0
        %v8236 = vadd.f32 0.0, %v8235
        %v8237 = vpop.f32.mrf.mxu0
        %v8238 = vpop.f32.mrf.mxu0
        %v8239 = vadd.f32 0.0, %v8238
        %v8240 = vpop.f32.mrf.mxu0
        %8241 = vmatprep.mubr.bf16.mxu0 0
        %8242 = vmatmul.mubr.bf16.gmra.mxu0 %v8036
        %v8243 = vpop.f32.mrf.mxu0
        %v8244 = vadd.f32 0.0, %v8243
        %v8245 = vpop.f32.mrf.mxu0
        %v8246 = vpop.f32.mrf.mxu0
        %v8247 = vadd.f32 0.0, %v8246
        %v8248 = vpop.f32.mrf.mxu0
        %8249 = vmatprep.mubr.bf16.mxu0 0
        %8250 = vmatmul.mubr.bf16.gmra.mxu0 %v8037
        %v8251 = vpop.f32.mrf.mxu0
        %v8252 = vadd.f32 0.0, %v8251
        %v8253 = vpop.f32.mrf.mxu0
        %v8254 = vpop.f32.mrf.mxu0
        %v8255 = vadd.f32 0.0, %v8254
        %v8256 = vpop.f32.mrf.mxu0
        %8257 = vmatprep.mubr.bf16.mxu0 0
        %8258 = vmatmul.mubr.bf16.gmra.mxu0 %v8038
        %v8259 = vpop.f32.mrf.mxu0
        %v8260 = vadd.f32 0.0, %v8259
        %v8261 = vpop.f32.mrf.mxu0
        %v8262 = vpop.f32.mrf.mxu0
        %v8263 = vadd.f32 0.0, %v8262
        %v8264 = vpop.f32.mrf.mxu0
        %8265 = vmatprep.mubr.bf16.mxu0 0
        %8266 = vmatmul.mubr.bf16.gmra.mxu0 %v8039
        %v8267 = vpop.f32.mrf.mxu0
        %v8268 = vadd.f32 0.0, %v8267
        %v8269 = vpop.f32.mrf.mxu0
        %v8270 = vpop.f32.mrf.mxu0
        %v8271 = vadd.f32 0.0, %v8270
        %v8272 = vpop.f32.mrf.mxu0
        %8273 = vmatprep.mubr.bf16.mxu0 0
        %8274 = vmatmul.mubr.bf16.gmra.mxu0 %v8040
        %v8275 = vpop.f32.mrf.mxu0
        %v8276 = vadd.f32 0.0, %v8275
        %v8277 = vpop.f32.mrf.mxu0
        %v8278 = vpop.f32.mrf.mxu0
        %v8279 = vadd.f32 0.0, %v8278
        %v8280 = vpop.f32.mrf.mxu0
        %8281 = vmatprep.mubr.bf16.mxu0 0
        %8282 = vmatmul.mubr.bf16.gmra.mxu0 %v8041
        %v8283 = vpop.f32.mrf.mxu0
        %v8284 = vadd.f32 0.0, %v8283
        %v8285 = vpop.f32.mrf.mxu0
        %v8286 = vpop.f32.mrf.mxu0
        %v8287 = vadd.f32 0.0, %v8286
        %v8288 = vpop.f32.mrf.mxu0
        %8289 = vmatprep.mubr.bf16.mxu0 0
        %8290 = vmatmul.mubr.bf16.gmra.mxu0 %v8042
        %v8291 = vpop.f32.mrf.mxu0
        %v8292 = vadd.f32 0.0, %v8291
        %v8293 = vpop.f32.mrf.mxu0
        %v8294 = vpop.f32.mrf.mxu0
        %v8295 = vadd.f32 0.0, %v8294
        %v8296 = vpop.f32.mrf.mxu0
        %8297 = vmatprep.mubr.bf16.mxu0 0
        %8298 = vmatmul.mubr.bf16.gmra.mxu0 %v8043
        %v8299 = vpop.f32.mrf.mxu0
        %v8300 = vadd.f32 0.0, %v8299
        %v8301 = vpop.f32.mrf.mxu0
        %v8302 = vpop.f32.mrf.mxu0
        %v8303 = vadd.f32 0.0, %v8302
        %v8304 = vpop.f32.mrf.mxu0
        %8305 = vmatprep.mubr.bf16.mxu0 0
        %8306 = vmatmul.mubr.bf16.gmra.mxu0 %v8044
        %v8307 = vpop.f32.mrf.mxu0
        %v8308 = vadd.f32 0.0, %v8307
        %v8309 = vpop.f32.mrf.mxu0
        %v8310 = vpop.f32.mrf.mxu0
        %v8311 = vadd.f32 0.0, %v8310
        %v8312 = vpop.f32.mrf.mxu0
        %8313 = vmatprep.mubr.bf16.mxu0 0
        %8314 = vmatmul.mubr.bf16.gmra.mxu0 %v8045
        %v8315 = vpop.f32.mrf.mxu0
        %v8316 = vadd.f32 0.0, %v8315
        %v8317 = vpop.f32.mrf.mxu0
        %v8318 = vpop.f32.mrf.mxu0
        %v8319 = vadd.f32 0.0, %v8318
        %v8320 = vpop.f32.mrf.mxu0
        %8321 = vmatprep.mubr.bf16.mxu0 0
        %8322 = vmatmul.mubr.bf16.gmra.mxu0 %v8046
        %v8323 = vpop.f32.mrf.mxu0
        %v8324 = vadd.f32 0.0, %v8323
        %v8325 = vpop.f32.mrf.mxu0
        %v8326 = vpop.f32.mrf.mxu0
        %v8327 = vadd.f32 0.0, %v8326
        %v8328 = vpop.f32.mrf.mxu0
        %8329 = vmatprep.mubr.bf16.mxu0 0
        %8330 = vmatmul.mubr.bf16.gmra.mxu0 %v8047
        %v8331 = vpop.f32.mrf.mxu0
        %v8332 = vadd.f32 0.0, %v8331
        %v8333 = vpop.f32.mrf.mxu0
        %v8334 = vpop.f32.mrf.mxu0
        %v8335 = vadd.f32 0.0, %v8334
        %v8336 = vpop.f32.mrf.mxu0
        %8337 = vdwg.mxu0
        %v8338 = vadd.f32 %v7786, %v8148
        %v8339 = vadd.f32 %v7789, %v8151
        %v8340 = vadd.f32 %v7794, %v8156
        %v8341 = vadd.f32 %v7797, %v8159
        %v8342 = vadd.f32 %v7802, %v8164
        %v8343 = vadd.f32 %v7805, %v8167
        %v8344 = vadd.f32 %v7810, %v8172
        %v8345 = vadd.f32 %v7813, %v8175
        %v8346 = vadd.f32 %v7818, %v8180
        %v8347 = vadd.f32 %v7821, %v8183
        %v8348 = vadd.f32 %v7826, %v8188
        %v8349 = vadd.f32 %v7829, %v8191
        %v8350 = vadd.f32 %v7834, %v8196
        %v8351 = vadd.f32 %v7837, %v8199
        %v8352 = vadd.f32 %v7842, %v8204
        %v8353 = vadd.f32 %v7845, %v8207
        %v8354 = vadd.f32 %v7850, %v8212
        %v8355 = vadd.f32 %v7853, %v8215
        %v8356 = vadd.f32 %v7858, %v8220
        %v8357 = vadd.f32 %v7861, %v8223
        %v8358 = vadd.f32 %v7866, %v8228
        %v8359 = vadd.f32 %v7869, %v8231
        %v8360 = vadd.f32 %v7874, %v8236
        %v8361 = vadd.f32 %v7877, %v8239
        %v8362 = vadd.f32 %v7882, %v8244
        %v8363 = vadd.f32 %v7885, %v8247
        %v8364 = vadd.f32 %v7890, %v8252
        %v8365 = vadd.f32 %v7893, %v8255
        %v8366 = vadd.f32 %v7898, %v8260
        %v8367 = vadd.f32 %v7901, %v8263
        %v8368 = vadd.f32 %v7906, %v8268
        %v8369 = vadd.f32 %v7909, %v8271
        %v8370 = vadd.f32 %v7914, %v8276
        %v8371 = vadd.f32 %v7917, %v8279
        %v8372 = vadd.f32 %v7922, %v8284
        %v8373 = vadd.f32 %v7925, %v8287
        %v8374 = vadd.f32 %v7930, %v8292
        %v8375 = vadd.f32 %v7933, %v8295
        %v8376 = vadd.f32 %v7938, %v8300
        %v8377 = vadd.f32 %v7941, %v8303
        %v8378 = vadd.f32 %v7946, %v8308
        %v8379 = vadd.f32 %v7949, %v8311
        %v8380 = vadd.f32 %v7954, %v8316
        %v8381 = vadd.f32 %v7957, %v8319
        %v8382 = vadd.f32 %v7962, %v8324
        %v8383 = vadd.f32 %v7965, %v8327
        %v8384 = vadd.f32 %v7970, %v8332
        %v8385 = vadd.f32 %v7973, %v8335
        %v8386 = vld [vmem:[#allocation3] sm:$0xff]
        %v8387 = vld [vmem:[#allocation3 + $0x8] sm:$0xff]
        %v8388 = vld [vmem:[#allocation3 + $0x10] sm:$0xff]
        %v8389 = vld [vmem:[#allocation3 + $0x18] sm:$0xff]
        %v8390 = vld [vmem:[#allocation3 + $0x20] sm:$0xff]
        %v8391 = vld [vmem:[#allocation3 + $0x28] sm:$0xff]
        %v8392 = vld [vmem:[#allocation3 + $0x30] sm:$0xff]
        %v8393 = vld [vmem:[#allocation3 + $0x38] sm:$0xff]
        %v8394 = vld [vmem:[#allocation3 + $0x40] sm:$0xff]
        %v8395 = vld [vmem:[#allocation3 + $0x48] sm:$0xff]
        %v8396 = vld [vmem:[#allocation3 + $0x50] sm:$0xff]
        %v8397 = vld [vmem:[#allocation3 + $0x58] sm:$0xff]
        %v8398 = vld [vmem:[#allocation3 + $0x60] sm:$0xff]
        %v8399 = vld [vmem:[#allocation3 + $0x68] sm:$0xff]
        %v8400 = vld [vmem:[#allocation3 + $0x70] sm:$0xff]
        %v8401 = vld [vmem:[#allocation3 + $0x78] sm:$0xff]
        %v8402 = vld [vmem:[#allocation3 + $0x80] sm:$0xff]
        %v8403 = vld [vmem:[#allocation3 + $0x88] sm:$0xff]
        %v8404 = vld [vmem:[#allocation3 + $0x90] sm:$0xff]
        %v8405 = vld [vmem:[#allocation3 + $0x98] sm:$0xff]
        %v8406 = vld [vmem:[#allocation3 + $0xa0] sm:$0xff]
        %v8407 = vld [vmem:[#allocation3 + $0xa8] sm:$0xff]
        %v8408 = vld [vmem:[#allocation3 + $0xb0] sm:$0xff]
        %v8409 = vld [vmem:[#allocation3 + $0xb8] sm:$0xff]
        %v8410 = vld [vmem:[#allocation3 + $0xc0] sm:$0xff]
        %v8411 = vld [vmem:[#allocation3 + $0xc8] sm:$0xff]
        %v8412 = vld [vmem:[#allocation3 + $0xd0] sm:$0xff]
        %v8413 = vld [vmem:[#allocation3 + $0xd8] sm:$0xff]
        %v8414 = vld [vmem:[#allocation3 + $0xe0] sm:$0xff]
        %v8415 = vld [vmem:[#allocation3 + $0xe8] sm:$0xff]
        %v8416 = vld [vmem:[#allocation3 + $0xf0] sm:$0xff]
        %v8417 = vld [vmem:[#allocation3 + $0xf8] sm:$0xff]
        %v8466 = vrot.slane %v8338, 2
        %v8467 = vrot.slane %v8339, 2
        %v8468 = vsel %vm4392, %v8466, %v8467
        %v8469 = vrot.slane %v8340, 2
        %v8470 = vsel %vm4392, %v8467, %v8469
        %v8471 = vrot.slane %v8341, 2
        %v8472 = vrot.slane %v8342, 2
        %v8473 = vsel %vm4392, %v8471, %v8472
        %v8474 = vrot.slane %v8343, 2
        %v8475 = vsel %vm4392, %v8472, %v8474
        %v8476 = vrot.slane %v8344, 2
        %v8477 = vrot.slane %v8345, 2
        %v8478 = vsel %vm4392, %v8476, %v8477
        %v8479 = vrot.slane %v8346, 2
        %v8480 = vsel %vm4392, %v8477, %v8479
        %v8481 = vrot.slane %v8347, 2
        %v8482 = vrot.slane %v8348, 2
        %v8483 = vsel %vm4392, %v8481, %v8482
        %v8484 = vrot.slane %v8349, 2
        %v8485 = vsel %vm4392, %v8482, %v8484
        %v8486 = vrot.slane %v8350, 2
        %v8487 = vrot.slane %v8351, 2
        %v8488 = vsel %vm4392, %v8486, %v8487
        %v8489 = vrot.slane %v8352, 2
        %v8490 = vsel %vm4392, %v8487, %v8489
        %v8491 = vrot.slane %v8353, 2
        %v8492 = vrot.slane %v8354, 2
        %v8493 = vsel %vm4392, %v8491, %v8492
        %v8494 = vrot.slane %v8355, 2
        %v8495 = vsel %vm4392, %v8492, %v8494
        %v8496 = vrot.slane %v8356, 2
        %v8497 = vrot.slane %v8357, 2
        %v8498 = vsel %vm4392, %v8496, %v8497
        %v8499 = vrot.slane %v8358, 2
        %v8500 = vsel %vm4392, %v8497, %v8499
        %v8501 = vrot.slane %v8359, 2
        %v8502 = vrot.slane %v8360, 2
        %v8503 = vsel %vm4392, %v8501, %v8502
        %v8504 = vrot.slane %v8361, 2
        %v8505 = vsel %vm4392, %v8502, %v8504
        %v8506 = vrot.slane %v8362, 2
        %v8507 = vrot.slane %v8363, 2
        %v8508 = vsel %vm4392, %v8506, %v8507
        %v8509 = vrot.slane %v8364, 2
        %v8510 = vsel %vm4392, %v8507, %v8509
        %v8511 = vrot.slane %v8365, 2
        %v8512 = vrot.slane %v8366, 2
        %v8513 = vsel %vm4392, %v8511, %v8512
        %v8514 = vrot.slane %v8367, 2
        %v8515 = vsel %vm4392, %v8512, %v8514
        %v8516 = vrot.slane %v8368, 2
        %v8517 = vrot.slane %v8369, 2
        %v8518 = vsel %vm4392, %v8516, %v8517
        %v8519 = vrot.slane %v8370, 2
        %v8520 = vsel %vm4392, %v8517, %v8519
        %v8521 = vrot.slane %v8371, 2
        %v8522 = vrot.slane %v8372, 2
        %v8523 = vsel %vm4392, %v8521, %v8522
        %v8524 = vrot.slane %v8373, 2
        %v8525 = vsel %vm4392, %v8522, %v8524
        %v8526 = vrot.slane %v8374, 2
        %v8527 = vrot.slane %v8375, 2
        %v8528 = vsel %vm4392, %v8526, %v8527
        %v8529 = vrot.slane %v8376, 2
        %v8530 = vsel %vm4392, %v8527, %v8529
        %v8531 = vrot.slane %v8377, 2
        %v8532 = vrot.slane %v8378, 2
        %v8533 = vsel %vm4392, %v8531, %v8532
        %v8534 = vrot.slane %v8379, 2
        %v8535 = vsel %vm4392, %v8532, %v8534
        %v8536 = vrot.slane %v8380, 2
        %v8537 = vrot.slane %v8381, 2
        %v8538 = vsel %vm4392, %v8536, %v8537
        %v8539 = vrot.slane %v8382, 2
        %v8540 = vsel %vm4392, %v8537, %v8539
        %v8541 = vrot.slane %v8383, 2
        %v8542 = vrot.slane %v8384, 2
        %v8543 = vsel %vm4392, %v8541, %v8542
        %v8544 = vrot.slane %v8385, 2
        %v8545 = vsel %vm4392, %v8542, %v8544
        %v8578 = vadd.f32 %v8386, %v8468
        %v8579 = vadd.f32 %v8387, %v8470
        %v8580 = vadd.f32 %v8388, %v8473
        %v8581 = vadd.f32 %v8389, %v8475
        %v8582 = vadd.f32 %v8390, %v8478
        %v8583 = vadd.f32 %v8391, %v8480
        %v8584 = vadd.f32 %v8392, %v8483
        %v8585 = vadd.f32 %v8393, %v8485
        %v8586 = vadd.f32 %v8394, %v8488
        %v8587 = vadd.f32 %v8395, %v8490
        %v8588 = vadd.f32 %v8396, %v8493
        %v8589 = vadd.f32 %v8397, %v8495
        %v8590 = vadd.f32 %v8398, %v8498
        %v8591 = vadd.f32 %v8399, %v8500
        %v8592 = vadd.f32 %v8400, %v8503
        %v8593 = vadd.f32 %v8401, %v8505
        %v8594 = vadd.f32 %v8402, %v8508
        %v8595 = vadd.f32 %v8403, %v8510
        %v8596 = vadd.f32 %v8404, %v8513
        %v8597 = vadd.f32 %v8405, %v8515
        %v8598 = vadd.f32 %v8406, %v8518
        %v8599 = vadd.f32 %v8407, %v8520
        %v8600 = vadd.f32 %v8408, %v8523
        %v8601 = vadd.f32 %v8409, %v8525
        %v8602 = vadd.f32 %v8410, %v8528
        %v8603 = vadd.f32 %v8411, %v8530
        %v8604 = vadd.f32 %v8412, %v8533
        %v8605 = vadd.f32 %v8413, %v8535
        %v8606 = vadd.f32 %v8414, %v8538
        %v8607 = vadd.f32 %v8415, %v8540
        %v8608 = vadd.f32 %v8416, %v8543
        %v8609 = vadd.f32 %v8417, %v8545
        %8610 = vst [vmem:[#allocation3] sm:$0xff] %v8578
        %8611 = vst [vmem:[#allocation3 + $0x8] sm:$0xff] %v8579
        %8612 = vst [vmem:[#allocation3 + $0x10] sm:$0xff] %v8580
        %8613 = vst [vmem:[#allocation3 + $0x18] sm:$0xff] %v8581
        %8614 = vst [vmem:[#allocation3 + $0x20] sm:$0xff] %v8582
        %8615 = vst [vmem:[#allocation3 + $0x28] sm:$0xff] %v8583
        %8616 = vst [vmem:[#allocation3 + $0x30] sm:$0xff] %v8584
        %8617 = vst [vmem:[#allocation3 + $0x38] sm:$0xff] %v8585
        %8618 = vst [vmem:[#allocation3 + $0x40] sm:$0xff] %v8586
        %8619 = vst [vmem:[#allocation3 + $0x48] sm:$0xff] %v8587
        %8620 = vst [vmem:[#allocation3 + $0x50] sm:$0xff] %v8588
        %8621 = vst [vmem:[#allocation3 + $0x58] sm:$0xff] %v8589
        %8622 = vst [vmem:[#allocation3 + $0x60] sm:$0xff] %v8590
        %8623 = vst [vmem:[#allocation3 + $0x68] sm:$0xff] %v8591
        %8624 = vst [vmem:[#allocation3 + $0x70] sm:$0xff] %v8592
        %8625 = vst [vmem:[#allocation3 + $0x78] sm:$0xff] %v8593
        %8626 = vst [vmem:[#allocation3 + $0x80] sm:$0xff] %v8594
        %8627 = vst [vmem:[#allocation3 + $0x88] sm:$0xff] %v8595
        %8628 = vst [vmem:[#allocation3 + $0x90] sm:$0xff] %v8596
        %8629 = vst [vmem:[#allocation3 + $0x98] sm:$0xff] %v8597
        %8630 = vst [vmem:[#allocation3 + $0xa0] sm:$0xff] %v8598
        %8631 = vst [vmem:[#allocation3 + $0xa8] sm:$0xff] %v8599
        %8632 = vst [vmem:[#allocation3 + $0xb0] sm:$0xff] %v8600
        %8633 = vst [vmem:[#allocation3 + $0xb8] sm:$0xff] %v8601
        %8634 = vst [vmem:[#allocation3 + $0xc0] sm:$0xff] %v8602
        %8635 = vst [vmem:[#allocation3 + $0xc8] sm:$0xff] %v8603
        %8636 = vst [vmem:[#allocation3 + $0xd0] sm:$0xff] %v8604
        %8637 = vst [vmem:[#allocation3 + $0xd8] sm:$0xff] %v8605
        %8638 = vst [vmem:[#allocation3 + $0xe0] sm:$0xff] %v8606
        %8639 = vst [vmem:[#allocation3 + $0xe8] sm:$0xff] %v8607
        %8640 = vst [vmem:[#allocation3 + $0xf0] sm:$0xff] %v8608
        %8641 = vst [vmem:[#allocation3 + $0xf8] sm:$0xff] %v8609
        %v8642 = vld [vmem:[#allocation3] sm:$0xff]
        %v8643 = vld [vmem:[#allocation3 + $0x8] sm:$0xff]
        %v8644 = vld [vmem:[#allocation3 + $0x10] sm:$0xff]
        %v8645 = vld [vmem:[#allocation3 + $0x18] sm:$0xff]
        %v8646 = vld [vmem:[#allocation3 + $0x20] sm:$0xff]
        %v8647 = vld [vmem:[#allocation3 + $0x28] sm:$0xff]
        %v8648 = vld [vmem:[#allocation3 + $0x30] sm:$0xff]
        %v8649 = vld [vmem:[#allocation3 + $0x38] sm:$0xff]
        %v8650 = vld [vmem:[#allocation3 + $0x40] sm:$0xff]
        %v8651 = vld [vmem:[#allocation3 + $0x48] sm:$0xff]
        %v8652 = vld [vmem:[#allocation3 + $0x50] sm:$0xff]
        %v8653 = vld [vmem:[#allocation3 + $0x58] sm:$0xff]
        %v8654 = vld [vmem:[#allocation3 + $0x60] sm:$0xff]
        %v8655 = vld [vmem:[#allocation3 + $0x68] sm:$0xff]
        %v8656 = vld [vmem:[#allocation3 + $0x70] sm:$0xff]
        %v8657 = vld [vmem:[#allocation3 + $0x78] sm:$0xff]
        %v8658 = vld [vmem:[#allocation3 + $0x80] sm:$0xff]
        %v8659 = vld [vmem:[#allocation3 + $0x88] sm:$0xff]
        %v8660 = vld [vmem:[#allocation3 + $0x90] sm:$0xff]
        %v8661 = vld [vmem:[#allocation3 + $0x98] sm:$0xff]
        %v8662 = vld [vmem:[#allocation3 + $0xa0] sm:$0xff]
        %v8663 = vld [vmem:[#allocation3 + $0xa8] sm:$0xff]
        %v8664 = vld [vmem:[#allocation3 + $0xb0] sm:$0xff]
        %v8665 = vld [vmem:[#allocation3 + $0xb8] sm:$0xff]
        %v8666 = vld [vmem:[#allocation3 + $0xc0] sm:$0xff]
        %v8667 = vld [vmem:[#allocation3 + $0xc8] sm:$0xff]
        %v8668 = vld [vmem:[#allocation3 + $0xd0] sm:$0xff]
        %v8669 = vld [vmem:[#allocation3 + $0xd8] sm:$0xff]
        %v8670 = vld [vmem:[#allocation3 + $0xe0] sm:$0xff]
        %v8671 = vld [vmem:[#allocation3 + $0xe8] sm:$0xff]
        %v8672 = vld [vmem:[#allocation3 + $0xf0] sm:$0xff]
        %v8673 = vld [vmem:[#allocation3 + $0xf8] sm:$0xff]
        %8674 = vst [vmem:[%s298] sm:$0xff] %v8642
        %8675 = vst [vmem:[%s298 + $0x8] sm:$0xff] %v8643
        %8676 = vst [vmem:[%s298 + $0x10] sm:$0xff] %v8644
        %8677 = vst [vmem:[%s298 + $0x18] sm:$0xff] %v8645
        %8678 = vst [vmem:[%s298 + $0x20] sm:$0xff] %v8646
        %8679 = vst [vmem:[%s298 + $0x28] sm:$0xff] %v8647
        %8680 = vst [vmem:[%s298 + $0x30] sm:$0xff] %v8648
        %8681 = vst [vmem:[%s298 + $0x38] sm:$0xff] %v8649
        %8682 = vst [vmem:[%s298 + $0x40] sm:$0xff] %v8650
        %8683 = vst [vmem:[%s298 + $0x48] sm:$0xff] %v8651
        %8684 = vst [vmem:[%s298 + $0x50] sm:$0xff] %v8652
        %8685 = vst [vmem:[%s298 + $0x58] sm:$0xff] %v8653
        %8686 = vst [vmem:[%s298 + $0x60] sm:$0xff] %v8654
        %8687 = vst [vmem:[%s298 + $0x68] sm:$0xff] %v8655
        %8688 = vst [vmem:[%s298 + $0x70] sm:$0xff] %v8656
        %8689 = vst [vmem:[%s298 + $0x78] sm:$0xff] %v8657
        %8690 = vst [vmem:[%s298 + $0x80] sm:$0xff] %v8658
        %8691 = vst [vmem:[%s298 + $0x88] sm:$0xff] %v8659
        %8692 = vst [vmem:[%s298 + $0x90] sm:$0xff] %v8660
        %8693 = vst [vmem:[%s298 + $0x98] sm:$0xff] %v8661
        %8694 = vst [vmem:[%s298 + $0xa0] sm:$0xff] %v8662
        %8695 = vst [vmem:[%s298 + $0xa8] sm:$0xff] %v8663
        %8696 = vst [vmem:[%s298 + $0xb0] sm:$0xff] %v8664
        %8697 = vst [vmem:[%s298 + $0xb8] sm:$0xff] %v8665
        %8698 = vst [vmem:[%s298 + $0xc0] sm:$0xff] %v8666
        %8699 = vst [vmem:[%s298 + $0xc8] sm:$0xff] %v8667
        %8700 = vst [vmem:[%s298 + $0xd0] sm:$0xff] %v8668
        %8701 = vst [vmem:[%s298 + $0xd8] sm:$0xff] %v8669
        %8702 = vst [vmem:[%s298 + $0xe0] sm:$0xff] %v8670
        %8703 = vst [vmem:[%s298 + $0xe8] sm:$0xff] %v8671
        %8704 = vst [vmem:[%s298 + $0xf0] sm:$0xff] %v8672
        %8705 = vst [vmem:[%s298 + $0xf8] sm:$0xff] %v8673
        %s8706 = sand.u32 %s163, 1
        %s8707 = scalar_lea.sflag [#allocation6], %s8706
        %s8708 = sand.u32 %s163, 1
        %s8709 = smul.addr %s8708, 256
        %s8710 = scalar_lea.vmem [#allocation10], %s8709
        // Predicated region
        $region57: #{tpu_custom_call.1} parent=43 // pred_check
          %p8711 = pneg %p173
        $region58: #{tpu_custom_call.1} parent=43 // pred_check_branch
          %8713 = sbr.rel (%p8711) target = $region60
        $region59: #{tpu_custom_call.1} parent=43 // pred_region
          %s8715 = ssub.s32 4096, 4096
          %8716 = vsyncadd %s8707, %s8715
          %s8717 = smul.addr %s24, 32
          %s8718 = smul.addr %s8717, 128
          %s8719 = scalar_lea.hbm %s6, %s8718
          %s8720 = sshll.u32 %s8710, 4
          %s8721 = int_to_ptr.vmem [resolvable:$true] %s8720
          %8726 = dma.vmem_to_hbm [thread:$0]  %s8721, 4096, %s8719, %s8707, 128, 128, 8
        $region60: #{tpu_custom_call.1} parent=43 // pred_fallthru
          _
      $region44: #{tpu_custom_call.1} parent=5 // pred_fallthru
        _
      %p8727 = scmp.le.s32.totalorder 2, %s19
      // Predicated region
      $region61: #{tpu_custom_call.1} parent=5 // pred_check
        %p8728 = pneg %p8727
      $region62: #{tpu_custom_call.1} parent=5 // pred_check_branch
        %8730 = sbr.rel (%p8728) target = $region64
      $region63: #{tpu_custom_call.1} parent=5 // pred_region
        %s8731 = ssub.s32 %s19, 2
        // Predicated region
        $region65: #{tpu_custom_call.1} parent=63 // pred_check
          %p8732 = pneg %p179
        $region66: #{tpu_custom_call.1} parent=63 // pred_check_branch
          %8734 = sbr.rel (%p8732) target = $region68
        $region67: #{tpu_custom_call.1} parent=63 // pred_region
          %s8735 = sand.u32 %s164, 1
          %s8736 = scalar_lea.sflag [#allocation6], %s8735
          %s8737 = sand.u32 %s164, 1
          %s8738 = smul.addr %s8737, 256
          %s8739 = scalar_lea.vmem [#allocation10], %s8738
          %8740 = dma.done %s8736, 4096
        $region68: #{tpu_custom_call.1} parent=63 // pred_fallthru
          _
      $region64: #{tpu_custom_call.1} parent=5 // pred_fallthru
        _
    $region6: #{tpu_custom_call.1} parent=1 // loop_footer
      %s23 = sadd.s32 1, %s19
    $region7: #{tpu_custom_call.1} parent=1 // loop_footer_branch
      %18 = sbr.rel target = $region3
    $region8: #{tpu_custom_call.1} parent=1 // loop_exit
      _
    %8741 = vsyncpa [#allocation5], 1
    %s8742 = scalar_lea.sflag [#allocation5], 1
    %8743 = vsyncpa %s8742, 1
    %8744 = vsyncpa [#allocation8], 1
    %8745 = vsyncpa [#allocation6], 1
    %s8746 = scalar_lea.sflag [#allocation6], 1
    %8747 = vsyncpa %s8746, 1

</llo_original>
